<compile_context>
chip_gen: v6e
topology: v6e:2x2x1
jax: 0.10.0
libtpu: 0.0.40
codegen_flags: <defaults>
</compile_context>

<pallas_src>
import jax
import jax.numpy as jnp
from jax.experimental import pallas as pl
from jax.experimental.pallas import tpu as pltpu


# ----------------------- in-kernel building blocks --------------------------

def _pad_hw(a, top, bottom, left, right):
    """Zero-pad dims 1 (H) and 2 (W) of an (N, H, W, C) value.

    Uses jnp.concatenate with zero splats (robust Mosaic lowering) instead of
    lax.pad."""
    n, h, w, c = a.shape
    dt = a.dtype
    if top or bottom:
        parts = ([jnp.zeros((n, top, w, c), dt)] if top else []) + [a] + \
                ([jnp.zeros((n, bottom, w, c), dt)] if bottom else [])
        a = jnp.concatenate(parts, axis=1)
        h = h + top + bottom
    if left or right:
        parts = ([jnp.zeros((n, h, left, c), dt)] if left else []) + [a] + \
                ([jnp.zeros((n, h, right, c), dt)] if right else [])
        a = jnp.concatenate(parts, axis=2)
    return a


def _conv3x3_s1(a2d, w_ref, n, h, w):
    """3x3, stride-1, pad-1 conv, in-kernel im2col.

    a2d: (n*h*w, cin) f32 value; w_ref: (9, cin, cout) bf16 ref.
    9 unit-stride tap slices of the padded activation, each a bf16xbf16->f32
    sub-matmul accumulated in f32 (no HBM patch matrix)."""
    cin = a2d.shape[-1]
    cout = w_ref.shape[-1]
    ap = _pad_hw(a2d.reshape(n, h, w, cin), 1, 1, 1, 1)
    acc = jnp.zeros((n * h * w, cout), jnp.float32)
    for dh in range(3):
        for dw in range(3):
            tap = ap[:, dh:dh + h, dw:dw + w, :].reshape(n * h * w, cin)
            acc += jnp.dot(tap.astype(jnp.bfloat16), w_ref[3 * dh + dw],
                           preferred_element_type=jnp.float32)
    return acc


def _conv3x3_s2_slabs(slabs, w_ref, n, ho, wo):
    """3x3, stride-2, pad-1 conv from space-to-depth slabs.

    slabs[(i, j)][b, oh, ow, :] == relu(bn1(x))[b, 2*oh + i, 2*ow + j, :].
    Input row for tap dh is 2*oh + dh - 1 = 2*(oh + r) + s with
    (s, r) = (1, -1), (0, 0), (1, 0) for dh = 0, 1, 2 — i.e. every tap is a
    unit-stride slice of a (top/left zero-padded) slab."""
    cin = slabs[(0, 0)].shape[-1]
    cout = w_ref.shape[-1]
    padded = {k: _pad_hw(v, 1, 0, 1, 0) for k, v in slabs.items()}
    sel = {0: (1, -1), 1: (0, 0), 2: (1, 0)}          # dh/dw -> (s, r)
    acc = jnp.zeros((n * ho * wo, cout), jnp.float32)
    for dh in range(3):
        si, ri = sel[dh]
        for dw in range(3):
            sj, rj = sel[dw]
            tap = padded[(si, sj)][:, 1 + ri:1 + ri + ho, 1 + rj:1 + rj + wo, :]
            tap = tap.reshape(n * ho * wo, cin)
            acc += jnp.dot(tap.astype(jnp.bfloat16), w_ref[3 * dh + dw],
                           preferred_element_type=jnp.float32)
    return acc


def _make_network_block_kernel(n_batch, blocks):
    """Fused NetworkBlock kernel factory.

    blocks: per-BasicBlock static meta (cin, cout, stride, equal_in_out,
    h_out, w_out).  Ref order: block-0 input slab(s), then per block
    [s1, b1, w1 (bn2-scale folded, bf16), b2, w2 (bf16), (w_short bf16)],
    finally the (M, Cout) f32 output ref."""

    def kernel(*refs):
        refs = list(refs)
        out_ref = refs.pop()
        it = iter(refs)

        xb = None                                    # running (M, C) f32 value
        slab_refs = None
        for bi, blk in enumerate(blocks):
            cin, cout = blk["cin"], blk["cout"]
            ho, wo = blk["h_out"], blk["w_out"]
            m = n_batch * ho * wo

            if bi == 0:
                n_slabs = 4 if blk["stride"] == 2 else 1
                slab_refs = [next(it) for _ in range(n_slabs)]

            s1 = next(it)[...]
            b1 = next(it)[...]
            w1_ref = next(it)
            b2 = next(it)[...]
            w2_ref = next(it)
            wsc_ref = None if blk["equal_in_out"] else next(it)

            if bi == 0 and blk["stride"] == 2:
                # bn1 + ReLU prologue on the four space-to-depth slabs (exact:
                # zero padding is added after the ReLU inside the conv helper).
                s1b, b1b = s1.reshape(1, 1, 1, cin), b1.reshape(1, 1, 1, cin)
                slabs = {
                    ij: jnp.maximum(r[...] * s1b + b1b, 0.0)
                    for ij, r in zip(((0, 0), (0, 1), (1, 0), (1, 1)),
                                     slab_refs)
                }
                h = _conv3x3_s2_slabs(slabs, w1_ref, n_batch, ho, wo)
                # 1x1 stride-2 shortcut == matmul on the (0, 0) slab.
                residual = jnp.dot(
                    slabs[(0, 0)].reshape(m, cin).astype(jnp.bfloat16),
                    wsc_ref[...], preferred_element_type=jnp.float32)
            else:
                if bi == 0:                          # stride-1 first block
                    xb = slab_refs[0][...].reshape(m, cin)
                a1 = jnp.maximum(xb * s1 + b1, 0.0)
                if blk["equal_in_out"]:
                    residual = xb                    # identity (pre-bn1 input)
                else:
                    residual = jnp.dot(a1.astype(jnp.bfloat16), wsc_ref[...],
                                       preferred_element_type=jnp.float32)
                h = _conv3x3_s1(a1, w1_ref, n_batch, ho, wo)

            a2 = jnp.maximum(h + b2, 0.0)            # bn2 scale folded into w1
            # TODO(synk): dropout between relu2 and conv2 is identity
            #             (dropRate = 0.0), so nothing to do here.
            xb = _conv3x3_s1(a2, w2_ref, n_batch, ho, wo) + residual

        out_ref[...] = xb

    return kernel


# ----------------------------- wrapper ---------------------------------------

def network_block_forward(x_nchw, params):
    """NetworkBlock forward (inference).  x_nchw: (N, C, H, W) f32."""
    x = jnp.transpose(x_nchw, (0, 2, 3, 1)).astype(jnp.float32)   # NCHW -> NHWC
    n, h, w, _ = x.shape

    args, blocks = [], []
    for bi, p in enumerate(params):
        cin, cout = p["w1"].shape[2], p["w1"].shape[3]
        stride = p["stride"] if bi == 0 else 1
        if stride not in (1, 2):
            raise NotImplementedError("stride must be 1 or 2")
        if stride != 1 and p["equal_in_out"]:
            raise ValueError("identity shortcut with stride > 1 is ill-formed "
                             "(same limitation as the PyTorch module)")
        ho, wo = h // stride, w // stride
        blocks.append(dict(cin=cin, cout=cout, stride=stride,
                           equal_in_out=p["equal_in_out"], h_out=ho, w_out=wo))

        if bi == 0:
            if stride == 2:
                assert h % 2 == 0 and w % 2 == 0
                # Space-to-depth x[:, i::2, j::2, :]: same bytes as x, done
                # once outside; makes every in-kernel tap a unit-stride slice.
                xs = x.reshape(n, ho, 2, wo, 2, cin)
                args += [xs[:, :, 0, :, 0, :], xs[:, :, 0, :, 1, :],
                         xs[:, :, 1, :, 0, :], xs[:, :, 1, :, 1, :]]
            else:
                args.append(x)

        s1, b1 = p["bn1"]
        s2, b2 = p["bn2"]
        args += [
            s1.reshape(1, cin).astype(jnp.float32),
            b1.reshape(1, cin).astype(jnp.float32),
            # bn2 scale folded into w1 (f32 fold, bf16 for the MXU).
            (p["w1"] * s2).reshape(9, cin, cout).astype(jnp.bfloat16),
            b2.reshape(1, cout).astype(jnp.float32),
            p["w2"].reshape(9, cout, cout).astype(jnp.bfloat16),
        ]
        if not p["equal_in_out"]:
            args.append(p["w_short"].astype(jnp.bfloat16))
        h, w = ho, wo

    cout = blocks[-1]["cout"]
    kernel = _make_network_block_kernel(n, blocks)
    vmem = pl.BlockSpec(memory_space=pltpu.MemorySpace.VMEM)
    out2d = pl.pallas_call(
        kernel,
        out_shape=jax.ShapeDtypeStruct((n * h * w, cout), jnp.float32),
        in_specs=[vmem] * len(args),
        out_specs=vmem,
    )(*args)
    return jnp.transpose(out2d.reshape(n, h, w, cout), (0, 3, 1, 2))


# ----------------------------- parameters ------------------------------------

def fold_bn(gamma, beta, mean, var, eps=1e-5):
    scale = gamma / jnp.sqrt(var + eps)
    return scale, beta - mean * scale


def init_basic_block(key, in_planes, out_planes, stride):
    ks = jax.random.split(key, 11)
    p = {
        "stride": stride,
        "equal_in_out": in_planes == out_planes,
        "bn1": fold_bn(1.0 + 0.1 * jax.random.normal(ks[0], (in_planes,)),
                       0.1 * jax.random.normal(ks[1], (in_planes,)),
                       0.1 * jax.random.normal(ks[2], (in_planes,)),
                       jnp.abs(jax.random.normal(ks[3], (in_planes,))) + 0.5),
        "w1": 0.1 * jax.random.normal(ks[4], (3, 3, in_planes, out_planes)),
        "bn2": fold_bn(1.0 + 0.1 * jax.random.normal(ks[5], (out_planes,)),
                       0.1 * jax.random.normal(ks[6], (out_planes,)),
                       0.1 * jax.random.normal(ks[7], (out_planes,)),
                       jnp.abs(jax.random.normal(ks[8], (out_planes,))) + 0.5),
        "w2": 0.1 * jax.random.normal(ks[9], (3, 3, out_planes, out_planes)),
    }
    if not p["equal_in_out"]:
        p["w_short"] = 0.1 * jax.random.normal(ks[10], (in_planes, out_planes))
    return p


def init_network_block(key, nb_layers, in_planes, out_planes, stride):
    keys = jax.random.split(key, nb_layers)
    return [init_basic_block(keys[i],
                             in_planes if i == 0 else out_planes,
                             out_planes,
                             stride if i == 0 else 1)
            for i in range(nb_layers)]


# ----------------------------- references ------------------------------------

def _ref_conv(x, w, stride, pad):
    return jax.lax.conv_general_dilated(
        x, w, (stride, stride), pad,
        dimension_numbers=("NHWC", "HWIO", "NHWC"),
        preferred_element_type=jnp.float32)


def _ref_forward_matched(x_nchw, params):
    """Pure-JAX reference with the kernel's quantization points (bf16 MXU
    operands, bn2 scale folded into w1, f32 accumulation/epilogues)."""
    x = jnp.transpose(x_nchw, (0, 2, 3, 1)).astype(jnp.float32)
    for p in params:
        s1, b1 = p["bn1"]
        s2, b2 = p["bn2"]
        a1 = jnp.maximum(x * s1 + b1, 0.0).astype(jnp.bfloat16)
        if p["equal_in_out"]:
            residual = x
        else:
            residual = _ref_conv(a1,
                                 p["w_short"][None, None].astype(jnp.bfloat16),
                                 p["stride"], ((0, 0), (0, 0)))
        h = _ref_conv(a1, (p["w1"] * s2).astype(jnp.bfloat16), p["stride"],
                      ((1, 1), (1, 1)))
        a2 = jnp.maximum(h + b2, 0.0).astype(jnp.bfloat16)
        x = _ref_conv(a2, p["w2"].astype(jnp.bfloat16), 1, ((1, 1), (1, 1))) \
            + residual
    return jnp.transpose(x, (0, 3, 1, 2))


def _ref_forward_f32(x_nchw, params):
    """Exact f32 reference (PyTorch semantics) for a loose sanity check."""
    x = jnp.transpose(x_nchw, (0, 2, 3, 1)).astype(jnp.float32)
    for p in params:
        s1, b1 = p["bn1"]
        s2, b2 = p["bn2"]
        a1 = jnp.maximum(x * s1 + b1, 0.0)
        if p["equal_in_out"]:
            residual = x
        else:
            residual = _ref_conv(a1, p["w_short"][None, None], p["stride"],
                                 ((0, 0), (0, 0)))
        h = _ref_conv(a1, p["w1"], p["stride"], ((1, 1), (1, 1)))
        a2 = jnp.maximum(h * s2 + b2, 0.0)
        x = _ref_conv(a2, p["w2"], 1, ((1, 1), (1, 1))) + residual
    return jnp.transpose(x, (0, 3, 1, 2))


# --------------------------------- main ---------------------------------------

if __name__ == "__main__":
    key = jax.random.PRNGKey(0)
    k_x, k_p = jax.random.split(key)

    # NetworkBlock(nb_layers=2, in_planes=4, out_planes=8, stride=2, dropRate=0.0)
    nb_layers, in_planes, out_planes, stride = 2, 4, 8, 2
    x = jax.random.normal(k_x, (2, in_planes, 16, 16), dtype=jnp.float32)  # NCHW

    params = init_network_block(k_p, nb_layers, in_planes, out_planes, stride)

    fwd = jax.jit(lambda t: network_block_forward(t, params))
    out = jax.block_until_ready(fwd(x))
    assert out.shape == (2, out_planes, 8, 8), out.shape

    ref_m = jax.block_until_ready(_ref_forward_matched(x, params))
    assert jnp.allclose(out, ref_m, rtol=2e-3, atol=2e-3), \
        float(jnp.max(jnp.abs(out - ref_m)))

    ref_f = jax.block_until_ready(_ref_forward_f32(x, params))
    assert jnp.allclose(out, ref_f, rtol=1e-1, atol=1e-1), \
        float(jnp.max(jnp.abs(out - ref_f)))

    print("KERNEL_OK")
</pallas_src>

<mosaic_0001>
module attributes {stable_mosaic.version = 11 : i64} {
  func.func @kernel(%arg0: memref<2x8x8x4xf32, #tpu.memory_space<vmem>>, %arg1: memref<2x8x8x4xf32, #tpu.memory_space<vmem>>, %arg2: memref<2x8x8x4xf32, #tpu.memory_space<vmem>>, %arg3: memref<2x8x8x4xf32, #tpu.memory_space<vmem>>, %arg4: memref<1x4xf32, #tpu.memory_space<vmem>>, %arg5: memref<1x4xf32, #tpu.memory_space<vmem>>, %arg6: memref<9x4x8xbf16, #tpu.memory_space<vmem>>, %arg7: memref<1x8xf32, #tpu.memory_space<vmem>>, %arg8: memref<9x8x8xbf16, #tpu.memory_space<vmem>>, %arg9: memref<4x8xbf16, #tpu.memory_space<vmem>>, %arg10: memref<1x8xf32, #tpu.memory_space<vmem>>, %arg11: memref<1x8xf32, #tpu.memory_space<vmem>>, %arg12: memref<9x8x8xbf16, #tpu.memory_space<vmem>>, %arg13: memref<1x8xf32, #tpu.memory_space<vmem>>, %arg14: memref<9x8x8xbf16, #tpu.memory_space<vmem>>, %arg15: memref<128x8xf32, #tpu.memory_space<vmem>>) attributes {dimension_semantics = [], scalar_prefetch = 0 : i64, scratch_operands = 0 : i64, tpu.core_type = #tpu.core_type<tc>} {
    %c0 = arith.constant 0 : index
    %c0_0 = arith.constant 0 : index
    %0 = vector.load %arg4[%c0, %c0_0] : memref<1x4xf32, #tpu.memory_space<vmem>>, vector<1x4xf32>
    %c0_1 = arith.constant 0 : index
    %c0_2 = arith.constant 0 : index
    %1 = vector.load %arg5[%c0_1, %c0_2] : memref<1x4xf32, #tpu.memory_space<vmem>>, vector<1x4xf32>
    %c0_3 = arith.constant 0 : index
    %c0_4 = arith.constant 0 : index
    %2 = vector.load %arg7[%c0_3, %c0_4] : memref<1x8xf32, #tpu.memory_space<vmem>>, vector<1x8xf32>
    %3 = vector.shape_cast %0 : vector<1x4xf32> to vector<1x1x1x4xf32>
    %4 = vector.shape_cast %1 : vector<1x4xf32> to vector<1x1x1x4xf32>
    %c0_5 = arith.constant 0 : index
    %c0_6 = arith.constant 0 : index
    %c0_7 = arith.constant 0 : index
    %c0_8 = arith.constant 0 : index
    %5 = vector.load %arg0[%c0_5, %c0_6, %c0_7, %c0_8] : memref<2x8x8x4xf32, #tpu.memory_space<vmem>>, vector<2x8x8x4xf32>
    %6 = vector.broadcast %3 : vector<1x1x1x4xf32> to vector<2x8x8x4xf32>
    %7 = arith.mulf %5, %6 : vector<2x8x8x4xf32>
    %8 = vector.broadcast %4 : vector<1x1x1x4xf32> to vector<2x8x8x4xf32>
    %9 = arith.addf %7, %8 : vector<2x8x8x4xf32>
    %cst = arith.constant 0.000000e+00 : f32
    %10 = vector.broadcast %cst : f32 to vector<2x8x8x4xf32>
    %11 = arith.maximumf %9, %10 : vector<2x8x8x4xf32>
    %c0_9 = arith.constant 0 : index
    %c0_10 = arith.constant 0 : index
    %c0_11 = arith.constant 0 : index
    %c0_12 = arith.constant 0 : index
    %12 = vector.load %arg1[%c0_9, %c0_10, %c0_11, %c0_12] : memref<2x8x8x4xf32, #tpu.memory_space<vmem>>, vector<2x8x8x4xf32>
    %13 = vector.broadcast %3 : vector<1x1x1x4xf32> to vector<2x8x8x4xf32>
    %14 = arith.mulf %12, %13 : vector<2x8x8x4xf32>
    %15 = vector.broadcast %4 : vector<1x1x1x4xf32> to vector<2x8x8x4xf32>
    %16 = arith.addf %14, %15 : vector<2x8x8x4xf32>
    %cst_13 = arith.constant 0.000000e+00 : f32
    %17 = vector.broadcast %cst_13 : f32 to vector<2x8x8x4xf32>
    %18 = arith.maximumf %16, %17 : vector<2x8x8x4xf32>
    %c0_14 = arith.constant 0 : index
    %c0_15 = arith.constant 0 : index
    %c0_16 = arith.constant 0 : index
    %c0_17 = arith.constant 0 : index
    %19 = vector.load %arg2[%c0_14, %c0_15, %c0_16, %c0_17] : memref<2x8x8x4xf32, #tpu.memory_space<vmem>>, vector<2x8x8x4xf32>
    %20 = vector.broadcast %3 : vector<1x1x1x4xf32> to vector<2x8x8x4xf32>
    %21 = arith.mulf %19, %20 : vector<2x8x8x4xf32>
    %22 = vector.broadcast %4 : vector<1x1x1x4xf32> to vector<2x8x8x4xf32>
    %23 = arith.addf %21, %22 : vector<2x8x8x4xf32>
    %cst_18 = arith.constant 0.000000e+00 : f32
    %24 = vector.broadcast %cst_18 : f32 to vector<2x8x8x4xf32>
    %25 = arith.maximumf %23, %24 : vector<2x8x8x4xf32>
    %c0_19 = arith.constant 0 : index
    %c0_20 = arith.constant 0 : index
    %c0_21 = arith.constant 0 : index
    %c0_22 = arith.constant 0 : index
    %26 = vector.load %arg3[%c0_19, %c0_20, %c0_21, %c0_22] : memref<2x8x8x4xf32, #tpu.memory_space<vmem>>, vector<2x8x8x4xf32>
    %27 = vector.broadcast %3 : vector<1x1x1x4xf32> to vector<2x8x8x4xf32>
    %28 = arith.mulf %26, %27 : vector<2x8x8x4xf32>
    %29 = vector.broadcast %4 : vector<1x1x1x4xf32> to vector<2x8x8x4xf32>
    %30 = arith.addf %28, %29 : vector<2x8x8x4xf32>
    %cst_23 = arith.constant 0.000000e+00 : f32
    %31 = vector.broadcast %cst_23 : f32 to vector<2x8x8x4xf32>
    %32 = arith.maximumf %30, %31 : vector<2x8x8x4xf32>
    %cst_24 = arith.constant 0.000000e+00 : f32
    %33 = vector.broadcast %cst_24 : f32 to vector<2x1x8x4xf32>
    %34 = tpu.concatenate %33, %11 in 1 : vector<2x1x8x4xf32>, vector<2x8x8x4xf32> -> vector<2x9x8x4xf32>
    %cst_25 = arith.constant 0.000000e+00 : f32
    %35 = vector.broadcast %cst_25 : f32 to vector<2x9x1x4xf32>
    %36 = tpu.concatenate %35, %34 in 2 : vector<2x9x1x4xf32>, vector<2x9x8x4xf32> -> vector<2x9x9x4xf32>
    %cst_26 = arith.constant 0.000000e+00 : f32
    %37 = vector.broadcast %cst_26 : f32 to vector<2x1x8x4xf32>
    %38 = tpu.concatenate %37, %18 in 1 : vector<2x1x8x4xf32>, vector<2x8x8x4xf32> -> vector<2x9x8x4xf32>
    %cst_27 = arith.constant 0.000000e+00 : f32
    %39 = vector.broadcast %cst_27 : f32 to vector<2x9x1x4xf32>
    %40 = tpu.concatenate %39, %38 in 2 : vector<2x9x1x4xf32>, vector<2x9x8x4xf32> -> vector<2x9x9x4xf32>
    %cst_28 = arith.constant 0.000000e+00 : f32
    %41 = vector.broadcast %cst_28 : f32 to vector<2x1x8x4xf32>
    %42 = tpu.concatenate %41, %25 in 1 : vector<2x1x8x4xf32>, vector<2x8x8x4xf32> -> vector<2x9x8x4xf32>
    %cst_29 = arith.constant 0.000000e+00 : f32
    %43 = vector.broadcast %cst_29 : f32 to vector<2x9x1x4xf32>
    %44 = tpu.concatenate %43, %42 in 2 : vector<2x9x1x4xf32>, vector<2x9x8x4xf32> -> vector<2x9x9x4xf32>
    %cst_30 = arith.constant 0.000000e+00 : f32
    %45 = vector.broadcast %cst_30 : f32 to vector<2x1x8x4xf32>
    %46 = tpu.concatenate %45, %32 in 1 : vector<2x1x8x4xf32>, vector<2x8x8x4xf32> -> vector<2x9x8x4xf32>
    %cst_31 = arith.constant 0.000000e+00 : f32
    %47 = vector.broadcast %cst_31 : f32 to vector<2x9x1x4xf32>
    %48 = tpu.concatenate %47, %46 in 2 : vector<2x9x1x4xf32>, vector<2x9x8x4xf32> -> vector<2x9x9x4xf32>
    %cst_32 = arith.constant 0.000000e+00 : f32
    %49 = vector.broadcast %cst_32 : f32 to vector<128x8xf32>
    %50 = vector.extract_strided_slice %48 {offsets = [0, 0, 0, 0], sizes = [2, 8, 8, 4], strides = [1, 1, 1, 1]} : vector<2x9x9x4xf32> to vector<2x8x8x4xf32>
    %51 = vector.shape_cast %50 : vector<2x8x8x4xf32> to vector<128x4xf32>
    %52 = arith.truncf %51 : vector<128x4xf32> to vector<128x4xbf16>
    %c0_33 = arith.constant 0 : index
    %c0_34 = arith.constant 0 : index
    %c0_35 = arith.constant 0 : index
    %53 = vector.load %arg6[%c0_33, %c0_34, %c0_35] : memref<9x4x8xbf16, #tpu.memory_space<vmem>>, vector<1x4x8xbf16>
    %54 = vector.shape_cast %53 : vector<1x4x8xbf16> to vector<4x8xbf16>
    %cst_36 = arith.constant dense<0.000000e+00> : vector<128x8xf32>
    %55 = tpu.matmul %52, %54, %cst_36 {dimension_numbers = #tpu.dot_dimension_numbers<[1], [0], [0], [1], [0, 0, 1, 1], [], []>} : vector<128x4xbf16>, vector<4x8xbf16>, vector<128x8xf32> -> vector<128x8xf32>
    %56 = arith.addf %49, %55 : vector<128x8xf32>
    %57 = vector.extract_strided_slice %44 {offsets = [0, 0, 1, 0], sizes = [2, 8, 8, 4], strides = [1, 1, 1, 1]} : vector<2x9x9x4xf32> to vector<2x8x8x4xf32>
    %58 = vector.shape_cast %57 : vector<2x8x8x4xf32> to vector<128x4xf32>
    %59 = arith.truncf %58 : vector<128x4xf32> to vector<128x4xbf16>
    %c1 = arith.constant 1 : index
    %c0_37 = arith.constant 0 : index
    %c0_38 = arith.constant 0 : index
    %60 = vector.load %arg6[%c1, %c0_37, %c0_38] : memref<9x4x8xbf16, #tpu.memory_space<vmem>>, vector<1x4x8xbf16>
    %61 = vector.shape_cast %60 : vector<1x4x8xbf16> to vector<4x8xbf16>
    %cst_39 = arith.constant dense<0.000000e+00> : vector<128x8xf32>
    %62 = tpu.matmul %59, %61, %cst_39 {dimension_numbers = #tpu.dot_dimension_numbers<[1], [0], [0], [1], [0, 0, 1, 1], [], []>} : vector<128x4xbf16>, vector<4x8xbf16>, vector<128x8xf32> -> vector<128x8xf32>
    %63 = arith.addf %56, %62 : vector<128x8xf32>
    %64 = vector.extract_strided_slice %48 {offsets = [0, 0, 1, 0], sizes = [2, 8, 8, 4], strides = [1, 1, 1, 1]} : vector<2x9x9x4xf32> to vector<2x8x8x4xf32>
    %65 = vector.shape_cast %64 : vector<2x8x8x4xf32> to vector<128x4xf32>
    %66 = arith.truncf %65 : vector<128x4xf32> to vector<128x4xbf16>
    %c2 = arith.constant 2 : index
    %c0_40 = arith.constant 0 : index
    %c0_41 = arith.constant 0 : index
    %67 = vector.load %arg6[%c2, %c0_40, %c0_41] : memref<9x4x8xbf16, #tpu.memory_space<vmem>>, vector<1x4x8xbf16>
    %68 = vector.shape_cast %67 : vector<1x4x8xbf16> to vector<4x8xbf16>
    %cst_42 = arith.constant dense<0.000000e+00> : vector<128x8xf32>
    %69 = tpu.matmul %66, %68, %cst_42 {dimension_numbers = #tpu.dot_dimension_numbers<[1], [0], [0], [1], [0, 0, 1, 1], [], []>} : vector<128x4xbf16>, vector<4x8xbf16>, vector<128x8xf32> -> vector<128x8xf32>
    %70 = arith.addf %63, %69 : vector<128x8xf32>
    %71 = vector.extract_strided_slice %40 {offsets = [0, 1, 0, 0], sizes = [2, 8, 8, 4], strides = [1, 1, 1, 1]} : vector<2x9x9x4xf32> to vector<2x8x8x4xf32>
    %72 = vector.shape_cast %71 : vector<2x8x8x4xf32> to vector<128x4xf32>
    %73 = arith.truncf %72 : vector<128x4xf32> to vector<128x4xbf16>
    %c3 = arith.constant 3 : index
    %c0_43 = arith.constant 0 : index
    %c0_44 = arith.constant 0 : index
    %74 = vector.load %arg6[%c3, %c0_43, %c0_44] : memref<9x4x8xbf16, #tpu.memory_space<vmem>>, vector<1x4x8xbf16>
    %75 = vector.shape_cast %74 : vector<1x4x8xbf16> to vector<4x8xbf16>
    %cst_45 = arith.constant dense<0.000000e+00> : vector<128x8xf32>
    %76 = tpu.matmul %73, %75, %cst_45 {dimension_numbers = #tpu.dot_dimension_numbers<[1], [0], [0], [1], [0, 0, 1, 1], [], []>} : vector<128x4xbf16>, vector<4x8xbf16>, vector<128x8xf32> -> vector<128x8xf32>
    %77 = arith.addf %70, %76 : vector<128x8xf32>
    %78 = vector.extract_strided_slice %36 {offsets = [0, 1, 1, 0], sizes = [2, 8, 8, 4], strides = [1, 1, 1, 1]} : vector<2x9x9x4xf32> to vector<2x8x8x4xf32>
    %79 = vector.shape_cast %78 : vector<2x8x8x4xf32> to vector<128x4xf32>
    %80 = arith.truncf %79 : vector<128x4xf32> to vector<128x4xbf16>
    %c4 = arith.constant 4 : index
    %c0_46 = arith.constant 0 : index
    %c0_47 = arith.constant 0 : index
    %81 = vector.load %arg6[%c4, %c0_46, %c0_47] : memref<9x4x8xbf16, #tpu.memory_space<vmem>>, vector<1x4x8xbf16>
    %82 = vector.shape_cast %81 : vector<1x4x8xbf16> to vector<4x8xbf16>
    %cst_48 = arith.constant dense<0.000000e+00> : vector<128x8xf32>
    %83 = tpu.matmul %80, %82, %cst_48 {dimension_numbers = #tpu.dot_dimension_numbers<[1], [0], [0], [1], [0, 0, 1, 1], [], []>} : vector<128x4xbf16>, vector<4x8xbf16>, vector<128x8xf32> -> vector<128x8xf32>
    %84 = arith.addf %77, %83 : vector<128x8xf32>
    %85 = vector.extract_strided_slice %40 {offsets = [0, 1, 1, 0], sizes = [2, 8, 8, 4], strides = [1, 1, 1, 1]} : vector<2x9x9x4xf32> to vector<2x8x8x4xf32>
    %86 = vector.shape_cast %85 : vector<2x8x8x4xf32> to vector<128x4xf32>
    %87 = arith.truncf %86 : vector<128x4xf32> to vector<128x4xbf16>
    %c5 = arith.constant 5 : index
    %c0_49 = arith.constant 0 : index
    %c0_50 = arith.constant 0 : index
    %88 = vector.load %arg6[%c5, %c0_49, %c0_50] : memref<9x4x8xbf16, #tpu.memory_space<vmem>>, vector<1x4x8xbf16>
    %89 = vector.shape_cast %88 : vector<1x4x8xbf16> to vector<4x8xbf16>
    %cst_51 = arith.constant dense<0.000000e+00> : vector<128x8xf32>
    %90 = tpu.matmul %87, %89, %cst_51 {dimension_numbers = #tpu.dot_dimension_numbers<[1], [0], [0], [1], [0, 0, 1, 1], [], []>} : vector<128x4xbf16>, vector<4x8xbf16>, vector<128x8xf32> -> vector<128x8xf32>
    %91 = arith.addf %84, %90 : vector<128x8xf32>
    %92 = vector.extract_strided_slice %48 {offsets = [0, 1, 0, 0], sizes = [2, 8, 8, 4], strides = [1, 1, 1, 1]} : vector<2x9x9x4xf32> to vector<2x8x8x4xf32>
    %93 = vector.shape_cast %92 : vector<2x8x8x4xf32> to vector<128x4xf32>
    %94 = arith.truncf %93 : vector<128x4xf32> to vector<128x4xbf16>
    %c6 = arith.constant 6 : index
    %c0_52 = arith.constant 0 : index
    %c0_53 = arith.constant 0 : index
    %95 = vector.load %arg6[%c6, %c0_52, %c0_53] : memref<9x4x8xbf16, #tpu.memory_space<vmem>>, vector<1x4x8xbf16>
    %96 = vector.shape_cast %95 : vector<1x4x8xbf16> to vector<4x8xbf16>
    %cst_54 = arith.constant dense<0.000000e+00> : vector<128x8xf32>
    %97 = tpu.matmul %94, %96, %cst_54 {dimension_numbers = #tpu.dot_dimension_numbers<[1], [0], [0], [1], [0, 0, 1, 1], [], []>} : vector<128x4xbf16>, vector<4x8xbf16>, vector<128x8xf32> -> vector<128x8xf32>
    %98 = arith.addf %91, %97 : vector<128x8xf32>
    %99 = vector.extract_strided_slice %44 {offsets = [0, 1, 1, 0], sizes = [2, 8, 8, 4], strides = [1, 1, 1, 1]} : vector<2x9x9x4xf32> to vector<2x8x8x4xf32>
    %100 = vector.shape_cast %99 : vector<2x8x8x4xf32> to vector<128x4xf32>
    %101 = arith.truncf %100 : vector<128x4xf32> to vector<128x4xbf16>
    %c7 = arith.constant 7 : index
    %c0_55 = arith.constant 0 : index
    %c0_56 = arith.constant 0 : index
    %102 = vector.load %arg6[%c7, %c0_55, %c0_56] : memref<9x4x8xbf16, #tpu.memory_space<vmem>>, vector<1x4x8xbf16>
    %103 = vector.shape_cast %102 : vector<1x4x8xbf16> to vector<4x8xbf16>
    %cst_57 = arith.constant dense<0.000000e+00> : vector<128x8xf32>
    %104 = tpu.matmul %101, %103, %cst_57 {dimension_numbers = #tpu.dot_dimension_numbers<[1], [0], [0], [1], [0, 0, 1, 1], [], []>} : vector<128x4xbf16>, vector<4x8xbf16>, vector<128x8xf32> -> vector<128x8xf32>
    %105 = arith.addf %98, %104 : vector<128x8xf32>
    %106 = vector.extract_strided_slice %48 {offsets = [0, 1, 1, 0], sizes = [2, 8, 8, 4], strides = [1, 1, 1, 1]} : vector<2x9x9x4xf32> to vector<2x8x8x4xf32>
    %107 = vector.shape_cast %106 : vector<2x8x8x4xf32> to vector<128x4xf32>
    %108 = arith.truncf %107 : vector<128x4xf32> to vector<128x4xbf16>
    %c8 = arith.constant 8 : index
    %c0_58 = arith.constant 0 : index
    %c0_59 = arith.constant 0 : index
    %109 = vector.load %arg6[%c8, %c0_58, %c0_59] : memref<9x4x8xbf16, #tpu.memory_space<vmem>>, vector<1x4x8xbf16>
    %110 = vector.shape_cast %109 : vector<1x4x8xbf16> to vector<4x8xbf16>
    %cst_60 = arith.constant dense<0.000000e+00> : vector<128x8xf32>
    %111 = tpu.matmul %108, %110, %cst_60 {dimension_numbers = #tpu.dot_dimension_numbers<[1], [0], [0], [1], [0, 0, 1, 1], [], []>} : vector<128x4xbf16>, vector<4x8xbf16>, vector<128x8xf32> -> vector<128x8xf32>
    %112 = arith.addf %105, %111 : vector<128x8xf32>
    %113 = vector.shape_cast %11 : vector<2x8x8x4xf32> to vector<128x4xf32>
    %114 = arith.truncf %113 : vector<128x4xf32> to vector<128x4xbf16>
    %c0_61 = arith.constant 0 : index
    %c0_62 = arith.constant 0 : index
    %115 = vector.load %arg9[%c0_61, %c0_62] : memref<4x8xbf16, #tpu.memory_space<vmem>>, vector<4x8xbf16>
    %cst_63 = arith.constant dense<0.000000e+00> : vector<128x8xf32>
    %116 = tpu.matmul %114, %115, %cst_63 {dimension_numbers = #tpu.dot_dimension_numbers<[1], [0], [0], [1], [0, 0, 1, 1], [], []>} : vector<128x4xbf16>, vector<4x8xbf16>, vector<128x8xf32> -> vector<128x8xf32>
    %117 = vector.broadcast %2 : vector<1x8xf32> to vector<128x8xf32>
    %118 = arith.addf %112, %117 : vector<128x8xf32>
    %cst_64 = arith.constant 0.000000e+00 : f32
    %119 = vector.broadcast %cst_64 : f32 to vector<128x8xf32>
    %120 = arith.maximumf %118, %119 : vector<128x8xf32>
    %121 = vector.shape_cast %120 : vector<128x8xf32> to vector<2x8x8x8xf32>
    %cst_65 = arith.constant 0.000000e+00 : f32
    %122 = vector.broadcast %cst_65 : f32 to vector<2x1x8x8xf32>
    %cst_66 = arith.constant 0.000000e+00 : f32
    %123 = vector.broadcast %cst_66 : f32 to vector<2x1x8x8xf32>
    %124 = tpu.concatenate %122, %121, %123 in 1 : vector<2x1x8x8xf32>, vector<2x8x8x8xf32>, vector<2x1x8x8xf32> -> vector<2x10x8x8xf32>
    %cst_67 = arith.constant 0.000000e+00 : f32
    %125 = vector.broadcast %cst_67 : f32 to vector<2x10x1x8xf32>
    %cst_68 = arith.constant 0.000000e+00 : f32
    %126 = vector.broadcast %cst_68 : f32 to vector<2x10x1x8xf32>
    %127 = tpu.concatenate %125, %124, %126 in 2 : vector<2x10x1x8xf32>, vector<2x10x8x8xf32>, vector<2x10x1x8xf32> -> vector<2x10x10x8xf32>
    %cst_69 = arith.constant 0.000000e+00 : f32
    %128 = vector.broadcast %cst_69 : f32 to vector<128x8xf32>
    %129 = vector.extract_strided_slice %127 {offsets = [0, 0, 0, 0], sizes = [2, 8, 8, 8], strides = [1, 1, 1, 1]} : vector<2x10x10x8xf32> to vector<2x8x8x8xf32>
    %130 = vector.shape_cast %129 : vector<2x8x8x8xf32> to vector<128x8xf32>
    %131 = arith.truncf %130 : vector<128x8xf32> to vector<128x8xbf16>
    %c0_70 = arith.constant 0 : index
    %c0_71 = arith.constant 0 : index
    %c0_72 = arith.constant 0 : index
    %132 = vector.load %arg8[%c0_70, %c0_71, %c0_72] : memref<9x8x8xbf16, #tpu.memory_space<vmem>>, vector<1x8x8xbf16>
    %133 = vector.shape_cast %132 : vector<1x8x8xbf16> to vector<8x8xbf16>
    %cst_73 = arith.constant dense<0.000000e+00> : vector<128x8xf32>
    %134 = tpu.matmul %131, %133, %cst_73 {dimension_numbers = #tpu.dot_dimension_numbers<[1], [0], [0], [1], [0, 0, 1, 1], [], []>} : vector<128x8xbf16>, vector<8x8xbf16>, vector<128x8xf32> -> vector<128x8xf32>
    %135 = arith.addf %128, %134 : vector<128x8xf32>
    %136 = vector.extract_strided_slice %127 {offsets = [0, 0, 1, 0], sizes = [2, 8, 8, 8], strides = [1, 1, 1, 1]} : vector<2x10x10x8xf32> to vector<2x8x8x8xf32>
    %137 = vector.shape_cast %136 : vector<2x8x8x8xf32> to vector<128x8xf32>
    %138 = arith.truncf %137 : vector<128x8xf32> to vector<128x8xbf16>
    %c1_74 = arith.constant 1 : index
    %c0_75 = arith.constant 0 : index
    %c0_76 = arith.constant 0 : index
    %139 = vector.load %arg8[%c1_74, %c0_75, %c0_76] : memref<9x8x8xbf16, #tpu.memory_space<vmem>>, vector<1x8x8xbf16>
    %140 = vector.shape_cast %139 : vector<1x8x8xbf16> to vector<8x8xbf16>
    %cst_77 = arith.constant dense<0.000000e+00> : vector<128x8xf32>
    %141 = tpu.matmul %138, %140, %cst_77 {dimension_numbers = #tpu.dot_dimension_numbers<[1], [0], [0], [1], [0, 0, 1, 1], [], []>} : vector<128x8xbf16>, vector<8x8xbf16>, vector<128x8xf32> -> vector<128x8xf32>
    %142 = arith.addf %135, %141 : vector<128x8xf32>
    %143 = vector.extract_strided_slice %127 {offsets = [0, 0, 2, 0], sizes = [2, 8, 8, 8], strides = [1, 1, 1, 1]} : vector<2x10x10x8xf32> to vector<2x8x8x8xf32>
    %144 = vector.shape_cast %143 : vector<2x8x8x8xf32> to vector<128x8xf32>
    %145 = arith.truncf %144 : vector<128x8xf32> to vector<128x8xbf16>
    %c2_78 = arith.constant 2 : index
    %c0_79 = arith.constant 0 : index
    %c0_80 = arith.constant 0 : index
    %146 = vector.load %arg8[%c2_78, %c0_79, %c0_80] : memref<9x8x8xbf16, #tpu.memory_space<vmem>>, vector<1x8x8xbf16>
    %147 = vector.shape_cast %146 : vector<1x8x8xbf16> to vector<8x8xbf16>
    %cst_81 = arith.constant dense<0.000000e+00> : vector<128x8xf32>
    %148 = tpu.matmul %145, %147, %cst_81 {dimension_numbers = #tpu.dot_dimension_numbers<[1], [0], [0], [1], [0, 0, 1, 1], [], []>} : vector<128x8xbf16>, vector<8x8xbf16>, vector<128x8xf32> -> vector<128x8xf32>
    %149 = arith.addf %142, %148 : vector<128x8xf32>
    %150 = vector.extract_strided_slice %127 {offsets = [0, 1, 0, 0], sizes = [2, 8, 8, 8], strides = [1, 1, 1, 1]} : vector<2x10x10x8xf32> to vector<2x8x8x8xf32>
    %151 = vector.shape_cast %150 : vector<2x8x8x8xf32> to vector<128x8xf32>
    %152 = arith.truncf %151 : vector<128x8xf32> to vector<128x8xbf16>
    %c3_82 = arith.constant 3 : index
    %c0_83 = arith.constant 0 : index
    %c0_84 = arith.constant 0 : index
    %153 = vector.load %arg8[%c3_82, %c0_83, %c0_84] : memref<9x8x8xbf16, #tpu.memory_space<vmem>>, vector<1x8x8xbf16>
    %154 = vector.shape_cast %153 : vector<1x8x8xbf16> to vector<8x8xbf16>
    %cst_85 = arith.constant dense<0.000000e+00> : vector<128x8xf32>
    %155 = tpu.matmul %152, %154, %cst_85 {dimension_numbers = #tpu.dot_dimension_numbers<[1], [0], [0], [1], [0, 0, 1, 1], [], []>} : vector<128x8xbf16>, vector<8x8xbf16>, vector<128x8xf32> -> vector<128x8xf32>
    %156 = arith.addf %149, %155 : vector<128x8xf32>
    %157 = vector.extract_strided_slice %127 {offsets = [0, 1, 1, 0], sizes = [2, 8, 8, 8], strides = [1, 1, 1, 1]} : vector<2x10x10x8xf32> to vector<2x8x8x8xf32>
    %158 = vector.shape_cast %157 : vector<2x8x8x8xf32> to vector<128x8xf32>
    %159 = arith.truncf %158 : vector<128x8xf32> to vector<128x8xbf16>
    %c4_86 = arith.constant 4 : index
    %c0_87 = arith.constant 0 : index
    %c0_88 = arith.constant 0 : index
    %160 = vector.load %arg8[%c4_86, %c0_87, %c0_88] : memref<9x8x8xbf16, #tpu.memory_space<vmem>>, vector<1x8x8xbf16>
    %161 = vector.shape_cast %160 : vector<1x8x8xbf16> to vector<8x8xbf16>
    %cst_89 = arith.constant dense<0.000000e+00> : vector<128x8xf32>
    %162 = tpu.matmul %159, %161, %cst_89 {dimension_numbers = #tpu.dot_dimension_numbers<[1], [0], [0], [1], [0, 0, 1, 1], [], []>} : vector<128x8xbf16>, vector<8x8xbf16>, vector<128x8xf32> -> vector<128x8xf32>
    %163 = arith.addf %156, %162 : vector<128x8xf32>
    %164 = vector.extract_strided_slice %127 {offsets = [0, 1, 2, 0], sizes = [2, 8, 8, 8], strides = [1, 1, 1, 1]} : vector<2x10x10x8xf32> to vector<2x8x8x8xf32>
    %165 = vector.shape_cast %164 : vector<2x8x8x8xf32> to vector<128x8xf32>
    %166 = arith.truncf %165 : vector<128x8xf32> to vector<128x8xbf16>
    %c5_90 = arith.constant 5 : index
    %c0_91 = arith.constant 0 : index
    %c0_92 = arith.constant 0 : index
    %167 = vector.load %arg8[%c5_90, %c0_91, %c0_92] : memref<9x8x8xbf16, #tpu.memory_space<vmem>>, vector<1x8x8xbf16>
    %168 = vector.shape_cast %167 : vector<1x8x8xbf16> to vector<8x8xbf16>
    %cst_93 = arith.constant dense<0.000000e+00> : vector<128x8xf32>
    %169 = tpu.matmul %166, %168, %cst_93 {dimension_numbers = #tpu.dot_dimension_numbers<[1], [0], [0], [1], [0, 0, 1, 1], [], []>} : vector<128x8xbf16>, vector<8x8xbf16>, vector<128x8xf32> -> vector<128x8xf32>
    %170 = arith.addf %163, %169 : vector<128x8xf32>
    %171 = vector.extract_strided_slice %127 {offsets = [0, 2, 0, 0], sizes = [2, 8, 8, 8], strides = [1, 1, 1, 1]} : vector<2x10x10x8xf32> to vector<2x8x8x8xf32>
    %172 = vector.shape_cast %171 : vector<2x8x8x8xf32> to vector<128x8xf32>
    %173 = arith.truncf %172 : vector<128x8xf32> to vector<128x8xbf16>
    %c6_94 = arith.constant 6 : index
    %c0_95 = arith.constant 0 : index
    %c0_96 = arith.constant 0 : index
    %174 = vector.load %arg8[%c6_94, %c0_95, %c0_96] : memref<9x8x8xbf16, #tpu.memory_space<vmem>>, vector<1x8x8xbf16>
    %175 = vector.shape_cast %174 : vector<1x8x8xbf16> to vector<8x8xbf16>
    %cst_97 = arith.constant dense<0.000000e+00> : vector<128x8xf32>
    %176 = tpu.matmul %173, %175, %cst_97 {dimension_numbers = #tpu.dot_dimension_numbers<[1], [0], [0], [1], [0, 0, 1, 1], [], []>} : vector<128x8xbf16>, vector<8x8xbf16>, vector<128x8xf32> -> vector<128x8xf32>
    %177 = arith.addf %170, %176 : vector<128x8xf32>
    %178 = vector.extract_strided_slice %127 {offsets = [0, 2, 1, 0], sizes = [2, 8, 8, 8], strides = [1, 1, 1, 1]} : vector<2x10x10x8xf32> to vector<2x8x8x8xf32>
    %179 = vector.shape_cast %178 : vector<2x8x8x8xf32> to vector<128x8xf32>
    %180 = arith.truncf %179 : vector<128x8xf32> to vector<128x8xbf16>
    %c7_98 = arith.constant 7 : index
    %c0_99 = arith.constant 0 : index
    %c0_100 = arith.constant 0 : index
    %181 = vector.load %arg8[%c7_98, %c0_99, %c0_100] : memref<9x8x8xbf16, #tpu.memory_space<vmem>>, vector<1x8x8xbf16>
    %182 = vector.shape_cast %181 : vector<1x8x8xbf16> to vector<8x8xbf16>
    %cst_101 = arith.constant dense<0.000000e+00> : vector<128x8xf32>
    %183 = tpu.matmul %180, %182, %cst_101 {dimension_numbers = #tpu.dot_dimension_numbers<[1], [0], [0], [1], [0, 0, 1, 1], [], []>} : vector<128x8xbf16>, vector<8x8xbf16>, vector<128x8xf32> -> vector<128x8xf32>
    %184 = arith.addf %177, %183 : vector<128x8xf32>
    %185 = vector.extract_strided_slice %127 {offsets = [0, 2, 2, 0], sizes = [2, 8, 8, 8], strides = [1, 1, 1, 1]} : vector<2x10x10x8xf32> to vector<2x8x8x8xf32>
    %186 = vector.shape_cast %185 : vector<2x8x8x8xf32> to vector<128x8xf32>
    %187 = arith.truncf %186 : vector<128x8xf32> to vector<128x8xbf16>
    %c8_102 = arith.constant 8 : index
    %c0_103 = arith.constant 0 : index
    %c0_104 = arith.constant 0 : index
    %188 = vector.load %arg8[%c8_102, %c0_103, %c0_104] : memref<9x8x8xbf16, #tpu.memory_space<vmem>>, vector<1x8x8xbf16>
    %189 = vector.shape_cast %188 : vector<1x8x8xbf16> to vector<8x8xbf16>
    %cst_105 = arith.constant dense<0.000000e+00> : vector<128x8xf32>
    %190 = tpu.matmul %187, %189, %cst_105 {dimension_numbers = #tpu.dot_dimension_numbers<[1], [0], [0], [1], [0, 0, 1, 1], [], []>} : vector<128x8xbf16>, vector<8x8xbf16>, vector<128x8xf32> -> vector<128x8xf32>
    %191 = arith.addf %184, %190 : vector<128x8xf32>
    %192 = arith.addf %191, %116 : vector<128x8xf32>
    %c0_106 = arith.constant 0 : index
    %c0_107 = arith.constant 0 : index
    %193 = vector.load %arg10[%c0_106, %c0_107] : memref<1x8xf32, #tpu.memory_space<vmem>>, vector<1x8xf32>
    %c0_108 = arith.constant 0 : index
    %c0_109 = arith.constant 0 : index
    %194 = vector.load %arg11[%c0_108, %c0_109] : memref<1x8xf32, #tpu.memory_space<vmem>>, vector<1x8xf32>
    %c0_110 = arith.constant 0 : index
    %c0_111 = arith.constant 0 : index
    %195 = vector.load %arg13[%c0_110, %c0_111] : memref<1x8xf32, #tpu.memory_space<vmem>>, vector<1x8xf32>
    %196 = vector.broadcast %193 : vector<1x8xf32> to vector<128x8xf32>
    %197 = arith.mulf %192, %196 : vector<128x8xf32>
    %198 = vector.broadcast %194 : vector<1x8xf32> to vector<128x8xf32>
    %199 = arith.addf %197, %198 : vector<128x8xf32>
    %cst_112 = arith.constant 0.000000e+00 : f32
    %200 = vector.broadcast %cst_112 : f32 to vector<128x8xf32>
    %201 = arith.maximumf %199, %200 : vector<128x8xf32>
    %202 = vector.shape_cast %201 : vector<128x8xf32> to vector<2x8x8x8xf32>
    %cst_113 = arith.constant 0.000000e+00 : f32
    %203 = vector.broadcast %cst_113 : f32 to vector<2x1x8x8xf32>
    %cst_114 = arith.constant 0.000000e+00 : f32
    %204 = vector.broadcast %cst_114 : f32 to vector<2x1x8x8xf32>
    %205 = tpu.concatenate %203, %202, %204 in 1 : vector<2x1x8x8xf32>, vector<2x8x8x8xf32>, vector<2x1x8x8xf32> -> vector<2x10x8x8xf32>
    %cst_115 = arith.constant 0.000000e+00 : f32
    %206 = vector.broadcast %cst_115 : f32 to vector<2x10x1x8xf32>
    %cst_116 = arith.constant 0.000000e+00 : f32
    %207 = vector.broadcast %cst_116 : f32 to vector<2x10x1x8xf32>
    %208 = tpu.concatenate %206, %205, %207 in 2 : vector<2x10x1x8xf32>, vector<2x10x8x8xf32>, vector<2x10x1x8xf32> -> vector<2x10x10x8xf32>
    %cst_117 = arith.constant 0.000000e+00 : f32
    %209 = vector.broadcast %cst_117 : f32 to vector<128x8xf32>
    %210 = vector.extract_strided_slice %208 {offsets = [0, 0, 0, 0], sizes = [2, 8, 8, 8], strides = [1, 1, 1, 1]} : vector<2x10x10x8xf32> to vector<2x8x8x8xf32>
    %211 = vector.shape_cast %210 : vector<2x8x8x8xf32> to vector<128x8xf32>
    %212 = arith.truncf %211 : vector<128x8xf32> to vector<128x8xbf16>
    %c0_118 = arith.constant 0 : index
    %c0_119 = arith.constant 0 : index
    %c0_120 = arith.constant 0 : index
    %213 = vector.load %arg12[%c0_118, %c0_119, %c0_120] : memref<9x8x8xbf16, #tpu.memory_space<vmem>>, vector<1x8x8xbf16>
    %214 = vector.shape_cast %213 : vector<1x8x8xbf16> to vector<8x8xbf16>
    %cst_121 = arith.constant dense<0.000000e+00> : vector<128x8xf32>
    %215 = tpu.matmul %212, %214, %cst_121 {dimension_numbers = #tpu.dot_dimension_numbers<[1], [0], [0], [1], [0, 0, 1, 1], [], []>} : vector<128x8xbf16>, vector<8x8xbf16>, vector<128x8xf32> -> vector<128x8xf32>
    %216 = arith.addf %209, %215 : vector<128x8xf32>
    %217 = vector.extract_strided_slice %208 {offsets = [0, 0, 1, 0], sizes = [2, 8, 8, 8], strides = [1, 1, 1, 1]} : vector<2x10x10x8xf32> to vector<2x8x8x8xf32>
    %218 = vector.shape_cast %217 : vector<2x8x8x8xf32> to vector<128x8xf32>
    %219 = arith.truncf %218 : vector<128x8xf32> to vector<128x8xbf16>
    %c1_122 = arith.constant 1 : index
    %c0_123 = arith.constant 0 : index
    %c0_124 = arith.constant 0 : index
    %220 = vector.load %arg12[%c1_122, %c0_123, %c0_124] : memref<9x8x8xbf16, #tpu.memory_space<vmem>>, vector<1x8x8xbf16>
    %221 = vector.shape_cast %220 : vector<1x8x8xbf16> to vector<8x8xbf16>
    %cst_125 = arith.constant dense<0.000000e+00> : vector<128x8xf32>
    %222 = tpu.matmul %219, %221, %cst_125 {dimension_numbers = #tpu.dot_dimension_numbers<[1], [0], [0], [1], [0, 0, 1, 1], [], []>} : vector<128x8xbf16>, vector<8x8xbf16>, vector<128x8xf32> -> vector<128x8xf32>
    %223 = arith.addf %216, %222 : vector<128x8xf32>
    %224 = vector.extract_strided_slice %208 {offsets = [0, 0, 2, 0], sizes = [2, 8, 8, 8], strides = [1, 1, 1, 1]} : vector<2x10x10x8xf32> to vector<2x8x8x8xf32>
    %225 = vector.shape_cast %224 : vector<2x8x8x8xf32> to vector<128x8xf32>
    %226 = arith.truncf %225 : vector<128x8xf32> to vector<128x8xbf16>
    %c2_126 = arith.constant 2 : index
    %c0_127 = arith.constant 0 : index
    %c0_128 = arith.constant 0 : index
    %227 = vector.load %arg12[%c2_126, %c0_127, %c0_128] : memref<9x8x8xbf16, #tpu.memory_space<vmem>>, vector<1x8x8xbf16>
    %228 = vector.shape_cast %227 : vector<1x8x8xbf16> to vector<8x8xbf16>
    %cst_129 = arith.constant dense<0.000000e+00> : vector<128x8xf32>
    %229 = tpu.matmul %226, %228, %cst_129 {dimension_numbers = #tpu.dot_dimension_numbers<[1], [0], [0], [1], [0, 0, 1, 1], [], []>} : vector<128x8xbf16>, vector<8x8xbf16>, vector<128x8xf32> -> vector<128x8xf32>
    %230 = arith.addf %223, %229 : vector<128x8xf32>
    %231 = vector.extract_strided_slice %208 {offsets = [0, 1, 0, 0], sizes = [2, 8, 8, 8], strides = [1, 1, 1, 1]} : vector<2x10x10x8xf32> to vector<2x8x8x8xf32>
    %232 = vector.shape_cast %231 : vector<2x8x8x8xf32> to vector<128x8xf32>
    %233 = arith.truncf %232 : vector<128x8xf32> to vector<128x8xbf16>
    %c3_130 = arith.constant 3 : index
    %c0_131 = arith.constant 0 : index
    %c0_132 = arith.constant 0 : index
    %234 = vector.load %arg12[%c3_130, %c0_131, %c0_132] : memref<9x8x8xbf16, #tpu.memory_space<vmem>>, vector<1x8x8xbf16>
    %235 = vector.shape_cast %234 : vector<1x8x8xbf16> to vector<8x8xbf16>
    %cst_133 = arith.constant dense<0.000000e+00> : vector<128x8xf32>
    %236 = tpu.matmul %233, %235, %cst_133 {dimension_numbers = #tpu.dot_dimension_numbers<[1], [0], [0], [1], [0, 0, 1, 1], [], []>} : vector<128x8xbf16>, vector<8x8xbf16>, vector<128x8xf32> -> vector<128x8xf32>
    %237 = arith.addf %230, %236 : vector<128x8xf32>
    %238 = vector.extract_strided_slice %208 {offsets = [0, 1, 1, 0], sizes = [2, 8, 8, 8], strides = [1, 1, 1, 1]} : vector<2x10x10x8xf32> to vector<2x8x8x8xf32>
    %239 = vector.shape_cast %238 : vector<2x8x8x8xf32> to vector<128x8xf32>
    %240 = arith.truncf %239 : vector<128x8xf32> to vector<128x8xbf16>
    %c4_134 = arith.constant 4 : index
    %c0_135 = arith.constant 0 : index
    %c0_136 = arith.constant 0 : index
    %241 = vector.load %arg12[%c4_134, %c0_135, %c0_136] : memref<9x8x8xbf16, #tpu.memory_space<vmem>>, vector<1x8x8xbf16>
    %242 = vector.shape_cast %241 : vector<1x8x8xbf16> to vector<8x8xbf16>
    %cst_137 = arith.constant dense<0.000000e+00> : vector<128x8xf32>
    %243 = tpu.matmul %240, %242, %cst_137 {dimension_numbers = #tpu.dot_dimension_numbers<[1], [0], [0], [1], [0, 0, 1, 1], [], []>} : vector<128x8xbf16>, vector<8x8xbf16>, vector<128x8xf32> -> vector<128x8xf32>
    %244 = arith.addf %237, %243 : vector<128x8xf32>
    %245 = vector.extract_strided_slice %208 {offsets = [0, 1, 2, 0], sizes = [2, 8, 8, 8], strides = [1, 1, 1, 1]} : vector<2x10x10x8xf32> to vector<2x8x8x8xf32>
    %246 = vector.shape_cast %245 : vector<2x8x8x8xf32> to vector<128x8xf32>
    %247 = arith.truncf %246 : vector<128x8xf32> to vector<128x8xbf16>
    %c5_138 = arith.constant 5 : index
    %c0_139 = arith.constant 0 : index
    %c0_140 = arith.constant 0 : index
    %248 = vector.load %arg12[%c5_138, %c0_139, %c0_140] : memref<9x8x8xbf16, #tpu.memory_space<vmem>>, vector<1x8x8xbf16>
    %249 = vector.shape_cast %248 : vector<1x8x8xbf16> to vector<8x8xbf16>
    %cst_141 = arith.constant dense<0.000000e+00> : vector<128x8xf32>
    %250 = tpu.matmul %247, %249, %cst_141 {dimension_numbers = #tpu.dot_dimension_numbers<[1], [0], [0], [1], [0, 0, 1, 1], [], []>} : vector<128x8xbf16>, vector<8x8xbf16>, vector<128x8xf32> -> vector<128x8xf32>
    %251 = arith.addf %244, %250 : vector<128x8xf32>
    %252 = vector.extract_strided_slice %208 {offsets = [0, 2, 0, 0], sizes = [2, 8, 8, 8], strides = [1, 1, 1, 1]} : vector<2x10x10x8xf32> to vector<2x8x8x8xf32>
    %253 = vector.shape_cast %252 : vector<2x8x8x8xf32> to vector<128x8xf32>
    %254 = arith.truncf %253 : vector<128x8xf32> to vector<128x8xbf16>
    %c6_142 = arith.constant 6 : index
    %c0_143 = arith.constant 0 : index
    %c0_144 = arith.constant 0 : index
    %255 = vector.load %arg12[%c6_142, %c0_143, %c0_144] : memref<9x8x8xbf16, #tpu.memory_space<vmem>>, vector<1x8x8xbf16>
    %256 = vector.shape_cast %255 : vector<1x8x8xbf16> to vector<8x8xbf16>
    %cst_145 = arith.constant dense<0.000000e+00> : vector<128x8xf32>
    %257 = tpu.matmul %254, %256, %cst_145 {dimension_numbers = #tpu.dot_dimension_numbers<[1], [0], [0], [1], [0, 0, 1, 1], [], []>} : vector<128x8xbf16>, vector<8x8xbf16>, vector<128x8xf32> -> vector<128x8xf32>
    %258 = arith.addf %251, %257 : vector<128x8xf32>
    %259 = vector.extract_strided_slice %208 {offsets = [0, 2, 1, 0], sizes = [2, 8, 8, 8], strides = [1, 1, 1, 1]} : vector<2x10x10x8xf32> to vector<2x8x8x8xf32>
    %260 = vector.shape_cast %259 : vector<2x8x8x8xf32> to vector<128x8xf32>
    %261 = arith.truncf %260 : vector<128x8xf32> to vector<128x8xbf16>
    %c7_146 = arith.constant 7 : index
    %c0_147 = arith.constant 0 : index
    %c0_148 = arith.constant 0 : index
    %262 = vector.load %arg12[%c7_146, %c0_147, %c0_148] : memref<9x8x8xbf16, #tpu.memory_space<vmem>>, vector<1x8x8xbf16>
    %263 = vector.shape_cast %262 : vector<1x8x8xbf16> to vector<8x8xbf16>
    %cst_149 = arith.constant dense<0.000000e+00> : vector<128x8xf32>
    %264 = tpu.matmul %261, %263, %cst_149 {dimension_numbers = #tpu.dot_dimension_numbers<[1], [0], [0], [1], [0, 0, 1, 1], [], []>} : vector<128x8xbf16>, vector<8x8xbf16>, vector<128x8xf32> -> vector<128x8xf32>
    %265 = arith.addf %258, %264 : vector<128x8xf32>
    %266 = vector.extract_strided_slice %208 {offsets = [0, 2, 2, 0], sizes = [2, 8, 8, 8], strides = [1, 1, 1, 1]} : vector<2x10x10x8xf32> to vector<2x8x8x8xf32>
    %267 = vector.shape_cast %266 : vector<2x8x8x8xf32> to vector<128x8xf32>
    %268 = arith.truncf %267 : vector<128x8xf32> to vector<128x8xbf16>
    %c8_150 = arith.constant 8 : index
    %c0_151 = arith.constant 0 : index
    %c0_152 = arith.constant 0 : index
    %269 = vector.load %arg12[%c8_150, %c0_151, %c0_152] : memref<9x8x8xbf16, #tpu.memory_space<vmem>>, vector<1x8x8xbf16>
    %270 = vector.shape_cast %269 : vector<1x8x8xbf16> to vector<8x8xbf16>
    %cst_153 = arith.constant dense<0.000000e+00> : vector<128x8xf32>
    %271 = tpu.matmul %268, %270, %cst_153 {dimension_numbers = #tpu.dot_dimension_numbers<[1], [0], [0], [1], [0, 0, 1, 1], [], []>} : vector<128x8xbf16>, vector<8x8xbf16>, vector<128x8xf32> -> vector<128x8xf32>
    %272 = arith.addf %265, %271 : vector<128x8xf32>
    %273 = vector.broadcast %195 : vector<1x8xf32> to vector<128x8xf32>
    %274 = arith.addf %272, %273 : vector<128x8xf32>
    %cst_154 = arith.constant 0.000000e+00 : f32
    %275 = vector.broadcast %cst_154 : f32 to vector<128x8xf32>
    %276 = arith.maximumf %274, %275 : vector<128x8xf32>
    %277 = vector.shape_cast %276 : vector<128x8xf32> to vector<2x8x8x8xf32>
    %cst_155 = arith.constant 0.000000e+00 : f32
    %278 = vector.broadcast %cst_155 : f32 to vector<2x1x8x8xf32>
    %cst_156 = arith.constant 0.000000e+00 : f32
    %279 = vector.broadcast %cst_156 : f32 to vector<2x1x8x8xf32>
    %280 = tpu.concatenate %278, %277, %279 in 1 : vector<2x1x8x8xf32>, vector<2x8x8x8xf32>, vector<2x1x8x8xf32> -> vector<2x10x8x8xf32>
    %cst_157 = arith.constant 0.000000e+00 : f32
    %281 = vector.broadcast %cst_157 : f32 to vector<2x10x1x8xf32>
    %cst_158 = arith.constant 0.000000e+00 : f32
    %282 = vector.broadcast %cst_158 : f32 to vector<2x10x1x8xf32>
    %283 = tpu.concatenate %281, %280, %282 in 2 : vector<2x10x1x8xf32>, vector<2x10x8x8xf32>, vector<2x10x1x8xf32> -> vector<2x10x10x8xf32>
    %cst_159 = arith.constant 0.000000e+00 : f32
    %284 = vector.broadcast %cst_159 : f32 to vector<128x8xf32>
    %285 = vector.extract_strided_slice %283 {offsets = [0, 0, 0, 0], sizes = [2, 8, 8, 8], strides = [1, 1, 1, 1]} : vector<2x10x10x8xf32> to vector<2x8x8x8xf32>
    %286 = vector.shape_cast %285 : vector<2x8x8x8xf32> to vector<128x8xf32>
    %287 = arith.truncf %286 : vector<128x8xf32> to vector<128x8xbf16>
    %c0_160 = arith.constant 0 : index
    %c0_161 = arith.constant 0 : index
    %c0_162 = arith.constant 0 : index
    %288 = vector.load %arg14[%c0_160, %c0_161, %c0_162] : memref<9x8x8xbf16, #tpu.memory_space<vmem>>, vector<1x8x8xbf16>
    %289 = vector.shape_cast %288 : vector<1x8x8xbf16> to vector<8x8xbf16>
    %cst_163 = arith.constant dense<0.000000e+00> : vector<128x8xf32>
    %290 = tpu.matmul %287, %289, %cst_163 {dimension_numbers = #tpu.dot_dimension_numbers<[1], [0], [0], [1], [0, 0, 1, 1], [], []>} : vector<128x8xbf16>, vector<8x8xbf16>, vector<128x8xf32> -> vector<128x8xf32>
    %291 = arith.addf %284, %290 : vector<128x8xf32>
    %292 = vector.extract_strided_slice %283 {offsets = [0, 0, 1, 0], sizes = [2, 8, 8, 8], strides = [1, 1, 1, 1]} : vector<2x10x10x8xf32> to vector<2x8x8x8xf32>
    %293 = vector.shape_cast %292 : vector<2x8x8x8xf32> to vector<128x8xf32>
    %294 = arith.truncf %293 : vector<128x8xf32> to vector<128x8xbf16>
    %c1_164 = arith.constant 1 : index
    %c0_165 = arith.constant 0 : index
    %c0_166 = arith.constant 0 : index
    %295 = vector.load %arg14[%c1_164, %c0_165, %c0_166] : memref<9x8x8xbf16, #tpu.memory_space<vmem>>, vector<1x8x8xbf16>
    %296 = vector.shape_cast %295 : vector<1x8x8xbf16> to vector<8x8xbf16>
    %cst_167 = arith.constant dense<0.000000e+00> : vector<128x8xf32>
    %297 = tpu.matmul %294, %296, %cst_167 {dimension_numbers = #tpu.dot_dimension_numbers<[1], [0], [0], [1], [0, 0, 1, 1], [], []>} : vector<128x8xbf16>, vector<8x8xbf16>, vector<128x8xf32> -> vector<128x8xf32>
    %298 = arith.addf %291, %297 : vector<128x8xf32>
    %299 = vector.extract_strided_slice %283 {offsets = [0, 0, 2, 0], sizes = [2, 8, 8, 8], strides = [1, 1, 1, 1]} : vector<2x10x10x8xf32> to vector<2x8x8x8xf32>
    %300 = vector.shape_cast %299 : vector<2x8x8x8xf32> to vector<128x8xf32>
    %301 = arith.truncf %300 : vector<128x8xf32> to vector<128x8xbf16>
    %c2_168 = arith.constant 2 : index
    %c0_169 = arith.constant 0 : index
    %c0_170 = arith.constant 0 : index
    %302 = vector.load %arg14[%c2_168, %c0_169, %c0_170] : memref<9x8x8xbf16, #tpu.memory_space<vmem>>, vector<1x8x8xbf16>
    %303 = vector.shape_cast %302 : vector<1x8x8xbf16> to vector<8x8xbf16>
    %cst_171 = arith.constant dense<0.000000e+00> : vector<128x8xf32>
    %304 = tpu.matmul %301, %303, %cst_171 {dimension_numbers = #tpu.dot_dimension_numbers<[1], [0], [0], [1], [0, 0, 1, 1], [], []>} : vector<128x8xbf16>, vector<8x8xbf16>, vector<128x8xf32> -> vector<128x8xf32>
    %305 = arith.addf %298, %304 : vector<128x8xf32>
    %306 = vector.extract_strided_slice %283 {offsets = [0, 1, 0, 0], sizes = [2, 8, 8, 8], strides = [1, 1, 1, 1]} : vector<2x10x10x8xf32> to vector<2x8x8x8xf32>
    %307 = vector.shape_cast %306 : vector<2x8x8x8xf32> to vector<128x8xf32>
    %308 = arith.truncf %307 : vector<128x8xf32> to vector<128x8xbf16>
    %c3_172 = arith.constant 3 : index
    %c0_173 = arith.constant 0 : index
    %c0_174 = arith.constant 0 : index
    %309 = vector.load %arg14[%c3_172, %c0_173, %c0_174] : memref<9x8x8xbf16, #tpu.memory_space<vmem>>, vector<1x8x8xbf16>
    %310 = vector.shape_cast %309 : vector<1x8x8xbf16> to vector<8x8xbf16>
    %cst_175 = arith.constant dense<0.000000e+00> : vector<128x8xf32>
    %311 = tpu.matmul %308, %310, %cst_175 {dimension_numbers = #tpu.dot_dimension_numbers<[1], [0], [0], [1], [0, 0, 1, 1], [], []>} : vector<128x8xbf16>, vector<8x8xbf16>, vector<128x8xf32> -> vector<128x8xf32>
    %312 = arith.addf %305, %311 : vector<128x8xf32>
    %313 = vector.extract_strided_slice %283 {offsets = [0, 1, 1, 0], sizes = [2, 8, 8, 8], strides = [1, 1, 1, 1]} : vector<2x10x10x8xf32> to vector<2x8x8x8xf32>
    %314 = vector.shape_cast %313 : vector<2x8x8x8xf32> to vector<128x8xf32>
    %315 = arith.truncf %314 : vector<128x8xf32> to vector<128x8xbf16>
    %c4_176 = arith.constant 4 : index
    %c0_177 = arith.constant 0 : index
    %c0_178 = arith.constant 0 : index
    %316 = vector.load %arg14[%c4_176, %c0_177, %c0_178] : memref<9x8x8xbf16, #tpu.memory_space<vmem>>, vector<1x8x8xbf16>
    %317 = vector.shape_cast %316 : vector<1x8x8xbf16> to vector<8x8xbf16>
    %cst_179 = arith.constant dense<0.000000e+00> : vector<128x8xf32>
    %318 = tpu.matmul %315, %317, %cst_179 {dimension_numbers = #tpu.dot_dimension_numbers<[1], [0], [0], [1], [0, 0, 1, 1], [], []>} : vector<128x8xbf16>, vector<8x8xbf16>, vector<128x8xf32> -> vector<128x8xf32>
    %319 = arith.addf %312, %318 : vector<128x8xf32>
    %320 = vector.extract_strided_slice %283 {offsets = [0, 1, 2, 0], sizes = [2, 8, 8, 8], strides = [1, 1, 1, 1]} : vector<2x10x10x8xf32> to vector<2x8x8x8xf32>
    %321 = vector.shape_cast %320 : vector<2x8x8x8xf32> to vector<128x8xf32>
    %322 = arith.truncf %321 : vector<128x8xf32> to vector<128x8xbf16>
    %c5_180 = arith.constant 5 : index
    %c0_181 = arith.constant 0 : index
    %c0_182 = arith.constant 0 : index
    %323 = vector.load %arg14[%c5_180, %c0_181, %c0_182] : memref<9x8x8xbf16, #tpu.memory_space<vmem>>, vector<1x8x8xbf16>
    %324 = vector.shape_cast %323 : vector<1x8x8xbf16> to vector<8x8xbf16>
    %cst_183 = arith.constant dense<0.000000e+00> : vector<128x8xf32>
    %325 = tpu.matmul %322, %324, %cst_183 {dimension_numbers = #tpu.dot_dimension_numbers<[1], [0], [0], [1], [0, 0, 1, 1], [], []>} : vector<128x8xbf16>, vector<8x8xbf16>, vector<128x8xf32> -> vector<128x8xf32>
    %326 = arith.addf %319, %325 : vector<128x8xf32>
    %327 = vector.extract_strided_slice %283 {offsets = [0, 2, 0, 0], sizes = [2, 8, 8, 8], strides = [1, 1, 1, 1]} : vector<2x10x10x8xf32> to vector<2x8x8x8xf32>
    %328 = vector.shape_cast %327 : vector<2x8x8x8xf32> to vector<128x8xf32>
    %329 = arith.truncf %328 : vector<128x8xf32> to vector<128x8xbf16>
    %c6_184 = arith.constant 6 : index
    %c0_185 = arith.constant 0 : index
    %c0_186 = arith.constant 0 : index
    %330 = vector.load %arg14[%c6_184, %c0_185, %c0_186] : memref<9x8x8xbf16, #tpu.memory_space<vmem>>, vector<1x8x8xbf16>
    %331 = vector.shape_cast %330 : vector<1x8x8xbf16> to vector<8x8xbf16>
    %cst_187 = arith.constant dense<0.000000e+00> : vector<128x8xf32>
    %332 = tpu.matmul %329, %331, %cst_187 {dimension_numbers = #tpu.dot_dimension_numbers<[1], [0], [0], [1], [0, 0, 1, 1], [], []>} : vector<128x8xbf16>, vector<8x8xbf16>, vector<128x8xf32> -> vector<128x8xf32>
    %333 = arith.addf %326, %332 : vector<128x8xf32>
    %334 = vector.extract_strided_slice %283 {offsets = [0, 2, 1, 0], sizes = [2, 8, 8, 8], strides = [1, 1, 1, 1]} : vector<2x10x10x8xf32> to vector<2x8x8x8xf32>
    %335 = vector.shape_cast %334 : vector<2x8x8x8xf32> to vector<128x8xf32>
    %336 = arith.truncf %335 : vector<128x8xf32> to vector<128x8xbf16>
    %c7_188 = arith.constant 7 : index
    %c0_189 = arith.constant 0 : index
    %c0_190 = arith.constant 0 : index
    %337 = vector.load %arg14[%c7_188, %c0_189, %c0_190] : memref<9x8x8xbf16, #tpu.memory_space<vmem>>, vector<1x8x8xbf16>
    %338 = vector.shape_cast %337 : vector<1x8x8xbf16> to vector<8x8xbf16>
    %cst_191 = arith.constant dense<0.000000e+00> : vector<128x8xf32>
    %339 = tpu.matmul %336, %338, %cst_191 {dimension_numbers = #tpu.dot_dimension_numbers<[1], [0], [0], [1], [0, 0, 1, 1], [], []>} : vector<128x8xbf16>, vector<8x8xbf16>, vector<128x8xf32> -> vector<128x8xf32>
    %340 = arith.addf %333, %339 : vector<128x8xf32>
    %341 = vector.extract_strided_slice %283 {offsets = [0, 2, 2, 0], sizes = [2, 8, 8, 8], strides = [1, 1, 1, 1]} : vector<2x10x10x8xf32> to vector<2x8x8x8xf32>
    %342 = vector.shape_cast %341 : vector<2x8x8x8xf32> to vector<128x8xf32>
    %343 = arith.truncf %342 : vector<128x8xf32> to vector<128x8xbf16>
    %c8_192 = arith.constant 8 : index
    %c0_193 = arith.constant 0 : index
    %c0_194 = arith.constant 0 : index
    %344 = vector.load %arg14[%c8_192, %c0_193, %c0_194] : memref<9x8x8xbf16, #tpu.memory_space<vmem>>, vector<1x8x8xbf16>
    %345 = vector.shape_cast %344 : vector<1x8x8xbf16> to vector<8x8xbf16>
    %cst_195 = arith.constant dense<0.000000e+00> : vector<128x8xf32>
    %346 = tpu.matmul %343, %345, %cst_195 {dimension_numbers = #tpu.dot_dimension_numbers<[1], [0], [0], [1], [0, 0, 1, 1], [], []>} : vector<128x8xbf16>, vector<8x8xbf16>, vector<128x8xf32> -> vector<128x8xf32>
    %347 = arith.addf %340, %346 : vector<128x8xf32>
    %348 = arith.addf %347, %192 : vector<128x8xf32>
    %c0_196 = arith.constant 0 : index
    %c0_197 = arith.constant 0 : index
    %349 = vector.load %arg15[%c0_196, %c0_197] : memref<128x8xf32, #tpu.memory_space<vmem>>, vector<128x8xf32>
    tpu.vector_store %arg15[%c0_196, %c0_197], %348 {strides = array<i32>} : memref<128x8xf32, #tpu.memory_space<vmem>>, vector<128x8xf32>,
    return
  }
}

</mosaic_0001>

<llo_original>
// kernel: _lambda_.1
$region0: #{_lambda_.1}
  #allocation0 [shape = 'u32[]', space=smem, size = 0x4, offset = 0x4, fixed_abs, tag = 'smem constant byte address 0x4 - core index']
  #allocation1 [shape = 'u32[144,128]{1,0:T(1,128)}', space=vmem, size = 0x12000, scoped, tag = 'internal scratch']
  %s0 = inlined_call_operand.vmem [shape: f32[2,8,8,4], index: 0, kind: input, shape index: {}]
  %s1 = inlined_call_operand.vmem [shape: f32[2,8,8,4], index: 1, kind: input, shape index: {}]
  %s2 = inlined_call_operand.vmem [shape: f32[2,8,8,4], index: 2, kind: input, shape index: {}]
  %s3 = inlined_call_operand.vmem [shape: f32[2,8,8,4], index: 3, kind: input, shape index: {}]
  %s4 = inlined_call_operand.vmem [shape: f32[1,4], index: 4, kind: input, shape index: {}]
  %s5 = inlined_call_operand.vmem [shape: f32[1,4], index: 5, kind: input, shape index: {}]
  %s6 = inlined_call_operand.vmem [shape: bf16[9,4,8], index: 6, kind: input, shape index: {}]
  %s7 = inlined_call_operand.vmem [shape: f32[1,8], index: 7, kind: input, shape index: {}]
  %s8 = inlined_call_operand.vmem [shape: bf16[9,8,8], index: 8, kind: input, shape index: {}]
  %s9 = inlined_call_operand.vmem [shape: bf16[4,8], index: 9, kind: input, shape index: {}]
  %s10 = inlined_call_operand.vmem [shape: f32[1,8], index: 10, kind: input, shape index: {}]
  %s11 = inlined_call_operand.vmem [shape: f32[1,8], index: 11, kind: input, shape index: {}]
  %s12 = inlined_call_operand.vmem [shape: bf16[9,8,8], index: 12, kind: input, shape index: {}]
  %s13 = inlined_call_operand.vmem [shape: f32[1,8], index: 13, kind: input, shape index: {}]
  %s14 = inlined_call_operand.vmem [shape: bf16[9,8,8], index: 14, kind: input, shape index: {}]
  %s15 = inlined_call_operand.vmem [shape: f32[128,8], index: 15, kind: output, shape index: {}]
  %s16 = sld [smem:[#allocation0]]
  $region70: #{_lambda_.1} parent=0
    _
  %s18 = ssub.s32 1, %s16
  %s19 = scalar_select 0, %s18, %s16
  // Predicated region
  $region2: #{_lambda_.1} parent=0 // pred_check
    _
  $region3: #{_lambda_.1} parent=0 // pred_check_branch
    %21 = sbr.rel (0) target = $region5
  $region4: #{_lambda_.1} parent=0 // pred_region
    _
  $region5: #{_lambda_.1} parent=0 // pred_fallthru
    _
  // Predicated region
  $region6: #{_lambda_.1} parent=0 // pred_check
    _
  $region7: #{_lambda_.1} parent=0 // pred_check_branch
    %23 = sbr.rel (0) target = $region9
  $region8: #{_lambda_.1} parent=0 // pred_region
    _
  $region9: #{_lambda_.1} parent=0 // pred_fallthru
    _
  // Predicated region
  $region10: #{_lambda_.1} parent=0 // pred_check
    _
  $region11: #{_lambda_.1} parent=0 // pred_check_branch
    %25 = sbr.rel (0) target = $region13
  $region12: #{_lambda_.1} parent=0 // pred_region
    _
  $region13: #{_lambda_.1} parent=0 // pred_fallthru
    _
  // Predicated region
  $region14: #{_lambda_.1} parent=0 // pred_check
    _
  $region15: #{_lambda_.1} parent=0 // pred_check_branch
    %27 = sbr.rel (0) target = $region17
  $region16: #{_lambda_.1} parent=0 // pred_region
    _
  $region17: #{_lambda_.1} parent=0 // pred_fallthru
    _
  // Predicated region
  $region18: #{_lambda_.1} parent=0 // pred_check
    _
  $region19: #{_lambda_.1} parent=0 // pred_check_branch
    %29 = sbr.rel (0) target = $region21
  $region20: #{_lambda_.1} parent=0 // pred_region
    _
  $region21: #{_lambda_.1} parent=0 // pred_fallthru
    _
  // Predicated region
  $region22: #{_lambda_.1} parent=0 // pred_check
    _
  $region23: #{_lambda_.1} parent=0 // pred_check_branch
    %31 = sbr.rel (0) target = $region25
  $region24: #{_lambda_.1} parent=0 // pred_region
    _
  $region25: #{_lambda_.1} parent=0 // pred_fallthru
    _
  // Predicated region
  $region26: #{_lambda_.1} parent=0 // pred_check
    _
  $region27: #{_lambda_.1} parent=0 // pred_check_branch
    %33 = sbr.rel (0) target = $region29
  $region28: #{_lambda_.1} parent=0 // pred_region
    _
  $region29: #{_lambda_.1} parent=0 // pred_fallthru
    _
  // Predicated region
  $region30: #{_lambda_.1} parent=0 // pred_check
    _
  $region31: #{_lambda_.1} parent=0 // pred_check_branch
    %35 = sbr.rel (0) target = $region33
  $region32: #{_lambda_.1} parent=0 // pred_region
    _
  $region33: #{_lambda_.1} parent=0 // pred_fallthru
    _
  // Predicated region
  $region34: #{_lambda_.1} parent=0 // pred_check
    _
  $region35: #{_lambda_.1} parent=0 // pred_check_branch
    %37 = sbr.rel (0) target = $region37
  $region36: #{_lambda_.1} parent=0 // pred_region
    _
  $region37: #{_lambda_.1} parent=0 // pred_fallthru
    _
  // Predicated region
  $region38: #{_lambda_.1} parent=0 // pred_check
    _
  $region39: #{_lambda_.1} parent=0 // pred_check_branch
    %39 = sbr.rel (0) target = $region41
  $region40: #{_lambda_.1} parent=0 // pred_region
    _
  $region41: #{_lambda_.1} parent=0 // pred_fallthru
    _
  // Predicated region
  $region42: #{_lambda_.1} parent=0 // pred_check
    _
  $region43: #{_lambda_.1} parent=0 // pred_check_branch
    %41 = sbr.rel (0) target = $region45
  $region44: #{_lambda_.1} parent=0 // pred_region
    _
  $region45: #{_lambda_.1} parent=0 // pred_fallthru
    _
  // Predicated region
  $region46: #{_lambda_.1} parent=0 // pred_check
    _
  $region47: #{_lambda_.1} parent=0 // pred_check_branch
    %43 = sbr.rel (0) target = $region49
  $region48: #{_lambda_.1} parent=0 // pred_region
    _
  $region49: #{_lambda_.1} parent=0 // pred_fallthru
    _
  // Predicated region
  $region50: #{_lambda_.1} parent=0 // pred_check
    _
  $region51: #{_lambda_.1} parent=0 // pred_check_branch
    %45 = sbr.rel (0) target = $region53
  $region52: #{_lambda_.1} parent=0 // pred_region
    _
  $region53: #{_lambda_.1} parent=0 // pred_fallthru
    _
  // Predicated region
  $region54: #{_lambda_.1} parent=0 // pred_check
    _
  $region55: #{_lambda_.1} parent=0 // pred_check_branch
    %47 = sbr.rel (0) target = $region57
  $region56: #{_lambda_.1} parent=0 // pred_region
    _
  $region57: #{_lambda_.1} parent=0 // pred_fallthru
    _
  // Predicated region
  $region58: #{_lambda_.1} parent=0 // pred_check
    _
  $region59: #{_lambda_.1} parent=0 // pred_check_branch
    %49 = sbr.rel (0) target = $region61
  $region60: #{_lambda_.1} parent=0 // pred_region
    _
  $region61: #{_lambda_.1} parent=0 // pred_fallthru
    _
  %v51 = vld [vmem:[%s4] sm:$0x1]
  %v52 = vld [vmem:[%s5] sm:$0x1]
  %v53 = vld [vmem:[%s7] sm:$0x1]
  %v54 = vld [vmem:[%s0] sm:$0xff]
  %v55 = vld [vmem:[%s0 + $0x8] sm:$0xff]
  %v56 = vld [vmem:[%s0 + $0x10] sm:$0xff]
  %v57 = vld [vmem:[%s0 + $0x18] sm:$0xff]
  %v58 = vld [vmem:[%s0 + $0x20] sm:$0xff]
  %v59 = vld [vmem:[%s0 + $0x28] sm:$0xff]
  %v60 = vld [vmem:[%s0 + $0x30] sm:$0xff]
  %v61 = vld [vmem:[%s0 + $0x38] sm:$0xff]
  %v62 = vld [vmem:[%s0 + $0x40] sm:$0xff]
  %v63 = vld [vmem:[%s0 + $0x48] sm:$0xff]
  %v64 = vld [vmem:[%s0 + $0x50] sm:$0xff]
  %v65 = vld [vmem:[%s0 + $0x58] sm:$0xff]
  %v66 = vld [vmem:[%s0 + $0x60] sm:$0xff]
  %v67 = vld [vmem:[%s0 + $0x68] sm:$0xff]
  %v68 = vld [vmem:[%s0 + $0x70] sm:$0xff]
  %v69 = vld [vmem:[%s0 + $0x78] sm:$0xff]
  %v71 = vlaneseq
  %v72 = vshrl.u32 %v71, 7
  %v73 = vsub.s32 0, %v72
  %v74 = vrot.slane %v51, %v73
  %v76 = vmul.f32 %v54, %v74
  %v77 = vmul.f32 %v55, %v74
  %v78 = vmul.f32 %v56, %v74
  %v79 = vmul.f32 %v57, %v74
  %v80 = vmul.f32 %v58, %v74
  %v81 = vmul.f32 %v59, %v74
  %v82 = vmul.f32 %v60, %v74
  %v83 = vmul.f32 %v61, %v74
  %v84 = vmul.f32 %v62, %v74
  %v85 = vmul.f32 %v63, %v74
  %v86 = vmul.f32 %v64, %v74
  %v87 = vmul.f32 %v65, %v74
  %v88 = vmul.f32 %v66, %v74
  %v89 = vmul.f32 %v67, %v74
  %v90 = vmul.f32 %v68, %v74
  %v91 = vmul.f32 %v69, %v74
  %v93 = vlaneseq
  %v94 = vshrl.u32 %v93, 7
  %v95 = vsub.s32 0, %v94
  %v96 = vrot.slane %v52, %v95
  %v98 = vadd.f32 %v76, %v96
  %v99 = vadd.f32 %v77, %v96
  %v100 = vadd.f32 %v78, %v96
  %v101 = vadd.f32 %v79, %v96
  %v102 = vadd.f32 %v80, %v96
  %v103 = vadd.f32 %v81, %v96
  %v104 = vadd.f32 %v82, %v96
  %v105 = vadd.f32 %v83, %v96
  %v106 = vadd.f32 %v84, %v96
  %v107 = vadd.f32 %v85, %v96
  %v108 = vadd.f32 %v86, %v96
  %v109 = vadd.f32 %v87, %v96
  %v110 = vadd.f32 %v88, %v96
  %v111 = vadd.f32 %v89, %v96
  %v112 = vadd.f32 %v90, %v96
  %v113 = vadd.f32 %v91, %v96
  %v114 = vmax.f32 %v98, 0.0
  %v115 = vmax.f32 %v99, 0.0
  %v116 = vmax.f32 %v100, 0.0
  %v117 = vmax.f32 %v101, 0.0
  %v118 = vmax.f32 %v102, 0.0
  %v119 = vmax.f32 %v103, 0.0
  %v120 = vmax.f32 %v104, 0.0
  %v121 = vmax.f32 %v105, 0.0
  %v122 = vmax.f32 %v106, 0.0
  %v123 = vmax.f32 %v107, 0.0
  %v124 = vmax.f32 %v108, 0.0
  %v125 = vmax.f32 %v109, 0.0
  %v126 = vmax.f32 %v110, 0.0
  %v127 = vmax.f32 %v111, 0.0
  %v128 = vmax.f32 %v112, 0.0
  %v129 = vmax.f32 %v113, 0.0
  %v130 = vld [vmem:[%s1] sm:$0xff]
  %v131 = vld [vmem:[%s1 + $0x8] sm:$0xff]
  %v132 = vld [vmem:[%s1 + $0x10] sm:$0xff]
  %v133 = vld [vmem:[%s1 + $0x18] sm:$0xff]
  %v134 = vld [vmem:[%s1 + $0x20] sm:$0xff]
  %v135 = vld [vmem:[%s1 + $0x28] sm:$0xff]
  %v136 = vld [vmem:[%s1 + $0x30] sm:$0xff]
  %v137 = vld [vmem:[%s1 + $0x38] sm:$0xff]
  %v138 = vld [vmem:[%s1 + $0x40] sm:$0xff]
  %v139 = vld [vmem:[%s1 + $0x48] sm:$0xff]
  %v140 = vld [vmem:[%s1 + $0x50] sm:$0xff]
  %v141 = vld [vmem:[%s1 + $0x58] sm:$0xff]
  %v142 = vld [vmem:[%s1 + $0x60] sm:$0xff]
  %v143 = vld [vmem:[%s1 + $0x68] sm:$0xff]
  %v144 = vld [vmem:[%s1 + $0x70] sm:$0xff]
  %v145 = vld [vmem:[%s1 + $0x78] sm:$0xff]
  %v146 = vmul.f32 %v130, %v74
  %v147 = vmul.f32 %v131, %v74
  %v148 = vmul.f32 %v132, %v74
  %v149 = vmul.f32 %v133, %v74
  %v150 = vmul.f32 %v134, %v74
  %v151 = vmul.f32 %v135, %v74
  %v152 = vmul.f32 %v136, %v74
  %v153 = vmul.f32 %v137, %v74
  %v154 = vmul.f32 %v138, %v74
  %v155 = vmul.f32 %v139, %v74
  %v156 = vmul.f32 %v140, %v74
  %v157 = vmul.f32 %v141, %v74
  %v158 = vmul.f32 %v142, %v74
  %v159 = vmul.f32 %v143, %v74
  %v160 = vmul.f32 %v144, %v74
  %v161 = vmul.f32 %v145, %v74
  %v162 = vadd.f32 %v146, %v96
  %v163 = vadd.f32 %v147, %v96
  %v164 = vadd.f32 %v148, %v96
  %v165 = vadd.f32 %v149, %v96
  %v166 = vadd.f32 %v150, %v96
  %v167 = vadd.f32 %v151, %v96
  %v168 = vadd.f32 %v152, %v96
  %v169 = vadd.f32 %v153, %v96
  %v170 = vadd.f32 %v154, %v96
  %v171 = vadd.f32 %v155, %v96
  %v172 = vadd.f32 %v156, %v96
  %v173 = vadd.f32 %v157, %v96
  %v174 = vadd.f32 %v158, %v96
  %v175 = vadd.f32 %v159, %v96
  %v176 = vadd.f32 %v160, %v96
  %v177 = vadd.f32 %v161, %v96
  %v178 = vmax.f32 %v162, 0.0
  %v179 = vmax.f32 %v163, 0.0
  %v180 = vmax.f32 %v164, 0.0
  %v181 = vmax.f32 %v165, 0.0
  %v182 = vmax.f32 %v166, 0.0
  %v183 = vmax.f32 %v167, 0.0
  %v184 = vmax.f32 %v168, 0.0
  %v185 = vmax.f32 %v169, 0.0
  %v186 = vmax.f32 %v170, 0.0
  %v187 = vmax.f32 %v171, 0.0
  %v188 = vmax.f32 %v172, 0.0
  %v189 = vmax.f32 %v173, 0.0
  %v190 = vmax.f32 %v174, 0.0
  %v191 = vmax.f32 %v175, 0.0
  %v192 = vmax.f32 %v176, 0.0
  %v193 = vmax.f32 %v177, 0.0
  %v194 = vld [vmem:[%s2] sm:$0xff]
  %v195 = vld [vmem:[%s2 + $0x8] sm:$0xff]
  %v196 = vld [vmem:[%s2 + $0x10] sm:$0xff]
  %v197 = vld [vmem:[%s2 + $0x18] sm:$0xff]
  %v198 = vld [vmem:[%s2 + $0x20] sm:$0xff]
  %v199 = vld [vmem:[%s2 + $0x28] sm:$0xff]
  %v200 = vld [vmem:[%s2 + $0x30] sm:$0xff]
  %v201 = vld [vmem:[%s2 + $0x38] sm:$0xff]
  %v202 = vld [vmem:[%s2 + $0x40] sm:$0xff]
  %v203 = vld [vmem:[%s2 + $0x48] sm:$0xff]
  %v204 = vld [vmem:[%s2 + $0x50] sm:$0xff]
  %v205 = vld [vmem:[%s2 + $0x58] sm:$0xff]
  %v206 = vld [vmem:[%s2 + $0x60] sm:$0xff]
  %v207 = vld [vmem:[%s2 + $0x68] sm:$0xff]
  %v208 = vld [vmem:[%s2 + $0x70] sm:$0xff]
  %v209 = vld [vmem:[%s2 + $0x78] sm:$0xff]
  %v210 = vmul.f32 %v194, %v74
  %v211 = vmul.f32 %v195, %v74
  %v212 = vmul.f32 %v196, %v74
  %v213 = vmul.f32 %v197, %v74
  %v214 = vmul.f32 %v198, %v74
  %v215 = vmul.f32 %v199, %v74
  %v216 = vmul.f32 %v200, %v74
  %v217 = vmul.f32 %v201, %v74
  %v218 = vmul.f32 %v202, %v74
  %v219 = vmul.f32 %v203, %v74
  %v220 = vmul.f32 %v204, %v74
  %v221 = vmul.f32 %v205, %v74
  %v222 = vmul.f32 %v206, %v74
  %v223 = vmul.f32 %v207, %v74
  %v224 = vmul.f32 %v208, %v74
  %v225 = vmul.f32 %v209, %v74
  %v226 = vadd.f32 %v210, %v96
  %v227 = vadd.f32 %v211, %v96
  %v228 = vadd.f32 %v212, %v96
  %v229 = vadd.f32 %v213, %v96
  %v230 = vadd.f32 %v214, %v96
  %v231 = vadd.f32 %v215, %v96
  %v232 = vadd.f32 %v216, %v96
  %v233 = vadd.f32 %v217, %v96
  %v234 = vadd.f32 %v218, %v96
  %v235 = vadd.f32 %v219, %v96
  %v236 = vadd.f32 %v220, %v96
  %v237 = vadd.f32 %v221, %v96
  %v238 = vadd.f32 %v222, %v96
  %v239 = vadd.f32 %v223, %v96
  %v240 = vadd.f32 %v224, %v96
  %v241 = vadd.f32 %v225, %v96
  %v242 = vmax.f32 %v226, 0.0
  %v243 = vmax.f32 %v227, 0.0
  %v244 = vmax.f32 %v228, 0.0
  %v245 = vmax.f32 %v229, 0.0
  %v246 = vmax.f32 %v230, 0.0
  %v247 = vmax.f32 %v231, 0.0
  %v248 = vmax.f32 %v232, 0.0
  %v249 = vmax.f32 %v233, 0.0
  %v250 = vmax.f32 %v234, 0.0
  %v251 = vmax.f32 %v235, 0.0
  %v252 = vmax.f32 %v236, 0.0
  %v253 = vmax.f32 %v237, 0.0
  %v254 = vmax.f32 %v238, 0.0
  %v255 = vmax.f32 %v239, 0.0
  %v256 = vmax.f32 %v240, 0.0
  %v257 = vmax.f32 %v241, 0.0
  %v258 = vld [vmem:[%s3] sm:$0xff]
  %v259 = vld [vmem:[%s3 + $0x8] sm:$0xff]
  %v260 = vld [vmem:[%s3 + $0x10] sm:$0xff]
  %v261 = vld [vmem:[%s3 + $0x18] sm:$0xff]
  %v262 = vld [vmem:[%s3 + $0x20] sm:$0xff]
  %v263 = vld [vmem:[%s3 + $0x28] sm:$0xff]
  %v264 = vld [vmem:[%s3 + $0x30] sm:$0xff]
  %v265 = vld [vmem:[%s3 + $0x38] sm:$0xff]
  %v266 = vld [vmem:[%s3 + $0x40] sm:$0xff]
  %v267 = vld [vmem:[%s3 + $0x48] sm:$0xff]
  %v268 = vld [vmem:[%s3 + $0x50] sm:$0xff]
  %v269 = vld [vmem:[%s3 + $0x58] sm:$0xff]
  %v270 = vld [vmem:[%s3 + $0x60] sm:$0xff]
  %v271 = vld [vmem:[%s3 + $0x68] sm:$0xff]
  %v272 = vld [vmem:[%s3 + $0x70] sm:$0xff]
  %v273 = vld [vmem:[%s3 + $0x78] sm:$0xff]
  %v274 = vmul.f32 %v258, %v74
  %v275 = vmul.f32 %v259, %v74
  %v276 = vmul.f32 %v260, %v74
  %v277 = vmul.f32 %v261, %v74
  %v278 = vmul.f32 %v262, %v74
  %v279 = vmul.f32 %v263, %v74
  %v280 = vmul.f32 %v264, %v74
  %v281 = vmul.f32 %v265, %v74
  %v282 = vmul.f32 %v266, %v74
  %v283 = vmul.f32 %v267, %v74
  %v284 = vmul.f32 %v268, %v74
  %v285 = vmul.f32 %v269, %v74
  %v286 = vmul.f32 %v270, %v74
  %v287 = vmul.f32 %v271, %v74
  %v288 = vmul.f32 %v272, %v74
  %v289 = vmul.f32 %v273, %v74
  %v290 = vadd.f32 %v274, %v96
  %v291 = vadd.f32 %v275, %v96
  %v292 = vadd.f32 %v276, %v96
  %v293 = vadd.f32 %v277, %v96
  %v294 = vadd.f32 %v278, %v96
  %v295 = vadd.f32 %v279, %v96
  %v296 = vadd.f32 %v280, %v96
  %v297 = vadd.f32 %v281, %v96
  %v298 = vadd.f32 %v282, %v96
  %v299 = vadd.f32 %v283, %v96
  %v300 = vadd.f32 %v284, %v96
  %v301 = vadd.f32 %v285, %v96
  %v302 = vadd.f32 %v286, %v96
  %v303 = vadd.f32 %v287, %v96
  %v304 = vadd.f32 %v288, %v96
  %v305 = vadd.f32 %v289, %v96
  %v306 = vmax.f32 %v290, 0.0
  %v307 = vmax.f32 %v291, 0.0
  %v308 = vmax.f32 %v292, 0.0
  %v309 = vmax.f32 %v293, 0.0
  %v310 = vmax.f32 %v294, 0.0
  %v311 = vmax.f32 %v295, 0.0
  %v312 = vmax.f32 %v296, 0.0
  %v313 = vmax.f32 %v297, 0.0
  %v314 = vmax.f32 %v298, 0.0
  %v315 = vmax.f32 %v299, 0.0
  %v316 = vmax.f32 %v300, 0.0
  %v317 = vmax.f32 %v301, 0.0
  %v318 = vmax.f32 %v302, 0.0
  %v319 = vmax.f32 %v303, 0.0
  %v320 = vmax.f32 %v304, 0.0
  %v321 = vmax.f32 %v305, 0.0
  %v338 = vrot.slane %v114, 7
  %v339 = vrot.slane %v115, 7
  %v340 = vrot.slane %v116, 7
  %v341 = vrot.slane %v117, 7
  %v342 = vrot.slane %v118, 7
  %v343 = vrot.slane %v119, 7
  %v344 = vrot.slane %v120, 7
  %v345 = vrot.slane %v121, 7
  %v346 = vrot.slane %v122, 7
  %v347 = vrot.slane %v123, 7
  %v348 = vrot.slane %v124, 7
  %v349 = vrot.slane %v125, 7
  %v350 = vrot.slane %v126, 7
  %v351 = vrot.slane %v127, 7
  %v352 = vrot.slane %v128, 7
  %v353 = vrot.slane %v129, 7
  %vm370 = vcmask 1040384
  %v371 = vsel %vm370, 0.0, %v338
  %v372 = vsel %vm370, 0.0, %v339
  %v373 = vsel %vm370, 0.0, %v340
  %v374 = vsel %vm370, 0.0, %v341
  %v375 = vsel %vm370, 0.0, %v342
  %v376 = vsel %vm370, 0.0, %v343
  %v377 = vsel %vm370, 0.0, %v344
  %v378 = vsel %vm370, 0.0, %v345
  %v379 = vsel %vm370, 0.0, %v346
  %v380 = vsel %vm370, 0.0, %v347
  %v381 = vsel %vm370, 0.0, %v348
  %v382 = vsel %vm370, 0.0, %v349
  %v383 = vsel %vm370, 0.0, %v350
  %v384 = vsel %vm370, 0.0, %v351
  %v385 = vsel %vm370, 0.0, %v352
  %v386 = vsel %vm370, 0.0, %v353
  %v403 = vrot.slane %v178, 7
  %v404 = vrot.slane %v179, 7
  %v405 = vrot.slane %v180, 7
  %v406 = vrot.slane %v181, 7
  %v407 = vrot.slane %v182, 7
  %v408 = vrot.slane %v183, 7
  %v409 = vrot.slane %v184, 7
  %v410 = vrot.slane %v185, 7
  %v411 = vrot.slane %v186, 7
  %v412 = vrot.slane %v187, 7
  %v413 = vrot.slane %v188, 7
  %v414 = vrot.slane %v189, 7
  %v415 = vrot.slane %v190, 7
  %v416 = vrot.slane %v191, 7
  %v417 = vrot.slane %v192, 7
  %v418 = vrot.slane %v193, 7
  %v435 = vsel %vm370, 0.0, %v403
  %v436 = vsel %vm370, 0.0, %v404
  %v437 = vsel %vm370, 0.0, %v405
  %v438 = vsel %vm370, 0.0, %v406
  %v439 = vsel %vm370, 0.0, %v407
  %v440 = vsel %vm370, 0.0, %v408
  %v441 = vsel %vm370, 0.0, %v409
  %v442 = vsel %vm370, 0.0, %v410
  %v443 = vsel %vm370, 0.0, %v411
  %v444 = vsel %vm370, 0.0, %v412
  %v445 = vsel %vm370, 0.0, %v413
  %v446 = vsel %vm370, 0.0, %v414
  %v447 = vsel %vm370, 0.0, %v415
  %v448 = vsel %vm370, 0.0, %v416
  %v449 = vsel %vm370, 0.0, %v417
  %v450 = vsel %vm370, 0.0, %v418
  %v468 = vrot.slane 0.0, 7
  %v469 = vrot.slane %v242, 7
  %v470 = vrot.slane %v243, 7
  %v471 = vrot.slane %v244, 7
  %v472 = vrot.slane %v245, 7
  %v473 = vrot.slane %v246, 7
  %v474 = vrot.slane %v247, 7
  %v475 = vrot.slane %v248, 7
  %v476 = vrot.slane %v249, 7
  %v477 = vrot.slane %v250, 7
  %v478 = vrot.slane %v251, 7
  %v479 = vrot.slane %v252, 7
  %v480 = vrot.slane %v253, 7
  %v481 = vrot.slane %v254, 7
  %v482 = vrot.slane %v255, 7
  %v483 = vrot.slane %v256, 7
  %v484 = vrot.slane %v257, 7
  %v502 = vsel %vm370, 0.0, %v468
  %v503 = vsel %vm370, 0.0, %v469
  %v504 = vsel %vm370, 0.0, %v470
  %v505 = vsel %vm370, 0.0, %v471
  %v506 = vsel %vm370, 0.0, %v472
  %v507 = vsel %vm370, 0.0, %v473
  %v508 = vsel %vm370, 0.0, %v474
  %v509 = vsel %vm370, 0.0, %v475
  %v510 = vsel %vm370, 0.0, %v476
  %v511 = vsel %vm370, 0.0, %v477
  %v512 = vsel %vm370, 0.0, %v478
  %v513 = vsel %vm370, 0.0, %v479
  %v514 = vsel %vm370, 0.0, %v480
  %v515 = vsel %vm370, 0.0, %v481
  %v516 = vsel %vm370, 0.0, %v482
  %v517 = vsel %vm370, 0.0, %v483
  %v518 = vsel %vm370, 0.0, %v484
  %v535 = vrot.slane %v306, 7
  %v536 = vrot.slane %v307, 7
  %v537 = vrot.slane %v308, 7
  %v538 = vrot.slane %v309, 7
  %v539 = vrot.slane %v310, 7
  %v540 = vrot.slane %v311, 7
  %v541 = vrot.slane %v312, 7
  %v542 = vrot.slane %v313, 7
  %v543 = vrot.slane %v314, 7
  %v544 = vrot.slane %v315, 7
  %v545 = vrot.slane %v316, 7
  %v546 = vrot.slane %v317, 7
  %v547 = vrot.slane %v318, 7
  %v548 = vrot.slane %v319, 7
  %v549 = vrot.slane %v320, 7
  %v550 = vrot.slane %v321, 7
  %v567 = vsel %vm370, 0.0, %v535
  %v568 = vsel %vm370, 0.0, %v536
  %v569 = vsel %vm370, 0.0, %v537
  %v570 = vsel %vm370, 0.0, %v538
  %v571 = vsel %vm370, 0.0, %v539
  %v572 = vsel %vm370, 0.0, %v540
  %v573 = vsel %vm370, 0.0, %v541
  %v574 = vsel %vm370, 0.0, %v542
  %v575 = vsel %vm370, 0.0, %v543
  %v576 = vsel %vm370, 0.0, %v544
  %v577 = vsel %vm370, 0.0, %v545
  %v578 = vsel %vm370, 0.0, %v546
  %v579 = vsel %vm370, 0.0, %v547
  %v580 = vsel %vm370, 0.0, %v548
  %v581 = vsel %vm370, 0.0, %v549
  %v582 = vsel %vm370, 0.0, %v550
  %v583 = vpack.c.bf16 %v567, %v502
  %v584 = vpack.c.bf16 %v569, %v568
  %v585 = vpack.c.bf16 %v571, %v570
  %v586 = vpack.c.bf16 %v573, %v572
  %v587 = vpack.c.bf16 %v575, %v502
  %v588 = vpack.c.bf16 %v577, %v576
  %v589 = vpack.c.bf16 %v579, %v578
  %v590 = vpack.c.bf16 %v581, %v580
  %v591 = vld [vmem:[%s6] sm:$0x3]
  %vm607 = vcmask 1046528
  %v608 = vrot.slane %v502, 1
  %v609 = vrot.slane %v468, 1
  %v610 = vsel %vm607, %v608, %v609
  %v611 = vrot.slane %v503, 1
  %v612 = vrot.slane %v469, 1
  %v613 = vsel %vm607, %v611, %v612
  %v614 = vrot.slane %v504, 1
  %v615 = vrot.slane %v470, 1
  %v616 = vsel %vm607, %v614, %v615
  %v617 = vrot.slane %v505, 1
  %v618 = vrot.slane %v471, 1
  %v619 = vsel %vm607, %v617, %v618
  %v620 = vrot.slane %v506, 1
  %v621 = vrot.slane %v472, 1
  %v622 = vsel %vm607, %v620, %v621
  %v623 = vrot.slane %v507, 1
  %v624 = vrot.slane %v473, 1
  %v625 = vsel %vm607, %v623, %v624
  %v626 = vrot.slane %v508, 1
  %v627 = vrot.slane %v474, 1
  %v628 = vsel %vm607, %v626, %v627
  %v629 = vrot.slane %v509, 1
  %v630 = vrot.slane %v475, 1
  %v631 = vsel %vm607, %v629, %v630
  %v632 = vrot.slane %v511, 1
  %v633 = vrot.slane %v477, 1
  %v634 = vsel %vm607, %v632, %v633
  %v635 = vrot.slane %v512, 1
  %v636 = vrot.slane %v478, 1
  %v637 = vsel %vm607, %v635, %v636
  %v638 = vrot.slane %v513, 1
  %v639 = vrot.slane %v479, 1
  %v640 = vsel %vm607, %v638, %v639
  %v641 = vrot.slane %v514, 1
  %v642 = vrot.slane %v480, 1
  %v643 = vsel %vm607, %v641, %v642
  %v644 = vrot.slane %v515, 1
  %v645 = vrot.slane %v481, 1
  %v646 = vsel %vm607, %v644, %v645
  %v647 = vrot.slane %v516, 1
  %v648 = vrot.slane %v482, 1
  %v649 = vsel %vm607, %v647, %v648
  %v650 = vrot.slane %v517, 1
  %v651 = vrot.slane %v483, 1
  %v652 = vsel %vm607, %v650, %v651
  %v668 = vpack.c.bf16 %v613, %v610
  %v669 = vpack.c.bf16 %v619, %v616
  %v670 = vpack.c.bf16 %v625, %v622
  %v671 = vpack.c.bf16 %v631, %v628
  %v672 = vpack.c.bf16 %v634, %v610
  %v673 = vpack.c.bf16 %v640, %v637
  %v674 = vpack.c.bf16 %v646, %v643
  %v675 = vpack.c.bf16 %v652, %v649
  %s676 = scalar_lea.vmem %s6, 2
  %v677 = vld [vmem:[%s676] sm:$0x3]
  %vm678 = vcmask 31744
  %v680 = vsel %vm678, %v668, 0
  %v683 = vsel %vm678, %v669, 0
  %v686 = vsel %vm678, %v670, 0
  %v689 = vsel %vm678, %v671, 0
  %v692 = vsel %vm678, %v672, 0
  %v695 = vsel %vm678, %v673, 0
  %v698 = vsel %vm678, %v674, 0
  %v701 = vsel %vm678, %v675, 0
  %vm703 = vcmask 1041408
  %v705 = vsel %vm703, %v677, 0
  %707 = vmatprep.subr.bf16.mxu0 0
  %708 = vmatpush1.bf16.msra.mxu0 0
  %709 = vmatprep.subr.bf16.mxu0 0
  %710 = vmatpush1.bf16.msra.mxu0 0
  %711 = vmatprep.subr.bf16.mxu0 0
  %712 = vmatpush1.bf16.msra.mxu0 0
  %713 = vmatprep.subr.bf16.mxu0 0
  %714 = vmatpush1.bf16.msra.mxu0 0
  %715 = vmatprep.subr.bf16.mxu0 0
  %716 = vmatpush1.bf16.msra.mxu0 0
  %717 = vmatprep.subr.bf16.mxu0 0
  %718 = vmatpush1.bf16.msra.mxu0 0
  %719 = vmatprep.subr.bf16.mxu0 0
  %720 = vmatpush1.bf16.msra.mxu0 0
  %721 = vmatprep.subr.bf16.mxu0 0
  %722 = vmatpush1.bf16.msra.mxu0 %v705
  %723 = vmatprep.subr.bf16.mxu0 0
  %724 = vmatpush2.bf16.msra.mxu0 0
  %725 = vmatprep.subr.bf16.mxu0 0
  %726 = vmatpush2.bf16.msra.mxu0 0
  %727 = vmatprep.subr.bf16.mxu0 0
  %728 = vmatpush2.bf16.msra.mxu0 0
  %729 = vmatprep.subr.bf16.mxu0 0
  %730 = vmatpush2.bf16.msra.mxu0 0
  %731 = vmatprep.subr.bf16.mxu0 0
  %732 = vmatpush2.bf16.msra.mxu0 0
  %733 = vmatprep.subr.bf16.mxu0 0
  %734 = vmatpush2.bf16.msra.mxu0 0
  %735 = vmatprep.subr.bf16.mxu0 0
  %736 = vmatpush2.bf16.msra.mxu0 0
  %737 = vmatprep.subr.bf16.mxu0 0
  %738 = vmatpush2.bf16.msra.mxu0 0
  %739 = vmatprep.mubr.bf16.mxu0 0
  %740 = vmatmul.mubr.bf16.gmra.mxu0 %v680
  %v741 = vpop.f32.mrf.mxu0
  %v742 = vadd.f32 0.0, %v741
  %v743 = vpop.f32.mrf.mxu0
  %v744 = vpop.f32.mrf.mxu0
  %v745 = vadd.f32 0.0, %v744
  %v746 = vpop.f32.mrf.mxu0
  %747 = vmatprep.mubr.bf16.mxu0 0
  %748 = vmatmul.mubr.bf16.gmra.mxu0 %v683
  %v749 = vpop.f32.mrf.mxu0
  %v750 = vadd.f32 0.0, %v749
  %v751 = vpop.f32.mrf.mxu0
  %v752 = vpop.f32.mrf.mxu0
  %v753 = vadd.f32 0.0, %v752
  %v754 = vpop.f32.mrf.mxu0
  %755 = vmatprep.mubr.bf16.mxu0 0
  %756 = vmatmul.mubr.bf16.gmra.mxu0 %v686
  %v757 = vpop.f32.mrf.mxu0
  %v758 = vadd.f32 0.0, %v757
  %v759 = vpop.f32.mrf.mxu0
  %v760 = vpop.f32.mrf.mxu0
  %v761 = vadd.f32 0.0, %v760
  %v762 = vpop.f32.mrf.mxu0
  %763 = vmatprep.mubr.bf16.mxu0 0
  %764 = vmatmul.mubr.bf16.gmra.mxu0 %v689
  %v765 = vpop.f32.mrf.mxu0
  %v766 = vadd.f32 0.0, %v765
  %v767 = vpop.f32.mrf.mxu0
  %v768 = vpop.f32.mrf.mxu0
  %v769 = vadd.f32 0.0, %v768
  %v770 = vpop.f32.mrf.mxu0
  %771 = vmatprep.mubr.bf16.mxu0 0
  %772 = vmatmul.mubr.bf16.gmra.mxu0 %v692
  %v773 = vpop.f32.mrf.mxu0
  %v774 = vadd.f32 0.0, %v773
  %v775 = vpop.f32.mrf.mxu0
  %v776 = vpop.f32.mrf.mxu0
  %v777 = vadd.f32 0.0, %v776
  %v778 = vpop.f32.mrf.mxu0
  %779 = vmatprep.mubr.bf16.mxu0 0
  %780 = vmatmul.mubr.bf16.gmra.mxu0 %v695
  %v781 = vpop.f32.mrf.mxu0
  %v782 = vadd.f32 0.0, %v781
  %v783 = vpop.f32.mrf.mxu0
  %v784 = vpop.f32.mrf.mxu0
  %v785 = vadd.f32 0.0, %v784
  %v786 = vpop.f32.mrf.mxu0
  %787 = vmatprep.mubr.bf16.mxu0 0
  %788 = vmatmul.mubr.bf16.gmra.mxu0 %v698
  %v789 = vpop.f32.mrf.mxu0
  %v790 = vadd.f32 0.0, %v789
  %v791 = vpop.f32.mrf.mxu0
  %v792 = vpop.f32.mrf.mxu0
  %v793 = vadd.f32 0.0, %v792
  %v794 = vpop.f32.mrf.mxu0
  %795 = vmatprep.mubr.bf16.mxu0 0
  %796 = vmatmul.mubr.bf16.gmra.mxu0 %v701
  %v797 = vpop.f32.mrf.mxu0
  %v798 = vadd.f32 0.0, %v797
  %v799 = vpop.f32.mrf.mxu0
  %v800 = vpop.f32.mrf.mxu0
  %v801 = vadd.f32 0.0, %v800
  %v802 = vpop.f32.mrf.mxu0
  %803 = vdwg.mxu0
  %v805 = vsel %vm678, %v583, 0
  %v808 = vsel %vm678, %v584, 0
  %v811 = vsel %vm678, %v585, 0
  %v814 = vsel %vm678, %v586, 0
  %v817 = vsel %vm678, %v587, 0
  %v820 = vsel %vm678, %v588, 0
  %v823 = vsel %vm678, %v589, 0
  %v826 = vsel %vm678, %v590, 0
  %v829 = vsel %vm703, %v591, 0
  %831 = vmatprep.subr.bf16.mxu0 0
  %832 = vmatpush1.bf16.msra.mxu0 0
  %833 = vmatprep.subr.bf16.mxu0 0
  %834 = vmatpush1.bf16.msra.mxu0 0
  %835 = vmatprep.subr.bf16.mxu0 0
  %836 = vmatpush1.bf16.msra.mxu0 0
  %837 = vmatprep.subr.bf16.mxu0 0
  %838 = vmatpush1.bf16.msra.mxu0 0
  %839 = vmatprep.subr.bf16.mxu0 0
  %840 = vmatpush1.bf16.msra.mxu0 0
  %841 = vmatprep.subr.bf16.mxu0 0
  %842 = vmatpush1.bf16.msra.mxu0 0
  %843 = vmatprep.subr.bf16.mxu0 0
  %844 = vmatpush1.bf16.msra.mxu0 0
  %845 = vmatprep.subr.bf16.mxu0 0
  %846 = vmatpush1.bf16.msra.mxu0 %v829
  %847 = vmatprep.subr.bf16.mxu0 0
  %848 = vmatpush2.bf16.msra.mxu0 0
  %849 = vmatprep.subr.bf16.mxu0 0
  %850 = vmatpush2.bf16.msra.mxu0 0
  %851 = vmatprep.subr.bf16.mxu0 0
  %852 = vmatpush2.bf16.msra.mxu0 0
  %853 = vmatprep.subr.bf16.mxu0 0
  %854 = vmatpush2.bf16.msra.mxu0 0
  %855 = vmatprep.subr.bf16.mxu0 0
  %856 = vmatpush2.bf16.msra.mxu0 0
  %857 = vmatprep.subr.bf16.mxu0 0
  %858 = vmatpush2.bf16.msra.mxu0 0
  %859 = vmatprep.subr.bf16.mxu0 0
  %860 = vmatpush2.bf16.msra.mxu0 0
  %861 = vmatprep.subr.bf16.mxu0 0
  %862 = vmatpush2.bf16.msra.mxu0 0
  %863 = vmatprep.mubr.bf16.mxu0 0
  %864 = vmatmul.mubr.bf16.gmra.mxu0 %v805
  %v865 = vpop.f32.mrf.mxu0
  %v866 = vadd.f32 %v742, %v865
  %v867 = vpop.f32.mrf.mxu0
  %v868 = vpop.f32.mrf.mxu0
  %v869 = vadd.f32 %v745, %v868
  %v870 = vpop.f32.mrf.mxu0
  %871 = vmatprep.mubr.bf16.mxu0 0
  %872 = vmatmul.mubr.bf16.gmra.mxu0 %v808
  %v873 = vpop.f32.mrf.mxu0
  %v874 = vadd.f32 %v750, %v873
  %v875 = vpop.f32.mrf.mxu0
  %v876 = vpop.f32.mrf.mxu0
  %v877 = vadd.f32 %v753, %v876
  %v878 = vpop.f32.mrf.mxu0
  %879 = vmatprep.mubr.bf16.mxu0 0
  %880 = vmatmul.mubr.bf16.gmra.mxu0 %v811
  %v881 = vpop.f32.mrf.mxu0
  %v882 = vadd.f32 %v758, %v881
  %v883 = vpop.f32.mrf.mxu0
  %v884 = vpop.f32.mrf.mxu0
  %v885 = vadd.f32 %v761, %v884
  %v886 = vpop.f32.mrf.mxu0
  %887 = vmatprep.mubr.bf16.mxu0 0
  %888 = vmatmul.mubr.bf16.gmra.mxu0 %v814
  %v889 = vpop.f32.mrf.mxu0
  %v890 = vadd.f32 %v766, %v889
  %v891 = vpop.f32.mrf.mxu0
  %v892 = vpop.f32.mrf.mxu0
  %v893 = vadd.f32 %v769, %v892
  %v894 = vpop.f32.mrf.mxu0
  %895 = vmatprep.mubr.bf16.mxu0 0
  %896 = vmatmul.mubr.bf16.gmra.mxu0 %v817
  %v897 = vpop.f32.mrf.mxu0
  %v898 = vadd.f32 %v774, %v897
  %v899 = vpop.f32.mrf.mxu0
  %v900 = vpop.f32.mrf.mxu0
  %v901 = vadd.f32 %v777, %v900
  %v902 = vpop.f32.mrf.mxu0
  %903 = vmatprep.mubr.bf16.mxu0 0
  %904 = vmatmul.mubr.bf16.gmra.mxu0 %v820
  %v905 = vpop.f32.mrf.mxu0
  %v906 = vadd.f32 %v782, %v905
  %v907 = vpop.f32.mrf.mxu0
  %v908 = vpop.f32.mrf.mxu0
  %v909 = vadd.f32 %v785, %v908
  %v910 = vpop.f32.mrf.mxu0
  %911 = vmatprep.mubr.bf16.mxu0 0
  %912 = vmatmul.mubr.bf16.gmra.mxu0 %v823
  %v913 = vpop.f32.mrf.mxu0
  %v914 = vadd.f32 %v790, %v913
  %v915 = vpop.f32.mrf.mxu0
  %v916 = vpop.f32.mrf.mxu0
  %v917 = vadd.f32 %v793, %v916
  %v918 = vpop.f32.mrf.mxu0
  %919 = vmatprep.mubr.bf16.mxu0 0
  %920 = vmatmul.mubr.bf16.gmra.mxu0 %v826
  %v921 = vpop.f32.mrf.mxu0
  %v922 = vadd.f32 %v798, %v921
  %v923 = vpop.f32.mrf.mxu0
  %v924 = vpop.f32.mrf.mxu0
  %v925 = vadd.f32 %v801, %v924
  %v926 = vpop.f32.mrf.mxu0
  %927 = vdwg.mxu0
  %v942 = vrot.slane %v567, 1
  %v943 = vrot.slane %v535, 1
  %v944 = vsel %vm607, %v942, %v943
  %v945 = vrot.slane %v568, 1
  %v946 = vrot.slane %v536, 1
  %v947 = vsel %vm607, %v945, %v946
  %v948 = vrot.slane %v569, 1
  %v949 = vrot.slane %v537, 1
  %v950 = vsel %vm607, %v948, %v949
  %v951 = vrot.slane %v570, 1
  %v952 = vrot.slane %v538, 1
  %v953 = vsel %vm607, %v951, %v952
  %v954 = vrot.slane %v571, 1
  %v955 = vrot.slane %v539, 1
  %v956 = vsel %vm607, %v954, %v955
  %v957 = vrot.slane %v572, 1
  %v958 = vrot.slane %v540, 1
  %v959 = vsel %vm607, %v957, %v958
  %v960 = vrot.slane %v573, 1
  %v961 = vrot.slane %v541, 1
  %v962 = vsel %vm607, %v960, %v961
  %v963 = vrot.slane %v575, 1
  %v964 = vrot.slane %v543, 1
  %v965 = vsel %vm607, %v963, %v964
  %v966 = vrot.slane %v576, 1
  %v967 = vrot.slane %v544, 1
  %v968 = vsel %vm607, %v966, %v967
  %v969 = vrot.slane %v577, 1
  %v970 = vrot.slane %v545, 1
  %v971 = vsel %vm607, %v969, %v970
  %v972 = vrot.slane %v578, 1
  %v973 = vrot.slane %v546, 1
  %v974 = vsel %vm607, %v972, %v973
  %v975 = vrot.slane %v579, 1
  %v976 = vrot.slane %v547, 1
  %v977 = vsel %vm607, %v975, %v976
  %v978 = vrot.slane %v580, 1
  %v979 = vrot.slane %v548, 1
  %v980 = vsel %vm607, %v978, %v979
  %v981 = vrot.slane %v581, 1
  %v982 = vrot.slane %v549, 1
  %v983 = vsel %vm607, %v981, %v982
  %v998 = vpack.c.bf16 %v944, %v610
  %v999 = vpack.c.bf16 %v950, %v947
  %v1000 = vpack.c.bf16 %v956, %v953
  %v1001 = vpack.c.bf16 %v962, %v959
  %v1002 = vpack.c.bf16 %v965, %v610
  %v1003 = vpack.c.bf16 %v971, %v968
  %v1004 = vpack.c.bf16 %v977, %v974
  %v1005 = vpack.c.bf16 %v983, %v980
  %s1006 = scalar_lea.vmem %s6, 4
  %v1007 = vld [vmem:[%s1006] sm:$0x3]
  %v1009 = vsel %vm678, %v998, 0
  %v1012 = vsel %vm678, %v999, 0
  %v1015 = vsel %vm678, %v1000, 0
  %v1018 = vsel %vm678, %v1001, 0
  %v1021 = vsel %vm678, %v1002, 0
  %v1024 = vsel %vm678, %v1003, 0
  %v1027 = vsel %vm678, %v1004, 0
  %v1030 = vsel %vm678, %v1005, 0
  %v1033 = vsel %vm703, %v1007, 0
  %1035 = vmatprep.subr.bf16.mxu0 0
  %1036 = vmatpush1.bf16.msra.mxu0 0
  %1037 = vmatprep.subr.bf16.mxu0 0
  %1038 = vmatpush1.bf16.msra.mxu0 0
  %1039 = vmatprep.subr.bf16.mxu0 0
  %1040 = vmatpush1.bf16.msra.mxu0 0
  %1041 = vmatprep.subr.bf16.mxu0 0
  %1042 = vmatpush1.bf16.msra.mxu0 0
  %1043 = vmatprep.subr.bf16.mxu0 0
  %1044 = vmatpush1.bf16.msra.mxu0 0
  %1045 = vmatprep.subr.bf16.mxu0 0
  %1046 = vmatpush1.bf16.msra.mxu0 0
  %1047 = vmatprep.subr.bf16.mxu0 0
  %1048 = vmatpush1.bf16.msra.mxu0 0
  %1049 = vmatprep.subr.bf16.mxu0 0
  %1050 = vmatpush1.bf16.msra.mxu0 %v1033
  %1051 = vmatprep.subr.bf16.mxu0 0
  %1052 = vmatpush2.bf16.msra.mxu0 0
  %1053 = vmatprep.subr.bf16.mxu0 0
  %1054 = vmatpush2.bf16.msra.mxu0 0
  %1055 = vmatprep.subr.bf16.mxu0 0
  %1056 = vmatpush2.bf16.msra.mxu0 0
  %1057 = vmatprep.subr.bf16.mxu0 0
  %1058 = vmatpush2.bf16.msra.mxu0 0
  %1059 = vmatprep.subr.bf16.mxu0 0
  %1060 = vmatpush2.bf16.msra.mxu0 0
  %1061 = vmatprep.subr.bf16.mxu0 0
  %1062 = vmatpush2.bf16.msra.mxu0 0
  %1063 = vmatprep.subr.bf16.mxu0 0
  %1064 = vmatpush2.bf16.msra.mxu0 0
  %1065 = vmatprep.subr.bf16.mxu0 0
  %1066 = vmatpush2.bf16.msra.mxu0 0
  %1067 = vmatprep.mubr.bf16.mxu0 0
  %1068 = vmatmul.mubr.bf16.gmra.mxu0 %v1009
  %v1069 = vpop.f32.mrf.mxu0
  %v1070 = vadd.f32 0.0, %v1069
  %v1071 = vpop.f32.mrf.mxu0
  %v1072 = vpop.f32.mrf.mxu0
  %v1073 = vadd.f32 0.0, %v1072
  %v1074 = vpop.f32.mrf.mxu0
  %1075 = vmatprep.mubr.bf16.mxu0 0
  %1076 = vmatmul.mubr.bf16.gmra.mxu0 %v1012
  %v1077 = vpop.f32.mrf.mxu0
  %v1078 = vadd.f32 0.0, %v1077
  %v1079 = vpop.f32.mrf.mxu0
  %v1080 = vpop.f32.mrf.mxu0
  %v1081 = vadd.f32 0.0, %v1080
  %v1082 = vpop.f32.mrf.mxu0
  %1083 = vmatprep.mubr.bf16.mxu0 0
  %1084 = vmatmul.mubr.bf16.gmra.mxu0 %v1015
  %v1085 = vpop.f32.mrf.mxu0
  %v1086 = vadd.f32 0.0, %v1085
  %v1087 = vpop.f32.mrf.mxu0
  %v1088 = vpop.f32.mrf.mxu0
  %v1089 = vadd.f32 0.0, %v1088
  %v1090 = vpop.f32.mrf.mxu0
  %1091 = vmatprep.mubr.bf16.mxu0 0
  %1092 = vmatmul.mubr.bf16.gmra.mxu0 %v1018
  %v1093 = vpop.f32.mrf.mxu0
  %v1094 = vadd.f32 0.0, %v1093
  %v1095 = vpop.f32.mrf.mxu0
  %v1096 = vpop.f32.mrf.mxu0
  %v1097 = vadd.f32 0.0, %v1096
  %v1098 = vpop.f32.mrf.mxu0
  %1099 = vmatprep.mubr.bf16.mxu0 0
  %1100 = vmatmul.mubr.bf16.gmra.mxu0 %v1021
  %v1101 = vpop.f32.mrf.mxu0
  %v1102 = vadd.f32 0.0, %v1101
  %v1103 = vpop.f32.mrf.mxu0
  %v1104 = vpop.f32.mrf.mxu0
  %v1105 = vadd.f32 0.0, %v1104
  %v1106 = vpop.f32.mrf.mxu0
  %1107 = vmatprep.mubr.bf16.mxu0 0
  %1108 = vmatmul.mubr.bf16.gmra.mxu0 %v1024
  %v1109 = vpop.f32.mrf.mxu0
  %v1110 = vadd.f32 0.0, %v1109
  %v1111 = vpop.f32.mrf.mxu0
  %v1112 = vpop.f32.mrf.mxu0
  %v1113 = vadd.f32 0.0, %v1112
  %v1114 = vpop.f32.mrf.mxu0
  %1115 = vmatprep.mubr.bf16.mxu0 0
  %1116 = vmatmul.mubr.bf16.gmra.mxu0 %v1027
  %v1117 = vpop.f32.mrf.mxu0
  %v1118 = vadd.f32 0.0, %v1117
  %v1119 = vpop.f32.mrf.mxu0
  %v1120 = vpop.f32.mrf.mxu0
  %v1121 = vadd.f32 0.0, %v1120
  %v1122 = vpop.f32.mrf.mxu0
  %1123 = vmatprep.mubr.bf16.mxu0 0
  %1124 = vmatmul.mubr.bf16.gmra.mxu0 %v1030
  %v1125 = vpop.f32.mrf.mxu0
  %v1126 = vadd.f32 0.0, %v1125
  %v1127 = vpop.f32.mrf.mxu0
  %v1128 = vpop.f32.mrf.mxu0
  %v1129 = vadd.f32 0.0, %v1128
  %v1130 = vpop.f32.mrf.mxu0
  %1131 = vdwg.mxu0
  %v1132 = vadd.f32 %v866, %v1070
  %v1133 = vadd.f32 %v869, %v1073
  %v1134 = vadd.f32 %v874, %v1078
  %v1135 = vadd.f32 %v877, %v1081
  %v1136 = vadd.f32 %v882, %v1086
  %v1137 = vadd.f32 %v885, %v1089
  %v1138 = vadd.f32 %v890, %v1094
  %v1139 = vadd.f32 %v893, %v1097
  %v1140 = vadd.f32 %v898, %v1102
  %v1141 = vadd.f32 %v901, %v1105
  %v1142 = vadd.f32 %v906, %v1110
  %v1143 = vadd.f32 %v909, %v1113
  %v1144 = vadd.f32 %v914, %v1118
  %v1145 = vadd.f32 %v917, %v1121
  %v1146 = vadd.f32 %v922, %v1126
  %v1147 = vadd.f32 %v925, %v1129
  %v1148 = vpack.c.bf16 %v436, %v435
  %v1149 = vpack.c.bf16 %v438, %v437
  %v1150 = vpack.c.bf16 %v440, %v439
  %v1151 = vpack.c.bf16 %v442, %v441
  %v1152 = vpack.c.bf16 %v444, %v443
  %v1153 = vpack.c.bf16 %v446, %v445
  %v1154 = vpack.c.bf16 %v448, %v447
  %v1155 = vpack.c.bf16 %v450, %v449
  %s1156 = scalar_lea.vmem %s6, 6
  %v1157 = vld [vmem:[%s1156] sm:$0x3]
  %v1159 = vsel %vm678, %v1148, 0
  %v1162 = vsel %vm678, %v1149, 0
  %v1165 = vsel %vm678, %v1150, 0
  %v1168 = vsel %vm678, %v1151, 0
  %v1171 = vsel %vm678, %v1152, 0
  %v1174 = vsel %vm678, %v1153, 0
  %v1177 = vsel %vm678, %v1154, 0
  %v1180 = vsel %vm678, %v1155, 0
  %v1183 = vsel %vm703, %v1157, 0
  %1185 = vmatprep.subr.bf16.mxu0 0
  %1186 = vmatpush1.bf16.msra.mxu0 0
  %1187 = vmatprep.subr.bf16.mxu0 0
  %1188 = vmatpush1.bf16.msra.mxu0 0
  %1189 = vmatprep.subr.bf16.mxu0 0
  %1190 = vmatpush1.bf16.msra.mxu0 0
  %1191 = vmatprep.subr.bf16.mxu0 0
  %1192 = vmatpush1.bf16.msra.mxu0 0
  %1193 = vmatprep.subr.bf16.mxu0 0
  %1194 = vmatpush1.bf16.msra.mxu0 0
  %1195 = vmatprep.subr.bf16.mxu0 0
  %1196 = vmatpush1.bf16.msra.mxu0 0
  %1197 = vmatprep.subr.bf16.mxu0 0
  %1198 = vmatpush1.bf16.msra.mxu0 0
  %1199 = vmatprep.subr.bf16.mxu0 0
  %1200 = vmatpush1.bf16.msra.mxu0 %v1183
  %1201 = vmatprep.subr.bf16.mxu0 0
  %1202 = vmatpush2.bf16.msra.mxu0 0
  %1203 = vmatprep.subr.bf16.mxu0 0
  %1204 = vmatpush2.bf16.msra.mxu0 0
  %1205 = vmatprep.subr.bf16.mxu0 0
  %1206 = vmatpush2.bf16.msra.mxu0 0
  %1207 = vmatprep.subr.bf16.mxu0 0
  %1208 = vmatpush2.bf16.msra.mxu0 0
  %1209 = vmatprep.subr.bf16.mxu0 0
  %1210 = vmatpush2.bf16.msra.mxu0 0
  %1211 = vmatprep.subr.bf16.mxu0 0
  %1212 = vmatpush2.bf16.msra.mxu0 0
  %1213 = vmatprep.subr.bf16.mxu0 0
  %1214 = vmatpush2.bf16.msra.mxu0 0
  %1215 = vmatprep.subr.bf16.mxu0 0
  %1216 = vmatpush2.bf16.msra.mxu0 0
  %1217 = vmatprep.mubr.bf16.mxu0 0
  %1218 = vmatmul.mubr.bf16.gmra.mxu0 %v1159
  %v1219 = vpop.f32.mrf.mxu0
  %v1220 = vadd.f32 0.0, %v1219
  %v1221 = vpop.f32.mrf.mxu0
  %v1222 = vpop.f32.mrf.mxu0
  %v1223 = vadd.f32 0.0, %v1222
  %v1224 = vpop.f32.mrf.mxu0
  %1225 = vmatprep.mubr.bf16.mxu0 0
  %1226 = vmatmul.mubr.bf16.gmra.mxu0 %v1162
  %v1227 = vpop.f32.mrf.mxu0
  %v1228 = vadd.f32 0.0, %v1227
  %v1229 = vpop.f32.mrf.mxu0
  %v1230 = vpop.f32.mrf.mxu0
  %v1231 = vadd.f32 0.0, %v1230
  %v1232 = vpop.f32.mrf.mxu0
  %1233 = vmatprep.mubr.bf16.mxu0 0
  %1234 = vmatmul.mubr.bf16.gmra.mxu0 %v1165
  %v1235 = vpop.f32.mrf.mxu0
  %v1236 = vadd.f32 0.0, %v1235
  %v1237 = vpop.f32.mrf.mxu0
  %v1238 = vpop.f32.mrf.mxu0
  %v1239 = vadd.f32 0.0, %v1238
  %v1240 = vpop.f32.mrf.mxu0
  %1241 = vmatprep.mubr.bf16.mxu0 0
  %1242 = vmatmul.mubr.bf16.gmra.mxu0 %v1168
  %v1243 = vpop.f32.mrf.mxu0
  %v1244 = vadd.f32 0.0, %v1243
  %v1245 = vpop.f32.mrf.mxu0
  %v1246 = vpop.f32.mrf.mxu0
  %v1247 = vadd.f32 0.0, %v1246
  %v1248 = vpop.f32.mrf.mxu0
  %1249 = vmatprep.mubr.bf16.mxu0 0
  %1250 = vmatmul.mubr.bf16.gmra.mxu0 %v1171
  %v1251 = vpop.f32.mrf.mxu0
  %v1252 = vadd.f32 0.0, %v1251
  %v1253 = vpop.f32.mrf.mxu0
  %v1254 = vpop.f32.mrf.mxu0
  %v1255 = vadd.f32 0.0, %v1254
  %v1256 = vpop.f32.mrf.mxu0
  %1257 = vmatprep.mubr.bf16.mxu0 0
  %1258 = vmatmul.mubr.bf16.gmra.mxu0 %v1174
  %v1259 = vpop.f32.mrf.mxu0
  %v1260 = vadd.f32 0.0, %v1259
  %v1261 = vpop.f32.mrf.mxu0
  %v1262 = vpop.f32.mrf.mxu0
  %v1263 = vadd.f32 0.0, %v1262
  %v1264 = vpop.f32.mrf.mxu0
  %1265 = vmatprep.mubr.bf16.mxu0 0
  %1266 = vmatmul.mubr.bf16.gmra.mxu0 %v1177
  %v1267 = vpop.f32.mrf.mxu0
  %v1268 = vadd.f32 0.0, %v1267
  %v1269 = vpop.f32.mrf.mxu0
  %v1270 = vpop.f32.mrf.mxu0
  %v1271 = vadd.f32 0.0, %v1270
  %v1272 = vpop.f32.mrf.mxu0
  %1273 = vmatprep.mubr.bf16.mxu0 0
  %1274 = vmatmul.mubr.bf16.gmra.mxu0 %v1180
  %v1275 = vpop.f32.mrf.mxu0
  %v1276 = vadd.f32 0.0, %v1275
  %v1277 = vpop.f32.mrf.mxu0
  %v1278 = vpop.f32.mrf.mxu0
  %v1279 = vadd.f32 0.0, %v1278
  %v1280 = vpop.f32.mrf.mxu0
  %1281 = vdwg.mxu0
  %v1282 = vadd.f32 %v1132, %v1220
  %v1283 = vadd.f32 %v1133, %v1223
  %v1284 = vadd.f32 %v1134, %v1228
  %v1285 = vadd.f32 %v1135, %v1231
  %v1286 = vadd.f32 %v1136, %v1236
  %v1287 = vadd.f32 %v1137, %v1239
  %v1288 = vadd.f32 %v1138, %v1244
  %v1289 = vadd.f32 %v1139, %v1247
  %v1290 = vadd.f32 %v1140, %v1252
  %v1291 = vadd.f32 %v1141, %v1255
  %v1292 = vadd.f32 %v1142, %v1260
  %v1293 = vadd.f32 %v1143, %v1263
  %v1294 = vadd.f32 %v1144, %v1268
  %v1295 = vadd.f32 %v1145, %v1271
  %v1296 = vadd.f32 %v1146, %v1276
  %v1297 = vadd.f32 %v1147, %v1279
  %v1314 = vrot.slane %v371, 1
  %v1315 = vrot.slane %v338, 1
  %v1316 = vsel %vm607, %v1314, %v1315
  %v1317 = vrot.slane %v372, 1
  %v1318 = vrot.slane %v339, 1
  %v1319 = vsel %vm607, %v1317, %v1318
  %v1320 = vrot.slane %v373, 1
  %v1321 = vrot.slane %v340, 1
  %v1322 = vsel %vm607, %v1320, %v1321
  %v1323 = vrot.slane %v374, 1
  %v1324 = vrot.slane %v341, 1
  %v1325 = vsel %vm607, %v1323, %v1324
  %v1326 = vrot.slane %v375, 1
  %v1327 = vrot.slane %v342, 1
  %v1328 = vsel %vm607, %v1326, %v1327
  %v1329 = vrot.slane %v376, 1
  %v1330 = vrot.slane %v343, 1
  %v1331 = vsel %vm607, %v1329, %v1330
  %v1332 = vrot.slane %v377, 1
  %v1333 = vrot.slane %v344, 1
  %v1334 = vsel %vm607, %v1332, %v1333
  %v1335 = vrot.slane %v378, 1
  %v1336 = vrot.slane %v345, 1
  %v1337 = vsel %vm607, %v1335, %v1336
  %v1338 = vrot.slane %v379, 1
  %v1339 = vrot.slane %v346, 1
  %v1340 = vsel %vm607, %v1338, %v1339
  %v1341 = vrot.slane %v380, 1
  %v1342 = vrot.slane %v347, 1
  %v1343 = vsel %vm607, %v1341, %v1342
  %v1344 = vrot.slane %v381, 1
  %v1345 = vrot.slane %v348, 1
  %v1346 = vsel %vm607, %v1344, %v1345
  %v1347 = vrot.slane %v382, 1
  %v1348 = vrot.slane %v349, 1
  %v1349 = vsel %vm607, %v1347, %v1348
  %v1350 = vrot.slane %v383, 1
  %v1351 = vrot.slane %v350, 1
  %v1352 = vsel %vm607, %v1350, %v1351
  %v1353 = vrot.slane %v384, 1
  %v1354 = vrot.slane %v351, 1
  %v1355 = vsel %vm607, %v1353, %v1354
  %v1356 = vrot.slane %v385, 1
  %v1357 = vrot.slane %v352, 1
  %v1358 = vsel %vm607, %v1356, %v1357
  %v1359 = vrot.slane %v386, 1
  %v1360 = vrot.slane %v353, 1
  %v1361 = vsel %vm607, %v1359, %v1360
  %v1378 = vpack.c.bf16 %v1319, %v1316
  %v1379 = vpack.c.bf16 %v1325, %v1322
  %v1380 = vpack.c.bf16 %v1331, %v1328
  %v1381 = vpack.c.bf16 %v1337, %v1334
  %v1382 = vpack.c.bf16 %v1343, %v1340
  %v1383 = vpack.c.bf16 %v1349, %v1346
  %v1384 = vpack.c.bf16 %v1355, %v1352
  %v1385 = vpack.c.bf16 %v1361, %v1358
  %s1386 = scalar_lea.vmem %s6, 8
  %v1387 = vld [vmem:[%s1386] sm:$0x3]
  %v1389 = vsel %vm678, %v1378, 0
  %v1392 = vsel %vm678, %v1379, 0
  %v1395 = vsel %vm678, %v1380, 0
  %v1398 = vsel %vm678, %v1381, 0
  %v1401 = vsel %vm678, %v1382, 0
  %v1404 = vsel %vm678, %v1383, 0
  %v1407 = vsel %vm678, %v1384, 0
  %v1410 = vsel %vm678, %v1385, 0
  %v1413 = vsel %vm703, %v1387, 0
  %1415 = vmatprep.subr.bf16.mxu0 0
  %1416 = vmatpush1.bf16.msra.mxu0 0
  %1417 = vmatprep.subr.bf16.mxu0 0
  %1418 = vmatpush1.bf16.msra.mxu0 0
  %1419 = vmatprep.subr.bf16.mxu0 0
  %1420 = vmatpush1.bf16.msra.mxu0 0
  %1421 = vmatprep.subr.bf16.mxu0 0
  %1422 = vmatpush1.bf16.msra.mxu0 0
  %1423 = vmatprep.subr.bf16.mxu0 0
  %1424 = vmatpush1.bf16.msra.mxu0 0
  %1425 = vmatprep.subr.bf16.mxu0 0
  %1426 = vmatpush1.bf16.msra.mxu0 0
  %1427 = vmatprep.subr.bf16.mxu0 0
  %1428 = vmatpush1.bf16.msra.mxu0 0
  %1429 = vmatprep.subr.bf16.mxu0 0
  %1430 = vmatpush1.bf16.msra.mxu0 %v1413
  %1431 = vmatprep.subr.bf16.mxu0 0
  %1432 = vmatpush2.bf16.msra.mxu0 0
  %1433 = vmatprep.subr.bf16.mxu0 0
  %1434 = vmatpush2.bf16.msra.mxu0 0
  %1435 = vmatprep.subr.bf16.mxu0 0
  %1436 = vmatpush2.bf16.msra.mxu0 0
  %1437 = vmatprep.subr.bf16.mxu0 0
  %1438 = vmatpush2.bf16.msra.mxu0 0
  %1439 = vmatprep.subr.bf16.mxu0 0
  %1440 = vmatpush2.bf16.msra.mxu0 0
  %1441 = vmatprep.subr.bf16.mxu0 0
  %1442 = vmatpush2.bf16.msra.mxu0 0
  %1443 = vmatprep.subr.bf16.mxu0 0
  %1444 = vmatpush2.bf16.msra.mxu0 0
  %1445 = vmatprep.subr.bf16.mxu0 0
  %1446 = vmatpush2.bf16.msra.mxu0 0
  %1447 = vmatprep.mubr.bf16.mxu0 0
  %1448 = vmatmul.mubr.bf16.gmra.mxu0 %v1389
  %v1449 = vpop.f32.mrf.mxu0
  %v1450 = vadd.f32 0.0, %v1449
  %v1451 = vpop.f32.mrf.mxu0
  %v1452 = vpop.f32.mrf.mxu0
  %v1453 = vadd.f32 0.0, %v1452
  %v1454 = vpop.f32.mrf.mxu0
  %1455 = vmatprep.mubr.bf16.mxu0 0
  %1456 = vmatmul.mubr.bf16.gmra.mxu0 %v1392
  %v1457 = vpop.f32.mrf.mxu0
  %v1458 = vadd.f32 0.0, %v1457
  %v1459 = vpop.f32.mrf.mxu0
  %v1460 = vpop.f32.mrf.mxu0
  %v1461 = vadd.f32 0.0, %v1460
  %v1462 = vpop.f32.mrf.mxu0
  %1463 = vmatprep.mubr.bf16.mxu0 0
  %1464 = vmatmul.mubr.bf16.gmra.mxu0 %v1395
  %v1465 = vpop.f32.mrf.mxu0
  %v1466 = vadd.f32 0.0, %v1465
  %v1467 = vpop.f32.mrf.mxu0
  %v1468 = vpop.f32.mrf.mxu0
  %v1469 = vadd.f32 0.0, %v1468
  %v1470 = vpop.f32.mrf.mxu0
  %1471 = vmatprep.mubr.bf16.mxu0 0
  %1472 = vmatmul.mubr.bf16.gmra.mxu0 %v1398
  %v1473 = vpop.f32.mrf.mxu0
  %v1474 = vadd.f32 0.0, %v1473
  %v1475 = vpop.f32.mrf.mxu0
  %v1476 = vpop.f32.mrf.mxu0
  %v1477 = vadd.f32 0.0, %v1476
  %v1478 = vpop.f32.mrf.mxu0
  %1479 = vmatprep.mubr.bf16.mxu0 0
  %1480 = vmatmul.mubr.bf16.gmra.mxu0 %v1401
  %v1481 = vpop.f32.mrf.mxu0
  %v1482 = vadd.f32 0.0, %v1481
  %v1483 = vpop.f32.mrf.mxu0
  %v1484 = vpop.f32.mrf.mxu0
  %v1485 = vadd.f32 0.0, %v1484
  %v1486 = vpop.f32.mrf.mxu0
  %1487 = vmatprep.mubr.bf16.mxu0 0
  %1488 = vmatmul.mubr.bf16.gmra.mxu0 %v1404
  %v1489 = vpop.f32.mrf.mxu0
  %v1490 = vadd.f32 0.0, %v1489
  %v1491 = vpop.f32.mrf.mxu0
  %v1492 = vpop.f32.mrf.mxu0
  %v1493 = vadd.f32 0.0, %v1492
  %v1494 = vpop.f32.mrf.mxu0
  %1495 = vmatprep.mubr.bf16.mxu0 0
  %1496 = vmatmul.mubr.bf16.gmra.mxu0 %v1407
  %v1497 = vpop.f32.mrf.mxu0
  %v1498 = vadd.f32 0.0, %v1497
  %v1499 = vpop.f32.mrf.mxu0
  %v1500 = vpop.f32.mrf.mxu0
  %v1501 = vadd.f32 0.0, %v1500
  %v1502 = vpop.f32.mrf.mxu0
  %1503 = vmatprep.mubr.bf16.mxu0 0
  %1504 = vmatmul.mubr.bf16.gmra.mxu0 %v1410
  %v1505 = vpop.f32.mrf.mxu0
  %v1506 = vadd.f32 0.0, %v1505
  %v1507 = vpop.f32.mrf.mxu0
  %v1508 = vpop.f32.mrf.mxu0
  %v1509 = vadd.f32 0.0, %v1508
  %v1510 = vpop.f32.mrf.mxu0
  %1511 = vdwg.mxu0
  %v1512 = vadd.f32 %v1282, %v1450
  %v1513 = vadd.f32 %v1283, %v1453
  %v1514 = vadd.f32 %v1284, %v1458
  %v1515 = vadd.f32 %v1285, %v1461
  %v1516 = vadd.f32 %v1286, %v1466
  %v1517 = vadd.f32 %v1287, %v1469
  %v1518 = vadd.f32 %v1288, %v1474
  %v1519 = vadd.f32 %v1289, %v1477
  %v1520 = vadd.f32 %v1290, %v1482
  %v1521 = vadd.f32 %v1291, %v1485
  %v1522 = vadd.f32 %v1292, %v1490
  %v1523 = vadd.f32 %v1293, %v1493
  %v1524 = vadd.f32 %v1294, %v1498
  %v1525 = vadd.f32 %v1295, %v1501
  %v1526 = vadd.f32 %v1296, %v1506
  %v1527 = vadd.f32 %v1297, %v1509
  %v1544 = vrot.slane %v435, 1
  %v1545 = vrot.slane %v403, 1
  %v1546 = vsel %vm607, %v1544, %v1545
  %v1547 = vrot.slane %v436, 1
  %v1548 = vrot.slane %v404, 1
  %v1549 = vsel %vm607, %v1547, %v1548
  %v1550 = vrot.slane %v437, 1
  %v1551 = vrot.slane %v405, 1
  %v1552 = vsel %vm607, %v1550, %v1551
  %v1553 = vrot.slane %v438, 1
  %v1554 = vrot.slane %v406, 1
  %v1555 = vsel %vm607, %v1553, %v1554
  %v1556 = vrot.slane %v439, 1
  %v1557 = vrot.slane %v407, 1
  %v1558 = vsel %vm607, %v1556, %v1557
  %v1559 = vrot.slane %v440, 1
  %v1560 = vrot.slane %v408, 1
  %v1561 = vsel %vm607, %v1559, %v1560
  %v1562 = vrot.slane %v441, 1
  %v1563 = vrot.slane %v409, 1
  %v1564 = vsel %vm607, %v1562, %v1563
  %v1565 = vrot.slane %v442, 1
  %v1566 = vrot.slane %v410, 1
  %v1567 = vsel %vm607, %v1565, %v1566
  %v1568 = vrot.slane %v443, 1
  %v1569 = vrot.slane %v411, 1
  %v1570 = vsel %vm607, %v1568, %v1569
  %v1571 = vrot.slane %v444, 1
  %v1572 = vrot.slane %v412, 1
  %v1573 = vsel %vm607, %v1571, %v1572
  %v1574 = vrot.slane %v445, 1
  %v1575 = vrot.slane %v413, 1
  %v1576 = vsel %vm607, %v1574, %v1575
  %v1577 = vrot.slane %v446, 1
  %v1578 = vrot.slane %v414, 1
  %v1579 = vsel %vm607, %v1577, %v1578
  %v1580 = vrot.slane %v447, 1
  %v1581 = vrot.slane %v415, 1
  %v1582 = vsel %vm607, %v1580, %v1581
  %v1583 = vrot.slane %v448, 1
  %v1584 = vrot.slane %v416, 1
  %v1585 = vsel %vm607, %v1583, %v1584
  %v1586 = vrot.slane %v449, 1
  %v1587 = vrot.slane %v417, 1
  %v1588 = vsel %vm607, %v1586, %v1587
  %v1589 = vrot.slane %v450, 1
  %v1590 = vrot.slane %v418, 1
  %v1591 = vsel %vm607, %v1589, %v1590
  %v1608 = vpack.c.bf16 %v1549, %v1546
  %v1609 = vpack.c.bf16 %v1555, %v1552
  %v1610 = vpack.c.bf16 %v1561, %v1558
  %v1611 = vpack.c.bf16 %v1567, %v1564
  %v1612 = vpack.c.bf16 %v1573, %v1570
  %v1613 = vpack.c.bf16 %v1579, %v1576
  %v1614 = vpack.c.bf16 %v1585, %v1582
  %v1615 = vpack.c.bf16 %v1591, %v1588
  %s1616 = scalar_lea.vmem %s6, 10
  %v1617 = vld [vmem:[%s1616] sm:$0x3]
  %v1619 = vsel %vm678, %v1608, 0
  %v1622 = vsel %vm678, %v1609, 0
  %v1625 = vsel %vm678, %v1610, 0
  %v1628 = vsel %vm678, %v1611, 0
  %v1631 = vsel %vm678, %v1612, 0
  %v1634 = vsel %vm678, %v1613, 0
  %v1637 = vsel %vm678, %v1614, 0
  %v1640 = vsel %vm678, %v1615, 0
  %v1643 = vsel %vm703, %v1617, 0
  %1645 = vmatprep.subr.bf16.mxu0 0
  %1646 = vmatpush1.bf16.msra.mxu0 0
  %1647 = vmatprep.subr.bf16.mxu0 0
  %1648 = vmatpush1.bf16.msra.mxu0 0
  %1649 = vmatprep.subr.bf16.mxu0 0
  %1650 = vmatpush1.bf16.msra.mxu0 0
  %1651 = vmatprep.subr.bf16.mxu0 0
  %1652 = vmatpush1.bf16.msra.mxu0 0
  %1653 = vmatprep.subr.bf16.mxu0 0
  %1654 = vmatpush1.bf16.msra.mxu0 0
  %1655 = vmatprep.subr.bf16.mxu0 0
  %1656 = vmatpush1.bf16.msra.mxu0 0
  %1657 = vmatprep.subr.bf16.mxu0 0
  %1658 = vmatpush1.bf16.msra.mxu0 0
  %1659 = vmatprep.subr.bf16.mxu0 0
  %1660 = vmatpush1.bf16.msra.mxu0 %v1643
  %1661 = vmatprep.subr.bf16.mxu0 0
  %1662 = vmatpush2.bf16.msra.mxu0 0
  %1663 = vmatprep.subr.bf16.mxu0 0
  %1664 = vmatpush2.bf16.msra.mxu0 0
  %1665 = vmatprep.subr.bf16.mxu0 0
  %1666 = vmatpush2.bf16.msra.mxu0 0
  %1667 = vmatprep.subr.bf16.mxu0 0
  %1668 = vmatpush2.bf16.msra.mxu0 0
  %1669 = vmatprep.subr.bf16.mxu0 0
  %1670 = vmatpush2.bf16.msra.mxu0 0
  %1671 = vmatprep.subr.bf16.mxu0 0
  %1672 = vmatpush2.bf16.msra.mxu0 0
  %1673 = vmatprep.subr.bf16.mxu0 0
  %1674 = vmatpush2.bf16.msra.mxu0 0
  %1675 = vmatprep.subr.bf16.mxu0 0
  %1676 = vmatpush2.bf16.msra.mxu0 0
  %1677 = vmatprep.mubr.bf16.mxu0 0
  %1678 = vmatmul.mubr.bf16.gmra.mxu0 %v1619
  %v1679 = vpop.f32.mrf.mxu0
  %v1680 = vadd.f32 0.0, %v1679
  %v1681 = vpop.f32.mrf.mxu0
  %v1682 = vpop.f32.mrf.mxu0
  %v1683 = vadd.f32 0.0, %v1682
  %v1684 = vpop.f32.mrf.mxu0
  %1685 = vmatprep.mubr.bf16.mxu0 0
  %1686 = vmatmul.mubr.bf16.gmra.mxu0 %v1622
  %v1687 = vpop.f32.mrf.mxu0
  %v1688 = vadd.f32 0.0, %v1687
  %v1689 = vpop.f32.mrf.mxu0
  %v1690 = vpop.f32.mrf.mxu0
  %v1691 = vadd.f32 0.0, %v1690
  %v1692 = vpop.f32.mrf.mxu0
  %1693 = vmatprep.mubr.bf16.mxu0 0
  %1694 = vmatmul.mubr.bf16.gmra.mxu0 %v1625
  %v1695 = vpop.f32.mrf.mxu0
  %v1696 = vadd.f32 0.0, %v1695
  %v1697 = vpop.f32.mrf.mxu0
  %v1698 = vpop.f32.mrf.mxu0
  %v1699 = vadd.f32 0.0, %v1698
  %v1700 = vpop.f32.mrf.mxu0
  %1701 = vmatprep.mubr.bf16.mxu0 0
  %1702 = vmatmul.mubr.bf16.gmra.mxu0 %v1628
  %v1703 = vpop.f32.mrf.mxu0
  %v1704 = vadd.f32 0.0, %v1703
  %v1705 = vpop.f32.mrf.mxu0
  %v1706 = vpop.f32.mrf.mxu0
  %v1707 = vadd.f32 0.0, %v1706
  %v1708 = vpop.f32.mrf.mxu0
  %1709 = vmatprep.mubr.bf16.mxu0 0
  %1710 = vmatmul.mubr.bf16.gmra.mxu0 %v1631
  %v1711 = vpop.f32.mrf.mxu0
  %v1712 = vadd.f32 0.0, %v1711
  %v1713 = vpop.f32.mrf.mxu0
  %v1714 = vpop.f32.mrf.mxu0
  %v1715 = vadd.f32 0.0, %v1714
  %v1716 = vpop.f32.mrf.mxu0
  %1717 = vmatprep.mubr.bf16.mxu0 0
  %1718 = vmatmul.mubr.bf16.gmra.mxu0 %v1634
  %v1719 = vpop.f32.mrf.mxu0
  %v1720 = vadd.f32 0.0, %v1719
  %v1721 = vpop.f32.mrf.mxu0
  %v1722 = vpop.f32.mrf.mxu0
  %v1723 = vadd.f32 0.0, %v1722
  %v1724 = vpop.f32.mrf.mxu0
  %1725 = vmatprep.mubr.bf16.mxu0 0
  %1726 = vmatmul.mubr.bf16.gmra.mxu0 %v1637
  %v1727 = vpop.f32.mrf.mxu0
  %v1728 = vadd.f32 0.0, %v1727
  %v1729 = vpop.f32.mrf.mxu0
  %v1730 = vpop.f32.mrf.mxu0
  %v1731 = vadd.f32 0.0, %v1730
  %v1732 = vpop.f32.mrf.mxu0
  %1733 = vmatprep.mubr.bf16.mxu0 0
  %1734 = vmatmul.mubr.bf16.gmra.mxu0 %v1640
  %v1735 = vpop.f32.mrf.mxu0
  %v1736 = vadd.f32 0.0, %v1735
  %v1737 = vpop.f32.mrf.mxu0
  %v1738 = vpop.f32.mrf.mxu0
  %v1739 = vadd.f32 0.0, %v1738
  %v1740 = vpop.f32.mrf.mxu0
  %1741 = vdwg.mxu0
  %v1742 = vadd.f32 %v1512, %v1680
  %v1743 = vadd.f32 %v1513, %v1683
  %v1744 = vadd.f32 %v1514, %v1688
  %v1745 = vadd.f32 %v1515, %v1691
  %v1746 = vadd.f32 %v1516, %v1696
  %v1747 = vadd.f32 %v1517, %v1699
  %v1748 = vadd.f32 %v1518, %v1704
  %v1749 = vadd.f32 %v1519, %v1707
  %v1750 = vadd.f32 %v1520, %v1712
  %v1751 = vadd.f32 %v1521, %v1715
  %v1752 = vadd.f32 %v1522, %v1720
  %v1753 = vadd.f32 %v1523, %v1723
  %v1754 = vadd.f32 %v1524, %v1728
  %v1755 = vadd.f32 %v1525, %v1731
  %v1756 = vadd.f32 %v1526, %v1736
  %v1757 = vadd.f32 %v1527, %v1739
  %v1758 = vpack.c.bf16 %v568, %v567
  %v1759 = vpack.c.bf16 %v570, %v569
  %v1760 = vpack.c.bf16 %v572, %v571
  %v1761 = vpack.c.bf16 %v574, %v573
  %v1762 = vpack.c.bf16 %v576, %v575
  %v1763 = vpack.c.bf16 %v578, %v577
  %v1764 = vpack.c.bf16 %v580, %v579
  %v1765 = vpack.c.bf16 %v582, %v581
  %s1766 = scalar_lea.vmem %s6, 12
  %v1767 = vld [vmem:[%s1766] sm:$0x3]
  %v1769 = vsel %vm678, %v1758, 0
  %v1772 = vsel %vm678, %v1759, 0
  %v1775 = vsel %vm678, %v1760, 0
  %v1778 = vsel %vm678, %v1761, 0
  %v1781 = vsel %vm678, %v1762, 0
  %v1784 = vsel %vm678, %v1763, 0
  %v1787 = vsel %vm678, %v1764, 0
  %v1790 = vsel %vm678, %v1765, 0
  %v1793 = vsel %vm703, %v1767, 0
  %1795 = vmatprep.subr.bf16.mxu0 0
  %1796 = vmatpush1.bf16.msra.mxu0 0
  %1797 = vmatprep.subr.bf16.mxu0 0
  %1798 = vmatpush1.bf16.msra.mxu0 0
  %1799 = vmatprep.subr.bf16.mxu0 0
  %1800 = vmatpush1.bf16.msra.mxu0 0
  %1801 = vmatprep.subr.bf16.mxu0 0
  %1802 = vmatpush1.bf16.msra.mxu0 0
  %1803 = vmatprep.subr.bf16.mxu0 0
  %1804 = vmatpush1.bf16.msra.mxu0 0
  %1805 = vmatprep.subr.bf16.mxu0 0
  %1806 = vmatpush1.bf16.msra.mxu0 0
  %1807 = vmatprep.subr.bf16.mxu0 0
  %1808 = vmatpush1.bf16.msra.mxu0 0
  %1809 = vmatprep.subr.bf16.mxu0 0
  %1810 = vmatpush1.bf16.msra.mxu0 %v1793
  %1811 = vmatprep.subr.bf16.mxu0 0
  %1812 = vmatpush2.bf16.msra.mxu0 0
  %1813 = vmatprep.subr.bf16.mxu0 0
  %1814 = vmatpush2.bf16.msra.mxu0 0
  %1815 = vmatprep.subr.bf16.mxu0 0
  %1816 = vmatpush2.bf16.msra.mxu0 0
  %1817 = vmatprep.subr.bf16.mxu0 0
  %1818 = vmatpush2.bf16.msra.mxu0 0
  %1819 = vmatprep.subr.bf16.mxu0 0
  %1820 = vmatpush2.bf16.msra.mxu0 0
  %1821 = vmatprep.subr.bf16.mxu0 0
  %1822 = vmatpush2.bf16.msra.mxu0 0
  %1823 = vmatprep.subr.bf16.mxu0 0
  %1824 = vmatpush2.bf16.msra.mxu0 0
  %1825 = vmatprep.subr.bf16.mxu0 0
  %1826 = vmatpush2.bf16.msra.mxu0 0
  %1827 = vmatprep.mubr.bf16.mxu0 0
  %1828 = vmatmul.mubr.bf16.gmra.mxu0 %v1769
  %v1829 = vpop.f32.mrf.mxu0
  %v1830 = vadd.f32 0.0, %v1829
  %v1831 = vpop.f32.mrf.mxu0
  %v1832 = vpop.f32.mrf.mxu0
  %v1833 = vadd.f32 0.0, %v1832
  %v1834 = vpop.f32.mrf.mxu0
  %1835 = vmatprep.mubr.bf16.mxu0 0
  %1836 = vmatmul.mubr.bf16.gmra.mxu0 %v1772
  %v1837 = vpop.f32.mrf.mxu0
  %v1838 = vadd.f32 0.0, %v1837
  %v1839 = vpop.f32.mrf.mxu0
  %v1840 = vpop.f32.mrf.mxu0
  %v1841 = vadd.f32 0.0, %v1840
  %v1842 = vpop.f32.mrf.mxu0
  %1843 = vmatprep.mubr.bf16.mxu0 0
  %1844 = vmatmul.mubr.bf16.gmra.mxu0 %v1775
  %v1845 = vpop.f32.mrf.mxu0
  %v1846 = vadd.f32 0.0, %v1845
  %v1847 = vpop.f32.mrf.mxu0
  %v1848 = vpop.f32.mrf.mxu0
  %v1849 = vadd.f32 0.0, %v1848
  %v1850 = vpop.f32.mrf.mxu0
  %1851 = vmatprep.mubr.bf16.mxu0 0
  %1852 = vmatmul.mubr.bf16.gmra.mxu0 %v1778
  %v1853 = vpop.f32.mrf.mxu0
  %v1854 = vadd.f32 0.0, %v1853
  %v1855 = vpop.f32.mrf.mxu0
  %v1856 = vpop.f32.mrf.mxu0
  %v1857 = vadd.f32 0.0, %v1856
  %v1858 = vpop.f32.mrf.mxu0
  %1859 = vmatprep.mubr.bf16.mxu0 0
  %1860 = vmatmul.mubr.bf16.gmra.mxu0 %v1781
  %v1861 = vpop.f32.mrf.mxu0
  %v1862 = vadd.f32 0.0, %v1861
  %v1863 = vpop.f32.mrf.mxu0
  %v1864 = vpop.f32.mrf.mxu0
  %v1865 = vadd.f32 0.0, %v1864
  %v1866 = vpop.f32.mrf.mxu0
  %1867 = vmatprep.mubr.bf16.mxu0 0
  %1868 = vmatmul.mubr.bf16.gmra.mxu0 %v1784
  %v1869 = vpop.f32.mrf.mxu0
  %v1870 = vadd.f32 0.0, %v1869
  %v1871 = vpop.f32.mrf.mxu0
  %v1872 = vpop.f32.mrf.mxu0
  %v1873 = vadd.f32 0.0, %v1872
  %v1874 = vpop.f32.mrf.mxu0
  %1875 = vmatprep.mubr.bf16.mxu0 0
  %1876 = vmatmul.mubr.bf16.gmra.mxu0 %v1787
  %v1877 = vpop.f32.mrf.mxu0
  %v1878 = vadd.f32 0.0, %v1877
  %v1879 = vpop.f32.mrf.mxu0
  %v1880 = vpop.f32.mrf.mxu0
  %v1881 = vadd.f32 0.0, %v1880
  %v1882 = vpop.f32.mrf.mxu0
  %1883 = vmatprep.mubr.bf16.mxu0 0
  %1884 = vmatmul.mubr.bf16.gmra.mxu0 %v1790
  %v1885 = vpop.f32.mrf.mxu0
  %v1886 = vadd.f32 0.0, %v1885
  %v1887 = vpop.f32.mrf.mxu0
  %v1888 = vpop.f32.mrf.mxu0
  %v1889 = vadd.f32 0.0, %v1888
  %v1890 = vpop.f32.mrf.mxu0
  %1891 = vdwg.mxu0
  %v1892 = vadd.f32 %v1742, %v1830
  %v1893 = vadd.f32 %v1743, %v1833
  %v1894 = vadd.f32 %v1744, %v1838
  %v1895 = vadd.f32 %v1745, %v1841
  %v1896 = vadd.f32 %v1746, %v1846
  %v1897 = vadd.f32 %v1747, %v1849
  %v1898 = vadd.f32 %v1748, %v1854
  %v1899 = vadd.f32 %v1749, %v1857
  %v1900 = vadd.f32 %v1750, %v1862
  %v1901 = vadd.f32 %v1751, %v1865
  %v1902 = vadd.f32 %v1752, %v1870
  %v1903 = vadd.f32 %v1753, %v1873
  %v1904 = vadd.f32 %v1754, %v1878
  %v1905 = vadd.f32 %v1755, %v1881
  %v1906 = vadd.f32 %v1756, %v1886
  %v1907 = vadd.f32 %v1757, %v1889
  %v1910 = vrot.slane %v510, 1
  %v1911 = vrot.slane %v476, 1
  %v1912 = vsel %vm607, %v1910, %v1911
  %v1913 = vrot.slane %v518, 1
  %v1914 = vrot.slane %v484, 1
  %v1915 = vsel %vm607, %v1913, %v1914
  %v1918 = vpack.c.bf16 %v616, %v613
  %v1919 = vpack.c.bf16 %v622, %v619
  %v1920 = vpack.c.bf16 %v628, %v625
  %v1921 = vpack.c.bf16 %v1912, %v631
  %v1922 = vpack.c.bf16 %v637, %v634
  %v1923 = vpack.c.bf16 %v643, %v640
  %v1924 = vpack.c.bf16 %v649, %v646
  %v1925 = vpack.c.bf16 %v1915, %v652
  %s1926 = scalar_lea.vmem %s6, 14
  %v1927 = vld [vmem:[%s1926] sm:$0x3]
  %v1929 = vsel %vm678, %v1918, 0
  %v1932 = vsel %vm678, %v1919, 0
  %v1935 = vsel %vm678, %v1920, 0
  %v1938 = vsel %vm678, %v1921, 0
  %v1941 = vsel %vm678, %v1922, 0
  %v1944 = vsel %vm678, %v1923, 0
  %v1947 = vsel %vm678, %v1924, 0
  %v1950 = vsel %vm678, %v1925, 0
  %v1953 = vsel %vm703, %v1927, 0
  %1955 = vmatprep.subr.bf16.mxu0 0
  %1956 = vmatpush1.bf16.msra.mxu0 0
  %1957 = vmatprep.subr.bf16.mxu0 0
  %1958 = vmatpush1.bf16.msra.mxu0 0
  %1959 = vmatprep.subr.bf16.mxu0 0
  %1960 = vmatpush1.bf16.msra.mxu0 0
  %1961 = vmatprep.subr.bf16.mxu0 0
  %1962 = vmatpush1.bf16.msra.mxu0 0
  %1963 = vmatprep.subr.bf16.mxu0 0
  %1964 = vmatpush1.bf16.msra.mxu0 0
  %1965 = vmatprep.subr.bf16.mxu0 0
  %1966 = vmatpush1.bf16.msra.mxu0 0
  %1967 = vmatprep.subr.bf16.mxu0 0
  %1968 = vmatpush1.bf16.msra.mxu0 0
  %1969 = vmatprep.subr.bf16.mxu0 0
  %1970 = vmatpush1.bf16.msra.mxu0 %v1953
  %1971 = vmatprep.subr.bf16.mxu0 0
  %1972 = vmatpush2.bf16.msra.mxu0 0
  %1973 = vmatprep.subr.bf16.mxu0 0
  %1974 = vmatpush2.bf16.msra.mxu0 0
  %1975 = vmatprep.subr.bf16.mxu0 0
  %1976 = vmatpush2.bf16.msra.mxu0 0
  %1977 = vmatprep.subr.bf16.mxu0 0
  %1978 = vmatpush2.bf16.msra.mxu0 0
  %1979 = vmatprep.subr.bf16.mxu0 0
  %1980 = vmatpush2.bf16.msra.mxu0 0
  %1981 = vmatprep.subr.bf16.mxu0 0
  %1982 = vmatpush2.bf16.msra.mxu0 0
  %1983 = vmatprep.subr.bf16.mxu0 0
  %1984 = vmatpush2.bf16.msra.mxu0 0
  %1985 = vmatprep.subr.bf16.mxu0 0
  %1986 = vmatpush2.bf16.msra.mxu0 0
  %1987 = vmatprep.mubr.bf16.mxu0 0
  %1988 = vmatmul.mubr.bf16.gmra.mxu0 %v1929
  %v1989 = vpop.f32.mrf.mxu0
  %v1990 = vadd.f32 0.0, %v1989
  %v1991 = vpop.f32.mrf.mxu0
  %v1992 = vpop.f32.mrf.mxu0
  %v1993 = vadd.f32 0.0, %v1992
  %v1994 = vpop.f32.mrf.mxu0
  %1995 = vmatprep.mubr.bf16.mxu0 0
  %1996 = vmatmul.mubr.bf16.gmra.mxu0 %v1932
  %v1997 = vpop.f32.mrf.mxu0
  %v1998 = vadd.f32 0.0, %v1997
  %v1999 = vpop.f32.mrf.mxu0
  %v2000 = vpop.f32.mrf.mxu0
  %v2001 = vadd.f32 0.0, %v2000
  %v2002 = vpop.f32.mrf.mxu0
  %2003 = vmatprep.mubr.bf16.mxu0 0
  %2004 = vmatmul.mubr.bf16.gmra.mxu0 %v1935
  %v2005 = vpop.f32.mrf.mxu0
  %v2006 = vadd.f32 0.0, %v2005
  %v2007 = vpop.f32.mrf.mxu0
  %v2008 = vpop.f32.mrf.mxu0
  %v2009 = vadd.f32 0.0, %v2008
  %v2010 = vpop.f32.mrf.mxu0
  %2011 = vmatprep.mubr.bf16.mxu0 0
  %2012 = vmatmul.mubr.bf16.gmra.mxu0 %v1938
  %v2013 = vpop.f32.mrf.mxu0
  %v2014 = vadd.f32 0.0, %v2013
  %v2015 = vpop.f32.mrf.mxu0
  %v2016 = vpop.f32.mrf.mxu0
  %v2017 = vadd.f32 0.0, %v2016
  %v2018 = vpop.f32.mrf.mxu0
  %2019 = vmatprep.mubr.bf16.mxu0 0
  %2020 = vmatmul.mubr.bf16.gmra.mxu0 %v1941
  %v2021 = vpop.f32.mrf.mxu0
  %v2022 = vadd.f32 0.0, %v2021
  %v2023 = vpop.f32.mrf.mxu0
  %v2024 = vpop.f32.mrf.mxu0
  %v2025 = vadd.f32 0.0, %v2024
  %v2026 = vpop.f32.mrf.mxu0
  %2027 = vmatprep.mubr.bf16.mxu0 0
  %2028 = vmatmul.mubr.bf16.gmra.mxu0 %v1944
  %v2029 = vpop.f32.mrf.mxu0
  %v2030 = vadd.f32 0.0, %v2029
  %v2031 = vpop.f32.mrf.mxu0
  %v2032 = vpop.f32.mrf.mxu0
  %v2033 = vadd.f32 0.0, %v2032
  %v2034 = vpop.f32.mrf.mxu0
  %2035 = vmatprep.mubr.bf16.mxu0 0
  %2036 = vmatmul.mubr.bf16.gmra.mxu0 %v1947
  %v2037 = vpop.f32.mrf.mxu0
  %v2038 = vadd.f32 0.0, %v2037
  %v2039 = vpop.f32.mrf.mxu0
  %v2040 = vpop.f32.mrf.mxu0
  %v2041 = vadd.f32 0.0, %v2040
  %v2042 = vpop.f32.mrf.mxu0
  %2043 = vmatprep.mubr.bf16.mxu0 0
  %2044 = vmatmul.mubr.bf16.gmra.mxu0 %v1950
  %v2045 = vpop.f32.mrf.mxu0
  %v2046 = vadd.f32 0.0, %v2045
  %v2047 = vpop.f32.mrf.mxu0
  %v2048 = vpop.f32.mrf.mxu0
  %v2049 = vadd.f32 0.0, %v2048
  %v2050 = vpop.f32.mrf.mxu0
  %2051 = vdwg.mxu0
  %v2052 = vadd.f32 %v1892, %v1990
  %v2053 = vadd.f32 %v1893, %v1993
  %v2054 = vadd.f32 %v1894, %v1998
  %v2055 = vadd.f32 %v1895, %v2001
  %v2056 = vadd.f32 %v1896, %v2006
  %v2057 = vadd.f32 %v1897, %v2009
  %v2058 = vadd.f32 %v1898, %v2014
  %v2059 = vadd.f32 %v1899, %v2017
  %v2060 = vadd.f32 %v1900, %v2022
  %v2061 = vadd.f32 %v1901, %v2025
  %v2062 = vadd.f32 %v1902, %v2030
  %v2063 = vadd.f32 %v1903, %v2033
  %v2064 = vadd.f32 %v1904, %v2038
  %v2065 = vadd.f32 %v1905, %v2041
  %v2066 = vadd.f32 %v1906, %v2046
  %v2067 = vadd.f32 %v1907, %v2049
  %v2070 = vrot.slane %v574, 1
  %v2071 = vrot.slane %v542, 1
  %v2072 = vsel %vm607, %v2070, %v2071
  %v2073 = vrot.slane %v582, 1
  %v2074 = vrot.slane %v550, 1
  %v2075 = vsel %vm607, %v2073, %v2074
  %v2078 = vpack.c.bf16 %v947, %v944
  %v2079 = vpack.c.bf16 %v953, %v950
  %v2080 = vpack.c.bf16 %v959, %v956
  %v2081 = vpack.c.bf16 %v2072, %v962
  %v2082 = vpack.c.bf16 %v968, %v965
  %v2083 = vpack.c.bf16 %v974, %v971
  %v2084 = vpack.c.bf16 %v980, %v977
  %v2085 = vpack.c.bf16 %v2075, %v983
  %s2086 = scalar_lea.vmem %s6, 16
  %v2087 = vld [vmem:[%s2086] sm:$0x3]
  %v2089 = vsel %vm678, %v2078, 0
  %v2092 = vsel %vm678, %v2079, 0
  %v2095 = vsel %vm678, %v2080, 0
  %v2098 = vsel %vm678, %v2081, 0
  %v2101 = vsel %vm678, %v2082, 0
  %v2104 = vsel %vm678, %v2083, 0
  %v2107 = vsel %vm678, %v2084, 0
  %v2110 = vsel %vm678, %v2085, 0
  %v2113 = vsel %vm703, %v2087, 0
  %2115 = vmatprep.subr.bf16.mxu0 0
  %2116 = vmatpush1.bf16.msra.mxu0 0
  %2117 = vmatprep.subr.bf16.mxu0 0
  %2118 = vmatpush1.bf16.msra.mxu0 0
  %2119 = vmatprep.subr.bf16.mxu0 0
  %2120 = vmatpush1.bf16.msra.mxu0 0
  %2121 = vmatprep.subr.bf16.mxu0 0
  %2122 = vmatpush1.bf16.msra.mxu0 0
  %2123 = vmatprep.subr.bf16.mxu0 0
  %2124 = vmatpush1.bf16.msra.mxu0 0
  %2125 = vmatprep.subr.bf16.mxu0 0
  %2126 = vmatpush1.bf16.msra.mxu0 0
  %2127 = vmatprep.subr.bf16.mxu0 0
  %2128 = vmatpush1.bf16.msra.mxu0 0
  %2129 = vmatprep.subr.bf16.mxu0 0
  %2130 = vmatpush1.bf16.msra.mxu0 %v2113
  %2131 = vmatprep.subr.bf16.mxu0 0
  %2132 = vmatpush2.bf16.msra.mxu0 0
  %2133 = vmatprep.subr.bf16.mxu0 0
  %2134 = vmatpush2.bf16.msra.mxu0 0
  %2135 = vmatprep.subr.bf16.mxu0 0
  %2136 = vmatpush2.bf16.msra.mxu0 0
  %2137 = vmatprep.subr.bf16.mxu0 0
  %2138 = vmatpush2.bf16.msra.mxu0 0
  %2139 = vmatprep.subr.bf16.mxu0 0
  %2140 = vmatpush2.bf16.msra.mxu0 0
  %2141 = vmatprep.subr.bf16.mxu0 0
  %2142 = vmatpush2.bf16.msra.mxu0 0
  %2143 = vmatprep.subr.bf16.mxu0 0
  %2144 = vmatpush2.bf16.msra.mxu0 0
  %2145 = vmatprep.subr.bf16.mxu0 0
  %2146 = vmatpush2.bf16.msra.mxu0 0
  %2147 = vmatprep.mubr.bf16.mxu0 0
  %2148 = vmatmul.mubr.bf16.gmra.mxu0 %v2089
  %v2149 = vpop.f32.mrf.mxu0
  %v2150 = vadd.f32 0.0, %v2149
  %v2151 = vpop.f32.mrf.mxu0
  %v2152 = vpop.f32.mrf.mxu0
  %v2153 = vadd.f32 0.0, %v2152
  %v2154 = vpop.f32.mrf.mxu0
  %2155 = vmatprep.mubr.bf16.mxu0 0
  %2156 = vmatmul.mubr.bf16.gmra.mxu0 %v2092
  %v2157 = vpop.f32.mrf.mxu0
  %v2158 = vadd.f32 0.0, %v2157
  %v2159 = vpop.f32.mrf.mxu0
  %v2160 = vpop.f32.mrf.mxu0
  %v2161 = vadd.f32 0.0, %v2160
  %v2162 = vpop.f32.mrf.mxu0
  %2163 = vmatprep.mubr.bf16.mxu0 0
  %2164 = vmatmul.mubr.bf16.gmra.mxu0 %v2095
  %v2165 = vpop.f32.mrf.mxu0
  %v2166 = vadd.f32 0.0, %v2165
  %v2167 = vpop.f32.mrf.mxu0
  %v2168 = vpop.f32.mrf.mxu0
  %v2169 = vadd.f32 0.0, %v2168
  %v2170 = vpop.f32.mrf.mxu0
  %2171 = vmatprep.mubr.bf16.mxu0 0
  %2172 = vmatmul.mubr.bf16.gmra.mxu0 %v2098
  %v2173 = vpop.f32.mrf.mxu0
  %v2174 = vadd.f32 0.0, %v2173
  %v2175 = vpop.f32.mrf.mxu0
  %v2176 = vpop.f32.mrf.mxu0
  %v2177 = vadd.f32 0.0, %v2176
  %v2178 = vpop.f32.mrf.mxu0
  %2179 = vmatprep.mubr.bf16.mxu0 0
  %2180 = vmatmul.mubr.bf16.gmra.mxu0 %v2101
  %v2181 = vpop.f32.mrf.mxu0
  %v2182 = vadd.f32 0.0, %v2181
  %v2183 = vpop.f32.mrf.mxu0
  %v2184 = vpop.f32.mrf.mxu0
  %v2185 = vadd.f32 0.0, %v2184
  %v2186 = vpop.f32.mrf.mxu0
  %2187 = vmatprep.mubr.bf16.mxu0 0
  %2188 = vmatmul.mubr.bf16.gmra.mxu0 %v2104
  %v2189 = vpop.f32.mrf.mxu0
  %v2190 = vadd.f32 0.0, %v2189
  %v2191 = vpop.f32.mrf.mxu0
  %v2192 = vpop.f32.mrf.mxu0
  %v2193 = vadd.f32 0.0, %v2192
  %v2194 = vpop.f32.mrf.mxu0
  %2195 = vmatprep.mubr.bf16.mxu0 0
  %2196 = vmatmul.mubr.bf16.gmra.mxu0 %v2107
  %v2197 = vpop.f32.mrf.mxu0
  %v2198 = vadd.f32 0.0, %v2197
  %v2199 = vpop.f32.mrf.mxu0
  %v2200 = vpop.f32.mrf.mxu0
  %v2201 = vadd.f32 0.0, %v2200
  %v2202 = vpop.f32.mrf.mxu0
  %2203 = vmatprep.mubr.bf16.mxu0 0
  %2204 = vmatmul.mubr.bf16.gmra.mxu0 %v2110
  %v2205 = vpop.f32.mrf.mxu0
  %v2206 = vadd.f32 0.0, %v2205
  %v2207 = vpop.f32.mrf.mxu0
  %v2208 = vpop.f32.mrf.mxu0
  %v2209 = vadd.f32 0.0, %v2208
  %v2210 = vpop.f32.mrf.mxu0
  %2211 = vdwg.mxu0
  %v2212 = vadd.f32 %v2052, %v2150
  %v2213 = vadd.f32 %v2053, %v2153
  %v2214 = vadd.f32 %v2054, %v2158
  %v2215 = vadd.f32 %v2055, %v2161
  %v2216 = vadd.f32 %v2056, %v2166
  %v2217 = vadd.f32 %v2057, %v2169
  %v2218 = vadd.f32 %v2058, %v2174
  %v2219 = vadd.f32 %v2059, %v2177
  %v2220 = vadd.f32 %v2060, %v2182
  %v2221 = vadd.f32 %v2061, %v2185
  %v2222 = vadd.f32 %v2062, %v2190
  %v2223 = vadd.f32 %v2063, %v2193
  %v2224 = vadd.f32 %v2064, %v2198
  %v2225 = vadd.f32 %v2065, %v2201
  %v2226 = vadd.f32 %v2066, %v2206
  %v2227 = vadd.f32 %v2067, %v2209
  %v2228 = vpack.c.bf16 %v115, %v114
  %v2229 = vpack.c.bf16 %v117, %v116
  %v2230 = vpack.c.bf16 %v119, %v118
  %v2231 = vpack.c.bf16 %v121, %v120
  %v2232 = vpack.c.bf16 %v123, %v122
  %v2233 = vpack.c.bf16 %v125, %v124
  %v2234 = vpack.c.bf16 %v127, %v126
  %v2235 = vpack.c.bf16 %v129, %v128
  %v2236 = vld [vmem:[%s9] sm:$0x3]
  %v2238 = vsel %vm678, %v2228, 0
  %v2241 = vsel %vm678, %v2229, 0
  %v2244 = vsel %vm678, %v2230, 0
  %v2247 = vsel %vm678, %v2231, 0
  %v2250 = vsel %vm678, %v2232, 0
  %v2253 = vsel %vm678, %v2233, 0
  %v2256 = vsel %vm678, %v2234, 0
  %v2259 = vsel %vm678, %v2235, 0
  %v2262 = vsel %vm703, %v2236, 0
  %2264 = vmatprep.subr.bf16.mxu0 0
  %2265 = vmatpush1.bf16.msra.mxu0 0
  %2266 = vmatprep.subr.bf16.mxu0 0
  %2267 = vmatpush1.bf16.msra.mxu0 0
  %2268 = vmatprep.subr.bf16.mxu0 0
  %2269 = vmatpush1.bf16.msra.mxu0 0
  %2270 = vmatprep.subr.bf16.mxu0 0
  %2271 = vmatpush1.bf16.msra.mxu0 0
  %2272 = vmatprep.subr.bf16.mxu0 0
  %2273 = vmatpush1.bf16.msra.mxu0 0
  %2274 = vmatprep.subr.bf16.mxu0 0
  %2275 = vmatpush1.bf16.msra.mxu0 0
  %2276 = vmatprep.subr.bf16.mxu0 0
  %2277 = vmatpush1.bf16.msra.mxu0 0
  %2278 = vmatprep.subr.bf16.mxu0 0
  %2279 = vmatpush1.bf16.msra.mxu0 %v2262
  %2280 = vmatprep.subr.bf16.mxu0 0
  %2281 = vmatpush2.bf16.msra.mxu0 0
  %2282 = vmatprep.subr.bf16.mxu0 0
  %2283 = vmatpush2.bf16.msra.mxu0 0
  %2284 = vmatprep.subr.bf16.mxu0 0
  %2285 = vmatpush2.bf16.msra.mxu0 0
  %2286 = vmatprep.subr.bf16.mxu0 0
  %2287 = vmatpush2.bf16.msra.mxu0 0
  %2288 = vmatprep.subr.bf16.mxu0 0
  %2289 = vmatpush2.bf16.msra.mxu0 0
  %2290 = vmatprep.subr.bf16.mxu0 0
  %2291 = vmatpush2.bf16.msra.mxu0 0
  %2292 = vmatprep.subr.bf16.mxu0 0
  %2293 = vmatpush2.bf16.msra.mxu0 0
  %2294 = vmatprep.subr.bf16.mxu0 0
  %2295 = vmatpush2.bf16.msra.mxu0 0
  %2296 = vmatprep.mubr.bf16.mxu0 0
  %2297 = vmatmul.mubr.bf16.gmra.mxu0 %v2238
  %v2298 = vpop.f32.mrf.mxu0
  %v2299 = vadd.f32 0.0, %v2298
  %v2300 = vpop.f32.mrf.mxu0
  %v2301 = vpop.f32.mrf.mxu0
  %v2302 = vadd.f32 0.0, %v2301
  %v2303 = vpop.f32.mrf.mxu0
  %2304 = vmatprep.mubr.bf16.mxu0 0
  %2305 = vmatmul.mubr.bf16.gmra.mxu0 %v2241
  %v2306 = vpop.f32.mrf.mxu0
  %v2307 = vadd.f32 0.0, %v2306
  %v2308 = vpop.f32.mrf.mxu0
  %v2309 = vpop.f32.mrf.mxu0
  %v2310 = vadd.f32 0.0, %v2309
  %v2311 = vpop.f32.mrf.mxu0
  %2312 = vmatprep.mubr.bf16.mxu0 0
  %2313 = vmatmul.mubr.bf16.gmra.mxu0 %v2244
  %v2314 = vpop.f32.mrf.mxu0
  %v2315 = vadd.f32 0.0, %v2314
  %v2316 = vpop.f32.mrf.mxu0
  %v2317 = vpop.f32.mrf.mxu0
  %v2318 = vadd.f32 0.0, %v2317
  %v2319 = vpop.f32.mrf.mxu0
  %2320 = vmatprep.mubr.bf16.mxu0 0
  %2321 = vmatmul.mubr.bf16.gmra.mxu0 %v2247
  %v2322 = vpop.f32.mrf.mxu0
  %v2323 = vadd.f32 0.0, %v2322
  %v2324 = vpop.f32.mrf.mxu0
  %v2325 = vpop.f32.mrf.mxu0
  %v2326 = vadd.f32 0.0, %v2325
  %v2327 = vpop.f32.mrf.mxu0
  %2328 = vmatprep.mubr.bf16.mxu0 0
  %2329 = vmatmul.mubr.bf16.gmra.mxu0 %v2250
  %v2330 = vpop.f32.mrf.mxu0
  %v2331 = vadd.f32 0.0, %v2330
  %v2332 = vpop.f32.mrf.mxu0
  %v2333 = vpop.f32.mrf.mxu0
  %v2334 = vadd.f32 0.0, %v2333
  %v2335 = vpop.f32.mrf.mxu0
  %2336 = vmatprep.mubr.bf16.mxu0 0
  %2337 = vmatmul.mubr.bf16.gmra.mxu0 %v2253
  %v2338 = vpop.f32.mrf.mxu0
  %v2339 = vadd.f32 0.0, %v2338
  %v2340 = vpop.f32.mrf.mxu0
  %v2341 = vpop.f32.mrf.mxu0
  %v2342 = vadd.f32 0.0, %v2341
  %v2343 = vpop.f32.mrf.mxu0
  %2344 = vmatprep.mubr.bf16.mxu0 0
  %2345 = vmatmul.mubr.bf16.gmra.mxu0 %v2256
  %v2346 = vpop.f32.mrf.mxu0
  %v2347 = vadd.f32 0.0, %v2346
  %v2348 = vpop.f32.mrf.mxu0
  %v2349 = vpop.f32.mrf.mxu0
  %v2350 = vadd.f32 0.0, %v2349
  %v2351 = vpop.f32.mrf.mxu0
  %2352 = vmatprep.mubr.bf16.mxu0 0
  %2353 = vmatmul.mubr.bf16.gmra.mxu0 %v2259
  %v2354 = vpop.f32.mrf.mxu0
  %v2355 = vadd.f32 0.0, %v2354
  %v2356 = vpop.f32.mrf.mxu0
  %v2357 = vpop.f32.mrf.mxu0
  %v2358 = vadd.f32 0.0, %v2357
  %v2359 = vpop.f32.mrf.mxu0
  %2360 = vdwg.mxu0
  %v2362 = vlaneseq
  %v2363 = vshrl.u32 %v2362, 7
  %v2364 = vsub.s32 0, %v2363
  %v2365 = vrot.slane %v53, %v2364
  %v2367 = vadd.f32 %v2212, %v2365
  %v2368 = vadd.f32 %v2213, %v2365
  %v2369 = vadd.f32 %v2214, %v2365
  %v2370 = vadd.f32 %v2215, %v2365
  %v2371 = vadd.f32 %v2216, %v2365
  %v2372 = vadd.f32 %v2217, %v2365
  %v2373 = vadd.f32 %v2218, %v2365
  %v2374 = vadd.f32 %v2219, %v2365
  %v2375 = vadd.f32 %v2220, %v2365
  %v2376 = vadd.f32 %v2221, %v2365
  %v2377 = vadd.f32 %v2222, %v2365
  %v2378 = vadd.f32 %v2223, %v2365
  %v2379 = vadd.f32 %v2224, %v2365
  %v2380 = vadd.f32 %v2225, %v2365
  %v2381 = vadd.f32 %v2226, %v2365
  %v2382 = vadd.f32 %v2227, %v2365
  %v2383 = vmax.f32 %v2367, 0.0
  %v2384 = vmax.f32 %v2368, 0.0
  %v2385 = vmax.f32 %v2369, 0.0
  %v2386 = vmax.f32 %v2370, 0.0
  %v2387 = vmax.f32 %v2371, 0.0
  %v2388 = vmax.f32 %v2372, 0.0
  %v2389 = vmax.f32 %v2373, 0.0
  %v2390 = vmax.f32 %v2374, 0.0
  %v2391 = vmax.f32 %v2375, 0.0
  %v2392 = vmax.f32 %v2376, 0.0
  %v2393 = vmax.f32 %v2377, 0.0
  %v2394 = vmax.f32 %v2378, 0.0
  %v2395 = vmax.f32 %v2379, 0.0
  %v2396 = vmax.f32 %v2380, 0.0
  %v2397 = vmax.f32 %v2381, 0.0
  %v2398 = vmax.f32 %v2382, 0.0
  %v2415 = vrot.slane %v2383, 7
  %v2416 = vrot.slane %v2384, 7
  %v2417 = vrot.slane %v2385, 7
  %v2418 = vrot.slane %v2386, 7
  %v2419 = vrot.slane %v2387, 7
  %v2420 = vrot.slane %v2388, 7
  %v2421 = vrot.slane %v2389, 7
  %v2422 = vrot.slane %v2390, 7
  %v2423 = vrot.slane %v2391, 7
  %v2424 = vrot.slane %v2392, 7
  %v2425 = vrot.slane %v2393, 7
  %v2426 = vrot.slane %v2394, 7
  %v2427 = vrot.slane %v2395, 7
  %v2428 = vrot.slane %v2396, 7
  %v2429 = vrot.slane %v2397, 7
  %v2430 = vrot.slane %v2398, 7
  %v2447 = vsel %vm370, 0.0, %v2415
  %v2448 = vsel %vm370, 0.0, %v2416
  %v2449 = vsel %vm370, 0.0, %v2417
  %v2450 = vsel %vm370, 0.0, %v2418
  %v2451 = vsel %vm370, 0.0, %v2419
  %v2452 = vsel %vm370, 0.0, %v2420
  %v2453 = vsel %vm370, 0.0, %v2421
  %v2454 = vsel %vm370, 0.0, %v2422
  %v2455 = vsel %vm370, 0.0, %v2423
  %v2456 = vsel %vm370, 0.0, %v2424
  %v2457 = vsel %vm370, 0.0, %v2425
  %v2458 = vsel %vm370, 0.0, %v2426
  %v2459 = vsel %vm370, 0.0, %v2427
  %v2460 = vsel %vm370, 0.0, %v2428
  %v2461 = vsel %vm370, 0.0, %v2429
  %v2462 = vsel %vm370, 0.0, %v2430
  %v2463 = vsel %vm370, %v468, 0.0
  %v2464 = vsel %vm370, %v2415, 0.0
  %v2465 = vsel %vm370, %v2416, 0.0
  %v2466 = vsel %vm370, %v2417, 0.0
  %v2467 = vsel %vm370, %v2418, 0.0
  %v2468 = vsel %vm370, %v2419, 0.0
  %v2469 = vsel %vm370, %v2420, 0.0
  %v2470 = vsel %vm370, %v2421, 0.0
  %v2471 = vsel %vm370, %v2422, 0.0
  %v2472 = vsel %vm370, %v2423, 0.0
  %v2473 = vsel %vm370, %v2424, 0.0
  %v2474 = vsel %vm370, %v2425, 0.0
  %v2475 = vsel %vm370, %v2426, 0.0
  %v2476 = vsel %vm370, %v2427, 0.0
  %v2477 = vsel %vm370, %v2428, 0.0
  %v2478 = vsel %vm370, %v2429, 0.0
  %v2479 = vsel %vm370, %v2430, 0.0
  %v2480 = vpack.c.bf16 %v2447, %v502
  %v2481 = vpack.c.bf16 %v2449, %v2448
  %v2482 = vpack.c.bf16 %v2451, %v2450
  %v2483 = vpack.c.bf16 %v2453, %v2452
  %v2484 = vpack.c.bf16 %v2455, %v502
  %v2485 = vpack.c.bf16 %v2457, %v2456
  %v2486 = vpack.c.bf16 %v2459, %v2458
  %v2487 = vpack.c.bf16 %v2461, %v2460
  %v2488 = vld [vmem:[%s8] sm:$0xf]
  %v2518 = vrot.slane %v2463, 1
  %v2519 = vsel %vm607, %v608, %v2518
  %v2520 = vrot.slane %v2447, 1
  %v2521 = vrot.slane %v2464, 1
  %v2522 = vsel %vm607, %v2520, %v2521
  %v2523 = vrot.slane %v2448, 1
  %v2524 = vrot.slane %v2465, 1
  %v2525 = vsel %vm607, %v2523, %v2524
  %v2526 = vrot.slane %v2449, 1
  %v2527 = vrot.slane %v2466, 1
  %v2528 = vsel %vm607, %v2526, %v2527
  %v2529 = vrot.slane %v2450, 1
  %v2530 = vrot.slane %v2467, 1
  %v2531 = vsel %vm607, %v2529, %v2530
  %v2532 = vrot.slane %v2451, 1
  %v2533 = vrot.slane %v2468, 1
  %v2534 = vsel %vm607, %v2532, %v2533
  %v2535 = vrot.slane %v2452, 1
  %v2536 = vrot.slane %v2469, 1
  %v2537 = vsel %vm607, %v2535, %v2536
  %v2538 = vrot.slane %v2453, 1
  %v2539 = vrot.slane %v2470, 1
  %v2540 = vsel %vm607, %v2538, %v2539
  %v2541 = vrot.slane %v2455, 1
  %v2542 = vrot.slane %v2472, 1
  %v2543 = vsel %vm607, %v2541, %v2542
  %v2544 = vrot.slane %v2456, 1
  %v2545 = vrot.slane %v2473, 1
  %v2546 = vsel %vm607, %v2544, %v2545
  %v2547 = vrot.slane %v2457, 1
  %v2548 = vrot.slane %v2474, 1
  %v2549 = vsel %vm607, %v2547, %v2548
  %v2550 = vrot.slane %v2458, 1
  %v2551 = vrot.slane %v2475, 1
  %v2552 = vsel %vm607, %v2550, %v2551
  %v2553 = vrot.slane %v2459, 1
  %v2554 = vrot.slane %v2476, 1
  %v2555 = vsel %vm607, %v2553, %v2554
  %v2556 = vrot.slane %v2460, 1
  %v2557 = vrot.slane %v2477, 1
  %v2558 = vsel %vm607, %v2556, %v2557
  %v2559 = vrot.slane %v2461, 1
  %v2560 = vrot.slane %v2478, 1
  %v2561 = vsel %vm607, %v2559, %v2560
  %v2577 = vpack.c.bf16 %v2522, %v2519
  %v2578 = vpack.c.bf16 %v2528, %v2525
  %v2579 = vpack.c.bf16 %v2534, %v2531
  %v2580 = vpack.c.bf16 %v2540, %v2537
  %v2581 = vpack.c.bf16 %v2543, %v2519
  %v2582 = vpack.c.bf16 %v2549, %v2546
  %v2583 = vpack.c.bf16 %v2555, %v2552
  %v2584 = vpack.c.bf16 %v2561, %v2558
  %s2585 = scalar_lea.vmem %s8, 4
  %v2586 = vld [vmem:[%s2585] sm:$0xf]
  %vm2587 = vcmask 64512
  %v2589 = vsel %vm2587, %v2577, 0
  %v2592 = vsel %vm2587, %v2578, 0
  %v2595 = vsel %vm2587, %v2579, 0
  %v2598 = vsel %vm2587, %v2580, 0
  %v2601 = vsel %vm2587, %v2581, 0
  %v2604 = vsel %vm2587, %v2582, 0
  %v2607 = vsel %vm2587, %v2583, 0
  %v2610 = vsel %vm2587, %v2584, 0
  %vm2612 = vcmask 1043456
  %v2614 = vsel %vm2612, %v2586, 0
  %2616 = vmatprep.subr.bf16.mxu0 0
  %2617 = vmatpush1.bf16.msra.mxu0 0
  %2618 = vmatprep.subr.bf16.mxu0 0
  %2619 = vmatpush1.bf16.msra.mxu0 0
  %2620 = vmatprep.subr.bf16.mxu0 0
  %2621 = vmatpush1.bf16.msra.mxu0 0
  %2622 = vmatprep.subr.bf16.mxu0 0
  %2623 = vmatpush1.bf16.msra.mxu0 0
  %2624 = vmatprep.subr.bf16.mxu0 0
  %2625 = vmatpush1.bf16.msra.mxu0 0
  %2626 = vmatprep.subr.bf16.mxu0 0
  %2627 = vmatpush1.bf16.msra.mxu0 0
  %2628 = vmatprep.subr.bf16.mxu0 0
  %2629 = vmatpush1.bf16.msra.mxu0 0
  %2630 = vmatprep.subr.bf16.mxu0 0
  %2631 = vmatpush1.bf16.msra.mxu0 %v2614
  %2632 = vmatprep.subr.bf16.mxu0 0
  %2633 = vmatpush2.bf16.msra.mxu0 0
  %2634 = vmatprep.subr.bf16.mxu0 0
  %2635 = vmatpush2.bf16.msra.mxu0 0
  %2636 = vmatprep.subr.bf16.mxu0 0
  %2637 = vmatpush2.bf16.msra.mxu0 0
  %2638 = vmatprep.subr.bf16.mxu0 0
  %2639 = vmatpush2.bf16.msra.mxu0 0
  %2640 = vmatprep.subr.bf16.mxu0 0
  %2641 = vmatpush2.bf16.msra.mxu0 0
  %2642 = vmatprep.subr.bf16.mxu0 0
  %2643 = vmatpush2.bf16.msra.mxu0 0
  %2644 = vmatprep.subr.bf16.mxu0 0
  %2645 = vmatpush2.bf16.msra.mxu0 0
  %2646 = vmatprep.subr.bf16.mxu0 0
  %2647 = vmatpush2.bf16.msra.mxu0 0
  %2648 = vmatprep.mubr.bf16.mxu0 0
  %2649 = vmatmul.mubr.bf16.gmra.mxu0 %v2589
  %v2650 = vpop.f32.mrf.mxu0
  %v2651 = vadd.f32 0.0, %v2650
  %v2652 = vpop.f32.mrf.mxu0
  %v2653 = vpop.f32.mrf.mxu0
  %v2654 = vadd.f32 0.0, %v2653
  %v2655 = vpop.f32.mrf.mxu0
  %2656 = vmatprep.mubr.bf16.mxu0 0
  %2657 = vmatmul.mubr.bf16.gmra.mxu0 %v2592
  %v2658 = vpop.f32.mrf.mxu0
  %v2659 = vadd.f32 0.0, %v2658
  %v2660 = vpop.f32.mrf.mxu0
  %v2661 = vpop.f32.mrf.mxu0
  %v2662 = vadd.f32 0.0, %v2661
  %v2663 = vpop.f32.mrf.mxu0
  %2664 = vmatprep.mubr.bf16.mxu0 0
  %2665 = vmatmul.mubr.bf16.gmra.mxu0 %v2595
  %v2666 = vpop.f32.mrf.mxu0
  %v2667 = vadd.f32 0.0, %v2666
  %v2668 = vpop.f32.mrf.mxu0
  %v2669 = vpop.f32.mrf.mxu0
  %v2670 = vadd.f32 0.0, %v2669
  %v2671 = vpop.f32.mrf.mxu0
  %2672 = vmatprep.mubr.bf16.mxu0 0
  %2673 = vmatmul.mubr.bf16.gmra.mxu0 %v2598
  %v2674 = vpop.f32.mrf.mxu0
  %v2675 = vadd.f32 0.0, %v2674
  %v2676 = vpop.f32.mrf.mxu0
  %v2677 = vpop.f32.mrf.mxu0
  %v2678 = vadd.f32 0.0, %v2677
  %v2679 = vpop.f32.mrf.mxu0
  %2680 = vmatprep.mubr.bf16.mxu0 0
  %2681 = vmatmul.mubr.bf16.gmra.mxu0 %v2601
  %v2682 = vpop.f32.mrf.mxu0
  %v2683 = vadd.f32 0.0, %v2682
  %v2684 = vpop.f32.mrf.mxu0
  %v2685 = vpop.f32.mrf.mxu0
  %v2686 = vadd.f32 0.0, %v2685
  %v2687 = vpop.f32.mrf.mxu0
  %2688 = vmatprep.mubr.bf16.mxu0 0
  %2689 = vmatmul.mubr.bf16.gmra.mxu0 %v2604
  %v2690 = vpop.f32.mrf.mxu0
  %v2691 = vadd.f32 0.0, %v2690
  %v2692 = vpop.f32.mrf.mxu0
  %v2693 = vpop.f32.mrf.mxu0
  %v2694 = vadd.f32 0.0, %v2693
  %v2695 = vpop.f32.mrf.mxu0
  %2696 = vmatprep.mubr.bf16.mxu0 0
  %2697 = vmatmul.mubr.bf16.gmra.mxu0 %v2607
  %v2698 = vpop.f32.mrf.mxu0
  %v2699 = vadd.f32 0.0, %v2698
  %v2700 = vpop.f32.mrf.mxu0
  %v2701 = vpop.f32.mrf.mxu0
  %v2702 = vadd.f32 0.0, %v2701
  %v2703 = vpop.f32.mrf.mxu0
  %2704 = vmatprep.mubr.bf16.mxu0 0
  %2705 = vmatmul.mubr.bf16.gmra.mxu0 %v2610
  %v2706 = vpop.f32.mrf.mxu0
  %v2707 = vadd.f32 0.0, %v2706
  %v2708 = vpop.f32.mrf.mxu0
  %v2709 = vpop.f32.mrf.mxu0
  %v2710 = vadd.f32 0.0, %v2709
  %v2711 = vpop.f32.mrf.mxu0
  %2712 = vdwg.mxu0
  %v2714 = vsel %vm2587, %v2480, 0
  %v2717 = vsel %vm2587, %v2481, 0
  %v2720 = vsel %vm2587, %v2482, 0
  %v2723 = vsel %vm2587, %v2483, 0
  %v2726 = vsel %vm2587, %v2484, 0
  %v2729 = vsel %vm2587, %v2485, 0
  %v2732 = vsel %vm2587, %v2486, 0
  %v2735 = vsel %vm2587, %v2487, 0
  %v2738 = vsel %vm2612, %v2488, 0
  %2740 = vmatprep.subr.bf16.mxu0 0
  %2741 = vmatpush1.bf16.msra.mxu0 0
  %2742 = vmatprep.subr.bf16.mxu0 0
  %2743 = vmatpush1.bf16.msra.mxu0 0
  %2744 = vmatprep.subr.bf16.mxu0 0
  %2745 = vmatpush1.bf16.msra.mxu0 0
  %2746 = vmatprep.subr.bf16.mxu0 0
  %2747 = vmatpush1.bf16.msra.mxu0 0
  %2748 = vmatprep.subr.bf16.mxu0 0
  %2749 = vmatpush1.bf16.msra.mxu0 0
  %2750 = vmatprep.subr.bf16.mxu0 0
  %2751 = vmatpush1.bf16.msra.mxu0 0
  %2752 = vmatprep.subr.bf16.mxu0 0
  %2753 = vmatpush1.bf16.msra.mxu0 0
  %2754 = vmatprep.subr.bf16.mxu0 0
  %2755 = vmatpush1.bf16.msra.mxu0 %v2738
  %2756 = vmatprep.subr.bf16.mxu0 0
  %2757 = vmatpush2.bf16.msra.mxu0 0
  %2758 = vmatprep.subr.bf16.mxu0 0
  %2759 = vmatpush2.bf16.msra.mxu0 0
  %2760 = vmatprep.subr.bf16.mxu0 0
  %2761 = vmatpush2.bf16.msra.mxu0 0
  %2762 = vmatprep.subr.bf16.mxu0 0
  %2763 = vmatpush2.bf16.msra.mxu0 0
  %2764 = vmatprep.subr.bf16.mxu0 0
  %2765 = vmatpush2.bf16.msra.mxu0 0
  %2766 = vmatprep.subr.bf16.mxu0 0
  %2767 = vmatpush2.bf16.msra.mxu0 0
  %2768 = vmatprep.subr.bf16.mxu0 0
  %2769 = vmatpush2.bf16.msra.mxu0 0
  %2770 = vmatprep.subr.bf16.mxu0 0
  %2771 = vmatpush2.bf16.msra.mxu0 0
  %2772 = vmatprep.mubr.bf16.mxu0 0
  %2773 = vmatmul.mubr.bf16.gmra.mxu0 %v2714
  %v2774 = vpop.f32.mrf.mxu0
  %v2775 = vadd.f32 %v2651, %v2774
  %v2776 = vpop.f32.mrf.mxu0
  %v2777 = vpop.f32.mrf.mxu0
  %v2778 = vadd.f32 %v2654, %v2777
  %v2779 = vpop.f32.mrf.mxu0
  %2780 = vmatprep.mubr.bf16.mxu0 0
  %2781 = vmatmul.mubr.bf16.gmra.mxu0 %v2717
  %v2782 = vpop.f32.mrf.mxu0
  %v2783 = vadd.f32 %v2659, %v2782
  %v2784 = vpop.f32.mrf.mxu0
  %v2785 = vpop.f32.mrf.mxu0
  %v2786 = vadd.f32 %v2662, %v2785
  %v2787 = vpop.f32.mrf.mxu0
  %2788 = vmatprep.mubr.bf16.mxu0 0
  %2789 = vmatmul.mubr.bf16.gmra.mxu0 %v2720
  %v2790 = vpop.f32.mrf.mxu0
  %v2791 = vadd.f32 %v2667, %v2790
  %v2792 = vpop.f32.mrf.mxu0
  %v2793 = vpop.f32.mrf.mxu0
  %v2794 = vadd.f32 %v2670, %v2793
  %v2795 = vpop.f32.mrf.mxu0
  %2796 = vmatprep.mubr.bf16.mxu0 0
  %2797 = vmatmul.mubr.bf16.gmra.mxu0 %v2723
  %v2798 = vpop.f32.mrf.mxu0
  %v2799 = vadd.f32 %v2675, %v2798
  %v2800 = vpop.f32.mrf.mxu0
  %v2801 = vpop.f32.mrf.mxu0
  %v2802 = vadd.f32 %v2678, %v2801
  %v2803 = vpop.f32.mrf.mxu0
  %2804 = vmatprep.mubr.bf16.mxu0 0
  %2805 = vmatmul.mubr.bf16.gmra.mxu0 %v2726
  %v2806 = vpop.f32.mrf.mxu0
  %v2807 = vadd.f32 %v2683, %v2806
  %v2808 = vpop.f32.mrf.mxu0
  %v2809 = vpop.f32.mrf.mxu0
  %v2810 = vadd.f32 %v2686, %v2809
  %v2811 = vpop.f32.mrf.mxu0
  %2812 = vmatprep.mubr.bf16.mxu0 0
  %2813 = vmatmul.mubr.bf16.gmra.mxu0 %v2729
  %v2814 = vpop.f32.mrf.mxu0
  %v2815 = vadd.f32 %v2691, %v2814
  %v2816 = vpop.f32.mrf.mxu0
  %v2817 = vpop.f32.mrf.mxu0
  %v2818 = vadd.f32 %v2694, %v2817
  %v2819 = vpop.f32.mrf.mxu0
  %2820 = vmatprep.mubr.bf16.mxu0 0
  %2821 = vmatmul.mubr.bf16.gmra.mxu0 %v2732
  %v2822 = vpop.f32.mrf.mxu0
  %v2823 = vadd.f32 %v2699, %v2822
  %v2824 = vpop.f32.mrf.mxu0
  %v2825 = vpop.f32.mrf.mxu0
  %v2826 = vadd.f32 %v2702, %v2825
  %v2827 = vpop.f32.mrf.mxu0
  %2828 = vmatprep.mubr.bf16.mxu0 0
  %2829 = vmatmul.mubr.bf16.gmra.mxu0 %v2735
  %v2830 = vpop.f32.mrf.mxu0
  %v2831 = vadd.f32 %v2707, %v2830
  %v2832 = vpop.f32.mrf.mxu0
  %v2833 = vpop.f32.mrf.mxu0
  %v2834 = vadd.f32 %v2710, %v2833
  %v2835 = vpop.f32.mrf.mxu0
  %2836 = vdwg.mxu0
  %vm2837 = vcmask 1045504
  %v2838 = vrot.slane %v502, 2
  %v2839 = vrot.slane %v2463, 2
  %v2840 = vsel %vm2837, %v2838, %v2839
  %v2841 = vrot.slane %v2447, 2
  %v2842 = vrot.slane %v2464, 2
  %v2843 = vsel %vm2837, %v2841, %v2842
  %v2844 = vrot.slane %v2448, 2
  %v2845 = vrot.slane %v2465, 2
  %v2846 = vsel %vm2837, %v2844, %v2845
  %v2847 = vrot.slane %v2449, 2
  %v2848 = vrot.slane %v2466, 2
  %v2849 = vsel %vm2837, %v2847, %v2848
  %v2850 = vrot.slane %v2450, 2
  %v2851 = vrot.slane %v2467, 2
  %v2852 = vsel %vm2837, %v2850, %v2851
  %v2853 = vrot.slane %v2451, 2
  %v2854 = vrot.slane %v2468, 2
  %v2855 = vsel %vm2837, %v2853, %v2854
  %v2856 = vrot.slane %v2452, 2
  %v2857 = vrot.slane %v2469, 2
  %v2858 = vsel %vm2837, %v2856, %v2857
  %v2859 = vrot.slane %v2453, 2
  %v2860 = vrot.slane %v2470, 2
  %v2861 = vsel %vm2837, %v2859, %v2860
  %v2862 = vrot.slane %v2455, 2
  %v2863 = vrot.slane %v2472, 2
  %v2864 = vsel %vm2837, %v2862, %v2863
  %v2865 = vrot.slane %v2456, 2
  %v2866 = vrot.slane %v2473, 2
  %v2867 = vsel %vm2837, %v2865, %v2866
  %v2868 = vrot.slane %v2457, 2
  %v2869 = vrot.slane %v2474, 2
  %v2870 = vsel %vm2837, %v2868, %v2869
  %v2871 = vrot.slane %v2458, 2
  %v2872 = vrot.slane %v2475, 2
  %v2873 = vsel %vm2837, %v2871, %v2872
  %v2874 = vrot.slane %v2459, 2
  %v2875 = vrot.slane %v2476, 2
  %v2876 = vsel %vm2837, %v2874, %v2875
  %v2877 = vrot.slane %v2460, 2
  %v2878 = vrot.slane %v2477, 2
  %v2879 = vsel %vm2837, %v2877, %v2878
  %v2880 = vrot.slane %v2461, 2
  %v2881 = vrot.slane %v2478, 2
  %v2882 = vsel %vm2837, %v2880, %v2881
  %v2898 = vpack.c.bf16 %v2843, %v2840
  %v2899 = vpack.c.bf16 %v2849, %v2846
  %v2900 = vpack.c.bf16 %v2855, %v2852
  %v2901 = vpack.c.bf16 %v2861, %v2858
  %v2902 = vpack.c.bf16 %v2864, %v2840
  %v2903 = vpack.c.bf16 %v2870, %v2867
  %v2904 = vpack.c.bf16 %v2876, %v2873
  %v2905 = vpack.c.bf16 %v2882, %v2879
  %s2906 = scalar_lea.vmem %s8, 8
  %v2907 = vld [vmem:[%s2906] sm:$0xf]
  %v2909 = vsel %vm2587, %v2898, 0
  %v2912 = vsel %vm2587, %v2899, 0
  %v2915 = vsel %vm2587, %v2900, 0
  %v2918 = vsel %vm2587, %v2901, 0
  %v2921 = vsel %vm2587, %v2902, 0
  %v2924 = vsel %vm2587, %v2903, 0
  %v2927 = vsel %vm2587, %v2904, 0
  %v2930 = vsel %vm2587, %v2905, 0
  %v2933 = vsel %vm2612, %v2907, 0
  %2935 = vmatprep.subr.bf16.mxu0 0
  %2936 = vmatpush1.bf16.msra.mxu0 0
  %2937 = vmatprep.subr.bf16.mxu0 0
  %2938 = vmatpush1.bf16.msra.mxu0 0
  %2939 = vmatprep.subr.bf16.mxu0 0
  %2940 = vmatpush1.bf16.msra.mxu0 0
  %2941 = vmatprep.subr.bf16.mxu0 0
  %2942 = vmatpush1.bf16.msra.mxu0 0
  %2943 = vmatprep.subr.bf16.mxu0 0
  %2944 = vmatpush1.bf16.msra.mxu0 0
  %2945 = vmatprep.subr.bf16.mxu0 0
  %2946 = vmatpush1.bf16.msra.mxu0 0
  %2947 = vmatprep.subr.bf16.mxu0 0
  %2948 = vmatpush1.bf16.msra.mxu0 0
  %2949 = vmatprep.subr.bf16.mxu0 0
  %2950 = vmatpush1.bf16.msra.mxu0 %v2933
  %2951 = vmatprep.subr.bf16.mxu0 0
  %2952 = vmatpush2.bf16.msra.mxu0 0
  %2953 = vmatprep.subr.bf16.mxu0 0
  %2954 = vmatpush2.bf16.msra.mxu0 0
  %2955 = vmatprep.subr.bf16.mxu0 0
  %2956 = vmatpush2.bf16.msra.mxu0 0
  %2957 = vmatprep.subr.bf16.mxu0 0
  %2958 = vmatpush2.bf16.msra.mxu0 0
  %2959 = vmatprep.subr.bf16.mxu0 0
  %2960 = vmatpush2.bf16.msra.mxu0 0
  %2961 = vmatprep.subr.bf16.mxu0 0
  %2962 = vmatpush2.bf16.msra.mxu0 0
  %2963 = vmatprep.subr.bf16.mxu0 0
  %2964 = vmatpush2.bf16.msra.mxu0 0
  %2965 = vmatprep.subr.bf16.mxu0 0
  %2966 = vmatpush2.bf16.msra.mxu0 0
  %2967 = vmatprep.mubr.bf16.mxu0 0
  %2968 = vmatmul.mubr.bf16.gmra.mxu0 %v2909
  %v2969 = vpop.f32.mrf.mxu0
  %v2970 = vadd.f32 0.0, %v2969
  %v2971 = vpop.f32.mrf.mxu0
  %v2972 = vpop.f32.mrf.mxu0
  %v2973 = vadd.f32 0.0, %v2972
  %v2974 = vpop.f32.mrf.mxu0
  %2975 = vmatprep.mubr.bf16.mxu0 0
  %2976 = vmatmul.mubr.bf16.gmra.mxu0 %v2912
  %v2977 = vpop.f32.mrf.mxu0
  %v2978 = vadd.f32 0.0, %v2977
  %v2979 = vpop.f32.mrf.mxu0
  %v2980 = vpop.f32.mrf.mxu0
  %v2981 = vadd.f32 0.0, %v2980
  %v2982 = vpop.f32.mrf.mxu0
  %2983 = vmatprep.mubr.bf16.mxu0 0
  %2984 = vmatmul.mubr.bf16.gmra.mxu0 %v2915
  %v2985 = vpop.f32.mrf.mxu0
  %v2986 = vadd.f32 0.0, %v2985
  %v2987 = vpop.f32.mrf.mxu0
  %v2988 = vpop.f32.mrf.mxu0
  %v2989 = vadd.f32 0.0, %v2988
  %v2990 = vpop.f32.mrf.mxu0
  %2991 = vmatprep.mubr.bf16.mxu0 0
  %2992 = vmatmul.mubr.bf16.gmra.mxu0 %v2918
  %v2993 = vpop.f32.mrf.mxu0
  %v2994 = vadd.f32 0.0, %v2993
  %v2995 = vpop.f32.mrf.mxu0
  %v2996 = vpop.f32.mrf.mxu0
  %v2997 = vadd.f32 0.0, %v2996
  %v2998 = vpop.f32.mrf.mxu0
  %2999 = vmatprep.mubr.bf16.mxu0 0
  %3000 = vmatmul.mubr.bf16.gmra.mxu0 %v2921
  %v3001 = vpop.f32.mrf.mxu0
  %v3002 = vadd.f32 0.0, %v3001
  %v3003 = vpop.f32.mrf.mxu0
  %v3004 = vpop.f32.mrf.mxu0
  %v3005 = vadd.f32 0.0, %v3004
  %v3006 = vpop.f32.mrf.mxu0
  %3007 = vmatprep.mubr.bf16.mxu0 0
  %3008 = vmatmul.mubr.bf16.gmra.mxu0 %v2924
  %v3009 = vpop.f32.mrf.mxu0
  %v3010 = vadd.f32 0.0, %v3009
  %v3011 = vpop.f32.mrf.mxu0
  %v3012 = vpop.f32.mrf.mxu0
  %v3013 = vadd.f32 0.0, %v3012
  %v3014 = vpop.f32.mrf.mxu0
  %3015 = vmatprep.mubr.bf16.mxu0 0
  %3016 = vmatmul.mubr.bf16.gmra.mxu0 %v2927
  %v3017 = vpop.f32.mrf.mxu0
  %v3018 = vadd.f32 0.0, %v3017
  %v3019 = vpop.f32.mrf.mxu0
  %v3020 = vpop.f32.mrf.mxu0
  %v3021 = vadd.f32 0.0, %v3020
  %v3022 = vpop.f32.mrf.mxu0
  %3023 = vmatprep.mubr.bf16.mxu0 0
  %3024 = vmatmul.mubr.bf16.gmra.mxu0 %v2930
  %v3025 = vpop.f32.mrf.mxu0
  %v3026 = vadd.f32 0.0, %v3025
  %v3027 = vpop.f32.mrf.mxu0
  %v3028 = vpop.f32.mrf.mxu0
  %v3029 = vadd.f32 0.0, %v3028
  %v3030 = vpop.f32.mrf.mxu0
  %3031 = vdwg.mxu0
  %v3032 = vadd.f32 %v2775, %v2970
  %v3033 = vadd.f32 %v2778, %v2973
  %v3034 = vadd.f32 %v2783, %v2978
  %v3035 = vadd.f32 %v2786, %v2981
  %v3036 = vadd.f32 %v2791, %v2986
  %v3037 = vadd.f32 %v2794, %v2989
  %v3038 = vadd.f32 %v2799, %v2994
  %v3039 = vadd.f32 %v2802, %v2997
  %v3040 = vadd.f32 %v2807, %v3002
  %v3041 = vadd.f32 %v2810, %v3005
  %v3042 = vadd.f32 %v2815, %v3010
  %v3043 = vadd.f32 %v2818, %v3013
  %v3044 = vadd.f32 %v2823, %v3018
  %v3045 = vadd.f32 %v2826, %v3021
  %v3046 = vadd.f32 %v2831, %v3026
  %v3047 = vadd.f32 %v2834, %v3029
  %v3048 = vpack.c.bf16 %v2448, %v2447
  %v3049 = vpack.c.bf16 %v2450, %v2449
  %v3050 = vpack.c.bf16 %v2452, %v2451
  %v3051 = vpack.c.bf16 %v2454, %v2453
  %v3052 = vpack.c.bf16 %v2456, %v2455
  %v3053 = vpack.c.bf16 %v2458, %v2457
  %v3054 = vpack.c.bf16 %v2460, %v2459
  %v3055 = vpack.c.bf16 %v2462, %v2461
  %s3056 = scalar_lea.vmem %s8, 12
  %v3057 = vld [vmem:[%s3056] sm:$0xf]
  %v3059 = vsel %vm2587, %v3048, 0
  %v3062 = vsel %vm2587, %v3049, 0
  %v3065 = vsel %vm2587, %v3050, 0
  %v3068 = vsel %vm2587, %v3051, 0
  %v3071 = vsel %vm2587, %v3052, 0
  %v3074 = vsel %vm2587, %v3053, 0
  %v3077 = vsel %vm2587, %v3054, 0
  %v3080 = vsel %vm2587, %v3055, 0
  %v3083 = vsel %vm2612, %v3057, 0
  %3085 = vmatprep.subr.bf16.mxu0 0
  %3086 = vmatpush1.bf16.msra.mxu0 0
  %3087 = vmatprep.subr.bf16.mxu0 0
  %3088 = vmatpush1.bf16.msra.mxu0 0
  %3089 = vmatprep.subr.bf16.mxu0 0
  %3090 = vmatpush1.bf16.msra.mxu0 0
  %3091 = vmatprep.subr.bf16.mxu0 0
  %3092 = vmatpush1.bf16.msra.mxu0 0
  %3093 = vmatprep.subr.bf16.mxu0 0
  %3094 = vmatpush1.bf16.msra.mxu0 0
  %3095 = vmatprep.subr.bf16.mxu0 0
  %3096 = vmatpush1.bf16.msra.mxu0 0
  %3097 = vmatprep.subr.bf16.mxu0 0
  %3098 = vmatpush1.bf16.msra.mxu0 0
  %3099 = vmatprep.subr.bf16.mxu0 0
  %3100 = vmatpush1.bf16.msra.mxu0 %v3083
  %3101 = vmatprep.subr.bf16.mxu0 0
  %3102 = vmatpush2.bf16.msra.mxu0 0
  %3103 = vmatprep.subr.bf16.mxu0 0
  %3104 = vmatpush2.bf16.msra.mxu0 0
  %3105 = vmatprep.subr.bf16.mxu0 0
  %3106 = vmatpush2.bf16.msra.mxu0 0
  %3107 = vmatprep.subr.bf16.mxu0 0
  %3108 = vmatpush2.bf16.msra.mxu0 0
  %3109 = vmatprep.subr.bf16.mxu0 0
  %3110 = vmatpush2.bf16.msra.mxu0 0
  %3111 = vmatprep.subr.bf16.mxu0 0
  %3112 = vmatpush2.bf16.msra.mxu0 0
  %3113 = vmatprep.subr.bf16.mxu0 0
  %3114 = vmatpush2.bf16.msra.mxu0 0
  %3115 = vmatprep.subr.bf16.mxu0 0
  %3116 = vmatpush2.bf16.msra.mxu0 0
  %3117 = vmatprep.mubr.bf16.mxu0 0
  %3118 = vmatmul.mubr.bf16.gmra.mxu0 %v3059
  %v3119 = vpop.f32.mrf.mxu0
  %v3120 = vadd.f32 0.0, %v3119
  %v3121 = vpop.f32.mrf.mxu0
  %v3122 = vpop.f32.mrf.mxu0
  %v3123 = vadd.f32 0.0, %v3122
  %v3124 = vpop.f32.mrf.mxu0
  %3125 = vmatprep.mubr.bf16.mxu0 0
  %3126 = vmatmul.mubr.bf16.gmra.mxu0 %v3062
  %v3127 = vpop.f32.mrf.mxu0
  %v3128 = vadd.f32 0.0, %v3127
  %v3129 = vpop.f32.mrf.mxu0
  %v3130 = vpop.f32.mrf.mxu0
  %v3131 = vadd.f32 0.0, %v3130
  %v3132 = vpop.f32.mrf.mxu0
  %3133 = vmatprep.mubr.bf16.mxu0 0
  %3134 = vmatmul.mubr.bf16.gmra.mxu0 %v3065
  %v3135 = vpop.f32.mrf.mxu0
  %v3136 = vadd.f32 0.0, %v3135
  %v3137 = vpop.f32.mrf.mxu0
  %v3138 = vpop.f32.mrf.mxu0
  %v3139 = vadd.f32 0.0, %v3138
  %v3140 = vpop.f32.mrf.mxu0
  %3141 = vmatprep.mubr.bf16.mxu0 0
  %3142 = vmatmul.mubr.bf16.gmra.mxu0 %v3068
  %v3143 = vpop.f32.mrf.mxu0
  %v3144 = vadd.f32 0.0, %v3143
  %v3145 = vpop.f32.mrf.mxu0
  %v3146 = vpop.f32.mrf.mxu0
  %v3147 = vadd.f32 0.0, %v3146
  %v3148 = vpop.f32.mrf.mxu0
  %3149 = vmatprep.mubr.bf16.mxu0 0
  %3150 = vmatmul.mubr.bf16.gmra.mxu0 %v3071
  %v3151 = vpop.f32.mrf.mxu0
  %v3152 = vadd.f32 0.0, %v3151
  %v3153 = vpop.f32.mrf.mxu0
  %v3154 = vpop.f32.mrf.mxu0
  %v3155 = vadd.f32 0.0, %v3154
  %v3156 = vpop.f32.mrf.mxu0
  %3157 = vmatprep.mubr.bf16.mxu0 0
  %3158 = vmatmul.mubr.bf16.gmra.mxu0 %v3074
  %v3159 = vpop.f32.mrf.mxu0
  %v3160 = vadd.f32 0.0, %v3159
  %v3161 = vpop.f32.mrf.mxu0
  %v3162 = vpop.f32.mrf.mxu0
  %v3163 = vadd.f32 0.0, %v3162
  %v3164 = vpop.f32.mrf.mxu0
  %3165 = vmatprep.mubr.bf16.mxu0 0
  %3166 = vmatmul.mubr.bf16.gmra.mxu0 %v3077
  %v3167 = vpop.f32.mrf.mxu0
  %v3168 = vadd.f32 0.0, %v3167
  %v3169 = vpop.f32.mrf.mxu0
  %v3170 = vpop.f32.mrf.mxu0
  %v3171 = vadd.f32 0.0, %v3170
  %v3172 = vpop.f32.mrf.mxu0
  %3173 = vmatprep.mubr.bf16.mxu0 0
  %3174 = vmatmul.mubr.bf16.gmra.mxu0 %v3080
  %v3175 = vpop.f32.mrf.mxu0
  %v3176 = vadd.f32 0.0, %v3175
  %v3177 = vpop.f32.mrf.mxu0
  %v3178 = vpop.f32.mrf.mxu0
  %v3179 = vadd.f32 0.0, %v3178
  %v3180 = vpop.f32.mrf.mxu0
  %3181 = vdwg.mxu0
  %v3182 = vadd.f32 %v3032, %v3120
  %v3183 = vadd.f32 %v3033, %v3123
  %v3184 = vadd.f32 %v3034, %v3128
  %v3185 = vadd.f32 %v3035, %v3131
  %v3186 = vadd.f32 %v3036, %v3136
  %v3187 = vadd.f32 %v3037, %v3139
  %v3188 = vadd.f32 %v3038, %v3144
  %v3189 = vadd.f32 %v3039, %v3147
  %v3190 = vadd.f32 %v3040, %v3152
  %v3191 = vadd.f32 %v3041, %v3155
  %v3192 = vadd.f32 %v3042, %v3160
  %v3193 = vadd.f32 %v3043, %v3163
  %v3194 = vadd.f32 %v3044, %v3168
  %v3195 = vadd.f32 %v3045, %v3171
  %v3196 = vadd.f32 %v3046, %v3176
  %v3197 = vadd.f32 %v3047, %v3179
  %v3202 = vrot.slane %v2454, 1
  %v3203 = vrot.slane %v2471, 1
  %v3204 = vsel %vm607, %v3202, %v3203
  %v3205 = vrot.slane %v2462, 1
  %v3206 = vrot.slane %v2479, 1
  %v3207 = vsel %vm607, %v3205, %v3206
  %v3210 = vpack.c.bf16 %v2525, %v2522
  %v3211 = vpack.c.bf16 %v2531, %v2528
  %v3212 = vpack.c.bf16 %v2537, %v2534
  %v3213 = vpack.c.bf16 %v3204, %v2540
  %v3214 = vpack.c.bf16 %v2546, %v2543
  %v3215 = vpack.c.bf16 %v2552, %v2549
  %v3216 = vpack.c.bf16 %v2558, %v2555
  %v3217 = vpack.c.bf16 %v3207, %v2561
  %s3218 = scalar_lea.vmem %s8, 16
  %v3219 = vld [vmem:[%s3218] sm:$0xf]
  %v3221 = vsel %vm2587, %v3210, 0
  %v3224 = vsel %vm2587, %v3211, 0
  %v3227 = vsel %vm2587, %v3212, 0
  %v3230 = vsel %vm2587, %v3213, 0
  %v3233 = vsel %vm2587, %v3214, 0
  %v3236 = vsel %vm2587, %v3215, 0
  %v3239 = vsel %vm2587, %v3216, 0
  %v3242 = vsel %vm2587, %v3217, 0
  %v3245 = vsel %vm2612, %v3219, 0
  %3247 = vmatprep.subr.bf16.mxu0 0
  %3248 = vmatpush1.bf16.msra.mxu0 0
  %3249 = vmatprep.subr.bf16.mxu0 0
  %3250 = vmatpush1.bf16.msra.mxu0 0
  %3251 = vmatprep.subr.bf16.mxu0 0
  %3252 = vmatpush1.bf16.msra.mxu0 0
  %3253 = vmatprep.subr.bf16.mxu0 0
  %3254 = vmatpush1.bf16.msra.mxu0 0
  %3255 = vmatprep.subr.bf16.mxu0 0
  %3256 = vmatpush1.bf16.msra.mxu0 0
  %3257 = vmatprep.subr.bf16.mxu0 0
  %3258 = vmatpush1.bf16.msra.mxu0 0
  %3259 = vmatprep.subr.bf16.mxu0 0
  %3260 = vmatpush1.bf16.msra.mxu0 0
  %3261 = vmatprep.subr.bf16.mxu0 0
  %3262 = vmatpush1.bf16.msra.mxu0 %v3245
  %3263 = vmatprep.subr.bf16.mxu0 0
  %3264 = vmatpush2.bf16.msra.mxu0 0
  %3265 = vmatprep.subr.bf16.mxu0 0
  %3266 = vmatpush2.bf16.msra.mxu0 0
  %3267 = vmatprep.subr.bf16.mxu0 0
  %3268 = vmatpush2.bf16.msra.mxu0 0
  %3269 = vmatprep.subr.bf16.mxu0 0
  %3270 = vmatpush2.bf16.msra.mxu0 0
  %3271 = vmatprep.subr.bf16.mxu0 0
  %3272 = vmatpush2.bf16.msra.mxu0 0
  %3273 = vmatprep.subr.bf16.mxu0 0
  %3274 = vmatpush2.bf16.msra.mxu0 0
  %3275 = vmatprep.subr.bf16.mxu0 0
  %3276 = vmatpush2.bf16.msra.mxu0 0
  %3277 = vmatprep.subr.bf16.mxu0 0
  %3278 = vmatpush2.bf16.msra.mxu0 0
  %3279 = vmatprep.mubr.bf16.mxu0 0
  %3280 = vmatmul.mubr.bf16.gmra.mxu0 %v3221
  %v3281 = vpop.f32.mrf.mxu0
  %v3282 = vadd.f32 0.0, %v3281
  %v3283 = vpop.f32.mrf.mxu0
  %v3284 = vpop.f32.mrf.mxu0
  %v3285 = vadd.f32 0.0, %v3284
  %v3286 = vpop.f32.mrf.mxu0
  %3287 = vmatprep.mubr.bf16.mxu0 0
  %3288 = vmatmul.mubr.bf16.gmra.mxu0 %v3224
  %v3289 = vpop.f32.mrf.mxu0
  %v3290 = vadd.f32 0.0, %v3289
  %v3291 = vpop.f32.mrf.mxu0
  %v3292 = vpop.f32.mrf.mxu0
  %v3293 = vadd.f32 0.0, %v3292
  %v3294 = vpop.f32.mrf.mxu0
  %3295 = vmatprep.mubr.bf16.mxu0 0
  %3296 = vmatmul.mubr.bf16.gmra.mxu0 %v3227
  %v3297 = vpop.f32.mrf.mxu0
  %v3298 = vadd.f32 0.0, %v3297
  %v3299 = vpop.f32.mrf.mxu0
  %v3300 = vpop.f32.mrf.mxu0
  %v3301 = vadd.f32 0.0, %v3300
  %v3302 = vpop.f32.mrf.mxu0
  %3303 = vmatprep.mubr.bf16.mxu0 0
  %3304 = vmatmul.mubr.bf16.gmra.mxu0 %v3230
  %v3305 = vpop.f32.mrf.mxu0
  %v3306 = vadd.f32 0.0, %v3305
  %v3307 = vpop.f32.mrf.mxu0
  %v3308 = vpop.f32.mrf.mxu0
  %v3309 = vadd.f32 0.0, %v3308
  %v3310 = vpop.f32.mrf.mxu0
  %3311 = vmatprep.mubr.bf16.mxu0 0
  %3312 = vmatmul.mubr.bf16.gmra.mxu0 %v3233
  %v3313 = vpop.f32.mrf.mxu0
  %v3314 = vadd.f32 0.0, %v3313
  %v3315 = vpop.f32.mrf.mxu0
  %v3316 = vpop.f32.mrf.mxu0
  %v3317 = vadd.f32 0.0, %v3316
  %v3318 = vpop.f32.mrf.mxu0
  %3319 = vmatprep.mubr.bf16.mxu0 0
  %3320 = vmatmul.mubr.bf16.gmra.mxu0 %v3236
  %v3321 = vpop.f32.mrf.mxu0
  %v3322 = vadd.f32 0.0, %v3321
  %v3323 = vpop.f32.mrf.mxu0
  %v3324 = vpop.f32.mrf.mxu0
  %v3325 = vadd.f32 0.0, %v3324
  %v3326 = vpop.f32.mrf.mxu0
  %3327 = vmatprep.mubr.bf16.mxu0 0
  %3328 = vmatmul.mubr.bf16.gmra.mxu0 %v3239
  %v3329 = vpop.f32.mrf.mxu0
  %v3330 = vadd.f32 0.0, %v3329
  %v3331 = vpop.f32.mrf.mxu0
  %v3332 = vpop.f32.mrf.mxu0
  %v3333 = vadd.f32 0.0, %v3332
  %v3334 = vpop.f32.mrf.mxu0
  %3335 = vmatprep.mubr.bf16.mxu0 0
  %3336 = vmatmul.mubr.bf16.gmra.mxu0 %v3242
  %v3337 = vpop.f32.mrf.mxu0
  %v3338 = vadd.f32 0.0, %v3337
  %v3339 = vpop.f32.mrf.mxu0
  %v3340 = vpop.f32.mrf.mxu0
  %v3341 = vadd.f32 0.0, %v3340
  %v3342 = vpop.f32.mrf.mxu0
  %3343 = vdwg.mxu0
  %v3344 = vadd.f32 %v3182, %v3282
  %v3345 = vadd.f32 %v3183, %v3285
  %v3346 = vadd.f32 %v3184, %v3290
  %v3347 = vadd.f32 %v3185, %v3293
  %v3348 = vadd.f32 %v3186, %v3298
  %v3349 = vadd.f32 %v3187, %v3301
  %v3350 = vadd.f32 %v3188, %v3306
  %v3351 = vadd.f32 %v3189, %v3309
  %v3352 = vadd.f32 %v3190, %v3314
  %v3353 = vadd.f32 %v3191, %v3317
  %v3354 = vadd.f32 %v3192, %v3322
  %v3355 = vadd.f32 %v3193, %v3325
  %v3356 = vadd.f32 %v3194, %v3330
  %v3357 = vadd.f32 %v3195, %v3333
  %v3358 = vadd.f32 %v3196, %v3338
  %v3359 = vadd.f32 %v3197, %v3341
  %v3360 = vrot.slane %v2454, 2
  %v3361 = vrot.slane %v2471, 2
  %v3362 = vsel %vm2837, %v3360, %v3361
  %v3363 = vrot.slane %v2462, 2
  %v3364 = vrot.slane %v2479, 2
  %v3365 = vsel %vm2837, %v3363, %v3364
  %v3368 = vpack.c.bf16 %v2846, %v2843
  %v3369 = vpack.c.bf16 %v2852, %v2849
  %v3370 = vpack.c.bf16 %v2858, %v2855
  %v3371 = vpack.c.bf16 %v3362, %v2861
  %v3372 = vpack.c.bf16 %v2867, %v2864
  %v3373 = vpack.c.bf16 %v2873, %v2870
  %v3374 = vpack.c.bf16 %v2879, %v2876
  %v3375 = vpack.c.bf16 %v3365, %v2882
  %s3376 = scalar_lea.vmem %s8, 20
  %v3377 = vld [vmem:[%s3376] sm:$0xf]
  %v3379 = vsel %vm2587, %v3368, 0
  %v3382 = vsel %vm2587, %v3369, 0
  %v3385 = vsel %vm2587, %v3370, 0
  %v3388 = vsel %vm2587, %v3371, 0
  %v3391 = vsel %vm2587, %v3372, 0
  %v3394 = vsel %vm2587, %v3373, 0
  %v3397 = vsel %vm2587, %v3374, 0
  %v3400 = vsel %vm2587, %v3375, 0
  %v3403 = vsel %vm2612, %v3377, 0
  %3405 = vmatprep.subr.bf16.mxu0 0
  %3406 = vmatpush1.bf16.msra.mxu0 0
  %3407 = vmatprep.subr.bf16.mxu0 0
  %3408 = vmatpush1.bf16.msra.mxu0 0
  %3409 = vmatprep.subr.bf16.mxu0 0
  %3410 = vmatpush1.bf16.msra.mxu0 0
  %3411 = vmatprep.subr.bf16.mxu0 0
  %3412 = vmatpush1.bf16.msra.mxu0 0
  %3413 = vmatprep.subr.bf16.mxu0 0
  %3414 = vmatpush1.bf16.msra.mxu0 0
  %3415 = vmatprep.subr.bf16.mxu0 0
  %3416 = vmatpush1.bf16.msra.mxu0 0
  %3417 = vmatprep.subr.bf16.mxu0 0
  %3418 = vmatpush1.bf16.msra.mxu0 0
  %3419 = vmatprep.subr.bf16.mxu0 0
  %3420 = vmatpush1.bf16.msra.mxu0 %v3403
  %3421 = vmatprep.subr.bf16.mxu0 0
  %3422 = vmatpush2.bf16.msra.mxu0 0
  %3423 = vmatprep.subr.bf16.mxu0 0
  %3424 = vmatpush2.bf16.msra.mxu0 0
  %3425 = vmatprep.subr.bf16.mxu0 0
  %3426 = vmatpush2.bf16.msra.mxu0 0
  %3427 = vmatprep.subr.bf16.mxu0 0
  %3428 = vmatpush2.bf16.msra.mxu0 0
  %3429 = vmatprep.subr.bf16.mxu0 0
  %3430 = vmatpush2.bf16.msra.mxu0 0
  %3431 = vmatprep.subr.bf16.mxu0 0
  %3432 = vmatpush2.bf16.msra.mxu0 0
  %3433 = vmatprep.subr.bf16.mxu0 0
  %3434 = vmatpush2.bf16.msra.mxu0 0
  %3435 = vmatprep.subr.bf16.mxu0 0
  %3436 = vmatpush2.bf16.msra.mxu0 0
  %3437 = vmatprep.mubr.bf16.mxu0 0
  %3438 = vmatmul.mubr.bf16.gmra.mxu0 %v3379
  %v3439 = vpop.f32.mrf.mxu0
  %v3440 = vadd.f32 0.0, %v3439
  %v3441 = vpop.f32.mrf.mxu0
  %v3442 = vpop.f32.mrf.mxu0
  %v3443 = vadd.f32 0.0, %v3442
  %v3444 = vpop.f32.mrf.mxu0
  %3445 = vmatprep.mubr.bf16.mxu0 0
  %3446 = vmatmul.mubr.bf16.gmra.mxu0 %v3382
  %v3447 = vpop.f32.mrf.mxu0
  %v3448 = vadd.f32 0.0, %v3447
  %v3449 = vpop.f32.mrf.mxu0
  %v3450 = vpop.f32.mrf.mxu0
  %v3451 = vadd.f32 0.0, %v3450
  %v3452 = vpop.f32.mrf.mxu0
  %3453 = vmatprep.mubr.bf16.mxu0 0
  %3454 = vmatmul.mubr.bf16.gmra.mxu0 %v3385
  %v3455 = vpop.f32.mrf.mxu0
  %v3456 = vadd.f32 0.0, %v3455
  %v3457 = vpop.f32.mrf.mxu0
  %v3458 = vpop.f32.mrf.mxu0
  %v3459 = vadd.f32 0.0, %v3458
  %v3460 = vpop.f32.mrf.mxu0
  %3461 = vmatprep.mubr.bf16.mxu0 0
  %3462 = vmatmul.mubr.bf16.gmra.mxu0 %v3388
  %v3463 = vpop.f32.mrf.mxu0
  %v3464 = vadd.f32 0.0, %v3463
  %v3465 = vpop.f32.mrf.mxu0
  %v3466 = vpop.f32.mrf.mxu0
  %v3467 = vadd.f32 0.0, %v3466
  %v3468 = vpop.f32.mrf.mxu0
  %3469 = vmatprep.mubr.bf16.mxu0 0
  %3470 = vmatmul.mubr.bf16.gmra.mxu0 %v3391
  %v3471 = vpop.f32.mrf.mxu0
  %v3472 = vadd.f32 0.0, %v3471
  %v3473 = vpop.f32.mrf.mxu0
  %v3474 = vpop.f32.mrf.mxu0
  %v3475 = vadd.f32 0.0, %v3474
  %v3476 = vpop.f32.mrf.mxu0
  %3477 = vmatprep.mubr.bf16.mxu0 0
  %3478 = vmatmul.mubr.bf16.gmra.mxu0 %v3394
  %v3479 = vpop.f32.mrf.mxu0
  %v3480 = vadd.f32 0.0, %v3479
  %v3481 = vpop.f32.mrf.mxu0
  %v3482 = vpop.f32.mrf.mxu0
  %v3483 = vadd.f32 0.0, %v3482
  %v3484 = vpop.f32.mrf.mxu0
  %3485 = vmatprep.mubr.bf16.mxu0 0
  %3486 = vmatmul.mubr.bf16.gmra.mxu0 %v3397
  %v3487 = vpop.f32.mrf.mxu0
  %v3488 = vadd.f32 0.0, %v3487
  %v3489 = vpop.f32.mrf.mxu0
  %v3490 = vpop.f32.mrf.mxu0
  %v3491 = vadd.f32 0.0, %v3490
  %v3492 = vpop.f32.mrf.mxu0
  %3493 = vmatprep.mubr.bf16.mxu0 0
  %3494 = vmatmul.mubr.bf16.gmra.mxu0 %v3400
  %v3495 = vpop.f32.mrf.mxu0
  %v3496 = vadd.f32 0.0, %v3495
  %v3497 = vpop.f32.mrf.mxu0
  %v3498 = vpop.f32.mrf.mxu0
  %v3499 = vadd.f32 0.0, %v3498
  %v3500 = vpop.f32.mrf.mxu0
  %3501 = vdwg.mxu0
  %v3502 = vadd.f32 %v3344, %v3440
  %v3503 = vadd.f32 %v3345, %v3443
  %v3504 = vadd.f32 %v3346, %v3448
  %v3505 = vadd.f32 %v3347, %v3451
  %v3506 = vadd.f32 %v3348, %v3456
  %v3507 = vadd.f32 %v3349, %v3459
  %v3508 = vadd.f32 %v3350, %v3464
  %v3509 = vadd.f32 %v3351, %v3467
  %v3510 = vadd.f32 %v3352, %v3472
  %v3511 = vadd.f32 %v3353, %v3475
  %v3512 = vadd.f32 %v3354, %v3480
  %v3513 = vadd.f32 %v3355, %v3483
  %v3514 = vadd.f32 %v3356, %v3488
  %v3515 = vadd.f32 %v3357, %v3491
  %v3516 = vadd.f32 %v3358, %v3496
  %v3517 = vadd.f32 %v3359, %v3499
  %v3518 = vpack.c.bf16 %v502, %v2454
  %v3519 = vpack.c.bf16 %v502, %v2462
  %s3520 = scalar_lea.vmem %s8, 24
  %v3521 = vld [vmem:[%s3520] sm:$0xf]
  %v3523 = vsel %vm2587, %v3518, 0
  %v3526 = vsel %vm2587, %v3519, 0
  %v3529 = vsel %vm2612, %v3521, 0
  %3531 = vmatprep.subr.bf16.mxu0 0
  %3532 = vmatpush1.bf16.msra.mxu0 0
  %3533 = vmatprep.subr.bf16.mxu0 0
  %3534 = vmatpush1.bf16.msra.mxu0 0
  %3535 = vmatprep.subr.bf16.mxu0 0
  %3536 = vmatpush1.bf16.msra.mxu0 0
  %3537 = vmatprep.subr.bf16.mxu0 0
  %3538 = vmatpush1.bf16.msra.mxu0 0
  %3539 = vmatprep.subr.bf16.mxu0 0
  %3540 = vmatpush1.bf16.msra.mxu0 0
  %3541 = vmatprep.subr.bf16.mxu0 0
  %3542 = vmatpush1.bf16.msra.mxu0 0
  %3543 = vmatprep.subr.bf16.mxu0 0
  %3544 = vmatpush1.bf16.msra.mxu0 0
  %3545 = vmatprep.subr.bf16.mxu0 0
  %3546 = vmatpush1.bf16.msra.mxu0 %v3529
  %3547 = vmatprep.subr.bf16.mxu0 0
  %3548 = vmatpush2.bf16.msra.mxu0 0
  %3549 = vmatprep.subr.bf16.mxu0 0
  %3550 = vmatpush2.bf16.msra.mxu0 0
  %3551 = vmatprep.subr.bf16.mxu0 0
  %3552 = vmatpush2.bf16.msra.mxu0 0
  %3553 = vmatprep.subr.bf16.mxu0 0
  %3554 = vmatpush2.bf16.msra.mxu0 0
  %3555 = vmatprep.subr.bf16.mxu0 0
  %3556 = vmatpush2.bf16.msra.mxu0 0
  %3557 = vmatprep.subr.bf16.mxu0 0
  %3558 = vmatpush2.bf16.msra.mxu0 0
  %3559 = vmatprep.subr.bf16.mxu0 0
  %3560 = vmatpush2.bf16.msra.mxu0 0
  %3561 = vmatprep.subr.bf16.mxu0 0
  %3562 = vmatpush2.bf16.msra.mxu0 0
  %3563 = vmatprep.mubr.bf16.mxu0 0
  %3564 = vmatmul.mubr.bf16.gmra.mxu0 %v2717
  %v3565 = vpop.f32.mrf.mxu0
  %v3566 = vadd.f32 0.0, %v3565
  %v3567 = vpop.f32.mrf.mxu0
  %v3568 = vpop.f32.mrf.mxu0
  %v3569 = vadd.f32 0.0, %v3568
  %v3570 = vpop.f32.mrf.mxu0
  %3571 = vmatprep.mubr.bf16.mxu0 0
  %3572 = vmatmul.mubr.bf16.gmra.mxu0 %v2720
  %v3573 = vpop.f32.mrf.mxu0
  %v3574 = vadd.f32 0.0, %v3573
  %v3575 = vpop.f32.mrf.mxu0
  %v3576 = vpop.f32.mrf.mxu0
  %v3577 = vadd.f32 0.0, %v3576
  %v3578 = vpop.f32.mrf.mxu0
  %3579 = vmatprep.mubr.bf16.mxu0 0
  %3580 = vmatmul.mubr.bf16.gmra.mxu0 %v2723
  %v3581 = vpop.f32.mrf.mxu0
  %v3582 = vadd.f32 0.0, %v3581
  %v3583 = vpop.f32.mrf.mxu0
  %v3584 = vpop.f32.mrf.mxu0
  %v3585 = vadd.f32 0.0, %v3584
  %v3586 = vpop.f32.mrf.mxu0
  %3587 = vmatprep.mubr.bf16.mxu0 0
  %3588 = vmatmul.mubr.bf16.gmra.mxu0 %v3523
  %v3589 = vpop.f32.mrf.mxu0
  %v3590 = vadd.f32 0.0, %v3589
  %v3591 = vpop.f32.mrf.mxu0
  %v3592 = vpop.f32.mrf.mxu0
  %v3593 = vadd.f32 0.0, %v3592
  %v3594 = vpop.f32.mrf.mxu0
  %3595 = vmatprep.mubr.bf16.mxu0 0
  %3596 = vmatmul.mubr.bf16.gmra.mxu0 %v2729
  %v3597 = vpop.f32.mrf.mxu0
  %v3598 = vadd.f32 0.0, %v3597
  %v3599 = vpop.f32.mrf.mxu0
  %v3600 = vpop.f32.mrf.mxu0
  %v3601 = vadd.f32 0.0, %v3600
  %v3602 = vpop.f32.mrf.mxu0
  %3603 = vmatprep.mubr.bf16.mxu0 0
  %3604 = vmatmul.mubr.bf16.gmra.mxu0 %v2732
  %v3605 = vpop.f32.mrf.mxu0
  %v3606 = vadd.f32 0.0, %v3605
  %v3607 = vpop.f32.mrf.mxu0
  %v3608 = vpop.f32.mrf.mxu0
  %v3609 = vadd.f32 0.0, %v3608
  %v3610 = vpop.f32.mrf.mxu0
  %3611 = vmatprep.mubr.bf16.mxu0 0
  %3612 = vmatmul.mubr.bf16.gmra.mxu0 %v2735
  %v3613 = vpop.f32.mrf.mxu0
  %v3614 = vadd.f32 0.0, %v3613
  %v3615 = vpop.f32.mrf.mxu0
  %v3616 = vpop.f32.mrf.mxu0
  %v3617 = vadd.f32 0.0, %v3616
  %v3618 = vpop.f32.mrf.mxu0
  %3619 = vmatprep.mubr.bf16.mxu0 0
  %3620 = vmatmul.mubr.bf16.gmra.mxu0 %v3526
  %v3621 = vpop.f32.mrf.mxu0
  %v3622 = vadd.f32 0.0, %v3621
  %v3623 = vpop.f32.mrf.mxu0
  %v3624 = vpop.f32.mrf.mxu0
  %v3625 = vadd.f32 0.0, %v3624
  %v3626 = vpop.f32.mrf.mxu0
  %3627 = vdwg.mxu0
  %v3628 = vadd.f32 %v3502, %v3566
  %v3629 = vadd.f32 %v3503, %v3569
  %v3630 = vadd.f32 %v3504, %v3574
  %v3631 = vadd.f32 %v3505, %v3577
  %v3632 = vadd.f32 %v3506, %v3582
  %v3633 = vadd.f32 %v3507, %v3585
  %v3634 = vadd.f32 %v3508, %v3590
  %v3635 = vadd.f32 %v3509, %v3593
  %v3636 = vadd.f32 %v3510, %v3598
  %v3637 = vadd.f32 %v3511, %v3601
  %v3638 = vadd.f32 %v3512, %v3606
  %v3639 = vadd.f32 %v3513, %v3609
  %v3640 = vadd.f32 %v3514, %v3614
  %v3641 = vadd.f32 %v3515, %v3617
  %v3642 = vadd.f32 %v3516, %v3622
  %v3643 = vadd.f32 %v3517, %v3625
  %v3644 = vpack.c.bf16 %v2519, %v3204
  %v3645 = vpack.c.bf16 %v2519, %v3207
  %s3646 = scalar_lea.vmem %s8, 28
  %v3647 = vld [vmem:[%s3646] sm:$0xf]
  %v3649 = vsel %vm2587, %v3644, 0
  %v3652 = vsel %vm2587, %v3645, 0
  %v3655 = vsel %vm2612, %v3647, 0
  %3657 = vmatprep.subr.bf16.mxu0 0
  %3658 = vmatpush1.bf16.msra.mxu0 0
  %3659 = vmatprep.subr.bf16.mxu0 0
  %3660 = vmatpush1.bf16.msra.mxu0 0
  %3661 = vmatprep.subr.bf16.mxu0 0
  %3662 = vmatpush1.bf16.msra.mxu0 0
  %3663 = vmatprep.subr.bf16.mxu0 0
  %3664 = vmatpush1.bf16.msra.mxu0 0
  %3665 = vmatprep.subr.bf16.mxu0 0
  %3666 = vmatpush1.bf16.msra.mxu0 0
  %3667 = vmatprep.subr.bf16.mxu0 0
  %3668 = vmatpush1.bf16.msra.mxu0 0
  %3669 = vmatprep.subr.bf16.mxu0 0
  %3670 = vmatpush1.bf16.msra.mxu0 0
  %3671 = vmatprep.subr.bf16.mxu0 0
  %3672 = vmatpush1.bf16.msra.mxu0 %v3655
  %3673 = vmatprep.subr.bf16.mxu0 0
  %3674 = vmatpush2.bf16.msra.mxu0 0
  %3675 = vmatprep.subr.bf16.mxu0 0
  %3676 = vmatpush2.bf16.msra.mxu0 0
  %3677 = vmatprep.subr.bf16.mxu0 0
  %3678 = vmatpush2.bf16.msra.mxu0 0
  %3679 = vmatprep.subr.bf16.mxu0 0
  %3680 = vmatpush2.bf16.msra.mxu0 0
  %3681 = vmatprep.subr.bf16.mxu0 0
  %3682 = vmatpush2.bf16.msra.mxu0 0
  %3683 = vmatprep.subr.bf16.mxu0 0
  %3684 = vmatpush2.bf16.msra.mxu0 0
  %3685 = vmatprep.subr.bf16.mxu0 0
  %3686 = vmatpush2.bf16.msra.mxu0 0
  %3687 = vmatprep.subr.bf16.mxu0 0
  %3688 = vmatpush2.bf16.msra.mxu0 0
  %3689 = vmatprep.mubr.bf16.mxu0 0
  %3690 = vmatmul.mubr.bf16.gmra.mxu0 %v2592
  %v3691 = vpop.f32.mrf.mxu0
  %v3692 = vadd.f32 0.0, %v3691
  %v3693 = vpop.f32.mrf.mxu0
  %v3694 = vpop.f32.mrf.mxu0
  %v3695 = vadd.f32 0.0, %v3694
  %v3696 = vpop.f32.mrf.mxu0
  %3697 = vmatprep.mubr.bf16.mxu0 0
  %3698 = vmatmul.mubr.bf16.gmra.mxu0 %v2595
  %v3699 = vpop.f32.mrf.mxu0
  %v3700 = vadd.f32 0.0, %v3699
  %v3701 = vpop.f32.mrf.mxu0
  %v3702 = vpop.f32.mrf.mxu0
  %v3703 = vadd.f32 0.0, %v3702
  %v3704 = vpop.f32.mrf.mxu0
  %3705 = vmatprep.mubr.bf16.mxu0 0
  %3706 = vmatmul.mubr.bf16.gmra.mxu0 %v2598
  %v3707 = vpop.f32.mrf.mxu0
  %v3708 = vadd.f32 0.0, %v3707
  %v3709 = vpop.f32.mrf.mxu0
  %v3710 = vpop.f32.mrf.mxu0
  %v3711 = vadd.f32 0.0, %v3710
  %v3712 = vpop.f32.mrf.mxu0
  %3713 = vmatprep.mubr.bf16.mxu0 0
  %3714 = vmatmul.mubr.bf16.gmra.mxu0 %v3649
  %v3715 = vpop.f32.mrf.mxu0
  %v3716 = vadd.f32 0.0, %v3715
  %v3717 = vpop.f32.mrf.mxu0
  %v3718 = vpop.f32.mrf.mxu0
  %v3719 = vadd.f32 0.0, %v3718
  %v3720 = vpop.f32.mrf.mxu0
  %3721 = vmatprep.mubr.bf16.mxu0 0
  %3722 = vmatmul.mubr.bf16.gmra.mxu0 %v2604
  %v3723 = vpop.f32.mrf.mxu0
  %v3724 = vadd.f32 0.0, %v3723
  %v3725 = vpop.f32.mrf.mxu0
  %v3726 = vpop.f32.mrf.mxu0
  %v3727 = vadd.f32 0.0, %v3726
  %v3728 = vpop.f32.mrf.mxu0
  %3729 = vmatprep.mubr.bf16.mxu0 0
  %3730 = vmatmul.mubr.bf16.gmra.mxu0 %v2607
  %v3731 = vpop.f32.mrf.mxu0
  %v3732 = vadd.f32 0.0, %v3731
  %v3733 = vpop.f32.mrf.mxu0
  %v3734 = vpop.f32.mrf.mxu0
  %v3735 = vadd.f32 0.0, %v3734
  %v3736 = vpop.f32.mrf.mxu0
  %3737 = vmatprep.mubr.bf16.mxu0 0
  %3738 = vmatmul.mubr.bf16.gmra.mxu0 %v2610
  %v3739 = vpop.f32.mrf.mxu0
  %v3740 = vadd.f32 0.0, %v3739
  %v3741 = vpop.f32.mrf.mxu0
  %v3742 = vpop.f32.mrf.mxu0
  %v3743 = vadd.f32 0.0, %v3742
  %v3744 = vpop.f32.mrf.mxu0
  %3745 = vmatprep.mubr.bf16.mxu0 0
  %3746 = vmatmul.mubr.bf16.gmra.mxu0 %v3652
  %v3747 = vpop.f32.mrf.mxu0
  %v3748 = vadd.f32 0.0, %v3747
  %v3749 = vpop.f32.mrf.mxu0
  %v3750 = vpop.f32.mrf.mxu0
  %v3751 = vadd.f32 0.0, %v3750
  %v3752 = vpop.f32.mrf.mxu0
  %3753 = vdwg.mxu0
  %v3754 = vadd.f32 %v3628, %v3692
  %v3755 = vadd.f32 %v3629, %v3695
  %v3756 = vadd.f32 %v3630, %v3700
  %v3757 = vadd.f32 %v3631, %v3703
  %v3758 = vadd.f32 %v3632, %v3708
  %v3759 = vadd.f32 %v3633, %v3711
  %v3760 = vadd.f32 %v3634, %v3716
  %v3761 = vadd.f32 %v3635, %v3719
  %v3762 = vadd.f32 %v3636, %v3724
  %v3763 = vadd.f32 %v3637, %v3727
  %v3764 = vadd.f32 %v3638, %v3732
  %v3765 = vadd.f32 %v3639, %v3735
  %v3766 = vadd.f32 %v3640, %v3740
  %v3767 = vadd.f32 %v3641, %v3743
  %v3768 = vadd.f32 %v3642, %v3748
  %v3769 = vadd.f32 %v3643, %v3751
  %v3770 = vpack.c.bf16 %v2840, %v3362
  %v3771 = vpack.c.bf16 %v2840, %v3365
  %s3772 = scalar_lea.vmem %s8, 32
  %v3773 = vld [vmem:[%s3772] sm:$0xf]
  %v3775 = vsel %vm2587, %v3770, 0
  %v3778 = vsel %vm2587, %v3771, 0
  %v3781 = vsel %vm2612, %v3773, 0
  %3783 = vmatprep.subr.bf16.mxu0 0
  %3784 = vmatpush1.bf16.msra.mxu0 0
  %3785 = vmatprep.subr.bf16.mxu0 0
  %3786 = vmatpush1.bf16.msra.mxu0 0
  %3787 = vmatprep.subr.bf16.mxu0 0
  %3788 = vmatpush1.bf16.msra.mxu0 0
  %3789 = vmatprep.subr.bf16.mxu0 0
  %3790 = vmatpush1.bf16.msra.mxu0 0
  %3791 = vmatprep.subr.bf16.mxu0 0
  %3792 = vmatpush1.bf16.msra.mxu0 0
  %3793 = vmatprep.subr.bf16.mxu0 0
  %3794 = vmatpush1.bf16.msra.mxu0 0
  %3795 = vmatprep.subr.bf16.mxu0 0
  %3796 = vmatpush1.bf16.msra.mxu0 0
  %3797 = vmatprep.subr.bf16.mxu0 0
  %3798 = vmatpush1.bf16.msra.mxu0 %v3781
  %3799 = vmatprep.subr.bf16.mxu0 0
  %3800 = vmatpush2.bf16.msra.mxu0 0
  %3801 = vmatprep.subr.bf16.mxu0 0
  %3802 = vmatpush2.bf16.msra.mxu0 0
  %3803 = vmatprep.subr.bf16.mxu0 0
  %3804 = vmatpush2.bf16.msra.mxu0 0
  %3805 = vmatprep.subr.bf16.mxu0 0
  %3806 = vmatpush2.bf16.msra.mxu0 0
  %3807 = vmatprep.subr.bf16.mxu0 0
  %3808 = vmatpush2.bf16.msra.mxu0 0
  %3809 = vmatprep.subr.bf16.mxu0 0
  %3810 = vmatpush2.bf16.msra.mxu0 0
  %3811 = vmatprep.subr.bf16.mxu0 0
  %3812 = vmatpush2.bf16.msra.mxu0 0
  %3813 = vmatprep.subr.bf16.mxu0 0
  %3814 = vmatpush2.bf16.msra.mxu0 0
  %3815 = vmatprep.mubr.bf16.mxu0 0
  %3816 = vmatmul.mubr.bf16.gmra.mxu0 %v2912
  %v3817 = vpop.f32.mrf.mxu0
  %v3818 = vadd.f32 0.0, %v3817
  %v3819 = vpop.f32.mrf.mxu0
  %v3820 = vpop.f32.mrf.mxu0
  %v3821 = vadd.f32 0.0, %v3820
  %v3822 = vpop.f32.mrf.mxu0
  %3823 = vmatprep.mubr.bf16.mxu0 0
  %3824 = vmatmul.mubr.bf16.gmra.mxu0 %v2915
  %v3825 = vpop.f32.mrf.mxu0
  %v3826 = vadd.f32 0.0, %v3825
  %v3827 = vpop.f32.mrf.mxu0
  %v3828 = vpop.f32.mrf.mxu0
  %v3829 = vadd.f32 0.0, %v3828
  %v3830 = vpop.f32.mrf.mxu0
  %3831 = vmatprep.mubr.bf16.mxu0 0
  %3832 = vmatmul.mubr.bf16.gmra.mxu0 %v2918
  %v3833 = vpop.f32.mrf.mxu0
  %v3834 = vadd.f32 0.0, %v3833
  %v3835 = vpop.f32.mrf.mxu0
  %v3836 = vpop.f32.mrf.mxu0
  %v3837 = vadd.f32 0.0, %v3836
  %v3838 = vpop.f32.mrf.mxu0
  %3839 = vmatprep.mubr.bf16.mxu0 0
  %3840 = vmatmul.mubr.bf16.gmra.mxu0 %v3775
  %v3841 = vpop.f32.mrf.mxu0
  %v3842 = vadd.f32 0.0, %v3841
  %v3843 = vpop.f32.mrf.mxu0
  %v3844 = vpop.f32.mrf.mxu0
  %v3845 = vadd.f32 0.0, %v3844
  %v3846 = vpop.f32.mrf.mxu0
  %3847 = vmatprep.mubr.bf16.mxu0 0
  %3848 = vmatmul.mubr.bf16.gmra.mxu0 %v2924
  %v3849 = vpop.f32.mrf.mxu0
  %v3850 = vadd.f32 0.0, %v3849
  %v3851 = vpop.f32.mrf.mxu0
  %v3852 = vpop.f32.mrf.mxu0
  %v3853 = vadd.f32 0.0, %v3852
  %v3854 = vpop.f32.mrf.mxu0
  %3855 = vmatprep.mubr.bf16.mxu0 0
  %3856 = vmatmul.mubr.bf16.gmra.mxu0 %v2927
  %v3857 = vpop.f32.mrf.mxu0
  %v3858 = vadd.f32 0.0, %v3857
  %v3859 = vpop.f32.mrf.mxu0
  %v3860 = vpop.f32.mrf.mxu0
  %v3861 = vadd.f32 0.0, %v3860
  %v3862 = vpop.f32.mrf.mxu0
  %3863 = vmatprep.mubr.bf16.mxu0 0
  %3864 = vmatmul.mubr.bf16.gmra.mxu0 %v2930
  %v3865 = vpop.f32.mrf.mxu0
  %v3866 = vadd.f32 0.0, %v3865
  %v3867 = vpop.f32.mrf.mxu0
  %v3868 = vpop.f32.mrf.mxu0
  %v3869 = vadd.f32 0.0, %v3868
  %v3870 = vpop.f32.mrf.mxu0
  %3871 = vmatprep.mubr.bf16.mxu0 0
  %3872 = vmatmul.mubr.bf16.gmra.mxu0 %v3778
  %v3873 = vpop.f32.mrf.mxu0
  %v3874 = vadd.f32 0.0, %v3873
  %v3875 = vpop.f32.mrf.mxu0
  %v3876 = vpop.f32.mrf.mxu0
  %v3877 = vadd.f32 0.0, %v3876
  %v3878 = vpop.f32.mrf.mxu0
  %3879 = vdwg.mxu0
  %v3880 = vadd.f32 %v3754, %v3818
  %v3881 = vadd.f32 %v3755, %v3821
  %v3882 = vadd.f32 %v3756, %v3826
  %v3883 = vadd.f32 %v3757, %v3829
  %v3884 = vadd.f32 %v3758, %v3834
  %v3885 = vadd.f32 %v3759, %v3837
  %v3886 = vadd.f32 %v3760, %v3842
  %v3887 = vadd.f32 %v3761, %v3845
  %v3888 = vadd.f32 %v3762, %v3850
  %v3889 = vadd.f32 %v3763, %v3853
  %v3890 = vadd.f32 %v3764, %v3858
  %v3891 = vadd.f32 %v3765, %v3861
  %v3892 = vadd.f32 %v3766, %v3866
  %v3893 = vadd.f32 %v3767, %v3869
  %v3894 = vadd.f32 %v3768, %v3874
  %v3895 = vadd.f32 %v3769, %v3877
  %v3896 = vadd.f32 %v3880, %v2299
  %v3897 = vadd.f32 %v3881, %v2302
  %v3898 = vadd.f32 %v3882, %v2307
  %v3899 = vadd.f32 %v3883, %v2310
  %v3900 = vadd.f32 %v3884, %v2315
  %v3901 = vadd.f32 %v3885, %v2318
  %v3902 = vadd.f32 %v3886, %v2323
  %v3903 = vadd.f32 %v3887, %v2326
  %v3904 = vadd.f32 %v3888, %v2331
  %v3905 = vadd.f32 %v3889, %v2334
  %v3906 = vadd.f32 %v3890, %v2339
  %v3907 = vadd.f32 %v3891, %v2342
  %v3908 = vadd.f32 %v3892, %v2347
  %v3909 = vadd.f32 %v3893, %v2350
  %v3910 = vadd.f32 %v3894, %v2355
  %v3911 = vadd.f32 %v3895, %v2358
  %v3912 = vld [vmem:[%s10] sm:$0x1]
  %v3913 = vld [vmem:[%s11] sm:$0x1]
  %v3914 = vld [vmem:[%s13] sm:$0x1]
  %v3916 = vlaneseq
  %v3917 = vshrl.u32 %v3916, 7
  %v3918 = vsub.s32 0, %v3917
  %v3919 = vrot.slane %v3912, %v3918
  %v3921 = vmul.f32 %v3896, %v3919
  %v3922 = vmul.f32 %v3897, %v3919
  %v3923 = vmul.f32 %v3898, %v3919
  %v3924 = vmul.f32 %v3899, %v3919
  %v3925 = vmul.f32 %v3900, %v3919
  %v3926 = vmul.f32 %v3901, %v3919
  %v3927 = vmul.f32 %v3902, %v3919
  %v3928 = vmul.f32 %v3903, %v3919
  %v3929 = vmul.f32 %v3904, %v3919
  %v3930 = vmul.f32 %v3905, %v3919
  %v3931 = vmul.f32 %v3906, %v3919
  %v3932 = vmul.f32 %v3907, %v3919
  %v3933 = vmul.f32 %v3908, %v3919
  %v3934 = vmul.f32 %v3909, %v3919
  %v3935 = vmul.f32 %v3910, %v3919
  %v3936 = vmul.f32 %v3911, %v3919
  %v3938 = vlaneseq
  %v3939 = vshrl.u32 %v3938, 7
  %v3940 = vsub.s32 0, %v3939
  %v3941 = vrot.slane %v3913, %v3940
  %v3943 = vadd.f32 %v3921, %v3941
  %v3944 = vadd.f32 %v3922, %v3941
  %v3945 = vadd.f32 %v3923, %v3941
  %v3946 = vadd.f32 %v3924, %v3941
  %v3947 = vadd.f32 %v3925, %v3941
  %v3948 = vadd.f32 %v3926, %v3941
  %v3949 = vadd.f32 %v3927, %v3941
  %v3950 = vadd.f32 %v3928, %v3941
  %v3951 = vadd.f32 %v3929, %v3941
  %v3952 = vadd.f32 %v3930, %v3941
  %v3953 = vadd.f32 %v3931, %v3941
  %v3954 = vadd.f32 %v3932, %v3941
  %v3955 = vadd.f32 %v3933, %v3941
  %v3956 = vadd.f32 %v3934, %v3941
  %v3957 = vadd.f32 %v3935, %v3941
  %v3958 = vadd.f32 %v3936, %v3941
  %v3959 = vmax.f32 %v3943, 0.0
  %v3960 = vmax.f32 %v3944, 0.0
  %v3961 = vmax.f32 %v3945, 0.0
  %v3962 = vmax.f32 %v3946, 0.0
  %v3963 = vmax.f32 %v3947, 0.0
  %v3964 = vmax.f32 %v3948, 0.0
  %v3965 = vmax.f32 %v3949, 0.0
  %v3966 = vmax.f32 %v3950, 0.0
  %v3967 = vmax.f32 %v3951, 0.0
  %v3968 = vmax.f32 %v3952, 0.0
  %v3969 = vmax.f32 %v3953, 0.0
  %v3970 = vmax.f32 %v3954, 0.0
  %v3971 = vmax.f32 %v3955, 0.0
  %v3972 = vmax.f32 %v3956, 0.0
  %v3973 = vmax.f32 %v3957, 0.0
  %v3974 = vmax.f32 %v3958, 0.0
  %v3991 = vrot.slane %v3959, 7
  %v3992 = vrot.slane %v3960, 7
  %v3993 = vrot.slane %v3961, 7
  %v3994 = vrot.slane %v3962, 7
  %v3995 = vrot.slane %v3963, 7
  %v3996 = vrot.slane %v3964, 7
  %v3997 = vrot.slane %v3965, 7
  %v3998 = vrot.slane %v3966, 7
  %v3999 = vrot.slane %v3967, 7
  %v4000 = vrot.slane %v3968, 7
  %v4001 = vrot.slane %v3969, 7
  %v4002 = vrot.slane %v3970, 7
  %v4003 = vrot.slane %v3971, 7
  %v4004 = vrot.slane %v3972, 7
  %v4005 = vrot.slane %v3973, 7
  %v4006 = vrot.slane %v3974, 7
  %v4023 = vsel %vm370, 0.0, %v3991
  %v4024 = vsel %vm370, 0.0, %v3992
  %v4025 = vsel %vm370, 0.0, %v3993
  %v4026 = vsel %vm370, 0.0, %v3994
  %v4027 = vsel %vm370, 0.0, %v3995
  %v4028 = vsel %vm370, 0.0, %v3996
  %v4029 = vsel %vm370, 0.0, %v3997
  %v4030 = vsel %vm370, 0.0, %v3998
  %v4031 = vsel %vm370, 0.0, %v3999
  %v4032 = vsel %vm370, 0.0, %v4000
  %v4033 = vsel %vm370, 0.0, %v4001
  %v4034 = vsel %vm370, 0.0, %v4002
  %v4035 = vsel %vm370, 0.0, %v4003
  %v4036 = vsel %vm370, 0.0, %v4004
  %v4037 = vsel %vm370, 0.0, %v4005
  %v4038 = vsel %vm370, 0.0, %v4006
  %v4039 = vsel %vm370, %v3991, 0.0
  %v4040 = vsel %vm370, %v3992, 0.0
  %v4041 = vsel %vm370, %v3993, 0.0
  %v4042 = vsel %vm370, %v3994, 0.0
  %v4043 = vsel %vm370, %v3995, 0.0
  %v4044 = vsel %vm370, %v3996, 0.0
  %v4045 = vsel %vm370, %v3997, 0.0
  %v4046 = vsel %vm370, %v3998, 0.0
  %v4047 = vsel %vm370, %v3999, 0.0
  %v4048 = vsel %vm370, %v4000, 0.0
  %v4049 = vsel %vm370, %v4001, 0.0
  %v4050 = vsel %vm370, %v4002, 0.0
  %v4051 = vsel %vm370, %v4003, 0.0
  %v4052 = vsel %vm370, %v4004, 0.0
  %v4053 = vsel %vm370, %v4005, 0.0
  %v4054 = vsel %vm370, %v4006, 0.0
  %v4055 = vpack.c.bf16 %v4023, %v502
  %v4056 = vpack.c.bf16 %v4025, %v4024
  %v4057 = vpack.c.bf16 %v4027, %v4026
  %v4058 = vpack.c.bf16 %v4029, %v4028
  %v4059 = vpack.c.bf16 %v4031, %v502
  %v4060 = vpack.c.bf16 %v4033, %v4032
  %v4061 = vpack.c.bf16 %v4035, %v4034
  %v4062 = vpack.c.bf16 %v4037, %v4036
  %v4063 = vld [vmem:[%s12] sm:$0xf]
  %v4092 = vrot.slane %v4023, 1
  %v4093 = vrot.slane %v4039, 1
  %v4094 = vsel %vm607, %v4092, %v4093
  %v4095 = vrot.slane %v4024, 1
  %v4096 = vrot.slane %v4040, 1
  %v4097 = vsel %vm607, %v4095, %v4096
  %v4098 = vrot.slane %v4025, 1
  %v4099 = vrot.slane %v4041, 1
  %v4100 = vsel %vm607, %v4098, %v4099
  %v4101 = vrot.slane %v4026, 1
  %v4102 = vrot.slane %v4042, 1
  %v4103 = vsel %vm607, %v4101, %v4102
  %v4104 = vrot.slane %v4027, 1
  %v4105 = vrot.slane %v4043, 1
  %v4106 = vsel %vm607, %v4104, %v4105
  %v4107 = vrot.slane %v4028, 1
  %v4108 = vrot.slane %v4044, 1
  %v4109 = vsel %vm607, %v4107, %v4108
  %v4110 = vrot.slane %v4029, 1
  %v4111 = vrot.slane %v4045, 1
  %v4112 = vsel %vm607, %v4110, %v4111
  %v4113 = vrot.slane %v4031, 1
  %v4114 = vrot.slane %v4047, 1
  %v4115 = vsel %vm607, %v4113, %v4114
  %v4116 = vrot.slane %v4032, 1
  %v4117 = vrot.slane %v4048, 1
  %v4118 = vsel %vm607, %v4116, %v4117
  %v4119 = vrot.slane %v4033, 1
  %v4120 = vrot.slane %v4049, 1
  %v4121 = vsel %vm607, %v4119, %v4120
  %v4122 = vrot.slane %v4034, 1
  %v4123 = vrot.slane %v4050, 1
  %v4124 = vsel %vm607, %v4122, %v4123
  %v4125 = vrot.slane %v4035, 1
  %v4126 = vrot.slane %v4051, 1
  %v4127 = vsel %vm607, %v4125, %v4126
  %v4128 = vrot.slane %v4036, 1
  %v4129 = vrot.slane %v4052, 1
  %v4130 = vsel %vm607, %v4128, %v4129
  %v4131 = vrot.slane %v4037, 1
  %v4132 = vrot.slane %v4053, 1
  %v4133 = vsel %vm607, %v4131, %v4132
  %v4148 = vpack.c.bf16 %v4094, %v2519
  %v4149 = vpack.c.bf16 %v4100, %v4097
  %v4150 = vpack.c.bf16 %v4106, %v4103
  %v4151 = vpack.c.bf16 %v4112, %v4109
  %v4152 = vpack.c.bf16 %v4115, %v2519
  %v4153 = vpack.c.bf16 %v4121, %v4118
  %v4154 = vpack.c.bf16 %v4127, %v4124
  %v4155 = vpack.c.bf16 %v4133, %v4130
  %s4156 = scalar_lea.vmem %s12, 4
  %v4157 = vld [vmem:[%s4156] sm:$0xf]
  %v4159 = vsel %vm2587, %v4148, 0
  %v4162 = vsel %vm2587, %v4149, 0
  %v4165 = vsel %vm2587, %v4150, 0
  %v4168 = vsel %vm2587, %v4151, 0
  %v4171 = vsel %vm2587, %v4152, 0
  %v4174 = vsel %vm2587, %v4153, 0
  %v4177 = vsel %vm2587, %v4154, 0
  %v4180 = vsel %vm2587, %v4155, 0
  %v4183 = vsel %vm2612, %v4157, 0
  %4185 = vmatprep.subr.bf16.mxu0 0
  %4186 = vmatpush1.bf16.msra.mxu0 0
  %4187 = vmatprep.subr.bf16.mxu0 0
  %4188 = vmatpush1.bf16.msra.mxu0 0
  %4189 = vmatprep.subr.bf16.mxu0 0
  %4190 = vmatpush1.bf16.msra.mxu0 0
  %4191 = vmatprep.subr.bf16.mxu0 0
  %4192 = vmatpush1.bf16.msra.mxu0 0
  %4193 = vmatprep.subr.bf16.mxu0 0
  %4194 = vmatpush1.bf16.msra.mxu0 0
  %4195 = vmatprep.subr.bf16.mxu0 0
  %4196 = vmatpush1.bf16.msra.mxu0 0
  %4197 = vmatprep.subr.bf16.mxu0 0
  %4198 = vmatpush1.bf16.msra.mxu0 0
  %4199 = vmatprep.subr.bf16.mxu0 0
  %4200 = vmatpush1.bf16.msra.mxu0 %v4183
  %4201 = vmatprep.subr.bf16.mxu0 0
  %4202 = vmatpush2.bf16.msra.mxu0 0
  %4203 = vmatprep.subr.bf16.mxu0 0
  %4204 = vmatpush2.bf16.msra.mxu0 0
  %4205 = vmatprep.subr.bf16.mxu0 0
  %4206 = vmatpush2.bf16.msra.mxu0 0
  %4207 = vmatprep.subr.bf16.mxu0 0
  %4208 = vmatpush2.bf16.msra.mxu0 0
  %4209 = vmatprep.subr.bf16.mxu0 0
  %4210 = vmatpush2.bf16.msra.mxu0 0
  %4211 = vmatprep.subr.bf16.mxu0 0
  %4212 = vmatpush2.bf16.msra.mxu0 0
  %4213 = vmatprep.subr.bf16.mxu0 0
  %4214 = vmatpush2.bf16.msra.mxu0 0
  %4215 = vmatprep.subr.bf16.mxu0 0
  %4216 = vmatpush2.bf16.msra.mxu0 0
  %4217 = vmatprep.mubr.bf16.mxu0 0
  %4218 = vmatmul.mubr.bf16.gmra.mxu0 %v4159
  %v4219 = vpop.f32.mrf.mxu0
  %v4220 = vadd.f32 0.0, %v4219
  %v4221 = vpop.f32.mrf.mxu0
  %v4222 = vpop.f32.mrf.mxu0
  %v4223 = vadd.f32 0.0, %v4222
  %v4224 = vpop.f32.mrf.mxu0
  %4225 = vmatprep.mubr.bf16.mxu0 0
  %4226 = vmatmul.mubr.bf16.gmra.mxu0 %v4162
  %v4227 = vpop.f32.mrf.mxu0
  %v4228 = vadd.f32 0.0, %v4227
  %v4229 = vpop.f32.mrf.mxu0
  %v4230 = vpop.f32.mrf.mxu0
  %v4231 = vadd.f32 0.0, %v4230
  %v4232 = vpop.f32.mrf.mxu0
  %4233 = vmatprep.mubr.bf16.mxu0 0
  %4234 = vmatmul.mubr.bf16.gmra.mxu0 %v4165
  %v4235 = vpop.f32.mrf.mxu0
  %v4236 = vadd.f32 0.0, %v4235
  %v4237 = vpop.f32.mrf.mxu0
  %v4238 = vpop.f32.mrf.mxu0
  %v4239 = vadd.f32 0.0, %v4238
  %v4240 = vpop.f32.mrf.mxu0
  %4241 = vmatprep.mubr.bf16.mxu0 0
  %4242 = vmatmul.mubr.bf16.gmra.mxu0 %v4168
  %v4243 = vpop.f32.mrf.mxu0
  %v4244 = vadd.f32 0.0, %v4243
  %v4245 = vpop.f32.mrf.mxu0
  %v4246 = vpop.f32.mrf.mxu0
  %v4247 = vadd.f32 0.0, %v4246
  %v4248 = vpop.f32.mrf.mxu0
  %4249 = vmatprep.mubr.bf16.mxu0 0
  %4250 = vmatmul.mubr.bf16.gmra.mxu0 %v4171
  %v4251 = vpop.f32.mrf.mxu0
  %v4252 = vadd.f32 0.0, %v4251
  %v4253 = vpop.f32.mrf.mxu0
  %v4254 = vpop.f32.mrf.mxu0
  %v4255 = vadd.f32 0.0, %v4254
  %v4256 = vpop.f32.mrf.mxu0
  %4257 = vmatprep.mubr.bf16.mxu0 0
  %4258 = vmatmul.mubr.bf16.gmra.mxu0 %v4174
  %v4259 = vpop.f32.mrf.mxu0
  %v4260 = vadd.f32 0.0, %v4259
  %v4261 = vpop.f32.mrf.mxu0
  %v4262 = vpop.f32.mrf.mxu0
  %v4263 = vadd.f32 0.0, %v4262
  %v4264 = vpop.f32.mrf.mxu0
  %4265 = vmatprep.mubr.bf16.mxu0 0
  %4266 = vmatmul.mubr.bf16.gmra.mxu0 %v4177
  %v4267 = vpop.f32.mrf.mxu0
  %v4268 = vadd.f32 0.0, %v4267
  %v4269 = vpop.f32.mrf.mxu0
  %v4270 = vpop.f32.mrf.mxu0
  %v4271 = vadd.f32 0.0, %v4270
  %v4272 = vpop.f32.mrf.mxu0
  %4273 = vmatprep.mubr.bf16.mxu0 0
  %4274 = vmatmul.mubr.bf16.gmra.mxu0 %v4180
  %v4275 = vpop.f32.mrf.mxu0
  %v4276 = vadd.f32 0.0, %v4275
  %v4277 = vpop.f32.mrf.mxu0
  %v4278 = vpop.f32.mrf.mxu0
  %v4279 = vadd.f32 0.0, %v4278
  %v4280 = vpop.f32.mrf.mxu0
  %4281 = vdwg.mxu0
  %v4283 = vsel %vm2587, %v4055, 0
  %v4286 = vsel %vm2587, %v4056, 0
  %v4289 = vsel %vm2587, %v4057, 0
  %v4292 = vsel %vm2587, %v4058, 0
  %v4295 = vsel %vm2587, %v4059, 0
  %v4298 = vsel %vm2587, %v4060, 0
  %v4301 = vsel %vm2587, %v4061, 0
  %v4304 = vsel %vm2587, %v4062, 0
  %v4307 = vsel %vm2612, %v4063, 0
  %4309 = vmatprep.subr.bf16.mxu0 0
  %4310 = vmatpush1.bf16.msra.mxu0 0
  %4311 = vmatprep.subr.bf16.mxu0 0
  %4312 = vmatpush1.bf16.msra.mxu0 0
  %4313 = vmatprep.subr.bf16.mxu0 0
  %4314 = vmatpush1.bf16.msra.mxu0 0
  %4315 = vmatprep.subr.bf16.mxu0 0
  %4316 = vmatpush1.bf16.msra.mxu0 0
  %4317 = vmatprep.subr.bf16.mxu0 0
  %4318 = vmatpush1.bf16.msra.mxu0 0
  %4319 = vmatprep.subr.bf16.mxu0 0
  %4320 = vmatpush1.bf16.msra.mxu0 0
  %4321 = vmatprep.subr.bf16.mxu0 0
  %4322 = vmatpush1.bf16.msra.mxu0 0
  %4323 = vmatprep.subr.bf16.mxu0 0
  %4324 = vmatpush1.bf16.msra.mxu0 %v4307
  %4325 = vmatprep.subr.bf16.mxu0 0
  %4326 = vmatpush2.bf16.msra.mxu0 0
  %4327 = vmatprep.subr.bf16.mxu0 0
  %4328 = vmatpush2.bf16.msra.mxu0 0
  %4329 = vmatprep.subr.bf16.mxu0 0
  %4330 = vmatpush2.bf16.msra.mxu0 0
  %4331 = vmatprep.subr.bf16.mxu0 0
  %4332 = vmatpush2.bf16.msra.mxu0 0
  %4333 = vmatprep.subr.bf16.mxu0 0
  %4334 = vmatpush2.bf16.msra.mxu0 0
  %4335 = vmatprep.subr.bf16.mxu0 0
  %4336 = vmatpush2.bf16.msra.mxu0 0
  %4337 = vmatprep.subr.bf16.mxu0 0
  %4338 = vmatpush2.bf16.msra.mxu0 0
  %4339 = vmatprep.subr.bf16.mxu0 0
  %4340 = vmatpush2.bf16.msra.mxu0 0
  %4341 = vmatprep.mubr.bf16.mxu0 0
  %4342 = vmatmul.mubr.bf16.gmra.mxu0 %v4283
  %v4343 = vpop.f32.mrf.mxu0
  %v4344 = vadd.f32 %v4220, %v4343
  %v4345 = vpop.f32.mrf.mxu0
  %v4346 = vpop.f32.mrf.mxu0
  %v4347 = vadd.f32 %v4223, %v4346
  %v4348 = vpop.f32.mrf.mxu0
  %4349 = vmatprep.mubr.bf16.mxu0 0
  %4350 = vmatmul.mubr.bf16.gmra.mxu0 %v4286
  %v4351 = vpop.f32.mrf.mxu0
  %v4352 = vadd.f32 %v4228, %v4351
  %v4353 = vpop.f32.mrf.mxu0
  %v4354 = vpop.f32.mrf.mxu0
  %v4355 = vadd.f32 %v4231, %v4354
  %v4356 = vpop.f32.mrf.mxu0
  %4357 = vmatprep.mubr.bf16.mxu0 0
  %4358 = vmatmul.mubr.bf16.gmra.mxu0 %v4289
  %v4359 = vpop.f32.mrf.mxu0
  %v4360 = vadd.f32 %v4236, %v4359
  %v4361 = vpop.f32.mrf.mxu0
  %v4362 = vpop.f32.mrf.mxu0
  %v4363 = vadd.f32 %v4239, %v4362
  %v4364 = vpop.f32.mrf.mxu0
  %4365 = vmatprep.mubr.bf16.mxu0 0
  %4366 = vmatmul.mubr.bf16.gmra.mxu0 %v4292
  %v4367 = vpop.f32.mrf.mxu0
  %v4368 = vadd.f32 %v4244, %v4367
  %v4369 = vpop.f32.mrf.mxu0
  %v4370 = vpop.f32.mrf.mxu0
  %v4371 = vadd.f32 %v4247, %v4370
  %v4372 = vpop.f32.mrf.mxu0
  %4373 = vmatprep.mubr.bf16.mxu0 0
  %4374 = vmatmul.mubr.bf16.gmra.mxu0 %v4295
  %v4375 = vpop.f32.mrf.mxu0
  %v4376 = vadd.f32 %v4252, %v4375
  %v4377 = vpop.f32.mrf.mxu0
  %v4378 = vpop.f32.mrf.mxu0
  %v4379 = vadd.f32 %v4255, %v4378
  %v4380 = vpop.f32.mrf.mxu0
  %4381 = vmatprep.mubr.bf16.mxu0 0
  %4382 = vmatmul.mubr.bf16.gmra.mxu0 %v4298
  %v4383 = vpop.f32.mrf.mxu0
  %v4384 = vadd.f32 %v4260, %v4383
  %v4385 = vpop.f32.mrf.mxu0
  %v4386 = vpop.f32.mrf.mxu0
  %v4387 = vadd.f32 %v4263, %v4386
  %v4388 = vpop.f32.mrf.mxu0
  %4389 = vmatprep.mubr.bf16.mxu0 0
  %4390 = vmatmul.mubr.bf16.gmra.mxu0 %v4301
  %v4391 = vpop.f32.mrf.mxu0
  %v4392 = vadd.f32 %v4268, %v4391
  %v4393 = vpop.f32.mrf.mxu0
  %v4394 = vpop.f32.mrf.mxu0
  %v4395 = vadd.f32 %v4271, %v4394
  %v4396 = vpop.f32.mrf.mxu0
  %4397 = vmatprep.mubr.bf16.mxu0 0
  %4398 = vmatmul.mubr.bf16.gmra.mxu0 %v4304
  %v4399 = vpop.f32.mrf.mxu0
  %v4400 = vadd.f32 %v4276, %v4399
  %v4401 = vpop.f32.mrf.mxu0
  %v4402 = vpop.f32.mrf.mxu0
  %v4403 = vadd.f32 %v4279, %v4402
  %v4404 = vpop.f32.mrf.mxu0
  %4405 = vdwg.mxu0
  %v4406 = vrot.slane %v4023, 2
  %v4407 = vrot.slane %v4039, 2
  %v4408 = vsel %vm2837, %v4406, %v4407
  %v4409 = vrot.slane %v4024, 2
  %v4410 = vrot.slane %v4040, 2
  %v4411 = vsel %vm2837, %v4409, %v4410
  %v4412 = vrot.slane %v4025, 2
  %v4413 = vrot.slane %v4041, 2
  %v4414 = vsel %vm2837, %v4412, %v4413
  %v4415 = vrot.slane %v4026, 2
  %v4416 = vrot.slane %v4042, 2
  %v4417 = vsel %vm2837, %v4415, %v4416
  %v4418 = vrot.slane %v4027, 2
  %v4419 = vrot.slane %v4043, 2
  %v4420 = vsel %vm2837, %v4418, %v4419
  %v4421 = vrot.slane %v4028, 2
  %v4422 = vrot.slane %v4044, 2
  %v4423 = vsel %vm2837, %v4421, %v4422
  %v4424 = vrot.slane %v4029, 2
  %v4425 = vrot.slane %v4045, 2
  %v4426 = vsel %vm2837, %v4424, %v4425
  %v4427 = vrot.slane %v4031, 2
  %v4428 = vrot.slane %v4047, 2
  %v4429 = vsel %vm2837, %v4427, %v4428
  %v4430 = vrot.slane %v4032, 2
  %v4431 = vrot.slane %v4048, 2
  %v4432 = vsel %vm2837, %v4430, %v4431
  %v4433 = vrot.slane %v4033, 2
  %v4434 = vrot.slane %v4049, 2
  %v4435 = vsel %vm2837, %v4433, %v4434
  %v4436 = vrot.slane %v4034, 2
  %v4437 = vrot.slane %v4050, 2
  %v4438 = vsel %vm2837, %v4436, %v4437
  %v4439 = vrot.slane %v4035, 2
  %v4440 = vrot.slane %v4051, 2
  %v4441 = vsel %vm2837, %v4439, %v4440
  %v4442 = vrot.slane %v4036, 2
  %v4443 = vrot.slane %v4052, 2
  %v4444 = vsel %vm2837, %v4442, %v4443
  %v4445 = vrot.slane %v4037, 2
  %v4446 = vrot.slane %v4053, 2
  %v4447 = vsel %vm2837, %v4445, %v4446
  %v4462 = vpack.c.bf16 %v4408, %v2840
  %v4463 = vpack.c.bf16 %v4414, %v4411
  %v4464 = vpack.c.bf16 %v4420, %v4417
  %v4465 = vpack.c.bf16 %v4426, %v4423
  %v4466 = vpack.c.bf16 %v4429, %v2840
  %v4467 = vpack.c.bf16 %v4435, %v4432
  %v4468 = vpack.c.bf16 %v4441, %v4438
  %v4469 = vpack.c.bf16 %v4447, %v4444
  %s4470 = scalar_lea.vmem %s12, 8
  %v4471 = vld [vmem:[%s4470] sm:$0xf]
  %v4473 = vsel %vm2587, %v4462, 0
  %v4476 = vsel %vm2587, %v4463, 0
  %v4479 = vsel %vm2587, %v4464, 0
  %v4482 = vsel %vm2587, %v4465, 0
  %v4485 = vsel %vm2587, %v4466, 0
  %v4488 = vsel %vm2587, %v4467, 0
  %v4491 = vsel %vm2587, %v4468, 0
  %v4494 = vsel %vm2587, %v4469, 0
  %v4497 = vsel %vm2612, %v4471, 0
  %4499 = vmatprep.subr.bf16.mxu0 0
  %4500 = vmatpush1.bf16.msra.mxu0 0
  %4501 = vmatprep.subr.bf16.mxu0 0
  %4502 = vmatpush1.bf16.msra.mxu0 0
  %4503 = vmatprep.subr.bf16.mxu0 0
  %4504 = vmatpush1.bf16.msra.mxu0 0
  %4505 = vmatprep.subr.bf16.mxu0 0
  %4506 = vmatpush1.bf16.msra.mxu0 0
  %4507 = vmatprep.subr.bf16.mxu0 0
  %4508 = vmatpush1.bf16.msra.mxu0 0
  %4509 = vmatprep.subr.bf16.mxu0 0
  %4510 = vmatpush1.bf16.msra.mxu0 0
  %4511 = vmatprep.subr.bf16.mxu0 0
  %4512 = vmatpush1.bf16.msra.mxu0 0
  %4513 = vmatprep.subr.bf16.mxu0 0
  %4514 = vmatpush1.bf16.msra.mxu0 %v4497
  %4515 = vmatprep.subr.bf16.mxu0 0
  %4516 = vmatpush2.bf16.msra.mxu0 0
  %4517 = vmatprep.subr.bf16.mxu0 0
  %4518 = vmatpush2.bf16.msra.mxu0 0
  %4519 = vmatprep.subr.bf16.mxu0 0
  %4520 = vmatpush2.bf16.msra.mxu0 0
  %4521 = vmatprep.subr.bf16.mxu0 0
  %4522 = vmatpush2.bf16.msra.mxu0 0
  %4523 = vmatprep.subr.bf16.mxu0 0
  %4524 = vmatpush2.bf16.msra.mxu0 0
  %4525 = vmatprep.subr.bf16.mxu0 0
  %4526 = vmatpush2.bf16.msra.mxu0 0
  %4527 = vmatprep.subr.bf16.mxu0 0
  %4528 = vmatpush2.bf16.msra.mxu0 0
  %4529 = vmatprep.subr.bf16.mxu0 0
  %4530 = vmatpush2.bf16.msra.mxu0 0
  %4531 = vmatprep.mubr.bf16.mxu0 0
  %4532 = vmatmul.mubr.bf16.gmra.mxu0 %v4473
  %v4533 = vpop.f32.mrf.mxu0
  %v4534 = vadd.f32 0.0, %v4533
  %v4535 = vpop.f32.mrf.mxu0
  %v4536 = vpop.f32.mrf.mxu0
  %v4537 = vadd.f32 0.0, %v4536
  %v4538 = vpop.f32.mrf.mxu0
  %4539 = vmatprep.mubr.bf16.mxu0 0
  %4540 = vmatmul.mubr.bf16.gmra.mxu0 %v4476
  %v4541 = vpop.f32.mrf.mxu0
  %v4542 = vadd.f32 0.0, %v4541
  %v4543 = vpop.f32.mrf.mxu0
  %v4544 = vpop.f32.mrf.mxu0
  %v4545 = vadd.f32 0.0, %v4544
  %v4546 = vpop.f32.mrf.mxu0
  %4547 = vmatprep.mubr.bf16.mxu0 0
  %4548 = vmatmul.mubr.bf16.gmra.mxu0 %v4479
  %v4549 = vpop.f32.mrf.mxu0
  %v4550 = vadd.f32 0.0, %v4549
  %v4551 = vpop.f32.mrf.mxu0
  %v4552 = vpop.f32.mrf.mxu0
  %v4553 = vadd.f32 0.0, %v4552
  %v4554 = vpop.f32.mrf.mxu0
  %4555 = vmatprep.mubr.bf16.mxu0 0
  %4556 = vmatmul.mubr.bf16.gmra.mxu0 %v4482
  %v4557 = vpop.f32.mrf.mxu0
  %v4558 = vadd.f32 0.0, %v4557
  %v4559 = vpop.f32.mrf.mxu0
  %v4560 = vpop.f32.mrf.mxu0
  %v4561 = vadd.f32 0.0, %v4560
  %v4562 = vpop.f32.mrf.mxu0
  %4563 = vmatprep.mubr.bf16.mxu0 0
  %4564 = vmatmul.mubr.bf16.gmra.mxu0 %v4485
  %v4565 = vpop.f32.mrf.mxu0
  %v4566 = vadd.f32 0.0, %v4565
  %v4567 = vpop.f32.mrf.mxu0
  %v4568 = vpop.f32.mrf.mxu0
  %v4569 = vadd.f32 0.0, %v4568
  %v4570 = vpop.f32.mrf.mxu0
  %4571 = vmatprep.mubr.bf16.mxu0 0
  %4572 = vmatmul.mubr.bf16.gmra.mxu0 %v4488
  %v4573 = vpop.f32.mrf.mxu0
  %v4574 = vadd.f32 0.0, %v4573
  %v4575 = vpop.f32.mrf.mxu0
  %v4576 = vpop.f32.mrf.mxu0
  %v4577 = vadd.f32 0.0, %v4576
  %v4578 = vpop.f32.mrf.mxu0
  %4579 = vmatprep.mubr.bf16.mxu0 0
  %4580 = vmatmul.mubr.bf16.gmra.mxu0 %v4491
  %v4581 = vpop.f32.mrf.mxu0
  %v4582 = vadd.f32 0.0, %v4581
  %v4583 = vpop.f32.mrf.mxu0
  %v4584 = vpop.f32.mrf.mxu0
  %v4585 = vadd.f32 0.0, %v4584
  %v4586 = vpop.f32.mrf.mxu0
  %4587 = vmatprep.mubr.bf16.mxu0 0
  %4588 = vmatmul.mubr.bf16.gmra.mxu0 %v4494
  %v4589 = vpop.f32.mrf.mxu0
  %v4590 = vadd.f32 0.0, %v4589
  %v4591 = vpop.f32.mrf.mxu0
  %v4592 = vpop.f32.mrf.mxu0
  %v4593 = vadd.f32 0.0, %v4592
  %v4594 = vpop.f32.mrf.mxu0
  %4595 = vdwg.mxu0
  %v4596 = vadd.f32 %v4344, %v4534
  %v4597 = vadd.f32 %v4347, %v4537
  %v4598 = vadd.f32 %v4352, %v4542
  %v4599 = vadd.f32 %v4355, %v4545
  %v4600 = vadd.f32 %v4360, %v4550
  %v4601 = vadd.f32 %v4363, %v4553
  %v4602 = vadd.f32 %v4368, %v4558
  %v4603 = vadd.f32 %v4371, %v4561
  %v4604 = vadd.f32 %v4376, %v4566
  %v4605 = vadd.f32 %v4379, %v4569
  %v4606 = vadd.f32 %v4384, %v4574
  %v4607 = vadd.f32 %v4387, %v4577
  %v4608 = vadd.f32 %v4392, %v4582
  %v4609 = vadd.f32 %v4395, %v4585
  %v4610 = vadd.f32 %v4400, %v4590
  %v4611 = vadd.f32 %v4403, %v4593
  %v4612 = vpack.c.bf16 %v4024, %v4023
  %v4613 = vpack.c.bf16 %v4026, %v4025
  %v4614 = vpack.c.bf16 %v4028, %v4027
  %v4615 = vpack.c.bf16 %v4030, %v4029
  %v4616 = vpack.c.bf16 %v4032, %v4031
  %v4617 = vpack.c.bf16 %v4034, %v4033
  %v4618 = vpack.c.bf16 %v4036, %v4035
  %v4619 = vpack.c.bf16 %v4038, %v4037
  %s4620 = scalar_lea.vmem %s12, 12
  %v4621 = vld [vmem:[%s4620] sm:$0xf]
  %v4623 = vsel %vm2587, %v4612, 0
  %v4626 = vsel %vm2587, %v4613, 0
  %v4629 = vsel %vm2587, %v4614, 0
  %v4632 = vsel %vm2587, %v4615, 0
  %v4635 = vsel %vm2587, %v4616, 0
  %v4638 = vsel %vm2587, %v4617, 0
  %v4641 = vsel %vm2587, %v4618, 0
  %v4644 = vsel %vm2587, %v4619, 0
  %v4647 = vsel %vm2612, %v4621, 0
  %4649 = vmatprep.subr.bf16.mxu0 0
  %4650 = vmatpush1.bf16.msra.mxu0 0
  %4651 = vmatprep.subr.bf16.mxu0 0
  %4652 = vmatpush1.bf16.msra.mxu0 0
  %4653 = vmatprep.subr.bf16.mxu0 0
  %4654 = vmatpush1.bf16.msra.mxu0 0
  %4655 = vmatprep.subr.bf16.mxu0 0
  %4656 = vmatpush1.bf16.msra.mxu0 0
  %4657 = vmatprep.subr.bf16.mxu0 0
  %4658 = vmatpush1.bf16.msra.mxu0 0
  %4659 = vmatprep.subr.bf16.mxu0 0
  %4660 = vmatpush1.bf16.msra.mxu0 0
  %4661 = vmatprep.subr.bf16.mxu0 0
  %4662 = vmatpush1.bf16.msra.mxu0 0
  %4663 = vmatprep.subr.bf16.mxu0 0
  %4664 = vmatpush1.bf16.msra.mxu0 %v4647
  %4665 = vmatprep.subr.bf16.mxu0 0
  %4666 = vmatpush2.bf16.msra.mxu0 0
  %4667 = vmatprep.subr.bf16.mxu0 0
  %4668 = vmatpush2.bf16.msra.mxu0 0
  %4669 = vmatprep.subr.bf16.mxu0 0
  %4670 = vmatpush2.bf16.msra.mxu0 0
  %4671 = vmatprep.subr.bf16.mxu0 0
  %4672 = vmatpush2.bf16.msra.mxu0 0
  %4673 = vmatprep.subr.bf16.mxu0 0
  %4674 = vmatpush2.bf16.msra.mxu0 0
  %4675 = vmatprep.subr.bf16.mxu0 0
  %4676 = vmatpush2.bf16.msra.mxu0 0
  %4677 = vmatprep.subr.bf16.mxu0 0
  %4678 = vmatpush2.bf16.msra.mxu0 0
  %4679 = vmatprep.subr.bf16.mxu0 0
  %4680 = vmatpush2.bf16.msra.mxu0 0
  %4681 = vmatprep.mubr.bf16.mxu0 0
  %4682 = vmatmul.mubr.bf16.gmra.mxu0 %v4623
  %v4683 = vpop.f32.mrf.mxu0
  %v4684 = vadd.f32 0.0, %v4683
  %v4685 = vpop.f32.mrf.mxu0
  %v4686 = vpop.f32.mrf.mxu0
  %v4687 = vadd.f32 0.0, %v4686
  %v4688 = vpop.f32.mrf.mxu0
  %4689 = vmatprep.mubr.bf16.mxu0 0
  %4690 = vmatmul.mubr.bf16.gmra.mxu0 %v4626
  %v4691 = vpop.f32.mrf.mxu0
  %v4692 = vadd.f32 0.0, %v4691
  %v4693 = vpop.f32.mrf.mxu0
  %v4694 = vpop.f32.mrf.mxu0
  %v4695 = vadd.f32 0.0, %v4694
  %v4696 = vpop.f32.mrf.mxu0
  %4697 = vmatprep.mubr.bf16.mxu0 0
  %4698 = vmatmul.mubr.bf16.gmra.mxu0 %v4629
  %v4699 = vpop.f32.mrf.mxu0
  %v4700 = vadd.f32 0.0, %v4699
  %v4701 = vpop.f32.mrf.mxu0
  %v4702 = vpop.f32.mrf.mxu0
  %v4703 = vadd.f32 0.0, %v4702
  %v4704 = vpop.f32.mrf.mxu0
  %4705 = vmatprep.mubr.bf16.mxu0 0
  %4706 = vmatmul.mubr.bf16.gmra.mxu0 %v4632
  %v4707 = vpop.f32.mrf.mxu0
  %v4708 = vadd.f32 0.0, %v4707
  %v4709 = vpop.f32.mrf.mxu0
  %v4710 = vpop.f32.mrf.mxu0
  %v4711 = vadd.f32 0.0, %v4710
  %v4712 = vpop.f32.mrf.mxu0
  %4713 = vmatprep.mubr.bf16.mxu0 0
  %4714 = vmatmul.mubr.bf16.gmra.mxu0 %v4635
  %v4715 = vpop.f32.mrf.mxu0
  %v4716 = vadd.f32 0.0, %v4715
  %v4717 = vpop.f32.mrf.mxu0
  %v4718 = vpop.f32.mrf.mxu0
  %v4719 = vadd.f32 0.0, %v4718
  %v4720 = vpop.f32.mrf.mxu0
  %4721 = vmatprep.mubr.bf16.mxu0 0
  %4722 = vmatmul.mubr.bf16.gmra.mxu0 %v4638
  %v4723 = vpop.f32.mrf.mxu0
  %v4724 = vadd.f32 0.0, %v4723
  %v4725 = vpop.f32.mrf.mxu0
  %v4726 = vpop.f32.mrf.mxu0
  %v4727 = vadd.f32 0.0, %v4726
  %v4728 = vpop.f32.mrf.mxu0
  %4729 = vmatprep.mubr.bf16.mxu0 0
  %4730 = vmatmul.mubr.bf16.gmra.mxu0 %v4641
  %v4731 = vpop.f32.mrf.mxu0
  %v4732 = vadd.f32 0.0, %v4731
  %v4733 = vpop.f32.mrf.mxu0
  %v4734 = vpop.f32.mrf.mxu0
  %v4735 = vadd.f32 0.0, %v4734
  %v4736 = vpop.f32.mrf.mxu0
  %4737 = vmatprep.mubr.bf16.mxu0 0
  %4738 = vmatmul.mubr.bf16.gmra.mxu0 %v4644
  %v4739 = vpop.f32.mrf.mxu0
  %v4740 = vadd.f32 0.0, %v4739
  %v4741 = vpop.f32.mrf.mxu0
  %v4742 = vpop.f32.mrf.mxu0
  %v4743 = vadd.f32 0.0, %v4742
  %v4744 = vpop.f32.mrf.mxu0
  %4745 = vdwg.mxu0
  %v4746 = vadd.f32 %v4596, %v4684
  %v4747 = vadd.f32 %v4597, %v4687
  %v4748 = vadd.f32 %v4598, %v4692
  %v4749 = vadd.f32 %v4599, %v4695
  %v4750 = vadd.f32 %v4600, %v4700
  %v4751 = vadd.f32 %v4601, %v4703
  %v4752 = vadd.f32 %v4602, %v4708
  %v4753 = vadd.f32 %v4603, %v4711
  %v4754 = vadd.f32 %v4604, %v4716
  %v4755 = vadd.f32 %v4605, %v4719
  %v4756 = vadd.f32 %v4606, %v4724
  %v4757 = vadd.f32 %v4607, %v4727
  %v4758 = vadd.f32 %v4608, %v4732
  %v4759 = vadd.f32 %v4609, %v4735
  %v4760 = vadd.f32 %v4610, %v4740
  %v4761 = vadd.f32 %v4611, %v4743
  %v4766 = vrot.slane %v4030, 1
  %v4767 = vrot.slane %v4046, 1
  %v4768 = vsel %vm607, %v4766, %v4767
  %v4769 = vrot.slane %v4038, 1
  %v4770 = vrot.slane %v4054, 1
  %v4771 = vsel %vm607, %v4769, %v4770
  %v4774 = vpack.c.bf16 %v4097, %v4094
  %v4775 = vpack.c.bf16 %v4103, %v4100
  %v4776 = vpack.c.bf16 %v4109, %v4106
  %v4777 = vpack.c.bf16 %v4768, %v4112
  %v4778 = vpack.c.bf16 %v4118, %v4115
  %v4779 = vpack.c.bf16 %v4124, %v4121
  %v4780 = vpack.c.bf16 %v4130, %v4127
  %v4781 = vpack.c.bf16 %v4771, %v4133
  %s4782 = scalar_lea.vmem %s12, 16
  %v4783 = vld [vmem:[%s4782] sm:$0xf]
  %v4785 = vsel %vm2587, %v4774, 0
  %v4788 = vsel %vm2587, %v4775, 0
  %v4791 = vsel %vm2587, %v4776, 0
  %v4794 = vsel %vm2587, %v4777, 0
  %v4797 = vsel %vm2587, %v4778, 0
  %v4800 = vsel %vm2587, %v4779, 0
  %v4803 = vsel %vm2587, %v4780, 0
  %v4806 = vsel %vm2587, %v4781, 0
  %v4809 = vsel %vm2612, %v4783, 0
  %4811 = vmatprep.subr.bf16.mxu0 0
  %4812 = vmatpush1.bf16.msra.mxu0 0
  %4813 = vmatprep.subr.bf16.mxu0 0
  %4814 = vmatpush1.bf16.msra.mxu0 0
  %4815 = vmatprep.subr.bf16.mxu0 0
  %4816 = vmatpush1.bf16.msra.mxu0 0
  %4817 = vmatprep.subr.bf16.mxu0 0
  %4818 = vmatpush1.bf16.msra.mxu0 0
  %4819 = vmatprep.subr.bf16.mxu0 0
  %4820 = vmatpush1.bf16.msra.mxu0 0
  %4821 = vmatprep.subr.bf16.mxu0 0
  %4822 = vmatpush1.bf16.msra.mxu0 0
  %4823 = vmatprep.subr.bf16.mxu0 0
  %4824 = vmatpush1.bf16.msra.mxu0 0
  %4825 = vmatprep.subr.bf16.mxu0 0
  %4826 = vmatpush1.bf16.msra.mxu0 %v4809
  %4827 = vmatprep.subr.bf16.mxu0 0
  %4828 = vmatpush2.bf16.msra.mxu0 0
  %4829 = vmatprep.subr.bf16.mxu0 0
  %4830 = vmatpush2.bf16.msra.mxu0 0
  %4831 = vmatprep.subr.bf16.mxu0 0
  %4832 = vmatpush2.bf16.msra.mxu0 0
  %4833 = vmatprep.subr.bf16.mxu0 0
  %4834 = vmatpush2.bf16.msra.mxu0 0
  %4835 = vmatprep.subr.bf16.mxu0 0
  %4836 = vmatpush2.bf16.msra.mxu0 0
  %4837 = vmatprep.subr.bf16.mxu0 0
  %4838 = vmatpush2.bf16.msra.mxu0 0
  %4839 = vmatprep.subr.bf16.mxu0 0
  %4840 = vmatpush2.bf16.msra.mxu0 0
  %4841 = vmatprep.subr.bf16.mxu0 0
  %4842 = vmatpush2.bf16.msra.mxu0 0
  %4843 = vmatprep.mubr.bf16.mxu0 0
  %4844 = vmatmul.mubr.bf16.gmra.mxu0 %v4785
  %v4845 = vpop.f32.mrf.mxu0
  %v4846 = vadd.f32 0.0, %v4845
  %v4847 = vpop.f32.mrf.mxu0
  %v4848 = vpop.f32.mrf.mxu0
  %v4849 = vadd.f32 0.0, %v4848
  %v4850 = vpop.f32.mrf.mxu0
  %4851 = vmatprep.mubr.bf16.mxu0 0
  %4852 = vmatmul.mubr.bf16.gmra.mxu0 %v4788
  %v4853 = vpop.f32.mrf.mxu0
  %v4854 = vadd.f32 0.0, %v4853
  %v4855 = vpop.f32.mrf.mxu0
  %v4856 = vpop.f32.mrf.mxu0
  %v4857 = vadd.f32 0.0, %v4856
  %v4858 = vpop.f32.mrf.mxu0
  %4859 = vmatprep.mubr.bf16.mxu0 0
  %4860 = vmatmul.mubr.bf16.gmra.mxu0 %v4791
  %v4861 = vpop.f32.mrf.mxu0
  %v4862 = vadd.f32 0.0, %v4861
  %v4863 = vpop.f32.mrf.mxu0
  %v4864 = vpop.f32.mrf.mxu0
  %v4865 = vadd.f32 0.0, %v4864
  %v4866 = vpop.f32.mrf.mxu0
  %4867 = vmatprep.mubr.bf16.mxu0 0
  %4868 = vmatmul.mubr.bf16.gmra.mxu0 %v4794
  %v4869 = vpop.f32.mrf.mxu0
  %v4870 = vadd.f32 0.0, %v4869
  %v4871 = vpop.f32.mrf.mxu0
  %v4872 = vpop.f32.mrf.mxu0
  %v4873 = vadd.f32 0.0, %v4872
  %v4874 = vpop.f32.mrf.mxu0
  %4875 = vmatprep.mubr.bf16.mxu0 0
  %4876 = vmatmul.mubr.bf16.gmra.mxu0 %v4797
  %v4877 = vpop.f32.mrf.mxu0
  %v4878 = vadd.f32 0.0, %v4877
  %v4879 = vpop.f32.mrf.mxu0
  %v4880 = vpop.f32.mrf.mxu0
  %v4881 = vadd.f32 0.0, %v4880
  %v4882 = vpop.f32.mrf.mxu0
  %4883 = vmatprep.mubr.bf16.mxu0 0
  %4884 = vmatmul.mubr.bf16.gmra.mxu0 %v4800
  %v4885 = vpop.f32.mrf.mxu0
  %v4886 = vadd.f32 0.0, %v4885
  %v4887 = vpop.f32.mrf.mxu0
  %v4888 = vpop.f32.mrf.mxu0
  %v4889 = vadd.f32 0.0, %v4888
  %v4890 = vpop.f32.mrf.mxu0
  %4891 = vmatprep.mubr.bf16.mxu0 0
  %4892 = vmatmul.mubr.bf16.gmra.mxu0 %v4803
  %v4893 = vpop.f32.mrf.mxu0
  %v4894 = vadd.f32 0.0, %v4893
  %v4895 = vpop.f32.mrf.mxu0
  %v4896 = vpop.f32.mrf.mxu0
  %v4897 = vadd.f32 0.0, %v4896
  %v4898 = vpop.f32.mrf.mxu0
  %4899 = vmatprep.mubr.bf16.mxu0 0
  %4900 = vmatmul.mubr.bf16.gmra.mxu0 %v4806
  %v4901 = vpop.f32.mrf.mxu0
  %v4902 = vadd.f32 0.0, %v4901
  %v4903 = vpop.f32.mrf.mxu0
  %v4904 = vpop.f32.mrf.mxu0
  %v4905 = vadd.f32 0.0, %v4904
  %v4906 = vpop.f32.mrf.mxu0
  %4907 = vdwg.mxu0
  %v4908 = vadd.f32 %v4746, %v4846
  %v4909 = vadd.f32 %v4747, %v4849
  %v4910 = vadd.f32 %v4748, %v4854
  %v4911 = vadd.f32 %v4749, %v4857
  %v4912 = vadd.f32 %v4750, %v4862
  %v4913 = vadd.f32 %v4751, %v4865
  %v4914 = vadd.f32 %v4752, %v4870
  %v4915 = vadd.f32 %v4753, %v4873
  %v4916 = vadd.f32 %v4754, %v4878
  %v4917 = vadd.f32 %v4755, %v4881
  %v4918 = vadd.f32 %v4756, %v4886
  %v4919 = vadd.f32 %v4757, %v4889
  %v4920 = vadd.f32 %v4758, %v4894
  %v4921 = vadd.f32 %v4759, %v4897
  %v4922 = vadd.f32 %v4760, %v4902
  %v4923 = vadd.f32 %v4761, %v4905
  %v4924 = vrot.slane %v4030, 2
  %v4925 = vrot.slane %v4046, 2
  %v4926 = vsel %vm2837, %v4924, %v4925
  %v4927 = vrot.slane %v4038, 2
  %v4928 = vrot.slane %v4054, 2
  %v4929 = vsel %vm2837, %v4927, %v4928
  %v4932 = vpack.c.bf16 %v4411, %v4408
  %v4933 = vpack.c.bf16 %v4417, %v4414
  %v4934 = vpack.c.bf16 %v4423, %v4420
  %v4935 = vpack.c.bf16 %v4926, %v4426
  %v4936 = vpack.c.bf16 %v4432, %v4429
  %v4937 = vpack.c.bf16 %v4438, %v4435
  %v4938 = vpack.c.bf16 %v4444, %v4441
  %v4939 = vpack.c.bf16 %v4929, %v4447
  %s4940 = scalar_lea.vmem %s12, 20
  %v4941 = vld [vmem:[%s4940] sm:$0xf]
  %v4943 = vsel %vm2587, %v4932, 0
  %v4946 = vsel %vm2587, %v4933, 0
  %v4949 = vsel %vm2587, %v4934, 0
  %v4952 = vsel %vm2587, %v4935, 0
  %v4955 = vsel %vm2587, %v4936, 0
  %v4958 = vsel %vm2587, %v4937, 0
  %v4961 = vsel %vm2587, %v4938, 0
  %v4964 = vsel %vm2587, %v4939, 0
  %v4967 = vsel %vm2612, %v4941, 0
  %4969 = vmatprep.subr.bf16.mxu0 0
  %4970 = vmatpush1.bf16.msra.mxu0 0
  %4971 = vmatprep.subr.bf16.mxu0 0
  %4972 = vmatpush1.bf16.msra.mxu0 0
  %4973 = vmatprep.subr.bf16.mxu0 0
  %4974 = vmatpush1.bf16.msra.mxu0 0
  %4975 = vmatprep.subr.bf16.mxu0 0
  %4976 = vmatpush1.bf16.msra.mxu0 0
  %4977 = vmatprep.subr.bf16.mxu0 0
  %4978 = vmatpush1.bf16.msra.mxu0 0
  %4979 = vmatprep.subr.bf16.mxu0 0
  %4980 = vmatpush1.bf16.msra.mxu0 0
  %4981 = vmatprep.subr.bf16.mxu0 0
  %4982 = vmatpush1.bf16.msra.mxu0 0
  %4983 = vmatprep.subr.bf16.mxu0 0
  %4984 = vmatpush1.bf16.msra.mxu0 %v4967
  %4985 = vmatprep.subr.bf16.mxu0 0
  %4986 = vmatpush2.bf16.msra.mxu0 0
  %4987 = vmatprep.subr.bf16.mxu0 0
  %4988 = vmatpush2.bf16.msra.mxu0 0
  %4989 = vmatprep.subr.bf16.mxu0 0
  %4990 = vmatpush2.bf16.msra.mxu0 0
  %4991 = vmatprep.subr.bf16.mxu0 0
  %4992 = vmatpush2.bf16.msra.mxu0 0
  %4993 = vmatprep.subr.bf16.mxu0 0
  %4994 = vmatpush2.bf16.msra.mxu0 0
  %4995 = vmatprep.subr.bf16.mxu0 0
  %4996 = vmatpush2.bf16.msra.mxu0 0
  %4997 = vmatprep.subr.bf16.mxu0 0
  %4998 = vmatpush2.bf16.msra.mxu0 0
  %4999 = vmatprep.subr.bf16.mxu0 0
  %5000 = vmatpush2.bf16.msra.mxu0 0
  %5001 = vmatprep.mubr.bf16.mxu0 0
  %5002 = vmatmul.mubr.bf16.gmra.mxu0 %v4943
  %v5003 = vpop.f32.mrf.mxu0
  %v5004 = vadd.f32 0.0, %v5003
  %v5005 = vpop.f32.mrf.mxu0
  %v5006 = vpop.f32.mrf.mxu0
  %v5007 = vadd.f32 0.0, %v5006
  %v5008 = vpop.f32.mrf.mxu0
  %5009 = vmatprep.mubr.bf16.mxu0 0
  %5010 = vmatmul.mubr.bf16.gmra.mxu0 %v4946
  %v5011 = vpop.f32.mrf.mxu0
  %v5012 = vadd.f32 0.0, %v5011
  %v5013 = vpop.f32.mrf.mxu0
  %v5014 = vpop.f32.mrf.mxu0
  %v5015 = vadd.f32 0.0, %v5014
  %v5016 = vpop.f32.mrf.mxu0
  %5017 = vmatprep.mubr.bf16.mxu0 0
  %5018 = vmatmul.mubr.bf16.gmra.mxu0 %v4949
  %v5019 = vpop.f32.mrf.mxu0
  %v5020 = vadd.f32 0.0, %v5019
  %v5021 = vpop.f32.mrf.mxu0
  %v5022 = vpop.f32.mrf.mxu0
  %v5023 = vadd.f32 0.0, %v5022
  %v5024 = vpop.f32.mrf.mxu0
  %5025 = vmatprep.mubr.bf16.mxu0 0
  %5026 = vmatmul.mubr.bf16.gmra.mxu0 %v4952
  %v5027 = vpop.f32.mrf.mxu0
  %v5028 = vadd.f32 0.0, %v5027
  %v5029 = vpop.f32.mrf.mxu0
  %v5030 = vpop.f32.mrf.mxu0
  %v5031 = vadd.f32 0.0, %v5030
  %v5032 = vpop.f32.mrf.mxu0
  %5033 = vmatprep.mubr.bf16.mxu0 0
  %5034 = vmatmul.mubr.bf16.gmra.mxu0 %v4955
  %v5035 = vpop.f32.mrf.mxu0
  %v5036 = vadd.f32 0.0, %v5035
  %v5037 = vpop.f32.mrf.mxu0
  %v5038 = vpop.f32.mrf.mxu0
  %v5039 = vadd.f32 0.0, %v5038
  %v5040 = vpop.f32.mrf.mxu0
  %5041 = vmatprep.mubr.bf16.mxu0 0
  %5042 = vmatmul.mubr.bf16.gmra.mxu0 %v4958
  %v5043 = vpop.f32.mrf.mxu0
  %v5044 = vadd.f32 0.0, %v5043
  %v5045 = vpop.f32.mrf.mxu0
  %v5046 = vpop.f32.mrf.mxu0
  %v5047 = vadd.f32 0.0, %v5046
  %v5048 = vpop.f32.mrf.mxu0
  %5049 = vmatprep.mubr.bf16.mxu0 0
  %5050 = vmatmul.mubr.bf16.gmra.mxu0 %v4961
  %v5051 = vpop.f32.mrf.mxu0
  %v5052 = vadd.f32 0.0, %v5051
  %v5053 = vpop.f32.mrf.mxu0
  %v5054 = vpop.f32.mrf.mxu0
  %v5055 = vadd.f32 0.0, %v5054
  %v5056 = vpop.f32.mrf.mxu0
  %5057 = vmatprep.mubr.bf16.mxu0 0
  %5058 = vmatmul.mubr.bf16.gmra.mxu0 %v4964
  %v5059 = vpop.f32.mrf.mxu0
  %v5060 = vadd.f32 0.0, %v5059
  %v5061 = vpop.f32.mrf.mxu0
  %v5062 = vpop.f32.mrf.mxu0
  %v5063 = vadd.f32 0.0, %v5062
  %v5064 = vpop.f32.mrf.mxu0
  %5065 = vdwg.mxu0
  %v5066 = vadd.f32 %v4908, %v5004
  %v5067 = vadd.f32 %v4909, %v5007
  %v5068 = vadd.f32 %v4910, %v5012
  %v5069 = vadd.f32 %v4911, %v5015
  %v5070 = vadd.f32 %v4912, %v5020
  %v5071 = vadd.f32 %v4913, %v5023
  %v5072 = vadd.f32 %v4914, %v5028
  %v5073 = vadd.f32 %v4915, %v5031
  %v5074 = vadd.f32 %v4916, %v5036
  %v5075 = vadd.f32 %v4917, %v5039
  %v5076 = vadd.f32 %v4918, %v5044
  %v5077 = vadd.f32 %v4919, %v5047
  %v5078 = vadd.f32 %v4920, %v5052
  %v5079 = vadd.f32 %v4921, %v5055
  %v5080 = vadd.f32 %v4922, %v5060
  %v5081 = vadd.f32 %v4923, %v5063
  %v5082 = vpack.c.bf16 %v502, %v4030
  %v5083 = vpack.c.bf16 %v502, %v4038
  %s5084 = scalar_lea.vmem %s12, 24
  %v5085 = vld [vmem:[%s5084] sm:$0xf]
  %v5087 = vsel %vm2587, %v5082, 0
  %v5090 = vsel %vm2587, %v5083, 0
  %v5093 = vsel %vm2612, %v5085, 0
  %5095 = vmatprep.subr.bf16.mxu0 0
  %5096 = vmatpush1.bf16.msra.mxu0 0
  %5097 = vmatprep.subr.bf16.mxu0 0
  %5098 = vmatpush1.bf16.msra.mxu0 0
  %5099 = vmatprep.subr.bf16.mxu0 0
  %5100 = vmatpush1.bf16.msra.mxu0 0
  %5101 = vmatprep.subr.bf16.mxu0 0
  %5102 = vmatpush1.bf16.msra.mxu0 0
  %5103 = vmatprep.subr.bf16.mxu0 0
  %5104 = vmatpush1.bf16.msra.mxu0 0
  %5105 = vmatprep.subr.bf16.mxu0 0
  %5106 = vmatpush1.bf16.msra.mxu0 0
  %5107 = vmatprep.subr.bf16.mxu0 0
  %5108 = vmatpush1.bf16.msra.mxu0 0
  %5109 = vmatprep.subr.bf16.mxu0 0
  %5110 = vmatpush1.bf16.msra.mxu0 %v5093
  %5111 = vmatprep.subr.bf16.mxu0 0
  %5112 = vmatpush2.bf16.msra.mxu0 0
  %5113 = vmatprep.subr.bf16.mxu0 0
  %5114 = vmatpush2.bf16.msra.mxu0 0
  %5115 = vmatprep.subr.bf16.mxu0 0
  %5116 = vmatpush2.bf16.msra.mxu0 0
  %5117 = vmatprep.subr.bf16.mxu0 0
  %5118 = vmatpush2.bf16.msra.mxu0 0
  %5119 = vmatprep.subr.bf16.mxu0 0
  %5120 = vmatpush2.bf16.msra.mxu0 0
  %5121 = vmatprep.subr.bf16.mxu0 0
  %5122 = vmatpush2.bf16.msra.mxu0 0
  %5123 = vmatprep.subr.bf16.mxu0 0
  %5124 = vmatpush2.bf16.msra.mxu0 0
  %5125 = vmatprep.subr.bf16.mxu0 0
  %5126 = vmatpush2.bf16.msra.mxu0 0
  %5127 = vmatprep.mubr.bf16.mxu0 0
  %5128 = vmatmul.mubr.bf16.gmra.mxu0 %v4286
  %v5129 = vpop.f32.mrf.mxu0
  %v5130 = vadd.f32 0.0, %v5129
  %v5131 = vpop.f32.mrf.mxu0
  %v5132 = vpop.f32.mrf.mxu0
  %v5133 = vadd.f32 0.0, %v5132
  %v5134 = vpop.f32.mrf.mxu0
  %5135 = vmatprep.mubr.bf16.mxu0 0
  %5136 = vmatmul.mubr.bf16.gmra.mxu0 %v4289
  %v5137 = vpop.f32.mrf.mxu0
  %v5138 = vadd.f32 0.0, %v5137
  %v5139 = vpop.f32.mrf.mxu0
  %v5140 = vpop.f32.mrf.mxu0
  %v5141 = vadd.f32 0.0, %v5140
  %v5142 = vpop.f32.mrf.mxu0
  %5143 = vmatprep.mubr.bf16.mxu0 0
  %5144 = vmatmul.mubr.bf16.gmra.mxu0 %v4292
  %v5145 = vpop.f32.mrf.mxu0
  %v5146 = vadd.f32 0.0, %v5145
  %v5147 = vpop.f32.mrf.mxu0
  %v5148 = vpop.f32.mrf.mxu0
  %v5149 = vadd.f32 0.0, %v5148
  %v5150 = vpop.f32.mrf.mxu0
  %5151 = vmatprep.mubr.bf16.mxu0 0
  %5152 = vmatmul.mubr.bf16.gmra.mxu0 %v5087
  %v5153 = vpop.f32.mrf.mxu0
  %v5154 = vadd.f32 0.0, %v5153
  %v5155 = vpop.f32.mrf.mxu0
  %v5156 = vpop.f32.mrf.mxu0
  %v5157 = vadd.f32 0.0, %v5156
  %v5158 = vpop.f32.mrf.mxu0
  %5159 = vmatprep.mubr.bf16.mxu0 0
  %5160 = vmatmul.mubr.bf16.gmra.mxu0 %v4298
  %v5161 = vpop.f32.mrf.mxu0
  %v5162 = vadd.f32 0.0, %v5161
  %v5163 = vpop.f32.mrf.mxu0
  %v5164 = vpop.f32.mrf.mxu0
  %v5165 = vadd.f32 0.0, %v5164
  %v5166 = vpop.f32.mrf.mxu0
  %5167 = vmatprep.mubr.bf16.mxu0 0
  %5168 = vmatmul.mubr.bf16.gmra.mxu0 %v4301
  %v5169 = vpop.f32.mrf.mxu0
  %v5170 = vadd.f32 0.0, %v5169
  %v5171 = vpop.f32.mrf.mxu0
  %v5172 = vpop.f32.mrf.mxu0
  %v5173 = vadd.f32 0.0, %v5172
  %v5174 = vpop.f32.mrf.mxu0
  %5175 = vmatprep.mubr.bf16.mxu0 0
  %5176 = vmatmul.mubr.bf16.gmra.mxu0 %v4304
  %v5177 = vpop.f32.mrf.mxu0
  %v5178 = vadd.f32 0.0, %v5177
  %v5179 = vpop.f32.mrf.mxu0
  %v5180 = vpop.f32.mrf.mxu0
  %v5181 = vadd.f32 0.0, %v5180
  %v5182 = vpop.f32.mrf.mxu0
  %5183 = vmatprep.mubr.bf16.mxu0 0
  %5184 = vmatmul.mubr.bf16.gmra.mxu0 %v5090
  %v5185 = vpop.f32.mrf.mxu0
  %v5186 = vadd.f32 0.0, %v5185
  %v5187 = vpop.f32.mrf.mxu0
  %v5188 = vpop.f32.mrf.mxu0
  %v5189 = vadd.f32 0.0, %v5188
  %v5190 = vpop.f32.mrf.mxu0
  %5191 = vdwg.mxu0
  %v5192 = vadd.f32 %v5066, %v5130
  %v5193 = vadd.f32 %v5067, %v5133
  %v5194 = vadd.f32 %v5068, %v5138
  %v5195 = vadd.f32 %v5069, %v5141
  %v5196 = vadd.f32 %v5070, %v5146
  %v5197 = vadd.f32 %v5071, %v5149
  %v5198 = vadd.f32 %v5072, %v5154
  %v5199 = vadd.f32 %v5073, %v5157
  %v5200 = vadd.f32 %v5074, %v5162
  %v5201 = vadd.f32 %v5075, %v5165
  %v5202 = vadd.f32 %v5076, %v5170
  %v5203 = vadd.f32 %v5077, %v5173
  %v5204 = vadd.f32 %v5078, %v5178
  %v5205 = vadd.f32 %v5079, %v5181
  %v5206 = vadd.f32 %v5080, %v5186
  %v5207 = vadd.f32 %v5081, %v5189
  %v5208 = vpack.c.bf16 %v2519, %v4768
  %v5209 = vpack.c.bf16 %v2519, %v4771
  %s5210 = scalar_lea.vmem %s12, 28
  %v5211 = vld [vmem:[%s5210] sm:$0xf]
  %v5213 = vsel %vm2587, %v5208, 0
  %v5216 = vsel %vm2587, %v5209, 0
  %v5219 = vsel %vm2612, %v5211, 0
  %5221 = vmatprep.subr.bf16.mxu0 0
  %5222 = vmatpush1.bf16.msra.mxu0 0
  %5223 = vmatprep.subr.bf16.mxu0 0
  %5224 = vmatpush1.bf16.msra.mxu0 0
  %5225 = vmatprep.subr.bf16.mxu0 0
  %5226 = vmatpush1.bf16.msra.mxu0 0
  %5227 = vmatprep.subr.bf16.mxu0 0
  %5228 = vmatpush1.bf16.msra.mxu0 0
  %5229 = vmatprep.subr.bf16.mxu0 0
  %5230 = vmatpush1.bf16.msra.mxu0 0
  %5231 = vmatprep.subr.bf16.mxu0 0
  %5232 = vmatpush1.bf16.msra.mxu0 0
  %5233 = vmatprep.subr.bf16.mxu0 0
  %5234 = vmatpush1.bf16.msra.mxu0 0
  %5235 = vmatprep.subr.bf16.mxu0 0
  %5236 = vmatpush1.bf16.msra.mxu0 %v5219
  %5237 = vmatprep.subr.bf16.mxu0 0
  %5238 = vmatpush2.bf16.msra.mxu0 0
  %5239 = vmatprep.subr.bf16.mxu0 0
  %5240 = vmatpush2.bf16.msra.mxu0 0
  %5241 = vmatprep.subr.bf16.mxu0 0
  %5242 = vmatpush2.bf16.msra.mxu0 0
  %5243 = vmatprep.subr.bf16.mxu0 0
  %5244 = vmatpush2.bf16.msra.mxu0 0
  %5245 = vmatprep.subr.bf16.mxu0 0
  %5246 = vmatpush2.bf16.msra.mxu0 0
  %5247 = vmatprep.subr.bf16.mxu0 0
  %5248 = vmatpush2.bf16.msra.mxu0 0
  %5249 = vmatprep.subr.bf16.mxu0 0
  %5250 = vmatpush2.bf16.msra.mxu0 0
  %5251 = vmatprep.subr.bf16.mxu0 0
  %5252 = vmatpush2.bf16.msra.mxu0 0
  %5253 = vmatprep.mubr.bf16.mxu0 0
  %5254 = vmatmul.mubr.bf16.gmra.mxu0 %v4162
  %v5255 = vpop.f32.mrf.mxu0
  %v5256 = vadd.f32 0.0, %v5255
  %v5257 = vpop.f32.mrf.mxu0
  %v5258 = vpop.f32.mrf.mxu0
  %v5259 = vadd.f32 0.0, %v5258
  %v5260 = vpop.f32.mrf.mxu0
  %5261 = vmatprep.mubr.bf16.mxu0 0
  %5262 = vmatmul.mubr.bf16.gmra.mxu0 %v4165
  %v5263 = vpop.f32.mrf.mxu0
  %v5264 = vadd.f32 0.0, %v5263
  %v5265 = vpop.f32.mrf.mxu0
  %v5266 = vpop.f32.mrf.mxu0
  %v5267 = vadd.f32 0.0, %v5266
  %v5268 = vpop.f32.mrf.mxu0
  %5269 = vmatprep.mubr.bf16.mxu0 0
  %5270 = vmatmul.mubr.bf16.gmra.mxu0 %v4168
  %v5271 = vpop.f32.mrf.mxu0
  %v5272 = vadd.f32 0.0, %v5271
  %v5273 = vpop.f32.mrf.mxu0
  %v5274 = vpop.f32.mrf.mxu0
  %v5275 = vadd.f32 0.0, %v5274
  %v5276 = vpop.f32.mrf.mxu0
  %5277 = vmatprep.mubr.bf16.mxu0 0
  %5278 = vmatmul.mubr.bf16.gmra.mxu0 %v5213
  %v5279 = vpop.f32.mrf.mxu0
  %v5280 = vadd.f32 0.0, %v5279
  %v5281 = vpop.f32.mrf.mxu0
  %v5282 = vpop.f32.mrf.mxu0
  %v5283 = vadd.f32 0.0, %v5282
  %v5284 = vpop.f32.mrf.mxu0
  %5285 = vmatprep.mubr.bf16.mxu0 0
  %5286 = vmatmul.mubr.bf16.gmra.mxu0 %v4174
  %v5287 = vpop.f32.mrf.mxu0
  %v5288 = vadd.f32 0.0, %v5287
  %v5289 = vpop.f32.mrf.mxu0
  %v5290 = vpop.f32.mrf.mxu0
  %v5291 = vadd.f32 0.0, %v5290
  %v5292 = vpop.f32.mrf.mxu0
  %5293 = vmatprep.mubr.bf16.mxu0 0
  %5294 = vmatmul.mubr.bf16.gmra.mxu0 %v4177
  %v5295 = vpop.f32.mrf.mxu0
  %v5296 = vadd.f32 0.0, %v5295
  %v5297 = vpop.f32.mrf.mxu0
  %v5298 = vpop.f32.mrf.mxu0
  %v5299 = vadd.f32 0.0, %v5298
  %v5300 = vpop.f32.mrf.mxu0
  %5301 = vmatprep.mubr.bf16.mxu0 0
  %5302 = vmatmul.mubr.bf16.gmra.mxu0 %v4180
  %v5303 = vpop.f32.mrf.mxu0
  %v5304 = vadd.f32 0.0, %v5303
  %v5305 = vpop.f32.mrf.mxu0
  %v5306 = vpop.f32.mrf.mxu0
  %v5307 = vadd.f32 0.0, %v5306
  %v5308 = vpop.f32.mrf.mxu0
  %5309 = vmatprep.mubr.bf16.mxu0 0
  %5310 = vmatmul.mubr.bf16.gmra.mxu0 %v5216
  %v5311 = vpop.f32.mrf.mxu0
  %v5312 = vadd.f32 0.0, %v5311
  %v5313 = vpop.f32.mrf.mxu0
  %v5314 = vpop.f32.mrf.mxu0
  %v5315 = vadd.f32 0.0, %v5314
  %v5316 = vpop.f32.mrf.mxu0
  %5317 = vdwg.mxu0
  %v5318 = vadd.f32 %v5192, %v5256
  %v5319 = vadd.f32 %v5193, %v5259
  %v5320 = vadd.f32 %v5194, %v5264
  %v5321 = vadd.f32 %v5195, %v5267
  %v5322 = vadd.f32 %v5196, %v5272
  %v5323 = vadd.f32 %v5197, %v5275
  %v5324 = vadd.f32 %v5198, %v5280
  %v5325 = vadd.f32 %v5199, %v5283
  %v5326 = vadd.f32 %v5200, %v5288
  %v5327 = vadd.f32 %v5201, %v5291
  %v5328 = vadd.f32 %v5202, %v5296
  %v5329 = vadd.f32 %v5203, %v5299
  %v5330 = vadd.f32 %v5204, %v5304
  %v5331 = vadd.f32 %v5205, %v5307
  %v5332 = vadd.f32 %v5206, %v5312
  %v5333 = vadd.f32 %v5207, %v5315
  %v5334 = vpack.c.bf16 %v2840, %v4926
  %v5335 = vpack.c.bf16 %v2840, %v4929
  %s5336 = scalar_lea.vmem %s12, 32
  %v5337 = vld [vmem:[%s5336] sm:$0xf]
  %v5339 = vsel %vm2587, %v5334, 0
  %v5342 = vsel %vm2587, %v5335, 0
  %v5345 = vsel %vm2612, %v5337, 0
  %5347 = vmatprep.subr.bf16.mxu0 0
  %5348 = vmatpush1.bf16.msra.mxu0 0
  %5349 = vmatprep.subr.bf16.mxu0 0
  %5350 = vmatpush1.bf16.msra.mxu0 0
  %5351 = vmatprep.subr.bf16.mxu0 0
  %5352 = vmatpush1.bf16.msra.mxu0 0
  %5353 = vmatprep.subr.bf16.mxu0 0
  %5354 = vmatpush1.bf16.msra.mxu0 0
  %5355 = vmatprep.subr.bf16.mxu0 0
  %5356 = vmatpush1.bf16.msra.mxu0 0
  %5357 = vmatprep.subr.bf16.mxu0 0
  %5358 = vmatpush1.bf16.msra.mxu0 0
  %5359 = vmatprep.subr.bf16.mxu0 0
  %5360 = vmatpush1.bf16.msra.mxu0 0
  %5361 = vmatprep.subr.bf16.mxu0 0
  %5362 = vmatpush1.bf16.msra.mxu0 %v5345
  %5363 = vmatprep.subr.bf16.mxu0 0
  %5364 = vmatpush2.bf16.msra.mxu0 0
  %5365 = vmatprep.subr.bf16.mxu0 0
  %5366 = vmatpush2.bf16.msra.mxu0 0
  %5367 = vmatprep.subr.bf16.mxu0 0
  %5368 = vmatpush2.bf16.msra.mxu0 0
  %5369 = vmatprep.subr.bf16.mxu0 0
  %5370 = vmatpush2.bf16.msra.mxu0 0
  %5371 = vmatprep.subr.bf16.mxu0 0
  %5372 = vmatpush2.bf16.msra.mxu0 0
  %5373 = vmatprep.subr.bf16.mxu0 0
  %5374 = vmatpush2.bf16.msra.mxu0 0
  %5375 = vmatprep.subr.bf16.mxu0 0
  %5376 = vmatpush2.bf16.msra.mxu0 0
  %5377 = vmatprep.subr.bf16.mxu0 0
  %5378 = vmatpush2.bf16.msra.mxu0 0
  %5379 = vmatprep.mubr.bf16.mxu0 0
  %5380 = vmatmul.mubr.bf16.gmra.mxu0 %v4476
  %v5381 = vpop.f32.mrf.mxu0
  %v5382 = vadd.f32 0.0, %v5381
  %v5383 = vpop.f32.mrf.mxu0
  %v5384 = vpop.f32.mrf.mxu0
  %v5385 = vadd.f32 0.0, %v5384
  %v5386 = vpop.f32.mrf.mxu0
  %5387 = vmatprep.mubr.bf16.mxu0 0
  %5388 = vmatmul.mubr.bf16.gmra.mxu0 %v4479
  %v5389 = vpop.f32.mrf.mxu0
  %v5390 = vadd.f32 0.0, %v5389
  %v5391 = vpop.f32.mrf.mxu0
  %v5392 = vpop.f32.mrf.mxu0
  %v5393 = vadd.f32 0.0, %v5392
  %v5394 = vpop.f32.mrf.mxu0
  %5395 = vmatprep.mubr.bf16.mxu0 0
  %5396 = vmatmul.mubr.bf16.gmra.mxu0 %v4482
  %v5397 = vpop.f32.mrf.mxu0
  %v5398 = vadd.f32 0.0, %v5397
  %v5399 = vpop.f32.mrf.mxu0
  %v5400 = vpop.f32.mrf.mxu0
  %v5401 = vadd.f32 0.0, %v5400
  %v5402 = vpop.f32.mrf.mxu0
  %5403 = vmatprep.mubr.bf16.mxu0 0
  %5404 = vmatmul.mubr.bf16.gmra.mxu0 %v5339
  %v5405 = vpop.f32.mrf.mxu0
  %v5406 = vadd.f32 0.0, %v5405
  %v5407 = vpop.f32.mrf.mxu0
  %v5408 = vpop.f32.mrf.mxu0
  %v5409 = vadd.f32 0.0, %v5408
  %v5410 = vpop.f32.mrf.mxu0
  %5411 = vmatprep.mubr.bf16.mxu0 0
  %5412 = vmatmul.mubr.bf16.gmra.mxu0 %v4488
  %v5413 = vpop.f32.mrf.mxu0
  %v5414 = vadd.f32 0.0, %v5413
  %v5415 = vpop.f32.mrf.mxu0
  %v5416 = vpop.f32.mrf.mxu0
  %v5417 = vadd.f32 0.0, %v5416
  %v5418 = vpop.f32.mrf.mxu0
  %5419 = vmatprep.mubr.bf16.mxu0 0
  %5420 = vmatmul.mubr.bf16.gmra.mxu0 %v4491
  %v5421 = vpop.f32.mrf.mxu0
  %v5422 = vadd.f32 0.0, %v5421
  %v5423 = vpop.f32.mrf.mxu0
  %v5424 = vpop.f32.mrf.mxu0
  %v5425 = vadd.f32 0.0, %v5424
  %v5426 = vpop.f32.mrf.mxu0
  %5427 = vmatprep.mubr.bf16.mxu0 0
  %5428 = vmatmul.mubr.bf16.gmra.mxu0 %v4494
  %v5429 = vpop.f32.mrf.mxu0
  %v5430 = vadd.f32 0.0, %v5429
  %v5431 = vpop.f32.mrf.mxu0
  %v5432 = vpop.f32.mrf.mxu0
  %v5433 = vadd.f32 0.0, %v5432
  %v5434 = vpop.f32.mrf.mxu0
  %5435 = vmatprep.mubr.bf16.mxu0 0
  %5436 = vmatmul.mubr.bf16.gmra.mxu0 %v5342
  %v5437 = vpop.f32.mrf.mxu0
  %v5438 = vadd.f32 0.0, %v5437
  %v5439 = vpop.f32.mrf.mxu0
  %v5440 = vpop.f32.mrf.mxu0
  %v5441 = vadd.f32 0.0, %v5440
  %v5442 = vpop.f32.mrf.mxu0
  %5443 = vdwg.mxu0
  %v5444 = vadd.f32 %v5318, %v5382
  %v5445 = vadd.f32 %v5319, %v5385
  %v5446 = vadd.f32 %v5320, %v5390
  %v5447 = vadd.f32 %v5321, %v5393
  %v5448 = vadd.f32 %v5322, %v5398
  %v5449 = vadd.f32 %v5323, %v5401
  %v5450 = vadd.f32 %v5324, %v5406
  %v5451 = vadd.f32 %v5325, %v5409
  %v5452 = vadd.f32 %v5326, %v5414
  %v5453 = vadd.f32 %v5327, %v5417
  %v5454 = vadd.f32 %v5328, %v5422
  %v5455 = vadd.f32 %v5329, %v5425
  %v5456 = vadd.f32 %v5330, %v5430
  %v5457 = vadd.f32 %v5331, %v5433
  %v5458 = vadd.f32 %v5332, %v5438
  %v5459 = vadd.f32 %v5333, %v5441
  %v5461 = vlaneseq
  %v5462 = vshrl.u32 %v5461, 7
  %v5463 = vsub.s32 0, %v5462
  %v5464 = vrot.slane %v3914, %v5463
  %v5466 = vadd.f32 %v5444, %v5464
  %v5467 = vadd.f32 %v5445, %v5464
  %v5468 = vadd.f32 %v5446, %v5464
  %v5469 = vadd.f32 %v5447, %v5464
  %v5470 = vadd.f32 %v5448, %v5464
  %v5471 = vadd.f32 %v5449, %v5464
  %v5472 = vadd.f32 %v5450, %v5464
  %v5473 = vadd.f32 %v5451, %v5464
  %v5474 = vadd.f32 %v5452, %v5464
  %v5475 = vadd.f32 %v5453, %v5464
  %v5476 = vadd.f32 %v5454, %v5464
  %v5477 = vadd.f32 %v5455, %v5464
  %v5478 = vadd.f32 %v5456, %v5464
  %v5479 = vadd.f32 %v5457, %v5464
  %v5480 = vadd.f32 %v5458, %v5464
  %v5481 = vadd.f32 %v5459, %v5464
  %v5482 = vmax.f32 %v5466, 0.0
  %v5483 = vmax.f32 %v5467, 0.0
  %v5484 = vmax.f32 %v5468, 0.0
  %v5485 = vmax.f32 %v5469, 0.0
  %v5486 = vmax.f32 %v5470, 0.0
  %v5487 = vmax.f32 %v5471, 0.0
  %v5488 = vmax.f32 %v5472, 0.0
  %v5489 = vmax.f32 %v5473, 0.0
  %v5490 = vmax.f32 %v5474, 0.0
  %v5491 = vmax.f32 %v5475, 0.0
  %v5492 = vmax.f32 %v5476, 0.0
  %v5493 = vmax.f32 %v5477, 0.0
  %v5494 = vmax.f32 %v5478, 0.0
  %v5495 = vmax.f32 %v5479, 0.0
  %v5496 = vmax.f32 %v5480, 0.0
  %v5497 = vmax.f32 %v5481, 0.0
  %v5514 = vrot.slane %v5482, 7
  %v5515 = vrot.slane %v5483, 7
  %v5516 = vrot.slane %v5484, 7
  %v5517 = vrot.slane %v5485, 7
  %v5518 = vrot.slane %v5486, 7
  %v5519 = vrot.slane %v5487, 7
  %v5520 = vrot.slane %v5488, 7
  %v5521 = vrot.slane %v5489, 7
  %v5522 = vrot.slane %v5490, 7
  %v5523 = vrot.slane %v5491, 7
  %v5524 = vrot.slane %v5492, 7
  %v5525 = vrot.slane %v5493, 7
  %v5526 = vrot.slane %v5494, 7
  %v5527 = vrot.slane %v5495, 7
  %v5528 = vrot.slane %v5496, 7
  %v5529 = vrot.slane %v5497, 7
  %v5546 = vsel %vm370, 0.0, %v5514
  %v5547 = vsel %vm370, 0.0, %v5515
  %v5548 = vsel %vm370, 0.0, %v5516
  %v5549 = vsel %vm370, 0.0, %v5517
  %v5550 = vsel %vm370, 0.0, %v5518
  %v5551 = vsel %vm370, 0.0, %v5519
  %v5552 = vsel %vm370, 0.0, %v5520
  %v5553 = vsel %vm370, 0.0, %v5521
  %v5554 = vsel %vm370, 0.0, %v5522
  %v5555 = vsel %vm370, 0.0, %v5523
  %v5556 = vsel %vm370, 0.0, %v5524
  %v5557 = vsel %vm370, 0.0, %v5525
  %v5558 = vsel %vm370, 0.0, %v5526
  %v5559 = vsel %vm370, 0.0, %v5527
  %v5560 = vsel %vm370, 0.0, %v5528
  %v5561 = vsel %vm370, 0.0, %v5529
  %v5562 = vsel %vm370, %v5514, 0.0
  %v5563 = vsel %vm370, %v5515, 0.0
  %v5564 = vsel %vm370, %v5516, 0.0
  %v5565 = vsel %vm370, %v5517, 0.0
  %v5566 = vsel %vm370, %v5518, 0.0
  %v5567 = vsel %vm370, %v5519, 0.0
  %v5568 = vsel %vm370, %v5520, 0.0
  %v5569 = vsel %vm370, %v5521, 0.0
  %v5570 = vsel %vm370, %v5522, 0.0
  %v5571 = vsel %vm370, %v5523, 0.0
  %v5572 = vsel %vm370, %v5524, 0.0
  %v5573 = vsel %vm370, %v5525, 0.0
  %v5574 = vsel %vm370, %v5526, 0.0
  %v5575 = vsel %vm370, %v5527, 0.0
  %v5576 = vsel %vm370, %v5528, 0.0
  %v5577 = vsel %vm370, %v5529, 0.0
  %v5578 = vpack.c.bf16 %v5546, %v502
  %v5579 = vpack.c.bf16 %v5548, %v5547
  %v5580 = vpack.c.bf16 %v5550, %v5549
  %v5581 = vpack.c.bf16 %v5552, %v5551
  %v5582 = vpack.c.bf16 %v5554, %v502
  %v5583 = vpack.c.bf16 %v5556, %v5555
  %v5584 = vpack.c.bf16 %v5558, %v5557
  %v5585 = vpack.c.bf16 %v5560, %v5559
  %v5586 = vld [vmem:[%s14] sm:$0xf]
  %v5615 = vrot.slane %v5546, 1
  %v5616 = vrot.slane %v5562, 1
  %v5617 = vsel %vm607, %v5615, %v5616
  %v5618 = vrot.slane %v5547, 1
  %v5619 = vrot.slane %v5563, 1
  %v5620 = vsel %vm607, %v5618, %v5619
  %v5621 = vrot.slane %v5548, 1
  %v5622 = vrot.slane %v5564, 1
  %v5623 = vsel %vm607, %v5621, %v5622
  %v5624 = vrot.slane %v5549, 1
  %v5625 = vrot.slane %v5565, 1
  %v5626 = vsel %vm607, %v5624, %v5625
  %v5627 = vrot.slane %v5550, 1
  %v5628 = vrot.slane %v5566, 1
  %v5629 = vsel %vm607, %v5627, %v5628
  %v5630 = vrot.slane %v5551, 1
  %v5631 = vrot.slane %v5567, 1
  %v5632 = vsel %vm607, %v5630, %v5631
  %v5633 = vrot.slane %v5552, 1
  %v5634 = vrot.slane %v5568, 1
  %v5635 = vsel %vm607, %v5633, %v5634
  %v5636 = vrot.slane %v5554, 1
  %v5637 = vrot.slane %v5570, 1
  %v5638 = vsel %vm607, %v5636, %v5637
  %v5639 = vrot.slane %v5555, 1
  %v5640 = vrot.slane %v5571, 1
  %v5641 = vsel %vm607, %v5639, %v5640
  %v5642 = vrot.slane %v5556, 1
  %v5643 = vrot.slane %v5572, 1
  %v5644 = vsel %vm607, %v5642, %v5643
  %v5645 = vrot.slane %v5557, 1
  %v5646 = vrot.slane %v5573, 1
  %v5647 = vsel %vm607, %v5645, %v5646
  %v5648 = vrot.slane %v5558, 1
  %v5649 = vrot.slane %v5574, 1
  %v5650 = vsel %vm607, %v5648, %v5649
  %v5651 = vrot.slane %v5559, 1
  %v5652 = vrot.slane %v5575, 1
  %v5653 = vsel %vm607, %v5651, %v5652
  %v5654 = vrot.slane %v5560, 1
  %v5655 = vrot.slane %v5576, 1
  %v5656 = vsel %vm607, %v5654, %v5655
  %v5671 = vpack.c.bf16 %v5617, %v2519
  %v5672 = vpack.c.bf16 %v5623, %v5620
  %v5673 = vpack.c.bf16 %v5629, %v5626
  %v5674 = vpack.c.bf16 %v5635, %v5632
  %v5675 = vpack.c.bf16 %v5638, %v2519
  %v5676 = vpack.c.bf16 %v5644, %v5641
  %v5677 = vpack.c.bf16 %v5650, %v5647
  %v5678 = vpack.c.bf16 %v5656, %v5653
  %s5679 = scalar_lea.vmem %s14, 4
  %v5680 = vld [vmem:[%s5679] sm:$0xf]
  %v5682 = vsel %vm2587, %v5671, 0
  %v5685 = vsel %vm2587, %v5672, 0
  %v5688 = vsel %vm2587, %v5673, 0
  %v5691 = vsel %vm2587, %v5674, 0
  %v5694 = vsel %vm2587, %v5675, 0
  %v5697 = vsel %vm2587, %v5676, 0
  %v5700 = vsel %vm2587, %v5677, 0
  %v5703 = vsel %vm2587, %v5678, 0
  %v5706 = vsel %vm2612, %v5680, 0
  %5708 = vmatprep.subr.bf16.mxu0 0
  %5709 = vmatpush1.bf16.msra.mxu0 0
  %5710 = vmatprep.subr.bf16.mxu0 0
  %5711 = vmatpush1.bf16.msra.mxu0 0
  %5712 = vmatprep.subr.bf16.mxu0 0
  %5713 = vmatpush1.bf16.msra.mxu0 0
  %5714 = vmatprep.subr.bf16.mxu0 0
  %5715 = vmatpush1.bf16.msra.mxu0 0
  %5716 = vmatprep.subr.bf16.mxu0 0
  %5717 = vmatpush1.bf16.msra.mxu0 0
  %5718 = vmatprep.subr.bf16.mxu0 0
  %5719 = vmatpush1.bf16.msra.mxu0 0
  %5720 = vmatprep.subr.bf16.mxu0 0
  %5721 = vmatpush1.bf16.msra.mxu0 0
  %5722 = vmatprep.subr.bf16.mxu0 0
  %5723 = vmatpush1.bf16.msra.mxu0 %v5706
  %5724 = vmatprep.subr.bf16.mxu0 0
  %5725 = vmatpush2.bf16.msra.mxu0 0
  %5726 = vmatprep.subr.bf16.mxu0 0
  %5727 = vmatpush2.bf16.msra.mxu0 0
  %5728 = vmatprep.subr.bf16.mxu0 0
  %5729 = vmatpush2.bf16.msra.mxu0 0
  %5730 = vmatprep.subr.bf16.mxu0 0
  %5731 = vmatpush2.bf16.msra.mxu0 0
  %5732 = vmatprep.subr.bf16.mxu0 0
  %5733 = vmatpush2.bf16.msra.mxu0 0
  %5734 = vmatprep.subr.bf16.mxu0 0
  %5735 = vmatpush2.bf16.msra.mxu0 0
  %5736 = vmatprep.subr.bf16.mxu0 0
  %5737 = vmatpush2.bf16.msra.mxu0 0
  %5738 = vmatprep.subr.bf16.mxu0 0
  %5739 = vmatpush2.bf16.msra.mxu0 0
  %5740 = vmatprep.mubr.bf16.mxu0 0
  %5741 = vmatmul.mubr.bf16.gmra.mxu0 %v5682
  %v5742 = vpop.f32.mrf.mxu0
  %v5743 = vadd.f32 0.0, %v5742
  %v5744 = vpop.f32.mrf.mxu0
  %v5745 = vpop.f32.mrf.mxu0
  %v5746 = vadd.f32 0.0, %v5745
  %v5747 = vpop.f32.mrf.mxu0
  %5748 = vmatprep.mubr.bf16.mxu0 0
  %5749 = vmatmul.mubr.bf16.gmra.mxu0 %v5685
  %v5750 = vpop.f32.mrf.mxu0
  %v5751 = vadd.f32 0.0, %v5750
  %v5752 = vpop.f32.mrf.mxu0
  %v5753 = vpop.f32.mrf.mxu0
  %v5754 = vadd.f32 0.0, %v5753
  %v5755 = vpop.f32.mrf.mxu0
  %5756 = vmatprep.mubr.bf16.mxu0 0
  %5757 = vmatmul.mubr.bf16.gmra.mxu0 %v5688
  %v5758 = vpop.f32.mrf.mxu0
  %v5759 = vadd.f32 0.0, %v5758
  %v5760 = vpop.f32.mrf.mxu0
  %v5761 = vpop.f32.mrf.mxu0
  %v5762 = vadd.f32 0.0, %v5761
  %v5763 = vpop.f32.mrf.mxu0
  %5764 = vmatprep.mubr.bf16.mxu0 0
  %5765 = vmatmul.mubr.bf16.gmra.mxu0 %v5691
  %v5766 = vpop.f32.mrf.mxu0
  %v5767 = vadd.f32 0.0, %v5766
  %v5768 = vpop.f32.mrf.mxu0
  %v5769 = vpop.f32.mrf.mxu0
  %v5770 = vadd.f32 0.0, %v5769
  %v5771 = vpop.f32.mrf.mxu0
  %5772 = vmatprep.mubr.bf16.mxu0 0
  %5773 = vmatmul.mubr.bf16.gmra.mxu0 %v5694
  %v5774 = vpop.f32.mrf.mxu0
  %v5775 = vadd.f32 0.0, %v5774
  %v5776 = vpop.f32.mrf.mxu0
  %v5777 = vpop.f32.mrf.mxu0
  %v5778 = vadd.f32 0.0, %v5777
  %v5779 = vpop.f32.mrf.mxu0
  %5780 = vmatprep.mubr.bf16.mxu0 0
  %5781 = vmatmul.mubr.bf16.gmra.mxu0 %v5697
  %v5782 = vpop.f32.mrf.mxu0
  %v5783 = vadd.f32 0.0, %v5782
  %v5784 = vpop.f32.mrf.mxu0
  %v5785 = vpop.f32.mrf.mxu0
  %v5786 = vadd.f32 0.0, %v5785
  %v5787 = vpop.f32.mrf.mxu0
  %5788 = vmatprep.mubr.bf16.mxu0 0
  %5789 = vmatmul.mubr.bf16.gmra.mxu0 %v5700
  %v5790 = vpop.f32.mrf.mxu0
  %v5791 = vadd.f32 0.0, %v5790
  %v5792 = vpop.f32.mrf.mxu0
  %v5793 = vpop.f32.mrf.mxu0
  %v5794 = vadd.f32 0.0, %v5793
  %v5795 = vpop.f32.mrf.mxu0
  %5796 = vmatprep.mubr.bf16.mxu0 0
  %5797 = vmatmul.mubr.bf16.gmra.mxu0 %v5703
  %v5798 = vpop.f32.mrf.mxu0
  %v5799 = vadd.f32 0.0, %v5798
  %v5800 = vpop.f32.mrf.mxu0
  %v5801 = vpop.f32.mrf.mxu0
  %v5802 = vadd.f32 0.0, %v5801
  %v5803 = vpop.f32.mrf.mxu0
  %5804 = vdwg.mxu0
  %v5806 = vsel %vm2587, %v5578, 0
  %v5809 = vsel %vm2587, %v5579, 0
  %v5812 = vsel %vm2587, %v5580, 0
  %v5815 = vsel %vm2587, %v5581, 0
  %v5818 = vsel %vm2587, %v5582, 0
  %v5821 = vsel %vm2587, %v5583, 0
  %v5824 = vsel %vm2587, %v5584, 0
  %v5827 = vsel %vm2587, %v5585, 0
  %v5830 = vsel %vm2612, %v5586, 0
  %5832 = vmatprep.subr.bf16.mxu0 0
  %5833 = vmatpush1.bf16.msra.mxu0 0
  %5834 = vmatprep.subr.bf16.mxu0 0
  %5835 = vmatpush1.bf16.msra.mxu0 0
  %5836 = vmatprep.subr.bf16.mxu0 0
  %5837 = vmatpush1.bf16.msra.mxu0 0
  %5838 = vmatprep.subr.bf16.mxu0 0
  %5839 = vmatpush1.bf16.msra.mxu0 0
  %5840 = vmatprep.subr.bf16.mxu0 0
  %5841 = vmatpush1.bf16.msra.mxu0 0
  %5842 = vmatprep.subr.bf16.mxu0 0
  %5843 = vmatpush1.bf16.msra.mxu0 0
  %5844 = vmatprep.subr.bf16.mxu0 0
  %5845 = vmatpush1.bf16.msra.mxu0 0
  %5846 = vmatprep.subr.bf16.mxu0 0
  %5847 = vmatpush1.bf16.msra.mxu0 %v5830
  %5848 = vmatprep.subr.bf16.mxu0 0
  %5849 = vmatpush2.bf16.msra.mxu0 0
  %5850 = vmatprep.subr.bf16.mxu0 0
  %5851 = vmatpush2.bf16.msra.mxu0 0
  %5852 = vmatprep.subr.bf16.mxu0 0
  %5853 = vmatpush2.bf16.msra.mxu0 0
  %5854 = vmatprep.subr.bf16.mxu0 0
  %5855 = vmatpush2.bf16.msra.mxu0 0
  %5856 = vmatprep.subr.bf16.mxu0 0
  %5857 = vmatpush2.bf16.msra.mxu0 0
  %5858 = vmatprep.subr.bf16.mxu0 0
  %5859 = vmatpush2.bf16.msra.mxu0 0
  %5860 = vmatprep.subr.bf16.mxu0 0
  %5861 = vmatpush2.bf16.msra.mxu0 0
  %5862 = vmatprep.subr.bf16.mxu0 0
  %5863 = vmatpush2.bf16.msra.mxu0 0
  %5864 = vmatprep.mubr.bf16.mxu0 0
  %5865 = vmatmul.mubr.bf16.gmra.mxu0 %v5806
  %v5866 = vpop.f32.mrf.mxu0
  %v5867 = vadd.f32 %v5743, %v5866
  %v5868 = vpop.f32.mrf.mxu0
  %v5869 = vpop.f32.mrf.mxu0
  %v5870 = vadd.f32 %v5746, %v5869
  %v5871 = vpop.f32.mrf.mxu0
  %5872 = vmatprep.mubr.bf16.mxu0 0
  %5873 = vmatmul.mubr.bf16.gmra.mxu0 %v5809
  %v5874 = vpop.f32.mrf.mxu0
  %v5875 = vadd.f32 %v5751, %v5874
  %v5876 = vpop.f32.mrf.mxu0
  %v5877 = vpop.f32.mrf.mxu0
  %v5878 = vadd.f32 %v5754, %v5877
  %v5879 = vpop.f32.mrf.mxu0
  %5880 = vmatprep.mubr.bf16.mxu0 0
  %5881 = vmatmul.mubr.bf16.gmra.mxu0 %v5812
  %v5882 = vpop.f32.mrf.mxu0
  %v5883 = vadd.f32 %v5759, %v5882
  %v5884 = vpop.f32.mrf.mxu0
  %v5885 = vpop.f32.mrf.mxu0
  %v5886 = vadd.f32 %v5762, %v5885
  %v5887 = vpop.f32.mrf.mxu0
  %5888 = vmatprep.mubr.bf16.mxu0 0
  %5889 = vmatmul.mubr.bf16.gmra.mxu0 %v5815
  %v5890 = vpop.f32.mrf.mxu0
  %v5891 = vadd.f32 %v5767, %v5890
  %v5892 = vpop.f32.mrf.mxu0
  %v5893 = vpop.f32.mrf.mxu0
  %v5894 = vadd.f32 %v5770, %v5893
  %v5895 = vpop.f32.mrf.mxu0
  %5896 = vmatprep.mubr.bf16.mxu0 0
  %5897 = vmatmul.mubr.bf16.gmra.mxu0 %v5818
  %v5898 = vpop.f32.mrf.mxu0
  %v5899 = vadd.f32 %v5775, %v5898
  %v5900 = vpop.f32.mrf.mxu0
  %v5901 = vpop.f32.mrf.mxu0
  %v5902 = vadd.f32 %v5778, %v5901
  %v5903 = vpop.f32.mrf.mxu0
  %5904 = vmatprep.mubr.bf16.mxu0 0
  %5905 = vmatmul.mubr.bf16.gmra.mxu0 %v5821
  %v5906 = vpop.f32.mrf.mxu0
  %v5907 = vadd.f32 %v5783, %v5906
  %v5908 = vpop.f32.mrf.mxu0
  %v5909 = vpop.f32.mrf.mxu0
  %v5910 = vadd.f32 %v5786, %v5909
  %v5911 = vpop.f32.mrf.mxu0
  %5912 = vmatprep.mubr.bf16.mxu0 0
  %5913 = vmatmul.mubr.bf16.gmra.mxu0 %v5824
  %v5914 = vpop.f32.mrf.mxu0
  %v5915 = vadd.f32 %v5791, %v5914
  %v5916 = vpop.f32.mrf.mxu0
  %v5917 = vpop.f32.mrf.mxu0
  %v5918 = vadd.f32 %v5794, %v5917
  %v5919 = vpop.f32.mrf.mxu0
  %5920 = vmatprep.mubr.bf16.mxu0 0
  %5921 = vmatmul.mubr.bf16.gmra.mxu0 %v5827
  %v5922 = vpop.f32.mrf.mxu0
  %v5923 = vadd.f32 %v5799, %v5922
  %v5924 = vpop.f32.mrf.mxu0
  %v5925 = vpop.f32.mrf.mxu0
  %v5926 = vadd.f32 %v5802, %v5925
  %v5927 = vpop.f32.mrf.mxu0
  %5928 = vdwg.mxu0
  %v5929 = vrot.slane %v5546, 2
  %v5930 = vrot.slane %v5562, 2
  %v5931 = vsel %vm2837, %v5929, %v5930
  %v5932 = vrot.slane %v5547, 2
  %v5933 = vrot.slane %v5563, 2
  %v5934 = vsel %vm2837, %v5932, %v5933
  %v5935 = vrot.slane %v5548, 2
  %v5936 = vrot.slane %v5564, 2
  %v5937 = vsel %vm2837, %v5935, %v5936
  %v5938 = vrot.slane %v5549, 2
  %v5939 = vrot.slane %v5565, 2
  %v5940 = vsel %vm2837, %v5938, %v5939
  %v5941 = vrot.slane %v5550, 2
  %v5942 = vrot.slane %v5566, 2
  %v5943 = vsel %vm2837, %v5941, %v5942
  %v5944 = vrot.slane %v5551, 2
  %v5945 = vrot.slane %v5567, 2
  %v5946 = vsel %vm2837, %v5944, %v5945
  %v5947 = vrot.slane %v5552, 2
  %v5948 = vrot.slane %v5568, 2
  %v5949 = vsel %vm2837, %v5947, %v5948
  %v5950 = vrot.slane %v5554, 2
  %v5951 = vrot.slane %v5570, 2
  %v5952 = vsel %vm2837, %v5950, %v5951
  %v5953 = vrot.slane %v5555, 2
  %v5954 = vrot.slane %v5571, 2
  %v5955 = vsel %vm2837, %v5953, %v5954
  %v5956 = vrot.slane %v5556, 2
  %v5957 = vrot.slane %v5572, 2
  %v5958 = vsel %vm2837, %v5956, %v5957
  %v5959 = vrot.slane %v5557, 2
  %v5960 = vrot.slane %v5573, 2
  %v5961 = vsel %vm2837, %v5959, %v5960
  %v5962 = vrot.slane %v5558, 2
  %v5963 = vrot.slane %v5574, 2
  %v5964 = vsel %vm2837, %v5962, %v5963
  %v5965 = vrot.slane %v5559, 2
  %v5966 = vrot.slane %v5575, 2
  %v5967 = vsel %vm2837, %v5965, %v5966
  %v5968 = vrot.slane %v5560, 2
  %v5969 = vrot.slane %v5576, 2
  %v5970 = vsel %vm2837, %v5968, %v5969
  %v5985 = vpack.c.bf16 %v5931, %v2840
  %v5986 = vpack.c.bf16 %v5937, %v5934
  %v5987 = vpack.c.bf16 %v5943, %v5940
  %v5988 = vpack.c.bf16 %v5949, %v5946
  %v5989 = vpack.c.bf16 %v5952, %v2840
  %v5990 = vpack.c.bf16 %v5958, %v5955
  %v5991 = vpack.c.bf16 %v5964, %v5961
  %v5992 = vpack.c.bf16 %v5970, %v5967
  %s5993 = scalar_lea.vmem %s14, 8
  %v5994 = vld [vmem:[%s5993] sm:$0xf]
  %v5996 = vsel %vm2587, %v5985, 0
  %v5999 = vsel %vm2587, %v5986, 0
  %v6002 = vsel %vm2587, %v5987, 0
  %v6005 = vsel %vm2587, %v5988, 0
  %v6008 = vsel %vm2587, %v5989, 0
  %v6011 = vsel %vm2587, %v5990, 0
  %v6014 = vsel %vm2587, %v5991, 0
  %v6017 = vsel %vm2587, %v5992, 0
  %v6020 = vsel %vm2612, %v5994, 0
  %6022 = vmatprep.subr.bf16.mxu0 0
  %6023 = vmatpush1.bf16.msra.mxu0 0
  %6024 = vmatprep.subr.bf16.mxu0 0
  %6025 = vmatpush1.bf16.msra.mxu0 0
  %6026 = vmatprep.subr.bf16.mxu0 0
  %6027 = vmatpush1.bf16.msra.mxu0 0
  %6028 = vmatprep.subr.bf16.mxu0 0
  %6029 = vmatpush1.bf16.msra.mxu0 0
  %6030 = vmatprep.subr.bf16.mxu0 0
  %6031 = vmatpush1.bf16.msra.mxu0 0
  %6032 = vmatprep.subr.bf16.mxu0 0
  %6033 = vmatpush1.bf16.msra.mxu0 0
  %6034 = vmatprep.subr.bf16.mxu0 0
  %6035 = vmatpush1.bf16.msra.mxu0 0
  %6036 = vmatprep.subr.bf16.mxu0 0
  %6037 = vmatpush1.bf16.msra.mxu0 %v6020
  %6038 = vmatprep.subr.bf16.mxu0 0
  %6039 = vmatpush2.bf16.msra.mxu0 0
  %6040 = vmatprep.subr.bf16.mxu0 0
  %6041 = vmatpush2.bf16.msra.mxu0 0
  %6042 = vmatprep.subr.bf16.mxu0 0
  %6043 = vmatpush2.bf16.msra.mxu0 0
  %6044 = vmatprep.subr.bf16.mxu0 0
  %6045 = vmatpush2.bf16.msra.mxu0 0
  %6046 = vmatprep.subr.bf16.mxu0 0
  %6047 = vmatpush2.bf16.msra.mxu0 0
  %6048 = vmatprep.subr.bf16.mxu0 0
  %6049 = vmatpush2.bf16.msra.mxu0 0
  %6050 = vmatprep.subr.bf16.mxu0 0
  %6051 = vmatpush2.bf16.msra.mxu0 0
  %6052 = vmatprep.subr.bf16.mxu0 0
  %6053 = vmatpush2.bf16.msra.mxu0 0
  %6054 = vmatprep.mubr.bf16.mxu0 0
  %6055 = vmatmul.mubr.bf16.gmra.mxu0 %v5996
  %v6056 = vpop.f32.mrf.mxu0
  %v6057 = vadd.f32 0.0, %v6056
  %v6058 = vpop.f32.mrf.mxu0
  %v6059 = vpop.f32.mrf.mxu0
  %v6060 = vadd.f32 0.0, %v6059
  %v6061 = vpop.f32.mrf.mxu0
  %6062 = vmatprep.mubr.bf16.mxu0 0
  %6063 = vmatmul.mubr.bf16.gmra.mxu0 %v5999
  %v6064 = vpop.f32.mrf.mxu0
  %v6065 = vadd.f32 0.0, %v6064
  %v6066 = vpop.f32.mrf.mxu0
  %v6067 = vpop.f32.mrf.mxu0
  %v6068 = vadd.f32 0.0, %v6067
  %v6069 = vpop.f32.mrf.mxu0
  %6070 = vmatprep.mubr.bf16.mxu0 0
  %6071 = vmatmul.mubr.bf16.gmra.mxu0 %v6002
  %v6072 = vpop.f32.mrf.mxu0
  %v6073 = vadd.f32 0.0, %v6072
  %v6074 = vpop.f32.mrf.mxu0
  %v6075 = vpop.f32.mrf.mxu0
  %v6076 = vadd.f32 0.0, %v6075
  %v6077 = vpop.f32.mrf.mxu0
  %6078 = vmatprep.mubr.bf16.mxu0 0
  %6079 = vmatmul.mubr.bf16.gmra.mxu0 %v6005
  %v6080 = vpop.f32.mrf.mxu0
  %v6081 = vadd.f32 0.0, %v6080
  %v6082 = vpop.f32.mrf.mxu0
  %v6083 = vpop.f32.mrf.mxu0
  %v6084 = vadd.f32 0.0, %v6083
  %v6085 = vpop.f32.mrf.mxu0
  %6086 = vmatprep.mubr.bf16.mxu0 0
  %6087 = vmatmul.mubr.bf16.gmra.mxu0 %v6008
  %v6088 = vpop.f32.mrf.mxu0
  %v6089 = vadd.f32 0.0, %v6088
  %v6090 = vpop.f32.mrf.mxu0
  %v6091 = vpop.f32.mrf.mxu0
  %v6092 = vadd.f32 0.0, %v6091
  %v6093 = vpop.f32.mrf.mxu0
  %6094 = vmatprep.mubr.bf16.mxu0 0
  %6095 = vmatmul.mubr.bf16.gmra.mxu0 %v6011
  %v6096 = vpop.f32.mrf.mxu0
  %v6097 = vadd.f32 0.0, %v6096
  %v6098 = vpop.f32.mrf.mxu0
  %v6099 = vpop.f32.mrf.mxu0
  %v6100 = vadd.f32 0.0, %v6099
  %v6101 = vpop.f32.mrf.mxu0
  %6102 = vmatprep.mubr.bf16.mxu0 0
  %6103 = vmatmul.mubr.bf16.gmra.mxu0 %v6014
  %v6104 = vpop.f32.mrf.mxu0
  %v6105 = vadd.f32 0.0, %v6104
  %v6106 = vpop.f32.mrf.mxu0
  %v6107 = vpop.f32.mrf.mxu0
  %v6108 = vadd.f32 0.0, %v6107
  %v6109 = vpop.f32.mrf.mxu0
  %6110 = vmatprep.mubr.bf16.mxu0 0
  %6111 = vmatmul.mubr.bf16.gmra.mxu0 %v6017
  %v6112 = vpop.f32.mrf.mxu0
  %v6113 = vadd.f32 0.0, %v6112
  %v6114 = vpop.f32.mrf.mxu0
  %v6115 = vpop.f32.mrf.mxu0
  %v6116 = vadd.f32 0.0, %v6115
  %v6117 = vpop.f32.mrf.mxu0
  %6118 = vdwg.mxu0
  %v6119 = vadd.f32 %v5867, %v6057
  %v6120 = vadd.f32 %v5870, %v6060
  %v6121 = vadd.f32 %v5875, %v6065
  %v6122 = vadd.f32 %v5878, %v6068
  %v6123 = vadd.f32 %v5883, %v6073
  %v6124 = vadd.f32 %v5886, %v6076
  %v6125 = vadd.f32 %v5891, %v6081
  %v6126 = vadd.f32 %v5894, %v6084
  %v6127 = vadd.f32 %v5899, %v6089
  %v6128 = vadd.f32 %v5902, %v6092
  %v6129 = vadd.f32 %v5907, %v6097
  %v6130 = vadd.f32 %v5910, %v6100
  %v6131 = vadd.f32 %v5915, %v6105
  %v6132 = vadd.f32 %v5918, %v6108
  %v6133 = vadd.f32 %v5923, %v6113
  %v6134 = vadd.f32 %v5926, %v6116
  %v6135 = vpack.c.bf16 %v5547, %v5546
  %v6136 = vpack.c.bf16 %v5549, %v5548
  %v6137 = vpack.c.bf16 %v5551, %v5550
  %v6138 = vpack.c.bf16 %v5553, %v5552
  %v6139 = vpack.c.bf16 %v5555, %v5554
  %v6140 = vpack.c.bf16 %v5557, %v5556
  %v6141 = vpack.c.bf16 %v5559, %v5558
  %v6142 = vpack.c.bf16 %v5561, %v5560
  %s6143 = scalar_lea.vmem %s14, 12
  %v6144 = vld [vmem:[%s6143] sm:$0xf]
  %v6146 = vsel %vm2587, %v6135, 0
  %v6149 = vsel %vm2587, %v6136, 0
  %v6152 = vsel %vm2587, %v6137, 0
  %v6155 = vsel %vm2587, %v6138, 0
  %v6158 = vsel %vm2587, %v6139, 0
  %v6161 = vsel %vm2587, %v6140, 0
  %v6164 = vsel %vm2587, %v6141, 0
  %v6167 = vsel %vm2587, %v6142, 0
  %v6170 = vsel %vm2612, %v6144, 0
  %6172 = vmatprep.subr.bf16.mxu0 0
  %6173 = vmatpush1.bf16.msra.mxu0 0
  %6174 = vmatprep.subr.bf16.mxu0 0
  %6175 = vmatpush1.bf16.msra.mxu0 0
  %6176 = vmatprep.subr.bf16.mxu0 0
  %6177 = vmatpush1.bf16.msra.mxu0 0
  %6178 = vmatprep.subr.bf16.mxu0 0
  %6179 = vmatpush1.bf16.msra.mxu0 0
  %6180 = vmatprep.subr.bf16.mxu0 0
  %6181 = vmatpush1.bf16.msra.mxu0 0
  %6182 = vmatprep.subr.bf16.mxu0 0
  %6183 = vmatpush1.bf16.msra.mxu0 0
  %6184 = vmatprep.subr.bf16.mxu0 0
  %6185 = vmatpush1.bf16.msra.mxu0 0
  %6186 = vmatprep.subr.bf16.mxu0 0
  %6187 = vmatpush1.bf16.msra.mxu0 %v6170
  %6188 = vmatprep.subr.bf16.mxu0 0
  %6189 = vmatpush2.bf16.msra.mxu0 0
  %6190 = vmatprep.subr.bf16.mxu0 0
  %6191 = vmatpush2.bf16.msra.mxu0 0
  %6192 = vmatprep.subr.bf16.mxu0 0
  %6193 = vmatpush2.bf16.msra.mxu0 0
  %6194 = vmatprep.subr.bf16.mxu0 0
  %6195 = vmatpush2.bf16.msra.mxu0 0
  %6196 = vmatprep.subr.bf16.mxu0 0
  %6197 = vmatpush2.bf16.msra.mxu0 0
  %6198 = vmatprep.subr.bf16.mxu0 0
  %6199 = vmatpush2.bf16.msra.mxu0 0
  %6200 = vmatprep.subr.bf16.mxu0 0
  %6201 = vmatpush2.bf16.msra.mxu0 0
  %6202 = vmatprep.subr.bf16.mxu0 0
  %6203 = vmatpush2.bf16.msra.mxu0 0
  %6204 = vmatprep.mubr.bf16.mxu0 0
  %6205 = vmatmul.mubr.bf16.gmra.mxu0 %v6146
  %v6206 = vpop.f32.mrf.mxu0
  %v6207 = vadd.f32 0.0, %v6206
  %v6208 = vpop.f32.mrf.mxu0
  %v6209 = vpop.f32.mrf.mxu0
  %v6210 = vadd.f32 0.0, %v6209
  %v6211 = vpop.f32.mrf.mxu0
  %6212 = vmatprep.mubr.bf16.mxu0 0
  %6213 = vmatmul.mubr.bf16.gmra.mxu0 %v6149
  %v6214 = vpop.f32.mrf.mxu0
  %v6215 = vadd.f32 0.0, %v6214
  %v6216 = vpop.f32.mrf.mxu0
  %v6217 = vpop.f32.mrf.mxu0
  %v6218 = vadd.f32 0.0, %v6217
  %v6219 = vpop.f32.mrf.mxu0
  %6220 = vmatprep.mubr.bf16.mxu0 0
  %6221 = vmatmul.mubr.bf16.gmra.mxu0 %v6152
  %v6222 = vpop.f32.mrf.mxu0
  %v6223 = vadd.f32 0.0, %v6222
  %v6224 = vpop.f32.mrf.mxu0
  %v6225 = vpop.f32.mrf.mxu0
  %v6226 = vadd.f32 0.0, %v6225
  %v6227 = vpop.f32.mrf.mxu0
  %6228 = vmatprep.mubr.bf16.mxu0 0
  %6229 = vmatmul.mubr.bf16.gmra.mxu0 %v6155
  %v6230 = vpop.f32.mrf.mxu0
  %v6231 = vadd.f32 0.0, %v6230
  %v6232 = vpop.f32.mrf.mxu0
  %v6233 = vpop.f32.mrf.mxu0
  %v6234 = vadd.f32 0.0, %v6233
  %v6235 = vpop.f32.mrf.mxu0
  %6236 = vmatprep.mubr.bf16.mxu0 0
  %6237 = vmatmul.mubr.bf16.gmra.mxu0 %v6158
  %v6238 = vpop.f32.mrf.mxu0
  %v6239 = vadd.f32 0.0, %v6238
  %v6240 = vpop.f32.mrf.mxu0
  %v6241 = vpop.f32.mrf.mxu0
  %v6242 = vadd.f32 0.0, %v6241
  %v6243 = vpop.f32.mrf.mxu0
  %6244 = vmatprep.mubr.bf16.mxu0 0
  %6245 = vmatmul.mubr.bf16.gmra.mxu0 %v6161
  %v6246 = vpop.f32.mrf.mxu0
  %v6247 = vadd.f32 0.0, %v6246
  %v6248 = vpop.f32.mrf.mxu0
  %v6249 = vpop.f32.mrf.mxu0
  %v6250 = vadd.f32 0.0, %v6249
  %v6251 = vpop.f32.mrf.mxu0
  %6252 = vmatprep.mubr.bf16.mxu0 0
  %6253 = vmatmul.mubr.bf16.gmra.mxu0 %v6164
  %v6254 = vpop.f32.mrf.mxu0
  %v6255 = vadd.f32 0.0, %v6254
  %v6256 = vpop.f32.mrf.mxu0
  %v6257 = vpop.f32.mrf.mxu0
  %v6258 = vadd.f32 0.0, %v6257
  %v6259 = vpop.f32.mrf.mxu0
  %6260 = vmatprep.mubr.bf16.mxu0 0
  %6261 = vmatmul.mubr.bf16.gmra.mxu0 %v6167
  %v6262 = vpop.f32.mrf.mxu0
  %v6263 = vadd.f32 0.0, %v6262
  %v6264 = vpop.f32.mrf.mxu0
  %v6265 = vpop.f32.mrf.mxu0
  %v6266 = vadd.f32 0.0, %v6265
  %v6267 = vpop.f32.mrf.mxu0
  %6268 = vdwg.mxu0
  %v6269 = vadd.f32 %v6119, %v6207
  %v6270 = vadd.f32 %v6120, %v6210
  %v6271 = vadd.f32 %v6121, %v6215
  %v6272 = vadd.f32 %v6122, %v6218
  %v6273 = vadd.f32 %v6123, %v6223
  %v6274 = vadd.f32 %v6124, %v6226
  %v6275 = vadd.f32 %v6125, %v6231
  %v6276 = vadd.f32 %v6126, %v6234
  %v6277 = vadd.f32 %v6127, %v6239
  %v6278 = vadd.f32 %v6128, %v6242
  %v6279 = vadd.f32 %v6129, %v6247
  %v6280 = vadd.f32 %v6130, %v6250
  %v6281 = vadd.f32 %v6131, %v6255
  %v6282 = vadd.f32 %v6132, %v6258
  %v6283 = vadd.f32 %v6133, %v6263
  %v6284 = vadd.f32 %v6134, %v6266
  %v6289 = vrot.slane %v5553, 1
  %v6290 = vrot.slane %v5569, 1
  %v6291 = vsel %vm607, %v6289, %v6290
  %v6292 = vrot.slane %v5561, 1
  %v6293 = vrot.slane %v5577, 1
  %v6294 = vsel %vm607, %v6292, %v6293
  %v6297 = vpack.c.bf16 %v5620, %v5617
  %v6298 = vpack.c.bf16 %v5626, %v5623
  %v6299 = vpack.c.bf16 %v5632, %v5629
  %v6300 = vpack.c.bf16 %v6291, %v5635
  %v6301 = vpack.c.bf16 %v5641, %v5638
  %v6302 = vpack.c.bf16 %v5647, %v5644
  %v6303 = vpack.c.bf16 %v5653, %v5650
  %v6304 = vpack.c.bf16 %v6294, %v5656
  %s6305 = scalar_lea.vmem %s14, 16
  %v6306 = vld [vmem:[%s6305] sm:$0xf]
  %v6308 = vsel %vm2587, %v6297, 0
  %v6311 = vsel %vm2587, %v6298, 0
  %v6314 = vsel %vm2587, %v6299, 0
  %v6317 = vsel %vm2587, %v6300, 0
  %v6320 = vsel %vm2587, %v6301, 0
  %v6323 = vsel %vm2587, %v6302, 0
  %v6326 = vsel %vm2587, %v6303, 0
  %v6329 = vsel %vm2587, %v6304, 0
  %v6332 = vsel %vm2612, %v6306, 0
  %6334 = vmatprep.subr.bf16.mxu0 0
  %6335 = vmatpush1.bf16.msra.mxu0 0
  %6336 = vmatprep.subr.bf16.mxu0 0
  %6337 = vmatpush1.bf16.msra.mxu0 0
  %6338 = vmatprep.subr.bf16.mxu0 0
  %6339 = vmatpush1.bf16.msra.mxu0 0
  %6340 = vmatprep.subr.bf16.mxu0 0
  %6341 = vmatpush1.bf16.msra.mxu0 0
  %6342 = vmatprep.subr.bf16.mxu0 0
  %6343 = vmatpush1.bf16.msra.mxu0 0
  %6344 = vmatprep.subr.bf16.mxu0 0
  %6345 = vmatpush1.bf16.msra.mxu0 0
  %6346 = vmatprep.subr.bf16.mxu0 0
  %6347 = vmatpush1.bf16.msra.mxu0 0
  %6348 = vmatprep.subr.bf16.mxu0 0
  %6349 = vmatpush1.bf16.msra.mxu0 %v6332
  %6350 = vmatprep.subr.bf16.mxu0 0
  %6351 = vmatpush2.bf16.msra.mxu0 0
  %6352 = vmatprep.subr.bf16.mxu0 0
  %6353 = vmatpush2.bf16.msra.mxu0 0
  %6354 = vmatprep.subr.bf16.mxu0 0
  %6355 = vmatpush2.bf16.msra.mxu0 0
  %6356 = vmatprep.subr.bf16.mxu0 0
  %6357 = vmatpush2.bf16.msra.mxu0 0
  %6358 = vmatprep.subr.bf16.mxu0 0
  %6359 = vmatpush2.bf16.msra.mxu0 0
  %6360 = vmatprep.subr.bf16.mxu0 0
  %6361 = vmatpush2.bf16.msra.mxu0 0
  %6362 = vmatprep.subr.bf16.mxu0 0
  %6363 = vmatpush2.bf16.msra.mxu0 0
  %6364 = vmatprep.subr.bf16.mxu0 0
  %6365 = vmatpush2.bf16.msra.mxu0 0
  %6366 = vmatprep.mubr.bf16.mxu0 0
  %6367 = vmatmul.mubr.bf16.gmra.mxu0 %v6308
  %v6368 = vpop.f32.mrf.mxu0
  %v6369 = vadd.f32 0.0, %v6368
  %v6370 = vpop.f32.mrf.mxu0
  %v6371 = vpop.f32.mrf.mxu0
  %v6372 = vadd.f32 0.0, %v6371
  %v6373 = vpop.f32.mrf.mxu0
  %6374 = vmatprep.mubr.bf16.mxu0 0
  %6375 = vmatmul.mubr.bf16.gmra.mxu0 %v6311
  %v6376 = vpop.f32.mrf.mxu0
  %v6377 = vadd.f32 0.0, %v6376
  %v6378 = vpop.f32.mrf.mxu0
  %v6379 = vpop.f32.mrf.mxu0
  %v6380 = vadd.f32 0.0, %v6379
  %v6381 = vpop.f32.mrf.mxu0
  %6382 = vmatprep.mubr.bf16.mxu0 0
  %6383 = vmatmul.mubr.bf16.gmra.mxu0 %v6314
  %v6384 = vpop.f32.mrf.mxu0
  %v6385 = vadd.f32 0.0, %v6384
  %v6386 = vpop.f32.mrf.mxu0
  %v6387 = vpop.f32.mrf.mxu0
  %v6388 = vadd.f32 0.0, %v6387
  %v6389 = vpop.f32.mrf.mxu0
  %6390 = vmatprep.mubr.bf16.mxu0 0
  %6391 = vmatmul.mubr.bf16.gmra.mxu0 %v6317
  %v6392 = vpop.f32.mrf.mxu0
  %v6393 = vadd.f32 0.0, %v6392
  %v6394 = vpop.f32.mrf.mxu0
  %v6395 = vpop.f32.mrf.mxu0
  %v6396 = vadd.f32 0.0, %v6395
  %v6397 = vpop.f32.mrf.mxu0
  %6398 = vmatprep.mubr.bf16.mxu0 0
  %6399 = vmatmul.mubr.bf16.gmra.mxu0 %v6320
  %v6400 = vpop.f32.mrf.mxu0
  %v6401 = vadd.f32 0.0, %v6400
  %v6402 = vpop.f32.mrf.mxu0
  %v6403 = vpop.f32.mrf.mxu0
  %v6404 = vadd.f32 0.0, %v6403
  %v6405 = vpop.f32.mrf.mxu0
  %6406 = vmatprep.mubr.bf16.mxu0 0
  %6407 = vmatmul.mubr.bf16.gmra.mxu0 %v6323
  %v6408 = vpop.f32.mrf.mxu0
  %v6409 = vadd.f32 0.0, %v6408
  %v6410 = vpop.f32.mrf.mxu0
  %v6411 = vpop.f32.mrf.mxu0
  %v6412 = vadd.f32 0.0, %v6411
  %v6413 = vpop.f32.mrf.mxu0
  %6414 = vmatprep.mubr.bf16.mxu0 0
  %6415 = vmatmul.mubr.bf16.gmra.mxu0 %v6326
  %v6416 = vpop.f32.mrf.mxu0
  %v6417 = vadd.f32 0.0, %v6416
  %v6418 = vpop.f32.mrf.mxu0
  %v6419 = vpop.f32.mrf.mxu0
  %v6420 = vadd.f32 0.0, %v6419
  %v6421 = vpop.f32.mrf.mxu0
  %6422 = vmatprep.mubr.bf16.mxu0 0
  %6423 = vmatmul.mubr.bf16.gmra.mxu0 %v6329
  %v6424 = vpop.f32.mrf.mxu0
  %v6425 = vadd.f32 0.0, %v6424
  %v6426 = vpop.f32.mrf.mxu0
  %v6427 = vpop.f32.mrf.mxu0
  %v6428 = vadd.f32 0.0, %v6427
  %v6429 = vpop.f32.mrf.mxu0
  %6430 = vdwg.mxu0
  %v6431 = vadd.f32 %v6269, %v6369
  %v6432 = vadd.f32 %v6270, %v6372
  %v6433 = vadd.f32 %v6271, %v6377
  %v6434 = vadd.f32 %v6272, %v6380
  %v6435 = vadd.f32 %v6273, %v6385
  %v6436 = vadd.f32 %v6274, %v6388
  %v6437 = vadd.f32 %v6275, %v6393
  %v6438 = vadd.f32 %v6276, %v6396
  %v6439 = vadd.f32 %v6277, %v6401
  %v6440 = vadd.f32 %v6278, %v6404
  %v6441 = vadd.f32 %v6279, %v6409
  %v6442 = vadd.f32 %v6280, %v6412
  %v6443 = vadd.f32 %v6281, %v6417
  %v6444 = vadd.f32 %v6282, %v6420
  %v6445 = vadd.f32 %v6283, %v6425
  %v6446 = vadd.f32 %v6284, %v6428
  %v6447 = vrot.slane %v5553, 2
  %v6448 = vrot.slane %v5569, 2
  %v6449 = vsel %vm2837, %v6447, %v6448
  %v6450 = vrot.slane %v5561, 2
  %v6451 = vrot.slane %v5577, 2
  %v6452 = vsel %vm2837, %v6450, %v6451
  %v6455 = vpack.c.bf16 %v5934, %v5931
  %v6456 = vpack.c.bf16 %v5940, %v5937
  %v6457 = vpack.c.bf16 %v5946, %v5943
  %v6458 = vpack.c.bf16 %v6449, %v5949
  %v6459 = vpack.c.bf16 %v5955, %v5952
  %v6460 = vpack.c.bf16 %v5961, %v5958
  %v6461 = vpack.c.bf16 %v5967, %v5964
  %v6462 = vpack.c.bf16 %v6452, %v5970
  %s6463 = scalar_lea.vmem %s14, 20
  %v6464 = vld [vmem:[%s6463] sm:$0xf]
  %v6466 = vsel %vm2587, %v6455, 0
  %v6469 = vsel %vm2587, %v6456, 0
  %v6472 = vsel %vm2587, %v6457, 0
  %v6475 = vsel %vm2587, %v6458, 0
  %v6478 = vsel %vm2587, %v6459, 0
  %v6481 = vsel %vm2587, %v6460, 0
  %v6484 = vsel %vm2587, %v6461, 0
  %v6487 = vsel %vm2587, %v6462, 0
  %v6490 = vsel %vm2612, %v6464, 0
  %6492 = vmatprep.subr.bf16.mxu0 0
  %6493 = vmatpush1.bf16.msra.mxu0 0
  %6494 = vmatprep.subr.bf16.mxu0 0
  %6495 = vmatpush1.bf16.msra.mxu0 0
  %6496 = vmatprep.subr.bf16.mxu0 0
  %6497 = vmatpush1.bf16.msra.mxu0 0
  %6498 = vmatprep.subr.bf16.mxu0 0
  %6499 = vmatpush1.bf16.msra.mxu0 0
  %6500 = vmatprep.subr.bf16.mxu0 0
  %6501 = vmatpush1.bf16.msra.mxu0 0
  %6502 = vmatprep.subr.bf16.mxu0 0
  %6503 = vmatpush1.bf16.msra.mxu0 0
  %6504 = vmatprep.subr.bf16.mxu0 0
  %6505 = vmatpush1.bf16.msra.mxu0 0
  %6506 = vmatprep.subr.bf16.mxu0 0
  %6507 = vmatpush1.bf16.msra.mxu0 %v6490
  %6508 = vmatprep.subr.bf16.mxu0 0
  %6509 = vmatpush2.bf16.msra.mxu0 0
  %6510 = vmatprep.subr.bf16.mxu0 0
  %6511 = vmatpush2.bf16.msra.mxu0 0
  %6512 = vmatprep.subr.bf16.mxu0 0
  %6513 = vmatpush2.bf16.msra.mxu0 0
  %6514 = vmatprep.subr.bf16.mxu0 0
  %6515 = vmatpush2.bf16.msra.mxu0 0
  %6516 = vmatprep.subr.bf16.mxu0 0
  %6517 = vmatpush2.bf16.msra.mxu0 0
  %6518 = vmatprep.subr.bf16.mxu0 0
  %6519 = vmatpush2.bf16.msra.mxu0 0
  %6520 = vmatprep.subr.bf16.mxu0 0
  %6521 = vmatpush2.bf16.msra.mxu0 0
  %6522 = vmatprep.subr.bf16.mxu0 0
  %6523 = vmatpush2.bf16.msra.mxu0 0
  %6524 = vmatprep.mubr.bf16.mxu0 0
  %6525 = vmatmul.mubr.bf16.gmra.mxu0 %v6466
  %v6526 = vpop.f32.mrf.mxu0
  %v6527 = vadd.f32 0.0, %v6526
  %v6528 = vpop.f32.mrf.mxu0
  %v6529 = vpop.f32.mrf.mxu0
  %v6530 = vadd.f32 0.0, %v6529
  %v6531 = vpop.f32.mrf.mxu0
  %6532 = vmatprep.mubr.bf16.mxu0 0
  %6533 = vmatmul.mubr.bf16.gmra.mxu0 %v6469
  %v6534 = vpop.f32.mrf.mxu0
  %v6535 = vadd.f32 0.0, %v6534
  %v6536 = vpop.f32.mrf.mxu0
  %v6537 = vpop.f32.mrf.mxu0
  %v6538 = vadd.f32 0.0, %v6537
  %v6539 = vpop.f32.mrf.mxu0
  %6540 = vmatprep.mubr.bf16.mxu0 0
  %6541 = vmatmul.mubr.bf16.gmra.mxu0 %v6472
  %v6542 = vpop.f32.mrf.mxu0
  %v6543 = vadd.f32 0.0, %v6542
  %v6544 = vpop.f32.mrf.mxu0
  %v6545 = vpop.f32.mrf.mxu0
  %v6546 = vadd.f32 0.0, %v6545
  %v6547 = vpop.f32.mrf.mxu0
  %6548 = vmatprep.mubr.bf16.mxu0 0
  %6549 = vmatmul.mubr.bf16.gmra.mxu0 %v6475
  %v6550 = vpop.f32.mrf.mxu0
  %v6551 = vadd.f32 0.0, %v6550
  %v6552 = vpop.f32.mrf.mxu0
  %v6553 = vpop.f32.mrf.mxu0
  %v6554 = vadd.f32 0.0, %v6553
  %v6555 = vpop.f32.mrf.mxu0
  %6556 = vmatprep.mubr.bf16.mxu0 0
  %6557 = vmatmul.mubr.bf16.gmra.mxu0 %v6478
  %v6558 = vpop.f32.mrf.mxu0
  %v6559 = vadd.f32 0.0, %v6558
  %v6560 = vpop.f32.mrf.mxu0
  %v6561 = vpop.f32.mrf.mxu0
  %v6562 = vadd.f32 0.0, %v6561
  %v6563 = vpop.f32.mrf.mxu0
  %6564 = vmatprep.mubr.bf16.mxu0 0
  %6565 = vmatmul.mubr.bf16.gmra.mxu0 %v6481
  %v6566 = vpop.f32.mrf.mxu0
  %v6567 = vadd.f32 0.0, %v6566
  %v6568 = vpop.f32.mrf.mxu0
  %v6569 = vpop.f32.mrf.mxu0
  %v6570 = vadd.f32 0.0, %v6569
  %v6571 = vpop.f32.mrf.mxu0
  %6572 = vmatprep.mubr.bf16.mxu0 0
  %6573 = vmatmul.mubr.bf16.gmra.mxu0 %v6484
  %v6574 = vpop.f32.mrf.mxu0
  %v6575 = vadd.f32 0.0, %v6574
  %v6576 = vpop.f32.mrf.mxu0
  %v6577 = vpop.f32.mrf.mxu0
  %v6578 = vadd.f32 0.0, %v6577
  %v6579 = vpop.f32.mrf.mxu0
  %6580 = vmatprep.mubr.bf16.mxu0 0
  %6581 = vmatmul.mubr.bf16.gmra.mxu0 %v6487
  %v6582 = vpop.f32.mrf.mxu0
  %v6583 = vadd.f32 0.0, %v6582
  %v6584 = vpop.f32.mrf.mxu0
  %v6585 = vpop.f32.mrf.mxu0
  %v6586 = vadd.f32 0.0, %v6585
  %v6587 = vpop.f32.mrf.mxu0
  %6588 = vdwg.mxu0
  %v6589 = vadd.f32 %v6431, %v6527
  %v6590 = vadd.f32 %v6432, %v6530
  %v6591 = vadd.f32 %v6433, %v6535
  %v6592 = vadd.f32 %v6434, %v6538
  %v6593 = vadd.f32 %v6435, %v6543
  %v6594 = vadd.f32 %v6436, %v6546
  %v6595 = vadd.f32 %v6437, %v6551
  %v6596 = vadd.f32 %v6438, %v6554
  %v6597 = vadd.f32 %v6439, %v6559
  %v6598 = vadd.f32 %v6440, %v6562
  %v6599 = vadd.f32 %v6441, %v6567
  %v6600 = vadd.f32 %v6442, %v6570
  %v6601 = vadd.f32 %v6443, %v6575
  %v6602 = vadd.f32 %v6444, %v6578
  %v6603 = vadd.f32 %v6445, %v6583
  %v6604 = vadd.f32 %v6446, %v6586
  %v6605 = vpack.c.bf16 %v502, %v5553
  %v6606 = vpack.c.bf16 %v502, %v5561
  %s6607 = scalar_lea.vmem %s14, 24
  %v6608 = vld [vmem:[%s6607] sm:$0xf]
  %v6610 = vsel %vm2587, %v6605, 0
  %v6613 = vsel %vm2587, %v6606, 0
  %v6616 = vsel %vm2612, %v6608, 0
  %6618 = vmatprep.subr.bf16.mxu0 0
  %6619 = vmatpush1.bf16.msra.mxu0 0
  %6620 = vmatprep.subr.bf16.mxu0 0
  %6621 = vmatpush1.bf16.msra.mxu0 0
  %6622 = vmatprep.subr.bf16.mxu0 0
  %6623 = vmatpush1.bf16.msra.mxu0 0
  %6624 = vmatprep.subr.bf16.mxu0 0
  %6625 = vmatpush1.bf16.msra.mxu0 0
  %6626 = vmatprep.subr.bf16.mxu0 0
  %6627 = vmatpush1.bf16.msra.mxu0 0
  %6628 = vmatprep.subr.bf16.mxu0 0
  %6629 = vmatpush1.bf16.msra.mxu0 0
  %6630 = vmatprep.subr.bf16.mxu0 0
  %6631 = vmatpush1.bf16.msra.mxu0 0
  %6632 = vmatprep.subr.bf16.mxu0 0
  %6633 = vmatpush1.bf16.msra.mxu0 %v6616
  %6634 = vmatprep.subr.bf16.mxu0 0
  %6635 = vmatpush2.bf16.msra.mxu0 0
  %6636 = vmatprep.subr.bf16.mxu0 0
  %6637 = vmatpush2.bf16.msra.mxu0 0
  %6638 = vmatprep.subr.bf16.mxu0 0
  %6639 = vmatpush2.bf16.msra.mxu0 0
  %6640 = vmatprep.subr.bf16.mxu0 0
  %6641 = vmatpush2.bf16.msra.mxu0 0
  %6642 = vmatprep.subr.bf16.mxu0 0
  %6643 = vmatpush2.bf16.msra.mxu0 0
  %6644 = vmatprep.subr.bf16.mxu0 0
  %6645 = vmatpush2.bf16.msra.mxu0 0
  %6646 = vmatprep.subr.bf16.mxu0 0
  %6647 = vmatpush2.bf16.msra.mxu0 0
  %6648 = vmatprep.subr.bf16.mxu0 0
  %6649 = vmatpush2.bf16.msra.mxu0 0
  %6650 = vmatprep.mubr.bf16.mxu0 0
  %6651 = vmatmul.mubr.bf16.gmra.mxu0 %v5809
  %v6652 = vpop.f32.mrf.mxu0
  %v6653 = vadd.f32 0.0, %v6652
  %v6654 = vpop.f32.mrf.mxu0
  %v6655 = vpop.f32.mrf.mxu0
  %v6656 = vadd.f32 0.0, %v6655
  %v6657 = vpop.f32.mrf.mxu0
  %6658 = vmatprep.mubr.bf16.mxu0 0
  %6659 = vmatmul.mubr.bf16.gmra.mxu0 %v5812
  %v6660 = vpop.f32.mrf.mxu0
  %v6661 = vadd.f32 0.0, %v6660
  %v6662 = vpop.f32.mrf.mxu0
  %v6663 = vpop.f32.mrf.mxu0
  %v6664 = vadd.f32 0.0, %v6663
  %v6665 = vpop.f32.mrf.mxu0
  %6666 = vmatprep.mubr.bf16.mxu0 0
  %6667 = vmatmul.mubr.bf16.gmra.mxu0 %v5815
  %v6668 = vpop.f32.mrf.mxu0
  %v6669 = vadd.f32 0.0, %v6668
  %v6670 = vpop.f32.mrf.mxu0
  %v6671 = vpop.f32.mrf.mxu0
  %v6672 = vadd.f32 0.0, %v6671
  %v6673 = vpop.f32.mrf.mxu0
  %6674 = vmatprep.mubr.bf16.mxu0 0
  %6675 = vmatmul.mubr.bf16.gmra.mxu0 %v6610
  %v6676 = vpop.f32.mrf.mxu0
  %v6677 = vadd.f32 0.0, %v6676
  %v6678 = vpop.f32.mrf.mxu0
  %v6679 = vpop.f32.mrf.mxu0
  %v6680 = vadd.f32 0.0, %v6679
  %v6681 = vpop.f32.mrf.mxu0
  %6682 = vmatprep.mubr.bf16.mxu0 0
  %6683 = vmatmul.mubr.bf16.gmra.mxu0 %v5821
  %v6684 = vpop.f32.mrf.mxu0
  %v6685 = vadd.f32 0.0, %v6684
  %v6686 = vpop.f32.mrf.mxu0
  %v6687 = vpop.f32.mrf.mxu0
  %v6688 = vadd.f32 0.0, %v6687
  %v6689 = vpop.f32.mrf.mxu0
  %6690 = vmatprep.mubr.bf16.mxu0 0
  %6691 = vmatmul.mubr.bf16.gmra.mxu0 %v5824
  %v6692 = vpop.f32.mrf.mxu0
  %v6693 = vadd.f32 0.0, %v6692
  %v6694 = vpop.f32.mrf.mxu0
  %v6695 = vpop.f32.mrf.mxu0
  %v6696 = vadd.f32 0.0, %v6695
  %v6697 = vpop.f32.mrf.mxu0
  %6698 = vmatprep.mubr.bf16.mxu0 0
  %6699 = vmatmul.mubr.bf16.gmra.mxu0 %v5827
  %v6700 = vpop.f32.mrf.mxu0
  %v6701 = vadd.f32 0.0, %v6700
  %v6702 = vpop.f32.mrf.mxu0
  %v6703 = vpop.f32.mrf.mxu0
  %v6704 = vadd.f32 0.0, %v6703
  %v6705 = vpop.f32.mrf.mxu0
  %6706 = vmatprep.mubr.bf16.mxu0 0
  %6707 = vmatmul.mubr.bf16.gmra.mxu0 %v6613
  %v6708 = vpop.f32.mrf.mxu0
  %v6709 = vadd.f32 0.0, %v6708
  %v6710 = vpop.f32.mrf.mxu0
  %v6711 = vpop.f32.mrf.mxu0
  %v6712 = vadd.f32 0.0, %v6711
  %v6713 = vpop.f32.mrf.mxu0
  %6714 = vdwg.mxu0
  %v6715 = vadd.f32 %v6589, %v6653
  %v6716 = vadd.f32 %v6590, %v6656
  %v6717 = vadd.f32 %v6591, %v6661
  %v6718 = vadd.f32 %v6592, %v6664
  %v6719 = vadd.f32 %v6593, %v6669
  %v6720 = vadd.f32 %v6594, %v6672
  %v6721 = vadd.f32 %v6595, %v6677
  %v6722 = vadd.f32 %v6596, %v6680
  %v6723 = vadd.f32 %v6597, %v6685
  %v6724 = vadd.f32 %v6598, %v6688
  %v6725 = vadd.f32 %v6599, %v6693
  %v6726 = vadd.f32 %v6600, %v6696
  %v6727 = vadd.f32 %v6601, %v6701
  %v6728 = vadd.f32 %v6602, %v6704
  %v6729 = vadd.f32 %v6603, %v6709
  %v6730 = vadd.f32 %v6604, %v6712
  %v6731 = vpack.c.bf16 %v2519, %v6291
  %v6732 = vpack.c.bf16 %v2519, %v6294
  %s6733 = scalar_lea.vmem %s14, 28
  %v6734 = vld [vmem:[%s6733] sm:$0xf]
  %v6736 = vsel %vm2587, %v6731, 0
  %v6739 = vsel %vm2587, %v6732, 0
  %v6742 = vsel %vm2612, %v6734, 0
  %6744 = vmatprep.subr.bf16.mxu0 0
  %6745 = vmatpush1.bf16.msra.mxu0 0
  %6746 = vmatprep.subr.bf16.mxu0 0
  %6747 = vmatpush1.bf16.msra.mxu0 0
  %6748 = vmatprep.subr.bf16.mxu0 0
  %6749 = vmatpush1.bf16.msra.mxu0 0
  %6750 = vmatprep.subr.bf16.mxu0 0
  %6751 = vmatpush1.bf16.msra.mxu0 0
  %6752 = vmatprep.subr.bf16.mxu0 0
  %6753 = vmatpush1.bf16.msra.mxu0 0
  %6754 = vmatprep.subr.bf16.mxu0 0
  %6755 = vmatpush1.bf16.msra.mxu0 0
  %6756 = vmatprep.subr.bf16.mxu0 0
  %6757 = vmatpush1.bf16.msra.mxu0 0
  %6758 = vmatprep.subr.bf16.mxu0 0
  %6759 = vmatpush1.bf16.msra.mxu0 %v6742
  %6760 = vmatprep.subr.bf16.mxu0 0
  %6761 = vmatpush2.bf16.msra.mxu0 0
  %6762 = vmatprep.subr.bf16.mxu0 0
  %6763 = vmatpush2.bf16.msra.mxu0 0
  %6764 = vmatprep.subr.bf16.mxu0 0
  %6765 = vmatpush2.bf16.msra.mxu0 0
  %6766 = vmatprep.subr.bf16.mxu0 0
  %6767 = vmatpush2.bf16.msra.mxu0 0
  %6768 = vmatprep.subr.bf16.mxu0 0
  %6769 = vmatpush2.bf16.msra.mxu0 0
  %6770 = vmatprep.subr.bf16.mxu0 0
  %6771 = vmatpush2.bf16.msra.mxu0 0
  %6772 = vmatprep.subr.bf16.mxu0 0
  %6773 = vmatpush2.bf16.msra.mxu0 0
  %6774 = vmatprep.subr.bf16.mxu0 0
  %6775 = vmatpush2.bf16.msra.mxu0 0
  %6776 = vmatprep.mubr.bf16.mxu0 0
  %6777 = vmatmul.mubr.bf16.gmra.mxu0 %v5685
  %v6778 = vpop.f32.mrf.mxu0
  %v6779 = vadd.f32 0.0, %v6778
  %v6780 = vpop.f32.mrf.mxu0
  %v6781 = vpop.f32.mrf.mxu0
  %v6782 = vadd.f32 0.0, %v6781
  %v6783 = vpop.f32.mrf.mxu0
  %6784 = vmatprep.mubr.bf16.mxu0 0
  %6785 = vmatmul.mubr.bf16.gmra.mxu0 %v5688
  %v6786 = vpop.f32.mrf.mxu0
  %v6787 = vadd.f32 0.0, %v6786
  %v6788 = vpop.f32.mrf.mxu0
  %v6789 = vpop.f32.mrf.mxu0
  %v6790 = vadd.f32 0.0, %v6789
  %v6791 = vpop.f32.mrf.mxu0
  %6792 = vmatprep.mubr.bf16.mxu0 0
  %6793 = vmatmul.mubr.bf16.gmra.mxu0 %v5691
  %v6794 = vpop.f32.mrf.mxu0
  %v6795 = vadd.f32 0.0, %v6794
  %v6796 = vpop.f32.mrf.mxu0
  %v6797 = vpop.f32.mrf.mxu0
  %v6798 = vadd.f32 0.0, %v6797
  %v6799 = vpop.f32.mrf.mxu0
  %6800 = vmatprep.mubr.bf16.mxu0 0
  %6801 = vmatmul.mubr.bf16.gmra.mxu0 %v6736
  %v6802 = vpop.f32.mrf.mxu0
  %v6803 = vadd.f32 0.0, %v6802
  %v6804 = vpop.f32.mrf.mxu0
  %v6805 = vpop.f32.mrf.mxu0
  %v6806 = vadd.f32 0.0, %v6805
  %v6807 = vpop.f32.mrf.mxu0
  %6808 = vmatprep.mubr.bf16.mxu0 0
  %6809 = vmatmul.mubr.bf16.gmra.mxu0 %v5697
  %v6810 = vpop.f32.mrf.mxu0
  %v6811 = vadd.f32 0.0, %v6810
  %v6812 = vpop.f32.mrf.mxu0
  %v6813 = vpop.f32.mrf.mxu0
  %v6814 = vadd.f32 0.0, %v6813
  %v6815 = vpop.f32.mrf.mxu0
  %6816 = vmatprep.mubr.bf16.mxu0 0
  %6817 = vmatmul.mubr.bf16.gmra.mxu0 %v5700
  %v6818 = vpop.f32.mrf.mxu0
  %v6819 = vadd.f32 0.0, %v6818
  %v6820 = vpop.f32.mrf.mxu0
  %v6821 = vpop.f32.mrf.mxu0
  %v6822 = vadd.f32 0.0, %v6821
  %v6823 = vpop.f32.mrf.mxu0
  %6824 = vmatprep.mubr.bf16.mxu0 0
  %6825 = vmatmul.mubr.bf16.gmra.mxu0 %v5703
  %v6826 = vpop.f32.mrf.mxu0
  %v6827 = vadd.f32 0.0, %v6826
  %v6828 = vpop.f32.mrf.mxu0
  %v6829 = vpop.f32.mrf.mxu0
  %v6830 = vadd.f32 0.0, %v6829
  %v6831 = vpop.f32.mrf.mxu0
  %6832 = vmatprep.mubr.bf16.mxu0 0
  %6833 = vmatmul.mubr.bf16.gmra.mxu0 %v6739
  %v6834 = vpop.f32.mrf.mxu0
  %v6835 = vadd.f32 0.0, %v6834
  %v6836 = vpop.f32.mrf.mxu0
  %v6837 = vpop.f32.mrf.mxu0
  %v6838 = vadd.f32 0.0, %v6837
  %v6839 = vpop.f32.mrf.mxu0
  %6840 = vdwg.mxu0
  %v6841 = vadd.f32 %v6715, %v6779
  %v6842 = vadd.f32 %v6716, %v6782
  %v6843 = vadd.f32 %v6717, %v6787
  %v6844 = vadd.f32 %v6718, %v6790
  %v6845 = vadd.f32 %v6719, %v6795
  %v6846 = vadd.f32 %v6720, %v6798
  %v6847 = vadd.f32 %v6721, %v6803
  %v6848 = vadd.f32 %v6722, %v6806
  %v6849 = vadd.f32 %v6723, %v6811
  %v6850 = vadd.f32 %v6724, %v6814
  %v6851 = vadd.f32 %v6725, %v6819
  %v6852 = vadd.f32 %v6726, %v6822
  %v6853 = vadd.f32 %v6727, %v6827
  %v6854 = vadd.f32 %v6728, %v6830
  %v6855 = vadd.f32 %v6729, %v6835
  %v6856 = vadd.f32 %v6730, %v6838
  %v6857 = vpack.c.bf16 %v2840, %v6449
  %v6858 = vpack.c.bf16 %v2840, %v6452
  %s6859 = scalar_lea.vmem %s14, 32
  %v6860 = vld [vmem:[%s6859] sm:$0xf]
  %v6862 = vsel %vm2587, %v6857, 0
  %v6865 = vsel %vm2587, %v6858, 0
  %v6868 = vsel %vm2612, %v6860, 0
  %6870 = vmatprep.subr.bf16.mxu0 0
  %6871 = vmatpush1.bf16.msra.mxu0 0
  %6872 = vmatprep.subr.bf16.mxu0 0
  %6873 = vmatpush1.bf16.msra.mxu0 0
  %6874 = vmatprep.subr.bf16.mxu0 0
  %6875 = vmatpush1.bf16.msra.mxu0 0
  %6876 = vmatprep.subr.bf16.mxu0 0
  %6877 = vmatpush1.bf16.msra.mxu0 0
  %6878 = vmatprep.subr.bf16.mxu0 0
  %6879 = vmatpush1.bf16.msra.mxu0 0
  %6880 = vmatprep.subr.bf16.mxu0 0
  %6881 = vmatpush1.bf16.msra.mxu0 0
  %6882 = vmatprep.subr.bf16.mxu0 0
  %6883 = vmatpush1.bf16.msra.mxu0 0
  %6884 = vmatprep.subr.bf16.mxu0 0
  %6885 = vmatpush1.bf16.msra.mxu0 %v6868
  %6886 = vmatprep.subr.bf16.mxu0 0
  %6887 = vmatpush2.bf16.msra.mxu0 0
  %6888 = vmatprep.subr.bf16.mxu0 0
  %6889 = vmatpush2.bf16.msra.mxu0 0
  %6890 = vmatprep.subr.bf16.mxu0 0
  %6891 = vmatpush2.bf16.msra.mxu0 0
  %6892 = vmatprep.subr.bf16.mxu0 0
  %6893 = vmatpush2.bf16.msra.mxu0 0
  %6894 = vmatprep.subr.bf16.mxu0 0
  %6895 = vmatpush2.bf16.msra.mxu0 0
  %6896 = vmatprep.subr.bf16.mxu0 0
  %6897 = vmatpush2.bf16.msra.mxu0 0
  %6898 = vmatprep.subr.bf16.mxu0 0
  %6899 = vmatpush2.bf16.msra.mxu0 0
  %6900 = vmatprep.subr.bf16.mxu0 0
  %6901 = vmatpush2.bf16.msra.mxu0 0
  %6902 = vmatprep.mubr.bf16.mxu0 0
  %6903 = vmatmul.mubr.bf16.gmra.mxu0 %v5999
  %v6904 = vpop.f32.mrf.mxu0
  %v6905 = vadd.f32 0.0, %v6904
  %v6906 = vpop.f32.mrf.mxu0
  %v6907 = vpop.f32.mrf.mxu0
  %v6908 = vadd.f32 0.0, %v6907
  %v6909 = vpop.f32.mrf.mxu0
  %6910 = vmatprep.mubr.bf16.mxu0 0
  %6911 = vmatmul.mubr.bf16.gmra.mxu0 %v6002
  %v6912 = vpop.f32.mrf.mxu0
  %v6913 = vadd.f32 0.0, %v6912
  %v6914 = vpop.f32.mrf.mxu0
  %v6915 = vpop.f32.mrf.mxu0
  %v6916 = vadd.f32 0.0, %v6915
  %v6917 = vpop.f32.mrf.mxu0
  %6918 = vmatprep.mubr.bf16.mxu0 0
  %6919 = vmatmul.mubr.bf16.gmra.mxu0 %v6005
  %v6920 = vpop.f32.mrf.mxu0
  %v6921 = vadd.f32 0.0, %v6920
  %v6922 = vpop.f32.mrf.mxu0
  %v6923 = vpop.f32.mrf.mxu0
  %v6924 = vadd.f32 0.0, %v6923
  %v6925 = vpop.f32.mrf.mxu0
  %6926 = vmatprep.mubr.bf16.mxu0 0
  %6927 = vmatmul.mubr.bf16.gmra.mxu0 %v6862
  %v6928 = vpop.f32.mrf.mxu0
  %v6929 = vadd.f32 0.0, %v6928
  %v6930 = vpop.f32.mrf.mxu0
  %v6931 = vpop.f32.mrf.mxu0
  %v6932 = vadd.f32 0.0, %v6931
  %v6933 = vpop.f32.mrf.mxu0
  %6934 = vmatprep.mubr.bf16.mxu0 0
  %6935 = vmatmul.mubr.bf16.gmra.mxu0 %v6011
  %v6936 = vpop.f32.mrf.mxu0
  %v6937 = vadd.f32 0.0, %v6936
  %v6938 = vpop.f32.mrf.mxu0
  %v6939 = vpop.f32.mrf.mxu0
  %v6940 = vadd.f32 0.0, %v6939
  %v6941 = vpop.f32.mrf.mxu0
  %6942 = vmatprep.mubr.bf16.mxu0 0
  %6943 = vmatmul.mubr.bf16.gmra.mxu0 %v6014
  %v6944 = vpop.f32.mrf.mxu0
  %v6945 = vadd.f32 0.0, %v6944
  %v6946 = vpop.f32.mrf.mxu0
  %v6947 = vpop.f32.mrf.mxu0
  %v6948 = vadd.f32 0.0, %v6947
  %v6949 = vpop.f32.mrf.mxu0
  %6950 = vmatprep.mubr.bf16.mxu0 0
  %6951 = vmatmul.mubr.bf16.gmra.mxu0 %v6017
  %v6952 = vpop.f32.mrf.mxu0
  %v6953 = vadd.f32 0.0, %v6952
  %v6954 = vpop.f32.mrf.mxu0
  %v6955 = vpop.f32.mrf.mxu0
  %v6956 = vadd.f32 0.0, %v6955
  %v6957 = vpop.f32.mrf.mxu0
  %6958 = vmatprep.mubr.bf16.mxu0 0
  %6959 = vmatmul.mubr.bf16.gmra.mxu0 %v6865
  %v6960 = vpop.f32.mrf.mxu0
  %v6961 = vadd.f32 0.0, %v6960
  %v6962 = vpop.f32.mrf.mxu0
  %v6963 = vpop.f32.mrf.mxu0
  %v6964 = vadd.f32 0.0, %v6963
  %v6965 = vpop.f32.mrf.mxu0
  %6966 = vdwg.mxu0
  %v6967 = vadd.f32 %v6841, %v6905
  %v6968 = vadd.f32 %v6842, %v6908
  %v6969 = vadd.f32 %v6843, %v6913
  %v6970 = vadd.f32 %v6844, %v6916
  %v6971 = vadd.f32 %v6845, %v6921
  %v6972 = vadd.f32 %v6846, %v6924
  %v6973 = vadd.f32 %v6847, %v6929
  %v6974 = vadd.f32 %v6848, %v6932
  %v6975 = vadd.f32 %v6849, %v6937
  %v6976 = vadd.f32 %v6850, %v6940
  %v6977 = vadd.f32 %v6851, %v6945
  %v6978 = vadd.f32 %v6852, %v6948
  %v6979 = vadd.f32 %v6853, %v6953
  %v6980 = vadd.f32 %v6854, %v6956
  %v6981 = vadd.f32 %v6855, %v6961
  %v6982 = vadd.f32 %v6856, %v6964
  %v6983 = vadd.f32 %v6967, %v3896
  %v6984 = vadd.f32 %v6968, %v3897
  %v6985 = vadd.f32 %v6969, %v3898
  %v6986 = vadd.f32 %v6970, %v3899
  %v6987 = vadd.f32 %v6971, %v3900
  %v6988 = vadd.f32 %v6972, %v3901
  %v6989 = vadd.f32 %v6973, %v3902
  %v6990 = vadd.f32 %v6974, %v3903
  %v6991 = vadd.f32 %v6975, %v3904
  %v6992 = vadd.f32 %v6976, %v3905
  %v6993 = vadd.f32 %v6977, %v3906
  %v6994 = vadd.f32 %v6978, %v3907
  %v6995 = vadd.f32 %v6979, %v3908
  %v6996 = vadd.f32 %v6980, %v3909
  %v6997 = vadd.f32 %v6981, %v3910
  %v6998 = vadd.f32 %v6982, %v3911
  %6999 = vst.msk [vmem:[%s15] sm:$0xff] %vm2587, %v6983
  %7000 = vst.msk [vmem:[%s15 + $0x8] sm:$0xff] %vm2587, %v6984
  %7001 = vst.msk [vmem:[%s15 + $0x10] sm:$0xff] %vm2587, %v6985
  %7002 = vst.msk [vmem:[%s15 + $0x18] sm:$0xff] %vm2587, %v6986
  %7003 = vst.msk [vmem:[%s15 + $0x20] sm:$0xff] %vm2587, %v6987
  %7004 = vst.msk [vmem:[%s15 + $0x28] sm:$0xff] %vm2587, %v6988
  %7005 = vst.msk [vmem:[%s15 + $0x30] sm:$0xff] %vm2587, %v6989
  %7006 = vst.msk [vmem:[%s15 + $0x38] sm:$0xff] %vm2587, %v6990
  %7007 = vst.msk [vmem:[%s15 + $0x40] sm:$0xff] %vm2587, %v6991
  %7008 = vst.msk [vmem:[%s15 + $0x48] sm:$0xff] %vm2587, %v6992
  %7009 = vst.msk [vmem:[%s15 + $0x50] sm:$0xff] %vm2587, %v6993
  %7010 = vst.msk [vmem:[%s15 + $0x58] sm:$0xff] %vm2587, %v6994
  %7011 = vst.msk [vmem:[%s15 + $0x60] sm:$0xff] %vm2587, %v6995
  %7012 = vst.msk [vmem:[%s15 + $0x68] sm:$0xff] %vm2587, %v6996
  %7013 = vst.msk [vmem:[%s15 + $0x70] sm:$0xff] %vm2587, %v6997
  %7014 = vst.msk [vmem:[%s15 + $0x78] sm:$0xff] %vm2587, %v6998
  // Predicated region
  $region62: #{_lambda_.1} parent=0 // pred_check
    _
  $region63: #{_lambda_.1} parent=0 // pred_check_branch
    %7016 = sbr.rel (0) target = $region65
  $region64: #{_lambda_.1} parent=0 // pred_region
    _
  $region65: #{_lambda_.1} parent=0 // pred_fallthru
    _
  // Predicated region
  $region66: #{_lambda_.1} parent=0 // pred_check
    _
  $region67: #{_lambda_.1} parent=0 // pred_check_branch
    %7018 = sbr.rel (0) target = $region69
  $region68: #{_lambda_.1} parent=0 // pred_region
    _
  $region69: #{_lambda_.1} parent=0 // pred_fallthru
    _

</llo_original>
